<compile_context>
chip_gen: v7x
topology: tpu7x:2x2x1
jax: 0.10.0
libtpu: 0.0.40
codegen_flags: <defaults>
</compile_context>

<pallas_src>
import functools

import jax
import jax.numpy as jnp
from jax import lax
from jax.experimental import pallas as pl
from jax.experimental.pallas import tpu as pltpu


def _flash_attn_kernel(scale_ref, q_ref, k_ref, v_ref, o_ref, m_sc, l_sc):
    # scale_ref : SMEM (1,) f32                 (learned scale_factor)
    # q_ref     : VMEM (1, TQ, D)
    # k_ref     : VMEM (1, TK, D)
    # v_ref     : VMEM (1, TK, D)
    # o_ref     : VMEM (1, TQ, D)   resident across the kv axis -> accumulator
    # m_sc/l_sc : VMEM (TQ, 1) f32  running max / running sum
    kv = pl.program_id(2)
    last_kv = pl.num_programs(2) - 1

    # S = (Q @ K^T) * scale. Scale is applied to the (TQ, TK) score tile (small)
    # instead of the (TQ, D) Q tile (8-16x fewer VPU elements per step for this
    # shape). trans_b avoids materializing a K transpose before the MXU.
    s = pl.dot(q_ref[0], k_ref[0], trans_b=True) * scale_ref[0]   # (TQ, TK) f32

    row_max = jnp.max(s, axis=-1, keepdims=True)                  # (TQ, 1)

    @pl.when(kv == 0)
    def _first():
        # First kv tile: accumulator is empty, so skip the alpha-rescale stream
        # entirely (also the only path taken when the kv grid is a single step).
        p = jnp.exp(s - row_max)                                   # (TQ, TK)
        m_sc[...] = row_max
        l_sc[...] = jnp.sum(p, axis=-1, keepdims=True)
        o_ref[0] = jnp.dot(p, v_ref[0], preferred_element_type=jnp.float32)

    @pl.when(kv > 0)
    def _rest():
        # Generic online-softmax update for additional kv tiles.
        m_prev = m_sc[...]
        m_new = jnp.maximum(m_prev, row_max)
        alpha = jnp.exp(m_prev - m_new)
        p = jnp.exp(s - m_new)
        m_sc[...] = m_new
        l_sc[...] = alpha * l_sc[...] + jnp.sum(p, axis=-1, keepdims=True)
        o_ref[0] = alpha * o_ref[0] + jnp.dot(
            p, v_ref[0], preferred_element_type=jnp.float32)

    @pl.when(kv == last_kv)
    def _finalize():
        # Deferred normalization: one per-row reciprocal + a (TQ, D) multiply.
        inv_l = pl.reciprocal(l_sc[...], approx=False)
        o_ref[0] = o_ref[0] * inv_l


def _tensorcores_per_chip():
    # v7x has 2 TensorCores per chip; give the second core a query block there.
    try:
        kind = jax.devices()[0].device_kind.lower()
    except Exception:
        return 1
    return 2 if ("v7" in kind or "7x" in kind) else 1


@functools.partial(jax.jit, static_argnames=("tq", "tk"))
def attention(query, key, value, scale_factor, *, tq=None, tk=None):
    """query: (B, Lq, D), key/value: (B, Lk, D), scale_factor: (1,) f32."""
    B, Lq, D = query.shape
    _, Lk, _ = key.shape

    if tq is None:
        tq = min(128, Lq)
        # With B=1 and a single query block, one v7x TensorCore would idle;
        # splitting tq gives both cores a "parallel" block. No split on 1-TC
        # chips (v5e/v6e) where it would only add a K/V re-read.
        if B * (Lq // tq) < 2 and _tensorcores_per_chip() > 1 and tq % 16 == 0:
            tq //= 2
    if tk is None:
        # Largest kv tile whose double-buffered K+V stays under ~16 MiB.
        # For the module's shape this is the whole Lk, so the kv grid collapses
        # to one step and the rescale machinery never runs.
        tk = Lk
        while tk > 128 and tk % 2 == 0 and 2 * 2 * tk * D * 4 > 16 * 1024 * 1024:
            tk //= 2

    assert Lq % tq == 0 and Lk % tk == 0, "Lq/Lk must divide by the tile sizes"
    assert tq % 8 == 0 and tk % 8 == 0 and D % 128 == 0, "TPU (8,128) tiling"

    grid = (B, Lq // tq, Lk // tk)

    flops = 4 * B * Lq * Lk * D                      # QK^T + PV (mul + add)
    transcendentals = B * Lq * Lk                    # exp
    bytes_accessed = 4 * (query.size + key.size + value.size + B * Lq * D)

    return pl.pallas_call(
        _flash_attn_kernel,
        out_shape=jax.ShapeDtypeStruct((B, Lq, D), query.dtype),
        grid=grid,
        in_specs=[
            pl.BlockSpec(memory_space=pltpu.MemorySpace.SMEM),           # scale
            pl.BlockSpec((1, tq, D), lambda b, qi, ki: (b, qi, 0)),      # Q
            pl.BlockSpec((1, tk, D), lambda b, qi, ki: (b, ki, 0)),      # K
            pl.BlockSpec((1, tk, D), lambda b, qi, ki: (b, ki, 0)),      # V
        ],
        out_specs=pl.BlockSpec((1, tq, D), lambda b, qi, ki: (b, qi, 0)),
        scratch_shapes=[
            pltpu.VMEM((tq, 1), jnp.float32),    # running max
            pltpu.VMEM((tq, 1), jnp.float32),    # running sum
        ],
        compiler_params=pltpu.CompilerParams(
            dimension_semantics=("parallel", "parallel", "arbitrary"),
            vmem_limit_bytes=32 * 1024 * 1024,
        ),
        cost_estimate=pl.CostEstimate(
            flops=flops,
            transcendentals=transcendentals,
            bytes_accessed=bytes_accessed,
        ),
    )(scale_factor, query, key, value)


if __name__ == "__main__":
    # Shapes from the PyTorch spec: query (1, 128, 2048), key/value (1, 256, 2048).
    B, Lq, Lk, D = 1, 128, 256, 2048

    k0, k1, k2 = jax.random.split(jax.random.PRNGKey(0), 3)
    query = jax.random.normal(k0, (B, Lq, D), dtype=jnp.float32)
    key = jax.random.normal(k1, (B, Lk, D), dtype=jnp.float32)
    value = jax.random.normal(k2, (B, Lk, D), dtype=jnp.float32)

    # Parameter init matches the module: scale_factor = ones(1).
    scale_factor = jnp.ones((1,), dtype=jnp.float32)

    out = jax.block_until_ready(attention(query, key, value, scale_factor))

    # Reference in plain JAX (eval-mode dropout = identity), full-f32 matmuls.
    s = jnp.einsum("bqd,bkd->bqk", query, key,
                   precision=lax.Precision.HIGHEST) * scale_factor[0]
    ref = jnp.einsum("bqk,bkd->bqd", jax.nn.softmax(s, axis=-1), value,
                     precision=lax.Precision.HIGHEST)

    assert out.shape == (B, Lq, D)
    # Small slack for MXU f32 multi-pass + softmax reassociation differences.
    assert jnp.allclose(out, ref, atol=5e-3, rtol=5e-3)

    print("KERNEL_OK")
</pallas_src>

<mosaic_0001>
module attributes {stable_mosaic.version = 11 : i64} {
  func.func @_flash_attn_kernel(%arg0: i32, %arg1: i32, %arg2: i32, %arg3: memref<1xf32, #tpu.memory_space<smem>>, %arg4: memref<1x128x2048xf32, #tpu.memory_space<vmem>>, %arg5: memref<1x256x2048xf32, #tpu.memory_space<vmem>>, %arg6: memref<1x256x2048xf32, #tpu.memory_space<vmem>>, %arg7: memref<1x128x2048xf32, #tpu.memory_space<vmem>>, %arg8: memref<128x1xf32, #tpu.memory_space<vmem>>, %arg9: memref<128x1xf32, #tpu.memory_space<vmem>>) attributes {dimension_semantics = [#tpu.dimension_semantics<parallel>, #tpu.dimension_semantics<parallel>, #tpu.dimension_semantics<arbitrary>], iteration_bounds = array<i64: 1, 1, 1>, scalar_prefetch = 0 : i64, scratch_operands = 2 : i64, tpu.core_type = #tpu.core_type<tc>, window_params = [{transform_indices = @transform_0, window_bounds = array<i64: 1>}, {transform_indices = @transform_1, window_bounds = array<i64: 1, 128, 2048>}, {transform_indices = @transform_2, window_bounds = array<i64: 1, 256, 2048>}, {transform_indices = @transform_3, window_bounds = array<i64: 1, 256, 2048>}, {transform_indices = @transform_4, window_bounds = array<i64: 1, 128, 2048>}]} {
    %c0 = arith.constant 0 : index
    %c0_0 = arith.constant 0 : index
    %c0_1 = arith.constant 0 : index
    %0 = vector.load %arg4[%c0, %c0_0, %c0_1] : memref<1x128x2048xf32, #tpu.memory_space<vmem>>, vector<1x128x2048xf32>
    %1 = vector.shape_cast %0 : vector<1x128x2048xf32> to vector<128x2048xf32>
    %c0_2 = arith.constant 0 : index
    %c0_3 = arith.constant 0 : index
    %c0_4 = arith.constant 0 : index
    %2 = vector.load %arg5[%c0_2, %c0_3, %c0_4] : memref<1x256x2048xf32, #tpu.memory_space<vmem>>, vector<1x256x2048xf32>
    %3 = vector.shape_cast %2 : vector<1x256x2048xf32> to vector<256x2048xf32>
    %cst = arith.constant dense<0.000000e+00> : vector<128x256xf32>
    %4 = tpu.matmul %1, %3, %cst {dimension_numbers = #tpu.dot_dimension_numbers<[1], [1], [0], [0], [0, 0, 1, 0], [], []>} : vector<128x2048xf32>, vector<256x2048xf32>, vector<128x256xf32> -> vector<128x256xf32>
    %c0_5 = arith.constant 0 : index
    %5 = memref.load %arg3[%c0_5] : memref<1xf32, #tpu.memory_space<smem>>
    %6 = vector.broadcast %5 : f32 to vector<128x256xf32>
    %7 = arith.mulf %4, %6 : vector<128x256xf32>
    %cst_6 = arith.constant dense<0xFF800000> : vector<128xf32>
    %8 = vector.multi_reduction <maximumf>, %7, %cst_6 [1] : vector<128x256xf32> to vector<128xf32>
    %9 = vector.shape_cast %8 : vector<128xf32> to vector<128x1xf32>
    %c0_i32 = arith.constant 0 : i32
    %10 = arith.cmpi eq, %arg2, %c0_i32 : i32
    %11 = arith.extui %10 : i1 to i32
    %c0_i32_7 = arith.constant 0 : i32
    %12 = arith.cmpi ne, %11, %c0_i32_7 : i32
    scf.if %12 {
      %19 = vector.broadcast %9 : vector<128x1xf32> to vector<128x256xf32>
      %20 = arith.subf %7, %19 : vector<128x256xf32>
      %21 = math.exp %20 : vector<128x256xf32>
      %c0_12 = arith.constant 0 : index
      %c0_13 = arith.constant 0 : index
      %22 = vector.load %arg8[%c0_12, %c0_13] : memref<128x1xf32, #tpu.memory_space<vmem>>, vector<128x1xf32>
      tpu.vector_store %arg8[%c0_12, %c0_13], %9 {strides = array<i32>} : memref<128x1xf32, #tpu.memory_space<vmem>>, vector<128x1xf32>,
      %cst_14 = arith.constant dense<0.000000e+00> : vector<128xf32>
      %23 = vector.multi_reduction <add>, %21, %cst_14 [1] : vector<128x256xf32> to vector<128xf32>
      %24 = vector.shape_cast %23 : vector<128xf32> to vector<128x1xf32>
      %c0_15 = arith.constant 0 : index
      %c0_16 = arith.constant 0 : index
      %25 = vector.load %arg9[%c0_15, %c0_16] : memref<128x1xf32, #tpu.memory_space<vmem>>, vector<128x1xf32>
      tpu.vector_store %arg9[%c0_15, %c0_16], %24 {strides = array<i32>} : memref<128x1xf32, #tpu.memory_space<vmem>>, vector<128x1xf32>,
      %c0_17 = arith.constant 0 : index
      %c0_18 = arith.constant 0 : index
      %c0_19 = arith.constant 0 : index
      %26 = vector.load %arg6[%c0_17, %c0_18, %c0_19] : memref<1x256x2048xf32, #tpu.memory_space<vmem>>, vector<1x256x2048xf32>
      %27 = vector.shape_cast %26 : vector<1x256x2048xf32> to vector<256x2048xf32>
      %cst_20 = arith.constant dense<0.000000e+00> : vector<128x2048xf32>
      %28 = tpu.matmul %21, %27, %cst_20 {dimension_numbers = #tpu.dot_dimension_numbers<[1], [0], [0], [1], [0, 0, 1, 1], [], []>} : vector<128x256xf32>, vector<256x2048xf32>, vector<128x2048xf32> -> vector<128x2048xf32>
      %c0_21 = arith.constant 0 : index
      %c0_22 = arith.constant 0 : index
      %c0_23 = arith.constant 0 : index
      %29 = vector.load %arg7[%c0_21, %c0_22, %c0_23] : memref<1x128x2048xf32, #tpu.memory_space<vmem>>, vector<1x128x2048xf32>
      %30 = vector.shape_cast %29 : vector<1x128x2048xf32> to vector<128x2048xf32>
      %31 = vector.shape_cast %28 : vector<128x2048xf32> to vector<1x128x2048xf32>
      tpu.vector_store %arg7[%c0_21, %c0_22, %c0_23], %31 {strides = array<i32>} : memref<1x128x2048xf32, #tpu.memory_space<vmem>>, vector<1x128x2048xf32>,
    } else {
    }
    %c0_i32_8 = arith.constant 0 : i32
    %13 = arith.cmpi sgt, %arg2, %c0_i32_8 : i32
    %14 = arith.extui %13 : i1 to i32
    %c0_i32_9 = arith.constant 0 : i32
    %15 = arith.cmpi ne, %14, %c0_i32_9 : i32
    scf.if %15 {
      %c0_12 = arith.constant 0 : index
      %c0_13 = arith.constant 0 : index
      %19 = vector.load %arg8[%c0_12, %c0_13] : memref<128x1xf32, #tpu.memory_space<vmem>>, vector<128x1xf32>
      %20 = arith.maximumf %19, %9 : vector<128x1xf32>
      %21 = arith.subf %19, %20 : vector<128x1xf32>
      %22 = math.exp %21 : vector<128x1xf32>
      %23 = vector.broadcast %20 : vector<128x1xf32> to vector<128x256xf32>
      %24 = arith.subf %7, %23 : vector<128x256xf32>
      %25 = math.exp %24 : vector<128x256xf32>
      %c0_14 = arith.constant 0 : index
      %c0_15 = arith.constant 0 : index
      %26 = vector.load %arg8[%c0_14, %c0_15] : memref<128x1xf32, #tpu.memory_space<vmem>>, vector<128x1xf32>
      tpu.vector_store %arg8[%c0_14, %c0_15], %20 {strides = array<i32>} : memref<128x1xf32, #tpu.memory_space<vmem>>, vector<128x1xf32>,
      %c0_16 = arith.constant 0 : index
      %c0_17 = arith.constant 0 : index
      %27 = vector.load %arg9[%c0_16, %c0_17] : memref<128x1xf32, #tpu.memory_space<vmem>>, vector<128x1xf32>
      %28 = arith.mulf %22, %27 : vector<128x1xf32>
      %cst_18 = arith.constant dense<0.000000e+00> : vector<128xf32>
      %29 = vector.multi_reduction <add>, %25, %cst_18 [1] : vector<128x256xf32> to vector<128xf32>
      %30 = vector.shape_cast %29 : vector<128xf32> to vector<128x1xf32>
      %31 = arith.addf %28, %30 : vector<128x1xf32>
      %c0_19 = arith.constant 0 : index
      %c0_20 = arith.constant 0 : index
      %32 = vector.load %arg9[%c0_19, %c0_20] : memref<128x1xf32, #tpu.memory_space<vmem>>, vector<128x1xf32>
      tpu.vector_store %arg9[%c0_19, %c0_20], %31 {strides = array<i32>} : memref<128x1xf32, #tpu.memory_space<vmem>>, vector<128x1xf32>,
      %c0_21 = arith.constant 0 : index
      %c0_22 = arith.constant 0 : index
      %c0_23 = arith.constant 0 : index
      %33 = vector.load %arg7[%c0_21, %c0_22, %c0_23] : memref<1x128x2048xf32, #tpu.memory_space<vmem>>, vector<1x128x2048xf32>
      %34 = vector.shape_cast %33 : vector<1x128x2048xf32> to vector<128x2048xf32>
      %35 = vector.broadcast %22 : vector<128x1xf32> to vector<128x2048xf32>
      %36 = arith.mulf %35, %34 : vector<128x2048xf32>
      %c0_24 = arith.constant 0 : index
      %c0_25 = arith.constant 0 : index
      %c0_26 = arith.constant 0 : index
      %37 = vector.load %arg6[%c0_24, %c0_25, %c0_26] : memref<1x256x2048xf32, #tpu.memory_space<vmem>>, vector<1x256x2048xf32>
      %38 = vector.shape_cast %37 : vector<1x256x2048xf32> to vector<256x2048xf32>
      %cst_27 = arith.constant dense<0.000000e+00> : vector<128x2048xf32>
      %39 = tpu.matmul %25, %38, %cst_27 {dimension_numbers = #tpu.dot_dimension_numbers<[1], [0], [0], [1], [0, 0, 1, 1], [], []>} : vector<128x256xf32>, vector<256x2048xf32>, vector<128x2048xf32> -> vector<128x2048xf32>
      %40 = arith.addf %36, %39 : vector<128x2048xf32>
      %c0_28 = arith.constant 0 : index
      %c0_29 = arith.constant 0 : index
      %c0_30 = arith.constant 0 : index
      %41 = vector.load %arg7[%c0_28, %c0_29, %c0_30] : memref<1x128x2048xf32, #tpu.memory_space<vmem>>, vector<1x128x2048xf32>
      %42 = vector.shape_cast %41 : vector<1x128x2048xf32> to vector<128x2048xf32>
      %43 = vector.shape_cast %40 : vector<128x2048xf32> to vector<1x128x2048xf32>
      tpu.vector_store %arg7[%c0_28, %c0_29, %c0_30], %43 {strides = array<i32>} : memref<1x128x2048xf32, #tpu.memory_space<vmem>>, vector<1x128x2048xf32>,
    } else {
    }
    %c0_i32_10 = arith.constant 0 : i32
    %16 = arith.cmpi eq, %arg2, %c0_i32_10 : i32
    %17 = arith.extui %16 : i1 to i32
    %c0_i32_11 = arith.constant 0 : i32
    %18 = arith.cmpi ne, %17, %c0_i32_11 : i32
    scf.if %18 {
      %c0_12 = arith.constant 0 : index
      %c0_13 = arith.constant 0 : index
      %19 = vector.load %arg9[%c0_12, %c0_13] : memref<128x1xf32, #tpu.memory_space<vmem>>, vector<128x1xf32>
      %20 = tpu.reciprocal %19 : vector<128x1xf32> -> vector<128x1xf32>
      %c0_14 = arith.constant 0 : index
      %c0_15 = arith.constant 0 : index
      %c0_16 = arith.constant 0 : index
      %21 = vector.load %arg7[%c0_14, %c0_15, %c0_16] : memref<1x128x2048xf32, #tpu.memory_space<vmem>>, vector<1x128x2048xf32>
      %22 = vector.shape_cast %21 : vector<1x128x2048xf32> to vector<128x2048xf32>
      %23 = vector.broadcast %20 : vector<128x1xf32> to vector<128x2048xf32>
      %24 = arith.mulf %22, %23 : vector<128x2048xf32>
      %c0_17 = arith.constant 0 : index
      %c0_18 = arith.constant 0 : index
      %c0_19 = arith.constant 0 : index
      %25 = vector.load %arg7[%c0_17, %c0_18, %c0_19] : memref<1x128x2048xf32, #tpu.memory_space<vmem>>, vector<1x128x2048xf32>
      %26 = vector.shape_cast %25 : vector<1x128x2048xf32> to vector<128x2048xf32>
      %27 = vector.shape_cast %24 : vector<128x2048xf32> to vector<1x128x2048xf32>
      tpu.vector_store %arg7[%c0_17, %c0_18, %c0_19], %27 {strides = array<i32>} : memref<1x128x2048xf32, #tpu.memory_space<vmem>>, vector<1x128x2048xf32>,
    } else {
    }
    return
  }
  func.func @transform_0(%arg0: i32, %arg1: i32, %arg2: i32) -> i32 {
    %c0_i32 = arith.constant 0 : i32
    %c0_i32_0 = arith.constant 0 : i32
    return %c0_i32 : i32
  }
  func.func @transform_1(%arg0: i32, %arg1: i32, %arg2: i32) -> (i32, i32, i32) {
    %c0_i32 = arith.constant 0 : i32
    %c0_i32_0 = arith.constant 0 : i32
    return %arg0, %arg1, %c0_i32 : i32, i32, i32
  }
  func.func @transform_2(%arg0: i32, %arg1: i32, %arg2: i32) -> (i32, i32, i32) {
    %c0_i32 = arith.constant 0 : i32
    %c0_i32_0 = arith.constant 0 : i32
    return %arg0, %arg2, %c0_i32 : i32, i32, i32
  }
  func.func @transform_3(%arg0: i32, %arg1: i32, %arg2: i32) -> (i32, i32, i32) {
    %c0_i32 = arith.constant 0 : i32
    %c0_i32_0 = arith.constant 0 : i32
    return %arg0, %arg2, %c0_i32 : i32, i32, i32
  }
  func.func @transform_4(%arg0: i32, %arg1: i32, %arg2: i32) -> (i32, i32, i32) {
    %c0_i32 = arith.constant 0 : i32
    %c0_i32_0 = arith.constant 0 : i32
    return %arg0, %arg1, %c0_i32 : i32, i32, i32
  }
}

</mosaic_0001>

<llo_original>
// kernel: attention.1
$region0: #{attention.1}
  #allocation0 [shape = 'u32[]', space=smem, size = 0x4, offset = 0x4, fixed_abs, tag = 'smem constant byte address 0x4 - core index']
  #allocation1 [shape = 'u32[144,128]{1,0:T(1,128)}', space=vmem, size = 0x12000, scoped, tag = 'internal scratch']
  #allocation2 [shape = 'f32[128,1]{1,0:T(8,128)}', space=vmem, size = 0x10000, scoped, tag = 'scratch operand']
  #allocation3 [shape = 'f32[128,1]{1,0:T(8,128)}', space=vmem, size = 0x10000, scoped, tag = 'scratch operand']
  #allocation4 [shape = 'f32[1]{0:T(128)S(6)}', space=smem, size = 0x200, scoped, tag = 'scoped memory for attention.1']
  %s0 = inlined_call_operand.<no memory space> [shape: f32[1], index: 0, kind: input, shape index: {}]
  %s1 = inlined_call_operand.hbm [shape: f32[1,128,2048], index: 1, kind: input, shape index: {}]
  %s2 = inlined_call_operand.hbm [shape: f32[1,256,2048], index: 2, kind: input, shape index: {}]
  %s3 = inlined_call_operand.hbm [shape: f32[1,256,2048], index: 3, kind: input, shape index: {}]
  %s4 = inlined_call_operand.hbm [shape: f32[1,128,2048], index: 4, kind: output, shape index: {}]
  %s5 = sld [smem:[#allocation0]]
  $region50: #{attention.1} parent=0
    _
  %s7 = ssub.s32 1, %s5
  %s8 = scalar_select 0, %s7, %s5
  %9 = sst [smem:[#allocation4]] %s0
  $region1: #{attention.1} parent=0
    #allocation5 [shape = 'u8[1048576]{0}', space=vmem, size = 0x100000, scoped, tag = 'input window, operand 1, single buffered']
    #allocation6 [shape = 's32[1]{0}', space=sflag, size = 0x4, scoped, tag = 'scoped memory for attention.1']
    #allocation7 [shape = 's32[1]{0}', space=sflag, size = 0x4, scoped, tag = 'scoped memory for attention.1']
    #allocation8 [shape = 'u8[2097152]{0}', space=vmem, size = 0x200000, scoped, tag = 'input window, operand 2, single buffered']
    #allocation9 [shape = 's32[1]{0}', space=sflag, size = 0x4, scoped, tag = 'scoped memory for attention.1']
    #allocation10 [shape = 'u8[2097152]{0}', space=vmem, size = 0x200000, scoped, tag = 'input window, operand 3, single buffered']
    #allocation11 [shape = 'u8[1048576]{0}', space=vmem, size = 0x100000, scoped, tag = 'output window, operand 0, single buffered']
    %10 = vsyncpa [#allocation6], 0
    %11 = vsyncpa [#allocation9], 0
    %12 = vsyncpa [#allocation7], 0
    // Predicated region
    $region2: #{attention.1} parent=1 // pred_check
      _
    $region3: #{attention.1} parent=1 // pred_check_branch
      %14 = sbr.rel (0) target = $region5
    $region4: #{attention.1} parent=1 // pred_region
      _
    $region5: #{attention.1} parent=1 // pred_fallthru
      _
    // Predicated region
    $region6: #{attention.1} parent=1 // pred_check
      _
    $region7: #{attention.1} parent=1 // pred_check_branch
      %16 = sbr.rel (0) target = $region9
    $region8: #{attention.1} parent=1 // pred_region
      %s18 = ssub.s32 32768, 32768
      %19 = vsyncadd [#allocation6], %s18
      %s20 = sshll.u32 [#allocation5], 4
      %s21 = int_to_ptr.vmem [resolvable:$true] %s20
      %26 = dma.hbm_to_vmem [thread:$0]  %s1, 32768, %s21, [#allocation6], 2048, 2048, 128
    $region9: #{attention.1} parent=1 // pred_fallthru
      _
    // Predicated region
    $region10: #{attention.1} parent=1 // pred_check
      _
    $region11: #{attention.1} parent=1 // pred_check_branch
      %28 = sbr.rel (0) target = $region13
    $region12: #{attention.1} parent=1 // pred_region
      %s30 = ssub.s32 65536, 65536
      %31 = vsyncadd [#allocation9], %s30
      %s32 = sshll.u32 [#allocation8], 4
      %s33 = int_to_ptr.vmem [resolvable:$true] %s32
      %38 = dma.hbm_to_vmem [thread:$0]  %s2, 65536, %s33, [#allocation9], 2048, 2048, 128
    $region13: #{attention.1} parent=1 // pred_fallthru
      _
    // Predicated region
    $region14: #{attention.1} parent=1 // pred_check
      _
    $region15: #{attention.1} parent=1 // pred_check_branch
      %40 = sbr.rel (0) target = $region17
    $region16: #{attention.1} parent=1 // pred_region
      %s42 = ssub.s32 65536, 65536
      %43 = vsyncadd [#allocation9], %s42
      %s44 = sshll.u32 [#allocation10], 4
      %s45 = int_to_ptr.vmem [resolvable:$true] %s44
      %50 = dma.hbm_to_vmem [thread:$0]  %s3, 65536, %s45, [#allocation9], 2048, 2048, 128
    $region17: #{attention.1} parent=1 // pred_fallthru
      _
    // Predicated region
    $region18: #{attention.1} parent=1 // pred_check
      _
    $region19: #{attention.1} parent=1 // pred_check_branch
      %52 = sbr.rel (0) target = $region21
    $region20: #{attention.1} parent=1 // pred_region
      %53 = dma.done [#allocation6], 32768
    $region21: #{attention.1} parent=1 // pred_fallthru
      _
    // Predicated region
    $region22: #{attention.1} parent=1 // pred_check
      _
    $region23: #{attention.1} parent=1 // pred_check_branch
      %55 = sbr.rel (0) target = $region25
    $region24: #{attention.1} parent=1 // pred_region
      %56 = dma.done [#allocation9], 65536
    $region25: #{attention.1} parent=1 // pred_fallthru
      _
    // Predicated region
    $region26: #{attention.1} parent=1 // pred_check
      _
    $region27: #{attention.1} parent=1 // pred_check_branch
      %58 = sbr.rel (0) target = $region29
    $region28: #{attention.1} parent=1 // pred_region
      %59 = dma.done [#allocation9], 65536
    $region29: #{attention.1} parent=1 // pred_fallthru
      _
    %v60 = vld [vmem:[#allocation5] sm:$0xff]
    %v61 = vld [vmem:[#allocation5 + $0x8] sm:$0xff]
    %v62 = vld [vmem:[#allocation5 + $0x10] sm:$0xff]
    %v63 = vld [vmem:[#allocation5 + $0x18] sm:$0xff]
    %v64 = vld [vmem:[#allocation5 + $0x20] sm:$0xff]
    %v65 = vld [vmem:[#allocation5 + $0x28] sm:$0xff]
    %v66 = vld [vmem:[#allocation5 + $0x30] sm:$0xff]
    %v67 = vld [vmem:[#allocation5 + $0x38] sm:$0xff]
    %v68 = vld [vmem:[#allocation5 + $0x40] sm:$0xff]
    %v69 = vld [vmem:[#allocation5 + $0x48] sm:$0xff]
    %v70 = vld [vmem:[#allocation5 + $0x50] sm:$0xff]
    %v71 = vld [vmem:[#allocation5 + $0x58] sm:$0xff]
    %v72 = vld [vmem:[#allocation5 + $0x60] sm:$0xff]
    %v73 = vld [vmem:[#allocation5 + $0x68] sm:$0xff]
    %v74 = vld [vmem:[#allocation5 + $0x70] sm:$0xff]
    %v75 = vld [vmem:[#allocation5 + $0x78] sm:$0xff]
    %v76 = vld [vmem:[#allocation5 + $0x80] sm:$0xff]
    %v77 = vld [vmem:[#allocation5 + $0x88] sm:$0xff]
    %v78 = vld [vmem:[#allocation5 + $0x90] sm:$0xff]
    %v79 = vld [vmem:[#allocation5 + $0x98] sm:$0xff]
    %v80 = vld [vmem:[#allocation5 + $0xa0] sm:$0xff]
    %v81 = vld [vmem:[#allocation5 + $0xa8] sm:$0xff]
    %v82 = vld [vmem:[#allocation5 + $0xb0] sm:$0xff]
    %v83 = vld [vmem:[#allocation5 + $0xb8] sm:$0xff]
    %v84 = vld [vmem:[#allocation5 + $0xc0] sm:$0xff]
    %v85 = vld [vmem:[#allocation5 + $0xc8] sm:$0xff]
    %v86 = vld [vmem:[#allocation5 + $0xd0] sm:$0xff]
    %v87 = vld [vmem:[#allocation5 + $0xd8] sm:$0xff]
    %v88 = vld [vmem:[#allocation5 + $0xe0] sm:$0xff]
    %v89 = vld [vmem:[#allocation5 + $0xe8] sm:$0xff]
    %v90 = vld [vmem:[#allocation5 + $0xf0] sm:$0xff]
    %v91 = vld [vmem:[#allocation5 + $0xf8] sm:$0xff]
    %v92 = vld [vmem:[#allocation5 + $0x100] sm:$0xff]
    %v93 = vld [vmem:[#allocation5 + $0x108] sm:$0xff]
    %v94 = vld [vmem:[#allocation5 + $0x110] sm:$0xff]
    %v95 = vld [vmem:[#allocation5 + $0x118] sm:$0xff]
    %v96 = vld [vmem:[#allocation5 + $0x120] sm:$0xff]
    %v97 = vld [vmem:[#allocation5 + $0x128] sm:$0xff]
    %v98 = vld [vmem:[#allocation5 + $0x130] sm:$0xff]
    %v99 = vld [vmem:[#allocation5 + $0x138] sm:$0xff]
    %v100 = vld [vmem:[#allocation5 + $0x140] sm:$0xff]
    %v101 = vld [vmem:[#allocation5 + $0x148] sm:$0xff]
    %v102 = vld [vmem:[#allocation5 + $0x150] sm:$0xff]
    %v103 = vld [vmem:[#allocation5 + $0x158] sm:$0xff]
    %v104 = vld [vmem:[#allocation5 + $0x160] sm:$0xff]
    %v105 = vld [vmem:[#allocation5 + $0x168] sm:$0xff]
    %v106 = vld [vmem:[#allocation5 + $0x170] sm:$0xff]
    %v107 = vld [vmem:[#allocation5 + $0x178] sm:$0xff]
    %v108 = vld [vmem:[#allocation5 + $0x180] sm:$0xff]
    %v109 = vld [vmem:[#allocation5 + $0x188] sm:$0xff]
    %v110 = vld [vmem:[#allocation5 + $0x190] sm:$0xff]
    %v111 = vld [vmem:[#allocation5 + $0x198] sm:$0xff]
    %v112 = vld [vmem:[#allocation5 + $0x1a0] sm:$0xff]
    %v113 = vld [vmem:[#allocation5 + $0x1a8] sm:$0xff]
    %v114 = vld [vmem:[#allocation5 + $0x1b0] sm:$0xff]
    %v115 = vld [vmem:[#allocation5 + $0x1b8] sm:$0xff]
    %v116 = vld [vmem:[#allocation5 + $0x1c0] sm:$0xff]
    %v117 = vld [vmem:[#allocation5 + $0x1c8] sm:$0xff]
    %v118 = vld [vmem:[#allocation5 + $0x1d0] sm:$0xff]
    %v119 = vld [vmem:[#allocation5 + $0x1d8] sm:$0xff]
    %v120 = vld [vmem:[#allocation5 + $0x1e0] sm:$0xff]
    %v121 = vld [vmem:[#allocation5 + $0x1e8] sm:$0xff]
    %v122 = vld [vmem:[#allocation5 + $0x1f0] sm:$0xff]
    %v123 = vld [vmem:[#allocation5 + $0x1f8] sm:$0xff]
    %v124 = vld [vmem:[#allocation5 + $0x200] sm:$0xff]
    %v125 = vld [vmem:[#allocation5 + $0x208] sm:$0xff]
    %v126 = vld [vmem:[#allocation5 + $0x210] sm:$0xff]
    %v127 = vld [vmem:[#allocation5 + $0x218] sm:$0xff]
    %v128 = vld [vmem:[#allocation5 + $0x220] sm:$0xff]
    %v129 = vld [vmem:[#allocation5 + $0x228] sm:$0xff]
    %v130 = vld [vmem:[#allocation5 + $0x230] sm:$0xff]
    %v131 = vld [vmem:[#allocation5 + $0x238] sm:$0xff]
    %v132 = vld [vmem:[#allocation5 + $0x240] sm:$0xff]
    %v133 = vld [vmem:[#allocation5 + $0x248] sm:$0xff]
    %v134 = vld [vmem:[#allocation5 + $0x250] sm:$0xff]
    %v135 = vld [vmem:[#allocation5 + $0x258] sm:$0xff]
    %v136 = vld [vmem:[#allocation5 + $0x260] sm:$0xff]
    %v137 = vld [vmem:[#allocation5 + $0x268] sm:$0xff]
    %v138 = vld [vmem:[#allocation5 + $0x270] sm:$0xff]
    %v139 = vld [vmem:[#allocation5 + $0x278] sm:$0xff]
    %v140 = vld [vmem:[#allocation5 + $0x280] sm:$0xff]
    %v141 = vld [vmem:[#allocation5 + $0x288] sm:$0xff]
    %v142 = vld [vmem:[#allocation5 + $0x290] sm:$0xff]
    %v143 = vld [vmem:[#allocation5 + $0x298] sm:$0xff]
    %v144 = vld [vmem:[#allocation5 + $0x2a0] sm:$0xff]
    %v145 = vld [vmem:[#allocation5 + $0x2a8] sm:$0xff]
    %v146 = vld [vmem:[#allocation5 + $0x2b0] sm:$0xff]
    %v147 = vld [vmem:[#allocation5 + $0x2b8] sm:$0xff]
    %v148 = vld [vmem:[#allocation5 + $0x2c0] sm:$0xff]
    %v149 = vld [vmem:[#allocation5 + $0x2c8] sm:$0xff]
    %v150 = vld [vmem:[#allocation5 + $0x2d0] sm:$0xff]
    %v151 = vld [vmem:[#allocation5 + $0x2d8] sm:$0xff]
    %v152 = vld [vmem:[#allocation5 + $0x2e0] sm:$0xff]
    %v153 = vld [vmem:[#allocation5 + $0x2e8] sm:$0xff]
    %v154 = vld [vmem:[#allocation5 + $0x2f0] sm:$0xff]
    %v155 = vld [vmem:[#allocation5 + $0x2f8] sm:$0xff]
    %v156 = vld [vmem:[#allocation5 + $0x300] sm:$0xff]
    %v157 = vld [vmem:[#allocation5 + $0x308] sm:$0xff]
    %v158 = vld [vmem:[#allocation5 + $0x310] sm:$0xff]
    %v159 = vld [vmem:[#allocation5 + $0x318] sm:$0xff]
    %v160 = vld [vmem:[#allocation5 + $0x320] sm:$0xff]
    %v161 = vld [vmem:[#allocation5 + $0x328] sm:$0xff]
    %v162 = vld [vmem:[#allocation5 + $0x330] sm:$0xff]
    %v163 = vld [vmem:[#allocation5 + $0x338] sm:$0xff]
    %v164 = vld [vmem:[#allocation5 + $0x340] sm:$0xff]
    %v165 = vld [vmem:[#allocation5 + $0x348] sm:$0xff]
    %v166 = vld [vmem:[#allocation5 + $0x350] sm:$0xff]
    %v167 = vld [vmem:[#allocation5 + $0x358] sm:$0xff]
    %v168 = vld [vmem:[#allocation5 + $0x360] sm:$0xff]
    %v169 = vld [vmem:[#allocation5 + $0x368] sm:$0xff]
    %v170 = vld [vmem:[#allocation5 + $0x370] sm:$0xff]
    %v171 = vld [vmem:[#allocation5 + $0x378] sm:$0xff]
    %v172 = vld [vmem:[#allocation5 + $0x380] sm:$0xff]
    %v173 = vld [vmem:[#allocation5 + $0x388] sm:$0xff]
    %v174 = vld [vmem:[#allocation5 + $0x390] sm:$0xff]
    %v175 = vld [vmem:[#allocation5 + $0x398] sm:$0xff]
    %v176 = vld [vmem:[#allocation5 + $0x3a0] sm:$0xff]
    %v177 = vld [vmem:[#allocation5 + $0x3a8] sm:$0xff]
    %v178 = vld [vmem:[#allocation5 + $0x3b0] sm:$0xff]
    %v179 = vld [vmem:[#allocation5 + $0x3b8] sm:$0xff]
    %v180 = vld [vmem:[#allocation5 + $0x3c0] sm:$0xff]
    %v181 = vld [vmem:[#allocation5 + $0x3c8] sm:$0xff]
    %v182 = vld [vmem:[#allocation5 + $0x3d0] sm:$0xff]
    %v183 = vld [vmem:[#allocation5 + $0x3d8] sm:$0xff]
    %v184 = vld [vmem:[#allocation5 + $0x3e0] sm:$0xff]
    %v185 = vld [vmem:[#allocation5 + $0x3e8] sm:$0xff]
    %v186 = vld [vmem:[#allocation5 + $0x3f0] sm:$0xff]
    %v187 = vld [vmem:[#allocation5 + $0x3f8] sm:$0xff]
    %v188 = vld [vmem:[#allocation5 + $0x400] sm:$0xff]
    %v189 = vld [vmem:[#allocation5 + $0x408] sm:$0xff]
    %v190 = vld [vmem:[#allocation5 + $0x410] sm:$0xff]
    %v191 = vld [vmem:[#allocation5 + $0x418] sm:$0xff]
    %v192 = vld [vmem:[#allocation5 + $0x420] sm:$0xff]
    %v193 = vld [vmem:[#allocation5 + $0x428] sm:$0xff]
    %v194 = vld [vmem:[#allocation5 + $0x430] sm:$0xff]
    %v195 = vld [vmem:[#allocation5 + $0x438] sm:$0xff]
    %v196 = vld [vmem:[#allocation5 + $0x440] sm:$0xff]
    %v197 = vld [vmem:[#allocation5 + $0x448] sm:$0xff]
    %v198 = vld [vmem:[#allocation5 + $0x450] sm:$0xff]
    %v199 = vld [vmem:[#allocation5 + $0x458] sm:$0xff]
    %v200 = vld [vmem:[#allocation5 + $0x460] sm:$0xff]
    %v201 = vld [vmem:[#allocation5 + $0x468] sm:$0xff]
    %v202 = vld [vmem:[#allocation5 + $0x470] sm:$0xff]
    %v203 = vld [vmem:[#allocation5 + $0x478] sm:$0xff]
    %v204 = vld [vmem:[#allocation5 + $0x480] sm:$0xff]
    %v205 = vld [vmem:[#allocation5 + $0x488] sm:$0xff]
    %v206 = vld [vmem:[#allocation5 + $0x490] sm:$0xff]
    %v207 = vld [vmem:[#allocation5 + $0x498] sm:$0xff]
    %v208 = vld [vmem:[#allocation5 + $0x4a0] sm:$0xff]
    %v209 = vld [vmem:[#allocation5 + $0x4a8] sm:$0xff]
    %v210 = vld [vmem:[#allocation5 + $0x4b0] sm:$0xff]
    %v211 = vld [vmem:[#allocation5 + $0x4b8] sm:$0xff]
    %v212 = vld [vmem:[#allocation5 + $0x4c0] sm:$0xff]
    %v213 = vld [vmem:[#allocation5 + $0x4c8] sm:$0xff]
    %v214 = vld [vmem:[#allocation5 + $0x4d0] sm:$0xff]
    %v215 = vld [vmem:[#allocation5 + $0x4d8] sm:$0xff]
    %v216 = vld [vmem:[#allocation5 + $0x4e0] sm:$0xff]
    %v217 = vld [vmem:[#allocation5 + $0x4e8] sm:$0xff]
    %v218 = vld [vmem:[#allocation5 + $0x4f0] sm:$0xff]
    %v219 = vld [vmem:[#allocation5 + $0x4f8] sm:$0xff]
    %v220 = vld [vmem:[#allocation5 + $0x500] sm:$0xff]
    %v221 = vld [vmem:[#allocation5 + $0x508] sm:$0xff]
    %v222 = vld [vmem:[#allocation5 + $0x510] sm:$0xff]
    %v223 = vld [vmem:[#allocation5 + $0x518] sm:$0xff]
    %v224 = vld [vmem:[#allocation5 + $0x520] sm:$0xff]
    %v225 = vld [vmem:[#allocation5 + $0x528] sm:$0xff]
    %v226 = vld [vmem:[#allocation5 + $0x530] sm:$0xff]
    %v227 = vld [vmem:[#allocation5 + $0x538] sm:$0xff]
    %v228 = vld [vmem:[#allocation5 + $0x540] sm:$0xff]
    %v229 = vld [vmem:[#allocation5 + $0x548] sm:$0xff]
    %v230 = vld [vmem:[#allocation5 + $0x550] sm:$0xff]
    %v231 = vld [vmem:[#allocation5 + $0x558] sm:$0xff]
    %v232 = vld [vmem:[#allocation5 + $0x560] sm:$0xff]
    %v233 = vld [vmem:[#allocation5 + $0x568] sm:$0xff]
    %v234 = vld [vmem:[#allocation5 + $0x570] sm:$0xff]
    %v235 = vld [vmem:[#allocation5 + $0x578] sm:$0xff]
    %v236 = vld [vmem:[#allocation5 + $0x580] sm:$0xff]
    %v237 = vld [vmem:[#allocation5 + $0x588] sm:$0xff]
    %v238 = vld [vmem:[#allocation5 + $0x590] sm:$0xff]
    %v239 = vld [vmem:[#allocation5 + $0x598] sm:$0xff]
    %v240 = vld [vmem:[#allocation5 + $0x5a0] sm:$0xff]
    %v241 = vld [vmem:[#allocation5 + $0x5a8] sm:$0xff]
    %v242 = vld [vmem:[#allocation5 + $0x5b0] sm:$0xff]
    %v243 = vld [vmem:[#allocation5 + $0x5b8] sm:$0xff]
    %v244 = vld [vmem:[#allocation5 + $0x5c0] sm:$0xff]
    %v245 = vld [vmem:[#allocation5 + $0x5c8] sm:$0xff]
    %v246 = vld [vmem:[#allocation5 + $0x5d0] sm:$0xff]
    %v247 = vld [vmem:[#allocation5 + $0x5d8] sm:$0xff]
    %v248 = vld [vmem:[#allocation5 + $0x5e0] sm:$0xff]
    %v249 = vld [vmem:[#allocation5 + $0x5e8] sm:$0xff]
    %v250 = vld [vmem:[#allocation5 + $0x5f0] sm:$0xff]
    %v251 = vld [vmem:[#allocation5 + $0x5f8] sm:$0xff]
    %v252 = vld [vmem:[#allocation5 + $0x600] sm:$0xff]
    %v253 = vld [vmem:[#allocation5 + $0x608] sm:$0xff]
    %v254 = vld [vmem:[#allocation5 + $0x610] sm:$0xff]
    %v255 = vld [vmem:[#allocation5 + $0x618] sm:$0xff]
    %v256 = vld [vmem:[#allocation5 + $0x620] sm:$0xff]
    %v257 = vld [vmem:[#allocation5 + $0x628] sm:$0xff]
    %v258 = vld [vmem:[#allocation5 + $0x630] sm:$0xff]
    %v259 = vld [vmem:[#allocation5 + $0x638] sm:$0xff]
    %v260 = vld [vmem:[#allocation5 + $0x640] sm:$0xff]
    %v261 = vld [vmem:[#allocation5 + $0x648] sm:$0xff]
    %v262 = vld [vmem:[#allocation5 + $0x650] sm:$0xff]
    %v263 = vld [vmem:[#allocation5 + $0x658] sm:$0xff]
    %v264 = vld [vmem:[#allocation5 + $0x660] sm:$0xff]
    %v265 = vld [vmem:[#allocation5 + $0x668] sm:$0xff]
    %v266 = vld [vmem:[#allocation5 + $0x670] sm:$0xff]
    %v267 = vld [vmem:[#allocation5 + $0x678] sm:$0xff]
    %v268 = vld [vmem:[#allocation5 + $0x680] sm:$0xff]
    %v269 = vld [vmem:[#allocation5 + $0x688] sm:$0xff]
    %v270 = vld [vmem:[#allocation5 + $0x690] sm:$0xff]
    %v271 = vld [vmem:[#allocation5 + $0x698] sm:$0xff]
    %v272 = vld [vmem:[#allocation5 + $0x6a0] sm:$0xff]
    %v273 = vld [vmem:[#allocation5 + $0x6a8] sm:$0xff]
    %v274 = vld [vmem:[#allocation5 + $0x6b0] sm:$0xff]
    %v275 = vld [vmem:[#allocation5 + $0x6b8] sm:$0xff]
    %v276 = vld [vmem:[#allocation5 + $0x6c0] sm:$0xff]
    %v277 = vld [vmem:[#allocation5 + $0x6c8] sm:$0xff]
    %v278 = vld [vmem:[#allocation5 + $0x6d0] sm:$0xff]
    %v279 = vld [vmem:[#allocation5 + $0x6d8] sm:$0xff]
    %v280 = vld [vmem:[#allocation5 + $0x6e0] sm:$0xff]
    %v281 = vld [vmem:[#allocation5 + $0x6e8] sm:$0xff]
    %v282 = vld [vmem:[#allocation5 + $0x6f0] sm:$0xff]
    %v283 = vld [vmem:[#allocation5 + $0x6f8] sm:$0xff]
    %v284 = vld [vmem:[#allocation5 + $0x700] sm:$0xff]
    %v285 = vld [vmem:[#allocation5 + $0x708] sm:$0xff]
    %v286 = vld [vmem:[#allocation5 + $0x710] sm:$0xff]
    %v287 = vld [vmem:[#allocation5 + $0x718] sm:$0xff]
    %v288 = vld [vmem:[#allocation5 + $0x720] sm:$0xff]
    %v289 = vld [vmem:[#allocation5 + $0x728] sm:$0xff]
    %v290 = vld [vmem:[#allocation5 + $0x730] sm:$0xff]
    %v291 = vld [vmem:[#allocation5 + $0x738] sm:$0xff]
    %v292 = vld [vmem:[#allocation5 + $0x740] sm:$0xff]
    %v293 = vld [vmem:[#allocation5 + $0x748] sm:$0xff]
    %v294 = vld [vmem:[#allocation5 + $0x750] sm:$0xff]
    %v295 = vld [vmem:[#allocation5 + $0x758] sm:$0xff]
    %v296 = vld [vmem:[#allocation5 + $0x760] sm:$0xff]
    %v297 = vld [vmem:[#allocation5 + $0x768] sm:$0xff]
    %v298 = vld [vmem:[#allocation5 + $0x770] sm:$0xff]
    %v299 = vld [vmem:[#allocation5 + $0x778] sm:$0xff]
    %v300 = vld [vmem:[#allocation5 + $0x780] sm:$0xff]
    %v301 = vld [vmem:[#allocation5 + $0x788] sm:$0xff]
    %v302 = vld [vmem:[#allocation5 + $0x790] sm:$0xff]
    %v303 = vld [vmem:[#allocation5 + $0x798] sm:$0xff]
    %v304 = vld [vmem:[#allocation5 + $0x7a0] sm:$0xff]
    %v305 = vld [vmem:[#allocation5 + $0x7a8] sm:$0xff]
    %v306 = vld [vmem:[#allocation5 + $0x7b0] sm:$0xff]
    %v307 = vld [vmem:[#allocation5 + $0x7b8] sm:$0xff]
    %v308 = vld [vmem:[#allocation5 + $0x7c0] sm:$0xff]
    %v309 = vld [vmem:[#allocation5 + $0x7c8] sm:$0xff]
    %v310 = vld [vmem:[#allocation5 + $0x7d0] sm:$0xff]
    %v311 = vld [vmem:[#allocation5 + $0x7d8] sm:$0xff]
    %v312 = vld [vmem:[#allocation5 + $0x7e0] sm:$0xff]
    %v313 = vld [vmem:[#allocation5 + $0x7e8] sm:$0xff]
    %v314 = vld [vmem:[#allocation5 + $0x7f0] sm:$0xff]
    %v315 = vld [vmem:[#allocation5 + $0x7f8] sm:$0xff]
    %v316 = vld [vmem:[#allocation8] sm:$0xff]
    %v317 = vld [vmem:[#allocation8 + $0x8] sm:$0xff]
    %v318 = vld [vmem:[#allocation8 + $0x10] sm:$0xff]
    %v319 = vld [vmem:[#allocation8 + $0x18] sm:$0xff]
    %v320 = vld [vmem:[#allocation8 + $0x20] sm:$0xff]
    %v321 = vld [vmem:[#allocation8 + $0x28] sm:$0xff]
    %v322 = vld [vmem:[#allocation8 + $0x30] sm:$0xff]
    %v323 = vld [vmem:[#allocation8 + $0x38] sm:$0xff]
    %v324 = vld [vmem:[#allocation8 + $0x40] sm:$0xff]
    %v325 = vld [vmem:[#allocation8 + $0x48] sm:$0xff]
    %v326 = vld [vmem:[#allocation8 + $0x50] sm:$0xff]
    %v327 = vld [vmem:[#allocation8 + $0x58] sm:$0xff]
    %v328 = vld [vmem:[#allocation8 + $0x60] sm:$0xff]
    %v329 = vld [vmem:[#allocation8 + $0x68] sm:$0xff]
    %v330 = vld [vmem:[#allocation8 + $0x70] sm:$0xff]
    %v331 = vld [vmem:[#allocation8 + $0x78] sm:$0xff]
    %v332 = vld [vmem:[#allocation8 + $0x80] sm:$0xff]
    %v333 = vld [vmem:[#allocation8 + $0x88] sm:$0xff]
    %v334 = vld [vmem:[#allocation8 + $0x90] sm:$0xff]
    %v335 = vld [vmem:[#allocation8 + $0x98] sm:$0xff]
    %v336 = vld [vmem:[#allocation8 + $0xa0] sm:$0xff]
    %v337 = vld [vmem:[#allocation8 + $0xa8] sm:$0xff]
    %v338 = vld [vmem:[#allocation8 + $0xb0] sm:$0xff]
    %v339 = vld [vmem:[#allocation8 + $0xb8] sm:$0xff]
    %v340 = vld [vmem:[#allocation8 + $0xc0] sm:$0xff]
    %v341 = vld [vmem:[#allocation8 + $0xc8] sm:$0xff]
    %v342 = vld [vmem:[#allocation8 + $0xd0] sm:$0xff]
    %v343 = vld [vmem:[#allocation8 + $0xd8] sm:$0xff]
    %v344 = vld [vmem:[#allocation8 + $0xe0] sm:$0xff]
    %v345 = vld [vmem:[#allocation8 + $0xe8] sm:$0xff]
    %v346 = vld [vmem:[#allocation8 + $0xf0] sm:$0xff]
    %v347 = vld [vmem:[#allocation8 + $0xf8] sm:$0xff]
    %v348 = vld [vmem:[#allocation8 + $0x100] sm:$0xff]
    %v349 = vld [vmem:[#allocation8 + $0x108] sm:$0xff]
    %v350 = vld [vmem:[#allocation8 + $0x110] sm:$0xff]
    %v351 = vld [vmem:[#allocation8 + $0x118] sm:$0xff]
    %v352 = vld [vmem:[#allocation8 + $0x120] sm:$0xff]
    %v353 = vld [vmem:[#allocation8 + $0x128] sm:$0xff]
    %v354 = vld [vmem:[#allocation8 + $0x130] sm:$0xff]
    %v355 = vld [vmem:[#allocation8 + $0x138] sm:$0xff]
    %v356 = vld [vmem:[#allocation8 + $0x140] sm:$0xff]
    %v357 = vld [vmem:[#allocation8 + $0x148] sm:$0xff]
    %v358 = vld [vmem:[#allocation8 + $0x150] sm:$0xff]
    %v359 = vld [vmem:[#allocation8 + $0x158] sm:$0xff]
    %v360 = vld [vmem:[#allocation8 + $0x160] sm:$0xff]
    %v361 = vld [vmem:[#allocation8 + $0x168] sm:$0xff]
    %v362 = vld [vmem:[#allocation8 + $0x170] sm:$0xff]
    %v363 = vld [vmem:[#allocation8 + $0x178] sm:$0xff]
    %v364 = vld [vmem:[#allocation8 + $0x180] sm:$0xff]
    %v365 = vld [vmem:[#allocation8 + $0x188] sm:$0xff]
    %v366 = vld [vmem:[#allocation8 + $0x190] sm:$0xff]
    %v367 = vld [vmem:[#allocation8 + $0x198] sm:$0xff]
    %v368 = vld [vmem:[#allocation8 + $0x1a0] sm:$0xff]
    %v369 = vld [vmem:[#allocation8 + $0x1a8] sm:$0xff]
    %v370 = vld [vmem:[#allocation8 + $0x1b0] sm:$0xff]
    %v371 = vld [vmem:[#allocation8 + $0x1b8] sm:$0xff]
    %v372 = vld [vmem:[#allocation8 + $0x1c0] sm:$0xff]
    %v373 = vld [vmem:[#allocation8 + $0x1c8] sm:$0xff]
    %v374 = vld [vmem:[#allocation8 + $0x1d0] sm:$0xff]
    %v375 = vld [vmem:[#allocation8 + $0x1d8] sm:$0xff]
    %v376 = vld [vmem:[#allocation8 + $0x1e0] sm:$0xff]
    %v377 = vld [vmem:[#allocation8 + $0x1e8] sm:$0xff]
    %v378 = vld [vmem:[#allocation8 + $0x1f0] sm:$0xff]
    %v379 = vld [vmem:[#allocation8 + $0x1f8] sm:$0xff]
    %v380 = vld [vmem:[#allocation8 + $0x200] sm:$0xff]
    %v381 = vld [vmem:[#allocation8 + $0x208] sm:$0xff]
    %v382 = vld [vmem:[#allocation8 + $0x210] sm:$0xff]
    %v383 = vld [vmem:[#allocation8 + $0x218] sm:$0xff]
    %v384 = vld [vmem:[#allocation8 + $0x220] sm:$0xff]
    %v385 = vld [vmem:[#allocation8 + $0x228] sm:$0xff]
    %v386 = vld [vmem:[#allocation8 + $0x230] sm:$0xff]
    %v387 = vld [vmem:[#allocation8 + $0x238] sm:$0xff]
    %v388 = vld [vmem:[#allocation8 + $0x240] sm:$0xff]
    %v389 = vld [vmem:[#allocation8 + $0x248] sm:$0xff]
    %v390 = vld [vmem:[#allocation8 + $0x250] sm:$0xff]
    %v391 = vld [vmem:[#allocation8 + $0x258] sm:$0xff]
    %v392 = vld [vmem:[#allocation8 + $0x260] sm:$0xff]
    %v393 = vld [vmem:[#allocation8 + $0x268] sm:$0xff]
    %v394 = vld [vmem:[#allocation8 + $0x270] sm:$0xff]
    %v395 = vld [vmem:[#allocation8 + $0x278] sm:$0xff]
    %v396 = vld [vmem:[#allocation8 + $0x280] sm:$0xff]
    %v397 = vld [vmem:[#allocation8 + $0x288] sm:$0xff]
    %v398 = vld [vmem:[#allocation8 + $0x290] sm:$0xff]
    %v399 = vld [vmem:[#allocation8 + $0x298] sm:$0xff]
    %v400 = vld [vmem:[#allocation8 + $0x2a0] sm:$0xff]
    %v401 = vld [vmem:[#allocation8 + $0x2a8] sm:$0xff]
    %v402 = vld [vmem:[#allocation8 + $0x2b0] sm:$0xff]
    %v403 = vld [vmem:[#allocation8 + $0x2b8] sm:$0xff]
    %v404 = vld [vmem:[#allocation8 + $0x2c0] sm:$0xff]
    %v405 = vld [vmem:[#allocation8 + $0x2c8] sm:$0xff]
    %v406 = vld [vmem:[#allocation8 + $0x2d0] sm:$0xff]
    %v407 = vld [vmem:[#allocation8 + $0x2d8] sm:$0xff]
    %v408 = vld [vmem:[#allocation8 + $0x2e0] sm:$0xff]
    %v409 = vld [vmem:[#allocation8 + $0x2e8] sm:$0xff]
    %v410 = vld [vmem:[#allocation8 + $0x2f0] sm:$0xff]
    %v411 = vld [vmem:[#allocation8 + $0x2f8] sm:$0xff]
    %v412 = vld [vmem:[#allocation8 + $0x300] sm:$0xff]
    %v413 = vld [vmem:[#allocation8 + $0x308] sm:$0xff]
    %v414 = vld [vmem:[#allocation8 + $0x310] sm:$0xff]
    %v415 = vld [vmem:[#allocation8 + $0x318] sm:$0xff]
    %v416 = vld [vmem:[#allocation8 + $0x320] sm:$0xff]
    %v417 = vld [vmem:[#allocation8 + $0x328] sm:$0xff]
    %v418 = vld [vmem:[#allocation8 + $0x330] sm:$0xff]
    %v419 = vld [vmem:[#allocation8 + $0x338] sm:$0xff]
    %v420 = vld [vmem:[#allocation8 + $0x340] sm:$0xff]
    %v421 = vld [vmem:[#allocation8 + $0x348] sm:$0xff]
    %v422 = vld [vmem:[#allocation8 + $0x350] sm:$0xff]
    %v423 = vld [vmem:[#allocation8 + $0x358] sm:$0xff]
    %v424 = vld [vmem:[#allocation8 + $0x360] sm:$0xff]
    %v425 = vld [vmem:[#allocation8 + $0x368] sm:$0xff]
    %v426 = vld [vmem:[#allocation8 + $0x370] sm:$0xff]
    %v427 = vld [vmem:[#allocation8 + $0x378] sm:$0xff]
    %v428 = vld [vmem:[#allocation8 + $0x380] sm:$0xff]
    %v429 = vld [vmem:[#allocation8 + $0x388] sm:$0xff]
    %v430 = vld [vmem:[#allocation8 + $0x390] sm:$0xff]
    %v431 = vld [vmem:[#allocation8 + $0x398] sm:$0xff]
    %v432 = vld [vmem:[#allocation8 + $0x3a0] sm:$0xff]
    %v433 = vld [vmem:[#allocation8 + $0x3a8] sm:$0xff]
    %v434 = vld [vmem:[#allocation8 + $0x3b0] sm:$0xff]
    %v435 = vld [vmem:[#allocation8 + $0x3b8] sm:$0xff]
    %v436 = vld [vmem:[#allocation8 + $0x3c0] sm:$0xff]
    %v437 = vld [vmem:[#allocation8 + $0x3c8] sm:$0xff]
    %v438 = vld [vmem:[#allocation8 + $0x3d0] sm:$0xff]
    %v439 = vld [vmem:[#allocation8 + $0x3d8] sm:$0xff]
    %v440 = vld [vmem:[#allocation8 + $0x3e0] sm:$0xff]
    %v441 = vld [vmem:[#allocation8 + $0x3e8] sm:$0xff]
    %v442 = vld [vmem:[#allocation8 + $0x3f0] sm:$0xff]
    %v443 = vld [vmem:[#allocation8 + $0x3f8] sm:$0xff]
    %v444 = vld [vmem:[#allocation8 + $0x400] sm:$0xff]
    %v445 = vld [vmem:[#allocation8 + $0x408] sm:$0xff]
    %v446 = vld [vmem:[#allocation8 + $0x410] sm:$0xff]
    %v447 = vld [vmem:[#allocation8 + $0x418] sm:$0xff]
    %v448 = vld [vmem:[#allocation8 + $0x420] sm:$0xff]
    %v449 = vld [vmem:[#allocation8 + $0x428] sm:$0xff]
    %v450 = vld [vmem:[#allocation8 + $0x430] sm:$0xff]
    %v451 = vld [vmem:[#allocation8 + $0x438] sm:$0xff]
    %v452 = vld [vmem:[#allocation8 + $0x440] sm:$0xff]
    %v453 = vld [vmem:[#allocation8 + $0x448] sm:$0xff]
    %v454 = vld [vmem:[#allocation8 + $0x450] sm:$0xff]
    %v455 = vld [vmem:[#allocation8 + $0x458] sm:$0xff]
    %v456 = vld [vmem:[#allocation8 + $0x460] sm:$0xff]
    %v457 = vld [vmem:[#allocation8 + $0x468] sm:$0xff]
    %v458 = vld [vmem:[#allocation8 + $0x470] sm:$0xff]
    %v459 = vld [vmem:[#allocation8 + $0x478] sm:$0xff]
    %v460 = vld [vmem:[#allocation8 + $0x480] sm:$0xff]
    %v461 = vld [vmem:[#allocation8 + $0x488] sm:$0xff]
    %v462 = vld [vmem:[#allocation8 + $0x490] sm:$0xff]
    %v463 = vld [vmem:[#allocation8 + $0x498] sm:$0xff]
    %v464 = vld [vmem:[#allocation8 + $0x4a0] sm:$0xff]
    %v465 = vld [vmem:[#allocation8 + $0x4a8] sm:$0xff]
    %v466 = vld [vmem:[#allocation8 + $0x4b0] sm:$0xff]
    %v467 = vld [vmem:[#allocation8 + $0x4b8] sm:$0xff]
    %v468 = vld [vmem:[#allocation8 + $0x4c0] sm:$0xff]
    %v469 = vld [vmem:[#allocation8 + $0x4c8] sm:$0xff]
    %v470 = vld [vmem:[#allocation8 + $0x4d0] sm:$0xff]
    %v471 = vld [vmem:[#allocation8 + $0x4d8] sm:$0xff]
    %v472 = vld [vmem:[#allocation8 + $0x4e0] sm:$0xff]
    %v473 = vld [vmem:[#allocation8 + $0x4e8] sm:$0xff]
    %v474 = vld [vmem:[#allocation8 + $0x4f0] sm:$0xff]
    %v475 = vld [vmem:[#allocation8 + $0x4f8] sm:$0xff]
    %v476 = vld [vmem:[#allocation8 + $0x500] sm:$0xff]
    %v477 = vld [vmem:[#allocation8 + $0x508] sm:$0xff]
    %v478 = vld [vmem:[#allocation8 + $0x510] sm:$0xff]
    %v479 = vld [vmem:[#allocation8 + $0x518] sm:$0xff]
    %v480 = vld [vmem:[#allocation8 + $0x520] sm:$0xff]
    %v481 = vld [vmem:[#allocation8 + $0x528] sm:$0xff]
    %v482 = vld [vmem:[#allocation8 + $0x530] sm:$0xff]
    %v483 = vld [vmem:[#allocation8 + $0x538] sm:$0xff]
    %v484 = vld [vmem:[#allocation8 + $0x540] sm:$0xff]
    %v485 = vld [vmem:[#allocation8 + $0x548] sm:$0xff]
    %v486 = vld [vmem:[#allocation8 + $0x550] sm:$0xff]
    %v487 = vld [vmem:[#allocation8 + $0x558] sm:$0xff]
    %v488 = vld [vmem:[#allocation8 + $0x560] sm:$0xff]
    %v489 = vld [vmem:[#allocation8 + $0x568] sm:$0xff]
    %v490 = vld [vmem:[#allocation8 + $0x570] sm:$0xff]
    %v491 = vld [vmem:[#allocation8 + $0x578] sm:$0xff]
    %v492 = vld [vmem:[#allocation8 + $0x580] sm:$0xff]
    %v493 = vld [vmem:[#allocation8 + $0x588] sm:$0xff]
    %v494 = vld [vmem:[#allocation8 + $0x590] sm:$0xff]
    %v495 = vld [vmem:[#allocation8 + $0x598] sm:$0xff]
    %v496 = vld [vmem:[#allocation8 + $0x5a0] sm:$0xff]
    %v497 = vld [vmem:[#allocation8 + $0x5a8] sm:$0xff]
    %v498 = vld [vmem:[#allocation8 + $0x5b0] sm:$0xff]
    %v499 = vld [vmem:[#allocation8 + $0x5b8] sm:$0xff]
    %v500 = vld [vmem:[#allocation8 + $0x5c0] sm:$0xff]
    %v501 = vld [vmem:[#allocation8 + $0x5c8] sm:$0xff]
    %v502 = vld [vmem:[#allocation8 + $0x5d0] sm:$0xff]
    %v503 = vld [vmem:[#allocation8 + $0x5d8] sm:$0xff]
    %v504 = vld [vmem:[#allocation8 + $0x5e0] sm:$0xff]
    %v505 = vld [vmem:[#allocation8 + $0x5e8] sm:$0xff]
    %v506 = vld [vmem:[#allocation8 + $0x5f0] sm:$0xff]
    %v507 = vld [vmem:[#allocation8 + $0x5f8] sm:$0xff]
    %v508 = vld [vmem:[#allocation8 + $0x600] sm:$0xff]
    %v509 = vld [vmem:[#allocation8 + $0x608] sm:$0xff]
    %v510 = vld [vmem:[#allocation8 + $0x610] sm:$0xff]
    %v511 = vld [vmem:[#allocation8 + $0x618] sm:$0xff]
    %v512 = vld [vmem:[#allocation8 + $0x620] sm:$0xff]
    %v513 = vld [vmem:[#allocation8 + $0x628] sm:$0xff]
    %v514 = vld [vmem:[#allocation8 + $0x630] sm:$0xff]
    %v515 = vld [vmem:[#allocation8 + $0x638] sm:$0xff]
    %v516 = vld [vmem:[#allocation8 + $0x640] sm:$0xff]
    %v517 = vld [vmem:[#allocation8 + $0x648] sm:$0xff]
    %v518 = vld [vmem:[#allocation8 + $0x650] sm:$0xff]
    %v519 = vld [vmem:[#allocation8 + $0x658] sm:$0xff]
    %v520 = vld [vmem:[#allocation8 + $0x660] sm:$0xff]
    %v521 = vld [vmem:[#allocation8 + $0x668] sm:$0xff]
    %v522 = vld [vmem:[#allocation8 + $0x670] sm:$0xff]
    %v523 = vld [vmem:[#allocation8 + $0x678] sm:$0xff]
    %v524 = vld [vmem:[#allocation8 + $0x680] sm:$0xff]
    %v525 = vld [vmem:[#allocation8 + $0x688] sm:$0xff]
    %v526 = vld [vmem:[#allocation8 + $0x690] sm:$0xff]
    %v527 = vld [vmem:[#allocation8 + $0x698] sm:$0xff]
    %v528 = vld [vmem:[#allocation8 + $0x6a0] sm:$0xff]
    %v529 = vld [vmem:[#allocation8 + $0x6a8] sm:$0xff]
    %v530 = vld [vmem:[#allocation8 + $0x6b0] sm:$0xff]
    %v531 = vld [vmem:[#allocation8 + $0x6b8] sm:$0xff]
    %v532 = vld [vmem:[#allocation8 + $0x6c0] sm:$0xff]
    %v533 = vld [vmem:[#allocation8 + $0x6c8] sm:$0xff]
    %v534 = vld [vmem:[#allocation8 + $0x6d0] sm:$0xff]
    %v535 = vld [vmem:[#allocation8 + $0x6d8] sm:$0xff]
    %v536 = vld [vmem:[#allocation8 + $0x6e0] sm:$0xff]
    %v537 = vld [vmem:[#allocation8 + $0x6e8] sm:$0xff]
    %v538 = vld [vmem:[#allocation8 + $0x6f0] sm:$0xff]
    %v539 = vld [vmem:[#allocation8 + $0x6f8] sm:$0xff]
    %v540 = vld [vmem:[#allocation8 + $0x700] sm:$0xff]
    %v541 = vld [vmem:[#allocation8 + $0x708] sm:$0xff]
    %v542 = vld [vmem:[#allocation8 + $0x710] sm:$0xff]
    %v543 = vld [vmem:[#allocation8 + $0x718] sm:$0xff]
    %v544 = vld [vmem:[#allocation8 + $0x720] sm:$0xff]
    %v545 = vld [vmem:[#allocation8 + $0x728] sm:$0xff]
    %v546 = vld [vmem:[#allocation8 + $0x730] sm:$0xff]
    %v547 = vld [vmem:[#allocation8 + $0x738] sm:$0xff]
    %v548 = vld [vmem:[#allocation8 + $0x740] sm:$0xff]
    %v549 = vld [vmem:[#allocation8 + $0x748] sm:$0xff]
    %v550 = vld [vmem:[#allocation8 + $0x750] sm:$0xff]
    %v551 = vld [vmem:[#allocation8 + $0x758] sm:$0xff]
    %v552 = vld [vmem:[#allocation8 + $0x760] sm:$0xff]
    %v553 = vld [vmem:[#allocation8 + $0x768] sm:$0xff]
    %v554 = vld [vmem:[#allocation8 + $0x770] sm:$0xff]
    %v555 = vld [vmem:[#allocation8 + $0x778] sm:$0xff]
    %v556 = vld [vmem:[#allocation8 + $0x780] sm:$0xff]
    %v557 = vld [vmem:[#allocation8 + $0x788] sm:$0xff]
    %v558 = vld [vmem:[#allocation8 + $0x790] sm:$0xff]
    %v559 = vld [vmem:[#allocation8 + $0x798] sm:$0xff]
    %v560 = vld [vmem:[#allocation8 + $0x7a0] sm:$0xff]
    %v561 = vld [vmem:[#allocation8 + $0x7a8] sm:$0xff]
    %v562 = vld [vmem:[#allocation8 + $0x7b0] sm:$0xff]
    %v563 = vld [vmem:[#allocation8 + $0x7b8] sm:$0xff]
    %v564 = vld [vmem:[#allocation8 + $0x7c0] sm:$0xff]
    %v565 = vld [vmem:[#allocation8 + $0x7c8] sm:$0xff]
    %v566 = vld [vmem:[#allocation8 + $0x7d0] sm:$0xff]
    %v567 = vld [vmem:[#allocation8 + $0x7d8] sm:$0xff]
    %v568 = vld [vmem:[#allocation8 + $0x7e0] sm:$0xff]
    %v569 = vld [vmem:[#allocation8 + $0x7e8] sm:$0xff]
    %v570 = vld [vmem:[#allocation8 + $0x7f0] sm:$0xff]
    %v571 = vld [vmem:[#allocation8 + $0x7f8] sm:$0xff]
    %v572 = vld [vmem:[#allocation8 + $0x800] sm:$0xff]
    %v573 = vld [vmem:[#allocation8 + $0x808] sm:$0xff]
    %v574 = vld [vmem:[#allocation8 + $0x810] sm:$0xff]
    %v575 = vld [vmem:[#allocation8 + $0x818] sm:$0xff]
    %v576 = vld [vmem:[#allocation8 + $0x820] sm:$0xff]
    %v577 = vld [vmem:[#allocation8 + $0x828] sm:$0xff]
    %v578 = vld [vmem:[#allocation8 + $0x830] sm:$0xff]
    %v579 = vld [vmem:[#allocation8 + $0x838] sm:$0xff]
    %v580 = vld [vmem:[#allocation8 + $0x840] sm:$0xff]
    %v581 = vld [vmem:[#allocation8 + $0x848] sm:$0xff]
    %v582 = vld [vmem:[#allocation8 + $0x850] sm:$0xff]
    %v583 = vld [vmem:[#allocation8 + $0x858] sm:$0xff]
    %v584 = vld [vmem:[#allocation8 + $0x860] sm:$0xff]
    %v585 = vld [vmem:[#allocation8 + $0x868] sm:$0xff]
    %v586 = vld [vmem:[#allocation8 + $0x870] sm:$0xff]
    %v587 = vld [vmem:[#allocation8 + $0x878] sm:$0xff]
    %v588 = vld [vmem:[#allocation8 + $0x880] sm:$0xff]
    %v589 = vld [vmem:[#allocation8 + $0x888] sm:$0xff]
    %v590 = vld [vmem:[#allocation8 + $0x890] sm:$0xff]
    %v591 = vld [vmem:[#allocation8 + $0x898] sm:$0xff]
    %v592 = vld [vmem:[#allocation8 + $0x8a0] sm:$0xff]
    %v593 = vld [vmem:[#allocation8 + $0x8a8] sm:$0xff]
    %v594 = vld [vmem:[#allocation8 + $0x8b0] sm:$0xff]
    %v595 = vld [vmem:[#allocation8 + $0x8b8] sm:$0xff]
    %v596 = vld [vmem:[#allocation8 + $0x8c0] sm:$0xff]
    %v597 = vld [vmem:[#allocation8 + $0x8c8] sm:$0xff]
    %v598 = vld [vmem:[#allocation8 + $0x8d0] sm:$0xff]
    %v599 = vld [vmem:[#allocation8 + $0x8d8] sm:$0xff]
    %v600 = vld [vmem:[#allocation8 + $0x8e0] sm:$0xff]
    %v601 = vld [vmem:[#allocation8 + $0x8e8] sm:$0xff]
    %v602 = vld [vmem:[#allocation8 + $0x8f0] sm:$0xff]
    %v603 = vld [vmem:[#allocation8 + $0x8f8] sm:$0xff]
    %v604 = vld [vmem:[#allocation8 + $0x900] sm:$0xff]
    %v605 = vld [vmem:[#allocation8 + $0x908] sm:$0xff]
    %v606 = vld [vmem:[#allocation8 + $0x910] sm:$0xff]
    %v607 = vld [vmem:[#allocation8 + $0x918] sm:$0xff]
    %v608 = vld [vmem:[#allocation8 + $0x920] sm:$0xff]
    %v609 = vld [vmem:[#allocation8 + $0x928] sm:$0xff]
    %v610 = vld [vmem:[#allocation8 + $0x930] sm:$0xff]
    %v611 = vld [vmem:[#allocation8 + $0x938] sm:$0xff]
    %v612 = vld [vmem:[#allocation8 + $0x940] sm:$0xff]
    %v613 = vld [vmem:[#allocation8 + $0x948] sm:$0xff]
    %v614 = vld [vmem:[#allocation8 + $0x950] sm:$0xff]
    %v615 = vld [vmem:[#allocation8 + $0x958] sm:$0xff]
    %v616 = vld [vmem:[#allocation8 + $0x960] sm:$0xff]
    %v617 = vld [vmem:[#allocation8 + $0x968] sm:$0xff]
    %v618 = vld [vmem:[#allocation8 + $0x970] sm:$0xff]
    %v619 = vld [vmem:[#allocation8 + $0x978] sm:$0xff]
    %v620 = vld [vmem:[#allocation8 + $0x980] sm:$0xff]
    %v621 = vld [vmem:[#allocation8 + $0x988] sm:$0xff]
    %v622 = vld [vmem:[#allocation8 + $0x990] sm:$0xff]
    %v623 = vld [vmem:[#allocation8 + $0x998] sm:$0xff]
    %v624 = vld [vmem:[#allocation8 + $0x9a0] sm:$0xff]
    %v625 = vld [vmem:[#allocation8 + $0x9a8] sm:$0xff]
    %v626 = vld [vmem:[#allocation8 + $0x9b0] sm:$0xff]
    %v627 = vld [vmem:[#allocation8 + $0x9b8] sm:$0xff]
    %v628 = vld [vmem:[#allocation8 + $0x9c0] sm:$0xff]
    %v629 = vld [vmem:[#allocation8 + $0x9c8] sm:$0xff]
    %v630 = vld [vmem:[#allocation8 + $0x9d0] sm:$0xff]
    %v631 = vld [vmem:[#allocation8 + $0x9d8] sm:$0xff]
    %v632 = vld [vmem:[#allocation8 + $0x9e0] sm:$0xff]
    %v633 = vld [vmem:[#allocation8 + $0x9e8] sm:$0xff]
    %v634 = vld [vmem:[#allocation8 + $0x9f0] sm:$0xff]
    %v635 = vld [vmem:[#allocation8 + $0x9f8] sm:$0xff]
    %v636 = vld [vmem:[#allocation8 + $0xa00] sm:$0xff]
    %v637 = vld [vmem:[#allocation8 + $0xa08] sm:$0xff]
    %v638 = vld [vmem:[#allocation8 + $0xa10] sm:$0xff]
    %v639 = vld [vmem:[#allocation8 + $0xa18] sm:$0xff]
    %v640 = vld [vmem:[#allocation8 + $0xa20] sm:$0xff]
    %v641 = vld [vmem:[#allocation8 + $0xa28] sm:$0xff]
    %v642 = vld [vmem:[#allocation8 + $0xa30] sm:$0xff]
    %v643 = vld [vmem:[#allocation8 + $0xa38] sm:$0xff]
    %v644 = vld [vmem:[#allocation8 + $0xa40] sm:$0xff]
    %v645 = vld [vmem:[#allocation8 + $0xa48] sm:$0xff]
    %v646 = vld [vmem:[#allocation8 + $0xa50] sm:$0xff]
    %v647 = vld [vmem:[#allocation8 + $0xa58] sm:$0xff]
    %v648 = vld [vmem:[#allocation8 + $0xa60] sm:$0xff]
    %v649 = vld [vmem:[#allocation8 + $0xa68] sm:$0xff]
    %v650 = vld [vmem:[#allocation8 + $0xa70] sm:$0xff]
    %v651 = vld [vmem:[#allocation8 + $0xa78] sm:$0xff]
    %v652 = vld [vmem:[#allocation8 + $0xa80] sm:$0xff]
    %v653 = vld [vmem:[#allocation8 + $0xa88] sm:$0xff]
    %v654 = vld [vmem:[#allocation8 + $0xa90] sm:$0xff]
    %v655 = vld [vmem:[#allocation8 + $0xa98] sm:$0xff]
    %v656 = vld [vmem:[#allocation8 + $0xaa0] sm:$0xff]
    %v657 = vld [vmem:[#allocation8 + $0xaa8] sm:$0xff]
    %v658 = vld [vmem:[#allocation8 + $0xab0] sm:$0xff]
    %v659 = vld [vmem:[#allocation8 + $0xab8] sm:$0xff]
    %v660 = vld [vmem:[#allocation8 + $0xac0] sm:$0xff]
    %v661 = vld [vmem:[#allocation8 + $0xac8] sm:$0xff]
    %v662 = vld [vmem:[#allocation8 + $0xad0] sm:$0xff]
    %v663 = vld [vmem:[#allocation8 + $0xad8] sm:$0xff]
    %v664 = vld [vmem:[#allocation8 + $0xae0] sm:$0xff]
    %v665 = vld [vmem:[#allocation8 + $0xae8] sm:$0xff]
    %v666 = vld [vmem:[#allocation8 + $0xaf0] sm:$0xff]
    %v667 = vld [vmem:[#allocation8 + $0xaf8] sm:$0xff]
    %v668 = vld [vmem:[#allocation8 + $0xb00] sm:$0xff]
    %v669 = vld [vmem:[#allocation8 + $0xb08] sm:$0xff]
    %v670 = vld [vmem:[#allocation8 + $0xb10] sm:$0xff]
    %v671 = vld [vmem:[#allocation8 + $0xb18] sm:$0xff]
    %v672 = vld [vmem:[#allocation8 + $0xb20] sm:$0xff]
    %v673 = vld [vmem:[#allocation8 + $0xb28] sm:$0xff]
    %v674 = vld [vmem:[#allocation8 + $0xb30] sm:$0xff]
    %v675 = vld [vmem:[#allocation8 + $0xb38] sm:$0xff]
    %v676 = vld [vmem:[#allocation8 + $0xb40] sm:$0xff]
    %v677 = vld [vmem:[#allocation8 + $0xb48] sm:$0xff]
    %v678 = vld [vmem:[#allocation8 + $0xb50] sm:$0xff]
    %v679 = vld [vmem:[#allocation8 + $0xb58] sm:$0xff]
    %v680 = vld [vmem:[#allocation8 + $0xb60] sm:$0xff]
    %v681 = vld [vmem:[#allocation8 + $0xb68] sm:$0xff]
    %v682 = vld [vmem:[#allocation8 + $0xb70] sm:$0xff]
    %v683 = vld [vmem:[#allocation8 + $0xb78] sm:$0xff]
    %v684 = vld [vmem:[#allocation8 + $0xb80] sm:$0xff]
    %v685 = vld [vmem:[#allocation8 + $0xb88] sm:$0xff]
    %v686 = vld [vmem:[#allocation8 + $0xb90] sm:$0xff]
    %v687 = vld [vmem:[#allocation8 + $0xb98] sm:$0xff]
    %v688 = vld [vmem:[#allocation8 + $0xba0] sm:$0xff]
    %v689 = vld [vmem:[#allocation8 + $0xba8] sm:$0xff]
    %v690 = vld [vmem:[#allocation8 + $0xbb0] sm:$0xff]
    %v691 = vld [vmem:[#allocation8 + $0xbb8] sm:$0xff]
    %v692 = vld [vmem:[#allocation8 + $0xbc0] sm:$0xff]
    %v693 = vld [vmem:[#allocation8 + $0xbc8] sm:$0xff]
    %v694 = vld [vmem:[#allocation8 + $0xbd0] sm:$0xff]
    %v695 = vld [vmem:[#allocation8 + $0xbd8] sm:$0xff]
    %v696 = vld [vmem:[#allocation8 + $0xbe0] sm:$0xff]
    %v697 = vld [vmem:[#allocation8 + $0xbe8] sm:$0xff]
    %v698 = vld [vmem:[#allocation8 + $0xbf0] sm:$0xff]
    %v699 = vld [vmem:[#allocation8 + $0xbf8] sm:$0xff]
    %v700 = vld [vmem:[#allocation8 + $0xc00] sm:$0xff]
    %v701 = vld [vmem:[#allocation8 + $0xc08] sm:$0xff]
    %v702 = vld [vmem:[#allocation8 + $0xc10] sm:$0xff]
    %v703 = vld [vmem:[#allocation8 + $0xc18] sm:$0xff]
    %v704 = vld [vmem:[#allocation8 + $0xc20] sm:$0xff]
    %v705 = vld [vmem:[#allocation8 + $0xc28] sm:$0xff]
    %v706 = vld [vmem:[#allocation8 + $0xc30] sm:$0xff]
    %v707 = vld [vmem:[#allocation8 + $0xc38] sm:$0xff]
    %v708 = vld [vmem:[#allocation8 + $0xc40] sm:$0xff]
    %v709 = vld [vmem:[#allocation8 + $0xc48] sm:$0xff]
    %v710 = vld [vmem:[#allocation8 + $0xc50] sm:$0xff]
    %v711 = vld [vmem:[#allocation8 + $0xc58] sm:$0xff]
    %v712 = vld [vmem:[#allocation8 + $0xc60] sm:$0xff]
    %v713 = vld [vmem:[#allocation8 + $0xc68] sm:$0xff]
    %v714 = vld [vmem:[#allocation8 + $0xc70] sm:$0xff]
    %v715 = vld [vmem:[#allocation8 + $0xc78] sm:$0xff]
    %v716 = vld [vmem:[#allocation8 + $0xc80] sm:$0xff]
    %v717 = vld [vmem:[#allocation8 + $0xc88] sm:$0xff]
    %v718 = vld [vmem:[#allocation8 + $0xc90] sm:$0xff]
    %v719 = vld [vmem:[#allocation8 + $0xc98] sm:$0xff]
    %v720 = vld [vmem:[#allocation8 + $0xca0] sm:$0xff]
    %v721 = vld [vmem:[#allocation8 + $0xca8] sm:$0xff]
    %v722 = vld [vmem:[#allocation8 + $0xcb0] sm:$0xff]
    %v723 = vld [vmem:[#allocation8 + $0xcb8] sm:$0xff]
    %v724 = vld [vmem:[#allocation8 + $0xcc0] sm:$0xff]
    %v725 = vld [vmem:[#allocation8 + $0xcc8] sm:$0xff]
    %v726 = vld [vmem:[#allocation8 + $0xcd0] sm:$0xff]
    %v727 = vld [vmem:[#allocation8 + $0xcd8] sm:$0xff]
    %v728 = vld [vmem:[#allocation8 + $0xce0] sm:$0xff]
    %v729 = vld [vmem:[#allocation8 + $0xce8] sm:$0xff]
    %v730 = vld [vmem:[#allocation8 + $0xcf0] sm:$0xff]
    %v731 = vld [vmem:[#allocation8 + $0xcf8] sm:$0xff]
    %v732 = vld [vmem:[#allocation8 + $0xd00] sm:$0xff]
    %v733 = vld [vmem:[#allocation8 + $0xd08] sm:$0xff]
    %v734 = vld [vmem:[#allocation8 + $0xd10] sm:$0xff]
    %v735 = vld [vmem:[#allocation8 + $0xd18] sm:$0xff]
    %v736 = vld [vmem:[#allocation8 + $0xd20] sm:$0xff]
    %v737 = vld [vmem:[#allocation8 + $0xd28] sm:$0xff]
    %v738 = vld [vmem:[#allocation8 + $0xd30] sm:$0xff]
    %v739 = vld [vmem:[#allocation8 + $0xd38] sm:$0xff]
    %v740 = vld [vmem:[#allocation8 + $0xd40] sm:$0xff]
    %v741 = vld [vmem:[#allocation8 + $0xd48] sm:$0xff]
    %v742 = vld [vmem:[#allocation8 + $0xd50] sm:$0xff]
    %v743 = vld [vmem:[#allocation8 + $0xd58] sm:$0xff]
    %v744 = vld [vmem:[#allocation8 + $0xd60] sm:$0xff]
    %v745 = vld [vmem:[#allocation8 + $0xd68] sm:$0xff]
    %v746 = vld [vmem:[#allocation8 + $0xd70] sm:$0xff]
    %v747 = vld [vmem:[#allocation8 + $0xd78] sm:$0xff]
    %v748 = vld [vmem:[#allocation8 + $0xd80] sm:$0xff]
    %v749 = vld [vmem:[#allocation8 + $0xd88] sm:$0xff]
    %v750 = vld [vmem:[#allocation8 + $0xd90] sm:$0xff]
    %v751 = vld [vmem:[#allocation8 + $0xd98] sm:$0xff]
    %v752 = vld [vmem:[#allocation8 + $0xda0] sm:$0xff]
    %v753 = vld [vmem:[#allocation8 + $0xda8] sm:$0xff]
    %v754 = vld [vmem:[#allocation8 + $0xdb0] sm:$0xff]
    %v755 = vld [vmem:[#allocation8 + $0xdb8] sm:$0xff]
    %v756 = vld [vmem:[#allocation8 + $0xdc0] sm:$0xff]
    %v757 = vld [vmem:[#allocation8 + $0xdc8] sm:$0xff]
    %v758 = vld [vmem:[#allocation8 + $0xdd0] sm:$0xff]
    %v759 = vld [vmem:[#allocation8 + $0xdd8] sm:$0xff]
    %v760 = vld [vmem:[#allocation8 + $0xde0] sm:$0xff]
    %v761 = vld [vmem:[#allocation8 + $0xde8] sm:$0xff]
    %v762 = vld [vmem:[#allocation8 + $0xdf0] sm:$0xff]
    %v763 = vld [vmem:[#allocation8 + $0xdf8] sm:$0xff]
    %v764 = vld [vmem:[#allocation8 + $0xe00] sm:$0xff]
    %v765 = vld [vmem:[#allocation8 + $0xe08] sm:$0xff]
    %v766 = vld [vmem:[#allocation8 + $0xe10] sm:$0xff]
    %v767 = vld [vmem:[#allocation8 + $0xe18] sm:$0xff]
    %v768 = vld [vmem:[#allocation8 + $0xe20] sm:$0xff]
    %v769 = vld [vmem:[#allocation8 + $0xe28] sm:$0xff]
    %v770 = vld [vmem:[#allocation8 + $0xe30] sm:$0xff]
    %v771 = vld [vmem:[#allocation8 + $0xe38] sm:$0xff]
    %v772 = vld [vmem:[#allocation8 + $0xe40] sm:$0xff]
    %v773 = vld [vmem:[#allocation8 + $0xe48] sm:$0xff]
    %v774 = vld [vmem:[#allocation8 + $0xe50] sm:$0xff]
    %v775 = vld [vmem:[#allocation8 + $0xe58] sm:$0xff]
    %v776 = vld [vmem:[#allocation8 + $0xe60] sm:$0xff]
    %v777 = vld [vmem:[#allocation8 + $0xe68] sm:$0xff]
    %v778 = vld [vmem:[#allocation8 + $0xe70] sm:$0xff]
    %v779 = vld [vmem:[#allocation8 + $0xe78] sm:$0xff]
    %v780 = vld [vmem:[#allocation8 + $0xe80] sm:$0xff]
    %v781 = vld [vmem:[#allocation8 + $0xe88] sm:$0xff]
    %v782 = vld [vmem:[#allocation8 + $0xe90] sm:$0xff]
    %v783 = vld [vmem:[#allocation8 + $0xe98] sm:$0xff]
    %v784 = vld [vmem:[#allocation8 + $0xea0] sm:$0xff]
    %v785 = vld [vmem:[#allocation8 + $0xea8] sm:$0xff]
    %v786 = vld [vmem:[#allocation8 + $0xeb0] sm:$0xff]
    %v787 = vld [vmem:[#allocation8 + $0xeb8] sm:$0xff]
    %v788 = vld [vmem:[#allocation8 + $0xec0] sm:$0xff]
    %v789 = vld [vmem:[#allocation8 + $0xec8] sm:$0xff]
    %v790 = vld [vmem:[#allocation8 + $0xed0] sm:$0xff]
    %v791 = vld [vmem:[#allocation8 + $0xed8] sm:$0xff]
    %v792 = vld [vmem:[#allocation8 + $0xee0] sm:$0xff]
    %v793 = vld [vmem:[#allocation8 + $0xee8] sm:$0xff]
    %v794 = vld [vmem:[#allocation8 + $0xef0] sm:$0xff]
    %v795 = vld [vmem:[#allocation8 + $0xef8] sm:$0xff]
    %v796 = vld [vmem:[#allocation8 + $0xf00] sm:$0xff]
    %v797 = vld [vmem:[#allocation8 + $0xf08] sm:$0xff]
    %v798 = vld [vmem:[#allocation8 + $0xf10] sm:$0xff]
    %v799 = vld [vmem:[#allocation8 + $0xf18] sm:$0xff]
    %v800 = vld [vmem:[#allocation8 + $0xf20] sm:$0xff]
    %v801 = vld [vmem:[#allocation8 + $0xf28] sm:$0xff]
    %v802 = vld [vmem:[#allocation8 + $0xf30] sm:$0xff]
    %v803 = vld [vmem:[#allocation8 + $0xf38] sm:$0xff]
    %v804 = vld [vmem:[#allocation8 + $0xf40] sm:$0xff]
    %v805 = vld [vmem:[#allocation8 + $0xf48] sm:$0xff]
    %v806 = vld [vmem:[#allocation8 + $0xf50] sm:$0xff]
    %v807 = vld [vmem:[#allocation8 + $0xf58] sm:$0xff]
    %v808 = vld [vmem:[#allocation8 + $0xf60] sm:$0xff]
    %v809 = vld [vmem:[#allocation8 + $0xf68] sm:$0xff]
    %v810 = vld [vmem:[#allocation8 + $0xf70] sm:$0xff]
    %v811 = vld [vmem:[#allocation8 + $0xf78] sm:$0xff]
    %v812 = vld [vmem:[#allocation8 + $0xf80] sm:$0xff]
    %v813 = vld [vmem:[#allocation8 + $0xf88] sm:$0xff]
    %v814 = vld [vmem:[#allocation8 + $0xf90] sm:$0xff]
    %v815 = vld [vmem:[#allocation8 + $0xf98] sm:$0xff]
    %v816 = vld [vmem:[#allocation8 + $0xfa0] sm:$0xff]
    %v817 = vld [vmem:[#allocation8 + $0xfa8] sm:$0xff]
    %v818 = vld [vmem:[#allocation8 + $0xfb0] sm:$0xff]
    %v819 = vld [vmem:[#allocation8 + $0xfb8] sm:$0xff]
    %v820 = vld [vmem:[#allocation8 + $0xfc0] sm:$0xff]
    %v821 = vld [vmem:[#allocation8 + $0xfc8] sm:$0xff]
    %v822 = vld [vmem:[#allocation8 + $0xfd0] sm:$0xff]
    %v823 = vld [vmem:[#allocation8 + $0xfd8] sm:$0xff]
    %v824 = vld [vmem:[#allocation8 + $0xfe0] sm:$0xff]
    %v825 = vld [vmem:[#allocation8 + $0xfe8] sm:$0xff]
    %v826 = vld [vmem:[#allocation8 + $0xff0] sm:$0xff]
    %v827 = vld [vmem:[#allocation8 + $0xff8] sm:$0xff]
    %828 = vmatprep.subr.mxu0 %v317
    %829 = vmatpush1.xpose.msra.mxu0 %v316
    %830 = vmatprep.subr.mxu0 %v333
    %831 = vmatpush1.xpose.msra.mxu0 %v332
    %832 = vmatprep.subr.mxu0 %v349
    %833 = vmatpush1.xpose.msra.mxu0 %v348
    %834 = vmatprep.subr.mxu0 %v365
    %835 = vmatpush1.xpose.msra.mxu0 %v364
    %836 = vmatprep.subr.mxu0 %v381
    %837 = vmatpush1.xpose.msra.mxu0 %v380
    %838 = vmatprep.subr.mxu0 %v397
    %839 = vmatpush1.xpose.msra.mxu0 %v396
    %840 = vmatprep.subr.mxu0 %v413
    %841 = vmatpush1.xpose.msra.mxu0 %v412
    %842 = vmatprep.subr.mxu0 %v429
    %843 = vmatpush1.xpose.msra.mxu0 %v428
    %844 = vmatprep.subr.mxu0 %v445
    %845 = vmatpush1.xpose.msra.mxu0 %v444
    %846 = vmatprep.subr.mxu0 %v461
    %847 = vmatpush1.xpose.msra.mxu0 %v460
    %848 = vmatprep.subr.mxu0 %v477
    %849 = vmatpush1.xpose.msra.mxu0 %v476
    %850 = vmatprep.subr.mxu0 %v493
    %851 = vmatpush1.xpose.msra.mxu0 %v492
    %852 = vmatprep.subr.mxu0 %v509
    %853 = vmatpush1.xpose.msra.mxu0 %v508
    %854 = vmatprep.subr.mxu0 %v525
    %855 = vmatpush1.xpose.msra.mxu0 %v524
    %856 = vmatprep.subr.mxu0 %v541
    %857 = vmatpush1.xpose.msra.mxu0 %v540
    %858 = vmatprep.subr.mxu0 %v557
    %859 = vmatpush1.xpose.msra.mxu0 %v556
    %860 = vmatprep.subr.mxu0 %v573
    %861 = vmatpush1.xpose.msra.mxu0 %v572
    %862 = vmatprep.subr.mxu0 %v589
    %863 = vmatpush1.xpose.msra.mxu0 %v588
    %864 = vmatprep.subr.mxu0 %v605
    %865 = vmatpush1.xpose.msra.mxu0 %v604
    %866 = vmatprep.subr.mxu0 %v621
    %867 = vmatpush1.xpose.msra.mxu0 %v620
    %868 = vmatprep.subr.mxu0 %v637
    %869 = vmatpush1.xpose.msra.mxu0 %v636
    %870 = vmatprep.subr.mxu0 %v653
    %871 = vmatpush1.xpose.msra.mxu0 %v652
    %872 = vmatprep.subr.mxu0 %v669
    %873 = vmatpush1.xpose.msra.mxu0 %v668
    %874 = vmatprep.subr.mxu0 %v685
    %875 = vmatpush1.xpose.msra.mxu0 %v684
    %876 = vmatprep.subr.mxu0 %v701
    %877 = vmatpush1.xpose.msra.mxu0 %v700
    %878 = vmatprep.subr.mxu0 %v717
    %879 = vmatpush1.xpose.msra.mxu0 %v716
    %880 = vmatprep.subr.mxu0 %v733
    %881 = vmatpush1.xpose.msra.mxu0 %v732
    %882 = vmatprep.subr.mxu0 %v749
    %883 = vmatpush1.xpose.msra.mxu0 %v748
    %884 = vmatprep.subr.mxu0 %v765
    %885 = vmatpush1.xpose.msra.mxu0 %v764
    %886 = vmatprep.subr.mxu0 %v781
    %887 = vmatpush1.xpose.msra.mxu0 %v780
    %888 = vmatprep.subr.mxu0 %v797
    %889 = vmatpush1.xpose.msra.mxu0 %v796
    %890 = vmatprep.subr.mxu0 %v813
    %891 = vmatpush1.xpose.msra.mxu0 %v812
    %892 = vmatprep.mubr.f32.mxu0 %v61
    %893 = vmatmul.mubr.f32.gmra.mrb[0].mxu0 %v60
    %v894 = vpop.f32.mrb[0].mxu0
    %v895 = vadd.f32 0.0, %v894
    %v896 = vpop.f32.mrb[0].mxu0
    %v897 = vadd.f32 0.0, %v896
    %898 = vmatprep.mubr.f32.mxu0 %v77
    %899 = vmatmul.mubr.f32.gmra.mrb[0].mxu0 %v76
    %v900 = vpop.f32.mrb[0].mxu0
    %v901 = vadd.f32 0.0, %v900
    %v902 = vpop.f32.mrb[0].mxu0
    %v903 = vadd.f32 0.0, %v902
    %904 = vmatprep.mubr.f32.mxu0 %v93
    %905 = vmatmul.mubr.f32.gmra.mrb[0].mxu0 %v92
    %v906 = vpop.f32.mrb[0].mxu0
    %v907 = vadd.f32 0.0, %v906
    %v908 = vpop.f32.mrb[0].mxu0
    %v909 = vadd.f32 0.0, %v908
    %910 = vmatprep.mubr.f32.mxu0 %v109
    %911 = vmatmul.mubr.f32.gmra.mrb[0].mxu0 %v108
    %v912 = vpop.f32.mrb[0].mxu0
    %v913 = vadd.f32 0.0, %v912
    %v914 = vpop.f32.mrb[0].mxu0
    %v915 = vadd.f32 0.0, %v914
    %916 = vmatprep.mubr.f32.mxu0 %v125
    %917 = vmatmul.mubr.f32.gmra.mrb[0].mxu0 %v124
    %v918 = vpop.f32.mrb[0].mxu0
    %v919 = vadd.f32 0.0, %v918
    %v920 = vpop.f32.mrb[0].mxu0
    %v921 = vadd.f32 0.0, %v920
    %922 = vmatprep.mubr.f32.mxu0 %v141
    %923 = vmatmul.mubr.f32.gmra.mrb[0].mxu0 %v140
    %v924 = vpop.f32.mrb[0].mxu0
    %v925 = vadd.f32 0.0, %v924
    %v926 = vpop.f32.mrb[0].mxu0
    %v927 = vadd.f32 0.0, %v926
    %928 = vmatprep.mubr.f32.mxu0 %v157
    %929 = vmatmul.mubr.f32.gmra.mrb[0].mxu0 %v156
    %v930 = vpop.f32.mrb[0].mxu0
    %v931 = vadd.f32 0.0, %v930
    %v932 = vpop.f32.mrb[0].mxu0
    %v933 = vadd.f32 0.0, %v932
    %934 = vmatprep.mubr.f32.mxu0 %v173
    %935 = vmatmul.mubr.f32.gmra.mrb[0].mxu0 %v172
    %v936 = vpop.f32.mrb[0].mxu0
    %v937 = vadd.f32 0.0, %v936
    %v938 = vpop.f32.mrb[0].mxu0
    %v939 = vadd.f32 0.0, %v938
    %940 = vmatprep.mubr.f32.mxu0 %v189
    %941 = vmatmul.mubr.f32.gmra.mrb[0].mxu0 %v188
    %v942 = vpop.f32.mrb[0].mxu0
    %v943 = vadd.f32 0.0, %v942
    %v944 = vpop.f32.mrb[0].mxu0
    %v945 = vadd.f32 0.0, %v944
    %946 = vmatprep.mubr.f32.mxu0 %v205
    %947 = vmatmul.mubr.f32.gmra.mrb[0].mxu0 %v204
    %v948 = vpop.f32.mrb[0].mxu0
    %v949 = vadd.f32 0.0, %v948
    %v950 = vpop.f32.mrb[0].mxu0
    %v951 = vadd.f32 0.0, %v950
    %952 = vmatprep.mubr.f32.mxu0 %v221
    %953 = vmatmul.mubr.f32.gmra.mrb[0].mxu0 %v220
    %v954 = vpop.f32.mrb[0].mxu0
    %v955 = vadd.f32 0.0, %v954
    %v956 = vpop.f32.mrb[0].mxu0
    %v957 = vadd.f32 0.0, %v956
    %958 = vmatprep.mubr.f32.mxu0 %v237
    %959 = vmatmul.mubr.f32.gmra.mrb[0].mxu0 %v236
    %v960 = vpop.f32.mrb[0].mxu0
    %v961 = vadd.f32 0.0, %v960
    %v962 = vpop.f32.mrb[0].mxu0
    %v963 = vadd.f32 0.0, %v962
    %964 = vmatprep.mubr.f32.mxu0 %v253
    %965 = vmatmul.mubr.f32.gmra.mrb[0].mxu0 %v252
    %v966 = vpop.f32.mrb[0].mxu0
    %v967 = vadd.f32 0.0, %v966
    %v968 = vpop.f32.mrb[0].mxu0
    %v969 = vadd.f32 0.0, %v968
    %970 = vmatprep.mubr.f32.mxu0 %v269
    %971 = vmatmul.mubr.f32.gmra.mrb[0].mxu0 %v268
    %v972 = vpop.f32.mrb[0].mxu0
    %v973 = vadd.f32 0.0, %v972
    %v974 = vpop.f32.mrb[0].mxu0
    %v975 = vadd.f32 0.0, %v974
    %976 = vmatprep.mubr.f32.mxu0 %v285
    %977 = vmatmul.mubr.f32.gmra.mrb[0].mxu0 %v284
    %v978 = vpop.f32.mrb[0].mxu0
    %v979 = vadd.f32 0.0, %v978
    %v980 = vpop.f32.mrb[0].mxu0
    %v981 = vadd.f32 0.0, %v980
    %982 = vmatprep.mubr.f32.mxu0 %v301
    %983 = vmatmul.mubr.f32.gmra.mrb[0].mxu0 %v300
    %v984 = vpop.f32.mrb[0].mxu0
    %v985 = vadd.f32 0.0, %v984
    %v986 = vpop.f32.mrb[0].mxu0
    %v987 = vadd.f32 0.0, %v986
    %988 = vdwg.mxu0
    %989 = vmatprep.subr.mxu0 %v319
    %990 = vmatpush1.xpose.msra.mxu0 %v318
    %991 = vmatprep.subr.mxu0 %v335
    %992 = vmatpush1.xpose.msra.mxu0 %v334
    %993 = vmatprep.subr.mxu0 %v351
    %994 = vmatpush1.xpose.msra.mxu0 %v350
    %995 = vmatprep.subr.mxu0 %v367
    %996 = vmatpush1.xpose.msra.mxu0 %v366
    %997 = vmatprep.subr.mxu0 %v383
    %998 = vmatpush1.xpose.msra.mxu0 %v382
    %999 = vmatprep.subr.mxu0 %v399
    %1000 = vmatpush1.xpose.msra.mxu0 %v398
    %1001 = vmatprep.subr.mxu0 %v415
    %1002 = vmatpush1.xpose.msra.mxu0 %v414
    %1003 = vmatprep.subr.mxu0 %v431
    %1004 = vmatpush1.xpose.msra.mxu0 %v430
    %1005 = vmatprep.subr.mxu0 %v447
    %1006 = vmatpush1.xpose.msra.mxu0 %v446
    %1007 = vmatprep.subr.mxu0 %v463
    %1008 = vmatpush1.xpose.msra.mxu0 %v462
    %1009 = vmatprep.subr.mxu0 %v479
    %1010 = vmatpush1.xpose.msra.mxu0 %v478
    %1011 = vmatprep.subr.mxu0 %v495
    %1012 = vmatpush1.xpose.msra.mxu0 %v494
    %1013 = vmatprep.subr.mxu0 %v511
    %1014 = vmatpush1.xpose.msra.mxu0 %v510
    %1015 = vmatprep.subr.mxu0 %v527
    %1016 = vmatpush1.xpose.msra.mxu0 %v526
    %1017 = vmatprep.subr.mxu0 %v543
    %1018 = vmatpush1.xpose.msra.mxu0 %v542
    %1019 = vmatprep.subr.mxu0 %v559
    %1020 = vmatpush1.xpose.msra.mxu0 %v558
    %1021 = vmatprep.subr.mxu0 %v575
    %1022 = vmatpush1.xpose.msra.mxu0 %v574
    %1023 = vmatprep.subr.mxu0 %v591
    %1024 = vmatpush1.xpose.msra.mxu0 %v590
    %1025 = vmatprep.subr.mxu0 %v607
    %1026 = vmatpush1.xpose.msra.mxu0 %v606
    %1027 = vmatprep.subr.mxu0 %v623
    %1028 = vmatpush1.xpose.msra.mxu0 %v622
    %1029 = vmatprep.subr.mxu0 %v639
    %1030 = vmatpush1.xpose.msra.mxu0 %v638
    %1031 = vmatprep.subr.mxu0 %v655
    %1032 = vmatpush1.xpose.msra.mxu0 %v654
    %1033 = vmatprep.subr.mxu0 %v671
    %1034 = vmatpush1.xpose.msra.mxu0 %v670
    %1035 = vmatprep.subr.mxu0 %v687
    %1036 = vmatpush1.xpose.msra.mxu0 %v686
    %1037 = vmatprep.subr.mxu0 %v703
    %1038 = vmatpush1.xpose.msra.mxu0 %v702
    %1039 = vmatprep.subr.mxu0 %v719
    %1040 = vmatpush1.xpose.msra.mxu0 %v718
    %1041 = vmatprep.subr.mxu0 %v735
    %1042 = vmatpush1.xpose.msra.mxu0 %v734
    %1043 = vmatprep.subr.mxu0 %v751
    %1044 = vmatpush1.xpose.msra.mxu0 %v750
    %1045 = vmatprep.subr.mxu0 %v767
    %1046 = vmatpush1.xpose.msra.mxu0 %v766
    %1047 = vmatprep.subr.mxu0 %v783
    %1048 = vmatpush1.xpose.msra.mxu0 %v782
    %1049 = vmatprep.subr.mxu0 %v799
    %1050 = vmatpush1.xpose.msra.mxu0 %v798
    %1051 = vmatprep.subr.mxu0 %v815
    %1052 = vmatpush1.xpose.msra.mxu0 %v814
    %1053 = vmatprep.mubr.f32.mxu0 %v63
    %1054 = vmatmul.mubr.f32.gmra.mrb[0].mxu0 %v62
    %v1055 = vpop.f32.mrb[0].mxu0
    %v1056 = vadd.f32 %v895, %v1055
    %v1057 = vpop.f32.mrb[0].mxu0
    %v1058 = vadd.f32 %v897, %v1057
    %1059 = vmatprep.mubr.f32.mxu0 %v79
    %1060 = vmatmul.mubr.f32.gmra.mrb[0].mxu0 %v78
    %v1061 = vpop.f32.mrb[0].mxu0
    %v1062 = vadd.f32 %v901, %v1061
    %v1063 = vpop.f32.mrb[0].mxu0
    %v1064 = vadd.f32 %v903, %v1063
    %1065 = vmatprep.mubr.f32.mxu0 %v95
    %1066 = vmatmul.mubr.f32.gmra.mrb[0].mxu0 %v94
    %v1067 = vpop.f32.mrb[0].mxu0
    %v1068 = vadd.f32 %v907, %v1067
    %v1069 = vpop.f32.mrb[0].mxu0
    %v1070 = vadd.f32 %v909, %v1069
    %1071 = vmatprep.mubr.f32.mxu0 %v111
    %1072 = vmatmul.mubr.f32.gmra.mrb[0].mxu0 %v110
    %v1073 = vpop.f32.mrb[0].mxu0
    %v1074 = vadd.f32 %v913, %v1073
    %v1075 = vpop.f32.mrb[0].mxu0
    %v1076 = vadd.f32 %v915, %v1075
    %1077 = vmatprep.mubr.f32.mxu0 %v127
    %1078 = vmatmul.mubr.f32.gmra.mrb[0].mxu0 %v126
    %v1079 = vpop.f32.mrb[0].mxu0
    %v1080 = vadd.f32 %v919, %v1079
    %v1081 = vpop.f32.mrb[0].mxu0
    %v1082 = vadd.f32 %v921, %v1081
    %1083 = vmatprep.mubr.f32.mxu0 %v143
    %1084 = vmatmul.mubr.f32.gmra.mrb[0].mxu0 %v142
    %v1085 = vpop.f32.mrb[0].mxu0
    %v1086 = vadd.f32 %v925, %v1085
    %v1087 = vpop.f32.mrb[0].mxu0
    %v1088 = vadd.f32 %v927, %v1087
    %1089 = vmatprep.mubr.f32.mxu0 %v159
    %1090 = vmatmul.mubr.f32.gmra.mrb[0].mxu0 %v158
    %v1091 = vpop.f32.mrb[0].mxu0
    %v1092 = vadd.f32 %v931, %v1091
    %v1093 = vpop.f32.mrb[0].mxu0
    %v1094 = vadd.f32 %v933, %v1093
    %1095 = vmatprep.mubr.f32.mxu0 %v175
    %1096 = vmatmul.mubr.f32.gmra.mrb[0].mxu0 %v174
    %v1097 = vpop.f32.mrb[0].mxu0
    %v1098 = vadd.f32 %v937, %v1097
    %v1099 = vpop.f32.mrb[0].mxu0
    %v1100 = vadd.f32 %v939, %v1099
    %1101 = vmatprep.mubr.f32.mxu0 %v191
    %1102 = vmatmul.mubr.f32.gmra.mrb[0].mxu0 %v190
    %v1103 = vpop.f32.mrb[0].mxu0
    %v1104 = vadd.f32 %v943, %v1103
    %v1105 = vpop.f32.mrb[0].mxu0
    %v1106 = vadd.f32 %v945, %v1105
    %1107 = vmatprep.mubr.f32.mxu0 %v207
    %1108 = vmatmul.mubr.f32.gmra.mrb[0].mxu0 %v206
    %v1109 = vpop.f32.mrb[0].mxu0
    %v1110 = vadd.f32 %v949, %v1109
    %v1111 = vpop.f32.mrb[0].mxu0
    %v1112 = vadd.f32 %v951, %v1111
    %1113 = vmatprep.mubr.f32.mxu0 %v223
    %1114 = vmatmul.mubr.f32.gmra.mrb[0].mxu0 %v222
    %v1115 = vpop.f32.mrb[0].mxu0
    %v1116 = vadd.f32 %v955, %v1115
    %v1117 = vpop.f32.mrb[0].mxu0
    %v1118 = vadd.f32 %v957, %v1117
    %1119 = vmatprep.mubr.f32.mxu0 %v239
    %1120 = vmatmul.mubr.f32.gmra.mrb[0].mxu0 %v238
    %v1121 = vpop.f32.mrb[0].mxu0
    %v1122 = vadd.f32 %v961, %v1121
    %v1123 = vpop.f32.mrb[0].mxu0
    %v1124 = vadd.f32 %v963, %v1123
    %1125 = vmatprep.mubr.f32.mxu0 %v255
    %1126 = vmatmul.mubr.f32.gmra.mrb[0].mxu0 %v254
    %v1127 = vpop.f32.mrb[0].mxu0
    %v1128 = vadd.f32 %v967, %v1127
    %v1129 = vpop.f32.mrb[0].mxu0
    %v1130 = vadd.f32 %v969, %v1129
    %1131 = vmatprep.mubr.f32.mxu0 %v271
    %1132 = vmatmul.mubr.f32.gmra.mrb[0].mxu0 %v270
    %v1133 = vpop.f32.mrb[0].mxu0
    %v1134 = vadd.f32 %v973, %v1133
    %v1135 = vpop.f32.mrb[0].mxu0
    %v1136 = vadd.f32 %v975, %v1135
    %1137 = vmatprep.mubr.f32.mxu0 %v287
    %1138 = vmatmul.mubr.f32.gmra.mrb[0].mxu0 %v286
    %v1139 = vpop.f32.mrb[0].mxu0
    %v1140 = vadd.f32 %v979, %v1139
    %v1141 = vpop.f32.mrb[0].mxu0
    %v1142 = vadd.f32 %v981, %v1141
    %1143 = vmatprep.mubr.f32.mxu0 %v303
    %1144 = vmatmul.mubr.f32.gmra.mrb[0].mxu0 %v302
    %v1145 = vpop.f32.mrb[0].mxu0
    %v1146 = vadd.f32 %v985, %v1145
    %v1147 = vpop.f32.mrb[0].mxu0
    %v1148 = vadd.f32 %v987, %v1147
    %1149 = vdwg.mxu0
    %1150 = vmatprep.subr.mxu0 %v321
    %1151 = vmatpush1.xpose.msra.mxu0 %v320
    %1152 = vmatprep.subr.mxu0 %v337
    %1153 = vmatpush1.xpose.msra.mxu0 %v336
    %1154 = vmatprep.subr.mxu0 %v353
    %1155 = vmatpush1.xpose.msra.mxu0 %v352
    %1156 = vmatprep.subr.mxu0 %v369
    %1157 = vmatpush1.xpose.msra.mxu0 %v368
    %1158 = vmatprep.subr.mxu0 %v385
    %1159 = vmatpush1.xpose.msra.mxu0 %v384
    %1160 = vmatprep.subr.mxu0 %v401
    %1161 = vmatpush1.xpose.msra.mxu0 %v400
    %1162 = vmatprep.subr.mxu0 %v417
    %1163 = vmatpush1.xpose.msra.mxu0 %v416
    %1164 = vmatprep.subr.mxu0 %v433
    %1165 = vmatpush1.xpose.msra.mxu0 %v432
    %1166 = vmatprep.subr.mxu0 %v449
    %1167 = vmatpush1.xpose.msra.mxu0 %v448
    %1168 = vmatprep.subr.mxu0 %v465
    %1169 = vmatpush1.xpose.msra.mxu0 %v464
    %1170 = vmatprep.subr.mxu0 %v481
    %1171 = vmatpush1.xpose.msra.mxu0 %v480
    %1172 = vmatprep.subr.mxu0 %v497
    %1173 = vmatpush1.xpose.msra.mxu0 %v496
    %1174 = vmatprep.subr.mxu0 %v513
    %1175 = vmatpush1.xpose.msra.mxu0 %v512
    %1176 = vmatprep.subr.mxu0 %v529
    %1177 = vmatpush1.xpose.msra.mxu0 %v528
    %1178 = vmatprep.subr.mxu0 %v545
    %1179 = vmatpush1.xpose.msra.mxu0 %v544
    %1180 = vmatprep.subr.mxu0 %v561
    %1181 = vmatpush1.xpose.msra.mxu0 %v560
    %1182 = vmatprep.subr.mxu0 %v577
    %1183 = vmatpush1.xpose.msra.mxu0 %v576
    %1184 = vmatprep.subr.mxu0 %v593
    %1185 = vmatpush1.xpose.msra.mxu0 %v592
    %1186 = vmatprep.subr.mxu0 %v609
    %1187 = vmatpush1.xpose.msra.mxu0 %v608
    %1188 = vmatprep.subr.mxu0 %v625
    %1189 = vmatpush1.xpose.msra.mxu0 %v624
    %1190 = vmatprep.subr.mxu0 %v641
    %1191 = vmatpush1.xpose.msra.mxu0 %v640
    %1192 = vmatprep.subr.mxu0 %v657
    %1193 = vmatpush1.xpose.msra.mxu0 %v656
    %1194 = vmatprep.subr.mxu0 %v673
    %1195 = vmatpush1.xpose.msra.mxu0 %v672
    %1196 = vmatprep.subr.mxu0 %v689
    %1197 = vmatpush1.xpose.msra.mxu0 %v688
    %1198 = vmatprep.subr.mxu0 %v705
    %1199 = vmatpush1.xpose.msra.mxu0 %v704
    %1200 = vmatprep.subr.mxu0 %v721
    %1201 = vmatpush1.xpose.msra.mxu0 %v720
    %1202 = vmatprep.subr.mxu0 %v737
    %1203 = vmatpush1.xpose.msra.mxu0 %v736
    %1204 = vmatprep.subr.mxu0 %v753
    %1205 = vmatpush1.xpose.msra.mxu0 %v752
    %1206 = vmatprep.subr.mxu0 %v769
    %1207 = vmatpush1.xpose.msra.mxu0 %v768
    %1208 = vmatprep.subr.mxu0 %v785
    %1209 = vmatpush1.xpose.msra.mxu0 %v784
    %1210 = vmatprep.subr.mxu0 %v801
    %1211 = vmatpush1.xpose.msra.mxu0 %v800
    %1212 = vmatprep.subr.mxu0 %v817
    %1213 = vmatpush1.xpose.msra.mxu0 %v816
    %1214 = vmatprep.mubr.f32.mxu0 %v65
    %1215 = vmatmul.mubr.f32.gmra.mrb[0].mxu0 %v64
    %v1216 = vpop.f32.mrb[0].mxu0
    %v1217 = vadd.f32 %v1056, %v1216
    %v1218 = vpop.f32.mrb[0].mxu0
    %v1219 = vadd.f32 %v1058, %v1218
    %1220 = vmatprep.mubr.f32.mxu0 %v81
    %1221 = vmatmul.mubr.f32.gmra.mrb[0].mxu0 %v80
    %v1222 = vpop.f32.mrb[0].mxu0
    %v1223 = vadd.f32 %v1062, %v1222
    %v1224 = vpop.f32.mrb[0].mxu0
    %v1225 = vadd.f32 %v1064, %v1224
    %1226 = vmatprep.mubr.f32.mxu0 %v97
    %1227 = vmatmul.mubr.f32.gmra.mrb[0].mxu0 %v96
    %v1228 = vpop.f32.mrb[0].mxu0
    %v1229 = vadd.f32 %v1068, %v1228
    %v1230 = vpop.f32.mrb[0].mxu0
    %v1231 = vadd.f32 %v1070, %v1230
    %1232 = vmatprep.mubr.f32.mxu0 %v113
    %1233 = vmatmul.mubr.f32.gmra.mrb[0].mxu0 %v112
    %v1234 = vpop.f32.mrb[0].mxu0
    %v1235 = vadd.f32 %v1074, %v1234
    %v1236 = vpop.f32.mrb[0].mxu0
    %v1237 = vadd.f32 %v1076, %v1236
    %1238 = vmatprep.mubr.f32.mxu0 %v129
    %1239 = vmatmul.mubr.f32.gmra.mrb[0].mxu0 %v128
    %v1240 = vpop.f32.mrb[0].mxu0
    %v1241 = vadd.f32 %v1080, %v1240
    %v1242 = vpop.f32.mrb[0].mxu0
    %v1243 = vadd.f32 %v1082, %v1242
    %1244 = vmatprep.mubr.f32.mxu0 %v145
    %1245 = vmatmul.mubr.f32.gmra.mrb[0].mxu0 %v144
    %v1246 = vpop.f32.mrb[0].mxu0
    %v1247 = vadd.f32 %v1086, %v1246
    %v1248 = vpop.f32.mrb[0].mxu0
    %v1249 = vadd.f32 %v1088, %v1248
    %1250 = vmatprep.mubr.f32.mxu0 %v161
    %1251 = vmatmul.mubr.f32.gmra.mrb[0].mxu0 %v160
    %v1252 = vpop.f32.mrb[0].mxu0
    %v1253 = vadd.f32 %v1092, %v1252
    %v1254 = vpop.f32.mrb[0].mxu0
    %v1255 = vadd.f32 %v1094, %v1254
    %1256 = vmatprep.mubr.f32.mxu0 %v177
    %1257 = vmatmul.mubr.f32.gmra.mrb[0].mxu0 %v176
    %v1258 = vpop.f32.mrb[0].mxu0
    %v1259 = vadd.f32 %v1098, %v1258
    %v1260 = vpop.f32.mrb[0].mxu0
    %v1261 = vadd.f32 %v1100, %v1260
    %1262 = vmatprep.mubr.f32.mxu0 %v193
    %1263 = vmatmul.mubr.f32.gmra.mrb[0].mxu0 %v192
    %v1264 = vpop.f32.mrb[0].mxu0
    %v1265 = vadd.f32 %v1104, %v1264
    %v1266 = vpop.f32.mrb[0].mxu0
    %v1267 = vadd.f32 %v1106, %v1266
    %1268 = vmatprep.mubr.f32.mxu0 %v209
    %1269 = vmatmul.mubr.f32.gmra.mrb[0].mxu0 %v208
    %v1270 = vpop.f32.mrb[0].mxu0
    %v1271 = vadd.f32 %v1110, %v1270
    %v1272 = vpop.f32.mrb[0].mxu0
    %v1273 = vadd.f32 %v1112, %v1272
    %1274 = vmatprep.mubr.f32.mxu0 %v225
    %1275 = vmatmul.mubr.f32.gmra.mrb[0].mxu0 %v224
    %v1276 = vpop.f32.mrb[0].mxu0
    %v1277 = vadd.f32 %v1116, %v1276
    %v1278 = vpop.f32.mrb[0].mxu0
    %v1279 = vadd.f32 %v1118, %v1278
    %1280 = vmatprep.mubr.f32.mxu0 %v241
    %1281 = vmatmul.mubr.f32.gmra.mrb[0].mxu0 %v240
    %v1282 = vpop.f32.mrb[0].mxu0
    %v1283 = vadd.f32 %v1122, %v1282
    %v1284 = vpop.f32.mrb[0].mxu0
    %v1285 = vadd.f32 %v1124, %v1284
    %1286 = vmatprep.mubr.f32.mxu0 %v257
    %1287 = vmatmul.mubr.f32.gmra.mrb[0].mxu0 %v256
    %v1288 = vpop.f32.mrb[0].mxu0
    %v1289 = vadd.f32 %v1128, %v1288
    %v1290 = vpop.f32.mrb[0].mxu0
    %v1291 = vadd.f32 %v1130, %v1290
    %1292 = vmatprep.mubr.f32.mxu0 %v273
    %1293 = vmatmul.mubr.f32.gmra.mrb[0].mxu0 %v272
    %v1294 = vpop.f32.mrb[0].mxu0
    %v1295 = vadd.f32 %v1134, %v1294
    %v1296 = vpop.f32.mrb[0].mxu0
    %v1297 = vadd.f32 %v1136, %v1296
    %1298 = vmatprep.mubr.f32.mxu0 %v289
    %1299 = vmatmul.mubr.f32.gmra.mrb[0].mxu0 %v288
    %v1300 = vpop.f32.mrb[0].mxu0
    %v1301 = vadd.f32 %v1140, %v1300
    %v1302 = vpop.f32.mrb[0].mxu0
    %v1303 = vadd.f32 %v1142, %v1302
    %1304 = vmatprep.mubr.f32.mxu0 %v305
    %1305 = vmatmul.mubr.f32.gmra.mrb[0].mxu0 %v304
    %v1306 = vpop.f32.mrb[0].mxu0
    %v1307 = vadd.f32 %v1146, %v1306
    %v1308 = vpop.f32.mrb[0].mxu0
    %v1309 = vadd.f32 %v1148, %v1308
    %1310 = vdwg.mxu0
    %1311 = vmatprep.subr.mxu0 %v323
    %1312 = vmatpush1.xpose.msra.mxu0 %v322
    %1313 = vmatprep.subr.mxu0 %v339
    %1314 = vmatpush1.xpose.msra.mxu0 %v338
    %1315 = vmatprep.subr.mxu0 %v355
    %1316 = vmatpush1.xpose.msra.mxu0 %v354
    %1317 = vmatprep.subr.mxu0 %v371
    %1318 = vmatpush1.xpose.msra.mxu0 %v370
    %1319 = vmatprep.subr.mxu0 %v387
    %1320 = vmatpush1.xpose.msra.mxu0 %v386
    %1321 = vmatprep.subr.mxu0 %v403
    %1322 = vmatpush1.xpose.msra.mxu0 %v402
    %1323 = vmatprep.subr.mxu0 %v419
    %1324 = vmatpush1.xpose.msra.mxu0 %v418
    %1325 = vmatprep.subr.mxu0 %v435
    %1326 = vmatpush1.xpose.msra.mxu0 %v434
    %1327 = vmatprep.subr.mxu0 %v451
    %1328 = vmatpush1.xpose.msra.mxu0 %v450
    %1329 = vmatprep.subr.mxu0 %v467
    %1330 = vmatpush1.xpose.msra.mxu0 %v466
    %1331 = vmatprep.subr.mxu0 %v483
    %1332 = vmatpush1.xpose.msra.mxu0 %v482
    %1333 = vmatprep.subr.mxu0 %v499
    %1334 = vmatpush1.xpose.msra.mxu0 %v498
    %1335 = vmatprep.subr.mxu0 %v515
    %1336 = vmatpush1.xpose.msra.mxu0 %v514
    %1337 = vmatprep.subr.mxu0 %v531
    %1338 = vmatpush1.xpose.msra.mxu0 %v530
    %1339 = vmatprep.subr.mxu0 %v547
    %1340 = vmatpush1.xpose.msra.mxu0 %v546
    %1341 = vmatprep.subr.mxu0 %v563
    %1342 = vmatpush1.xpose.msra.mxu0 %v562
    %1343 = vmatprep.subr.mxu0 %v579
    %1344 = vmatpush1.xpose.msra.mxu0 %v578
    %1345 = vmatprep.subr.mxu0 %v595
    %1346 = vmatpush1.xpose.msra.mxu0 %v594
    %1347 = vmatprep.subr.mxu0 %v611
    %1348 = vmatpush1.xpose.msra.mxu0 %v610
    %1349 = vmatprep.subr.mxu0 %v627
    %1350 = vmatpush1.xpose.msra.mxu0 %v626
    %1351 = vmatprep.subr.mxu0 %v643
    %1352 = vmatpush1.xpose.msra.mxu0 %v642
    %1353 = vmatprep.subr.mxu0 %v659
    %1354 = vmatpush1.xpose.msra.mxu0 %v658
    %1355 = vmatprep.subr.mxu0 %v675
    %1356 = vmatpush1.xpose.msra.mxu0 %v674
    %1357 = vmatprep.subr.mxu0 %v691
    %1358 = vmatpush1.xpose.msra.mxu0 %v690
    %1359 = vmatprep.subr.mxu0 %v707
    %1360 = vmatpush1.xpose.msra.mxu0 %v706
    %1361 = vmatprep.subr.mxu0 %v723
    %1362 = vmatpush1.xpose.msra.mxu0 %v722
    %1363 = vmatprep.subr.mxu0 %v739
    %1364 = vmatpush1.xpose.msra.mxu0 %v738
    %1365 = vmatprep.subr.mxu0 %v755
    %1366 = vmatpush1.xpose.msra.mxu0 %v754
    %1367 = vmatprep.subr.mxu0 %v771
    %1368 = vmatpush1.xpose.msra.mxu0 %v770
    %1369 = vmatprep.subr.mxu0 %v787
    %1370 = vmatpush1.xpose.msra.mxu0 %v786
    %1371 = vmatprep.subr.mxu0 %v803
    %1372 = vmatpush1.xpose.msra.mxu0 %v802
    %1373 = vmatprep.subr.mxu0 %v819
    %1374 = vmatpush1.xpose.msra.mxu0 %v818
    %1375 = vmatprep.mubr.f32.mxu0 %v67
    %1376 = vmatmul.mubr.f32.gmra.mrb[0].mxu0 %v66
    %v1377 = vpop.f32.mrb[0].mxu0
    %v1378 = vadd.f32 %v1217, %v1377
    %v1379 = vpop.f32.mrb[0].mxu0
    %v1380 = vadd.f32 %v1219, %v1379
    %1381 = vmatprep.mubr.f32.mxu0 %v83
    %1382 = vmatmul.mubr.f32.gmra.mrb[0].mxu0 %v82
    %v1383 = vpop.f32.mrb[0].mxu0
    %v1384 = vadd.f32 %v1223, %v1383
    %v1385 = vpop.f32.mrb[0].mxu0
    %v1386 = vadd.f32 %v1225, %v1385
    %1387 = vmatprep.mubr.f32.mxu0 %v99
    %1388 = vmatmul.mubr.f32.gmra.mrb[0].mxu0 %v98
    %v1389 = vpop.f32.mrb[0].mxu0
    %v1390 = vadd.f32 %v1229, %v1389
    %v1391 = vpop.f32.mrb[0].mxu0
    %v1392 = vadd.f32 %v1231, %v1391
    %1393 = vmatprep.mubr.f32.mxu0 %v115
    %1394 = vmatmul.mubr.f32.gmra.mrb[0].mxu0 %v114
    %v1395 = vpop.f32.mrb[0].mxu0
    %v1396 = vadd.f32 %v1235, %v1395
    %v1397 = vpop.f32.mrb[0].mxu0
    %v1398 = vadd.f32 %v1237, %v1397
    %1399 = vmatprep.mubr.f32.mxu0 %v131
    %1400 = vmatmul.mubr.f32.gmra.mrb[0].mxu0 %v130
    %v1401 = vpop.f32.mrb[0].mxu0
    %v1402 = vadd.f32 %v1241, %v1401
    %v1403 = vpop.f32.mrb[0].mxu0
    %v1404 = vadd.f32 %v1243, %v1403
    %1405 = vmatprep.mubr.f32.mxu0 %v147
    %1406 = vmatmul.mubr.f32.gmra.mrb[0].mxu0 %v146
    %v1407 = vpop.f32.mrb[0].mxu0
    %v1408 = vadd.f32 %v1247, %v1407
    %v1409 = vpop.f32.mrb[0].mxu0
    %v1410 = vadd.f32 %v1249, %v1409
    %1411 = vmatprep.mubr.f32.mxu0 %v163
    %1412 = vmatmul.mubr.f32.gmra.mrb[0].mxu0 %v162
    %v1413 = vpop.f32.mrb[0].mxu0
    %v1414 = vadd.f32 %v1253, %v1413
    %v1415 = vpop.f32.mrb[0].mxu0
    %v1416 = vadd.f32 %v1255, %v1415
    %1417 = vmatprep.mubr.f32.mxu0 %v179
    %1418 = vmatmul.mubr.f32.gmra.mrb[0].mxu0 %v178
    %v1419 = vpop.f32.mrb[0].mxu0
    %v1420 = vadd.f32 %v1259, %v1419
    %v1421 = vpop.f32.mrb[0].mxu0
    %v1422 = vadd.f32 %v1261, %v1421
    %1423 = vmatprep.mubr.f32.mxu0 %v195
    %1424 = vmatmul.mubr.f32.gmra.mrb[0].mxu0 %v194
    %v1425 = vpop.f32.mrb[0].mxu0
    %v1426 = vadd.f32 %v1265, %v1425
    %v1427 = vpop.f32.mrb[0].mxu0
    %v1428 = vadd.f32 %v1267, %v1427
    %1429 = vmatprep.mubr.f32.mxu0 %v211
    %1430 = vmatmul.mubr.f32.gmra.mrb[0].mxu0 %v210
    %v1431 = vpop.f32.mrb[0].mxu0
    %v1432 = vadd.f32 %v1271, %v1431
    %v1433 = vpop.f32.mrb[0].mxu0
    %v1434 = vadd.f32 %v1273, %v1433
    %1435 = vmatprep.mubr.f32.mxu0 %v227
    %1436 = vmatmul.mubr.f32.gmra.mrb[0].mxu0 %v226
    %v1437 = vpop.f32.mrb[0].mxu0
    %v1438 = vadd.f32 %v1277, %v1437
    %v1439 = vpop.f32.mrb[0].mxu0
    %v1440 = vadd.f32 %v1279, %v1439
    %1441 = vmatprep.mubr.f32.mxu0 %v243
    %1442 = vmatmul.mubr.f32.gmra.mrb[0].mxu0 %v242
    %v1443 = vpop.f32.mrb[0].mxu0
    %v1444 = vadd.f32 %v1283, %v1443
    %v1445 = vpop.f32.mrb[0].mxu0
    %v1446 = vadd.f32 %v1285, %v1445
    %1447 = vmatprep.mubr.f32.mxu0 %v259
    %1448 = vmatmul.mubr.f32.gmra.mrb[0].mxu0 %v258
    %v1449 = vpop.f32.mrb[0].mxu0
    %v1450 = vadd.f32 %v1289, %v1449
    %v1451 = vpop.f32.mrb[0].mxu0
    %v1452 = vadd.f32 %v1291, %v1451
    %1453 = vmatprep.mubr.f32.mxu0 %v275
    %1454 = vmatmul.mubr.f32.gmra.mrb[0].mxu0 %v274
    %v1455 = vpop.f32.mrb[0].mxu0
    %v1456 = vadd.f32 %v1295, %v1455
    %v1457 = vpop.f32.mrb[0].mxu0
    %v1458 = vadd.f32 %v1297, %v1457
    %1459 = vmatprep.mubr.f32.mxu0 %v291
    %1460 = vmatmul.mubr.f32.gmra.mrb[0].mxu0 %v290
    %v1461 = vpop.f32.mrb[0].mxu0
    %v1462 = vadd.f32 %v1301, %v1461
    %v1463 = vpop.f32.mrb[0].mxu0
    %v1464 = vadd.f32 %v1303, %v1463
    %1465 = vmatprep.mubr.f32.mxu0 %v307
    %1466 = vmatmul.mubr.f32.gmra.mrb[0].mxu0 %v306
    %v1467 = vpop.f32.mrb[0].mxu0
    %v1468 = vadd.f32 %v1307, %v1467
    %v1469 = vpop.f32.mrb[0].mxu0
    %v1470 = vadd.f32 %v1309, %v1469
    %1471 = vdwg.mxu0
    %1472 = vmatprep.subr.mxu0 %v325
    %1473 = vmatpush1.xpose.msra.mxu0 %v324
    %1474 = vmatprep.subr.mxu0 %v341
    %1475 = vmatpush1.xpose.msra.mxu0 %v340
    %1476 = vmatprep.subr.mxu0 %v357
    %1477 = vmatpush1.xpose.msra.mxu0 %v356
    %1478 = vmatprep.subr.mxu0 %v373
    %1479 = vmatpush1.xpose.msra.mxu0 %v372
    %1480 = vmatprep.subr.mxu0 %v389
    %1481 = vmatpush1.xpose.msra.mxu0 %v388
    %1482 = vmatprep.subr.mxu0 %v405
    %1483 = vmatpush1.xpose.msra.mxu0 %v404
    %1484 = vmatprep.subr.mxu0 %v421
    %1485 = vmatpush1.xpose.msra.mxu0 %v420
    %1486 = vmatprep.subr.mxu0 %v437
    %1487 = vmatpush1.xpose.msra.mxu0 %v436
    %1488 = vmatprep.subr.mxu0 %v453
    %1489 = vmatpush1.xpose.msra.mxu0 %v452
    %1490 = vmatprep.subr.mxu0 %v469
    %1491 = vmatpush1.xpose.msra.mxu0 %v468
    %1492 = vmatprep.subr.mxu0 %v485
    %1493 = vmatpush1.xpose.msra.mxu0 %v484
    %1494 = vmatprep.subr.mxu0 %v501
    %1495 = vmatpush1.xpose.msra.mxu0 %v500
    %1496 = vmatprep.subr.mxu0 %v517
    %1497 = vmatpush1.xpose.msra.mxu0 %v516
    %1498 = vmatprep.subr.mxu0 %v533
    %1499 = vmatpush1.xpose.msra.mxu0 %v532
    %1500 = vmatprep.subr.mxu0 %v549
    %1501 = vmatpush1.xpose.msra.mxu0 %v548
    %1502 = vmatprep.subr.mxu0 %v565
    %1503 = vmatpush1.xpose.msra.mxu0 %v564
    %1504 = vmatprep.subr.mxu0 %v581
    %1505 = vmatpush1.xpose.msra.mxu0 %v580
    %1506 = vmatprep.subr.mxu0 %v597
    %1507 = vmatpush1.xpose.msra.mxu0 %v596
    %1508 = vmatprep.subr.mxu0 %v613
    %1509 = vmatpush1.xpose.msra.mxu0 %v612
    %1510 = vmatprep.subr.mxu0 %v629
    %1511 = vmatpush1.xpose.msra.mxu0 %v628
    %1512 = vmatprep.subr.mxu0 %v645
    %1513 = vmatpush1.xpose.msra.mxu0 %v644
    %1514 = vmatprep.subr.mxu0 %v661
    %1515 = vmatpush1.xpose.msra.mxu0 %v660
    %1516 = vmatprep.subr.mxu0 %v677
    %1517 = vmatpush1.xpose.msra.mxu0 %v676
    %1518 = vmatprep.subr.mxu0 %v693
    %1519 = vmatpush1.xpose.msra.mxu0 %v692
    %1520 = vmatprep.subr.mxu0 %v709
    %1521 = vmatpush1.xpose.msra.mxu0 %v708
    %1522 = vmatprep.subr.mxu0 %v725
    %1523 = vmatpush1.xpose.msra.mxu0 %v724
    %1524 = vmatprep.subr.mxu0 %v741
    %1525 = vmatpush1.xpose.msra.mxu0 %v740
    %1526 = vmatprep.subr.mxu0 %v757
    %1527 = vmatpush1.xpose.msra.mxu0 %v756
    %1528 = vmatprep.subr.mxu0 %v773
    %1529 = vmatpush1.xpose.msra.mxu0 %v772
    %1530 = vmatprep.subr.mxu0 %v789
    %1531 = vmatpush1.xpose.msra.mxu0 %v788
    %1532 = vmatprep.subr.mxu0 %v805
    %1533 = vmatpush1.xpose.msra.mxu0 %v804
    %1534 = vmatprep.subr.mxu0 %v821
    %1535 = vmatpush1.xpose.msra.mxu0 %v820
    %1536 = vmatprep.mubr.f32.mxu0 %v69
    %1537 = vmatmul.mubr.f32.gmra.mrb[0].mxu0 %v68
    %v1538 = vpop.f32.mrb[0].mxu0
    %v1539 = vadd.f32 %v1378, %v1538
    %v1540 = vpop.f32.mrb[0].mxu0
    %v1541 = vadd.f32 %v1380, %v1540
    %1542 = vmatprep.mubr.f32.mxu0 %v85
    %1543 = vmatmul.mubr.f32.gmra.mrb[0].mxu0 %v84
    %v1544 = vpop.f32.mrb[0].mxu0
    %v1545 = vadd.f32 %v1384, %v1544
    %v1546 = vpop.f32.mrb[0].mxu0
    %v1547 = vadd.f32 %v1386, %v1546
    %1548 = vmatprep.mubr.f32.mxu0 %v101
    %1549 = vmatmul.mubr.f32.gmra.mrb[0].mxu0 %v100
    %v1550 = vpop.f32.mrb[0].mxu0
    %v1551 = vadd.f32 %v1390, %v1550
    %v1552 = vpop.f32.mrb[0].mxu0
    %v1553 = vadd.f32 %v1392, %v1552
    %1554 = vmatprep.mubr.f32.mxu0 %v117
    %1555 = vmatmul.mubr.f32.gmra.mrb[0].mxu0 %v116
    %v1556 = vpop.f32.mrb[0].mxu0
    %v1557 = vadd.f32 %v1396, %v1556
    %v1558 = vpop.f32.mrb[0].mxu0
    %v1559 = vadd.f32 %v1398, %v1558
    %1560 = vmatprep.mubr.f32.mxu0 %v133
    %1561 = vmatmul.mubr.f32.gmra.mrb[0].mxu0 %v132
    %v1562 = vpop.f32.mrb[0].mxu0
    %v1563 = vadd.f32 %v1402, %v1562
    %v1564 = vpop.f32.mrb[0].mxu0
    %v1565 = vadd.f32 %v1404, %v1564
    %1566 = vmatprep.mubr.f32.mxu0 %v149
    %1567 = vmatmul.mubr.f32.gmra.mrb[0].mxu0 %v148
    %v1568 = vpop.f32.mrb[0].mxu0
    %v1569 = vadd.f32 %v1408, %v1568
    %v1570 = vpop.f32.mrb[0].mxu0
    %v1571 = vadd.f32 %v1410, %v1570
    %1572 = vmatprep.mubr.f32.mxu0 %v165
    %1573 = vmatmul.mubr.f32.gmra.mrb[0].mxu0 %v164
    %v1574 = vpop.f32.mrb[0].mxu0
    %v1575 = vadd.f32 %v1414, %v1574
    %v1576 = vpop.f32.mrb[0].mxu0
    %v1577 = vadd.f32 %v1416, %v1576
    %1578 = vmatprep.mubr.f32.mxu0 %v181
    %1579 = vmatmul.mubr.f32.gmra.mrb[0].mxu0 %v180
    %v1580 = vpop.f32.mrb[0].mxu0
    %v1581 = vadd.f32 %v1420, %v1580
    %v1582 = vpop.f32.mrb[0].mxu0
    %v1583 = vadd.f32 %v1422, %v1582
    %1584 = vmatprep.mubr.f32.mxu0 %v197
    %1585 = vmatmul.mubr.f32.gmra.mrb[0].mxu0 %v196
    %v1586 = vpop.f32.mrb[0].mxu0
    %v1587 = vadd.f32 %v1426, %v1586
    %v1588 = vpop.f32.mrb[0].mxu0
    %v1589 = vadd.f32 %v1428, %v1588
    %1590 = vmatprep.mubr.f32.mxu0 %v213
    %1591 = vmatmul.mubr.f32.gmra.mrb[0].mxu0 %v212
    %v1592 = vpop.f32.mrb[0].mxu0
    %v1593 = vadd.f32 %v1432, %v1592
    %v1594 = vpop.f32.mrb[0].mxu0
    %v1595 = vadd.f32 %v1434, %v1594
    %1596 = vmatprep.mubr.f32.mxu0 %v229
    %1597 = vmatmul.mubr.f32.gmra.mrb[0].mxu0 %v228
    %v1598 = vpop.f32.mrb[0].mxu0
    %v1599 = vadd.f32 %v1438, %v1598
    %v1600 = vpop.f32.mrb[0].mxu0
    %v1601 = vadd.f32 %v1440, %v1600
    %1602 = vmatprep.mubr.f32.mxu0 %v245
    %1603 = vmatmul.mubr.f32.gmra.mrb[0].mxu0 %v244
    %v1604 = vpop.f32.mrb[0].mxu0
    %v1605 = vadd.f32 %v1444, %v1604
    %v1606 = vpop.f32.mrb[0].mxu0
    %v1607 = vadd.f32 %v1446, %v1606
    %1608 = vmatprep.mubr.f32.mxu0 %v261
    %1609 = vmatmul.mubr.f32.gmra.mrb[0].mxu0 %v260
    %v1610 = vpop.f32.mrb[0].mxu0
    %v1611 = vadd.f32 %v1450, %v1610
    %v1612 = vpop.f32.mrb[0].mxu0
    %v1613 = vadd.f32 %v1452, %v1612
    %1614 = vmatprep.mubr.f32.mxu0 %v277
    %1615 = vmatmul.mubr.f32.gmra.mrb[0].mxu0 %v276
    %v1616 = vpop.f32.mrb[0].mxu0
    %v1617 = vadd.f32 %v1456, %v1616
    %v1618 = vpop.f32.mrb[0].mxu0
    %v1619 = vadd.f32 %v1458, %v1618
    %1620 = vmatprep.mubr.f32.mxu0 %v293
    %1621 = vmatmul.mubr.f32.gmra.mrb[0].mxu0 %v292
    %v1622 = vpop.f32.mrb[0].mxu0
    %v1623 = vadd.f32 %v1462, %v1622
    %v1624 = vpop.f32.mrb[0].mxu0
    %v1625 = vadd.f32 %v1464, %v1624
    %1626 = vmatprep.mubr.f32.mxu0 %v309
    %1627 = vmatmul.mubr.f32.gmra.mrb[0].mxu0 %v308
    %v1628 = vpop.f32.mrb[0].mxu0
    %v1629 = vadd.f32 %v1468, %v1628
    %v1630 = vpop.f32.mrb[0].mxu0
    %v1631 = vadd.f32 %v1470, %v1630
    %1632 = vdwg.mxu0
    %1633 = vmatprep.subr.mxu0 %v327
    %1634 = vmatpush1.xpose.msra.mxu0 %v326
    %1635 = vmatprep.subr.mxu0 %v343
    %1636 = vmatpush1.xpose.msra.mxu0 %v342
    %1637 = vmatprep.subr.mxu0 %v359
    %1638 = vmatpush1.xpose.msra.mxu0 %v358
    %1639 = vmatprep.subr.mxu0 %v375
    %1640 = vmatpush1.xpose.msra.mxu0 %v374
    %1641 = vmatprep.subr.mxu0 %v391
    %1642 = vmatpush1.xpose.msra.mxu0 %v390
    %1643 = vmatprep.subr.mxu0 %v407
    %1644 = vmatpush1.xpose.msra.mxu0 %v406
    %1645 = vmatprep.subr.mxu0 %v423
    %1646 = vmatpush1.xpose.msra.mxu0 %v422
    %1647 = vmatprep.subr.mxu0 %v439
    %1648 = vmatpush1.xpose.msra.mxu0 %v438
    %1649 = vmatprep.subr.mxu0 %v455
    %1650 = vmatpush1.xpose.msra.mxu0 %v454
    %1651 = vmatprep.subr.mxu0 %v471
    %1652 = vmatpush1.xpose.msra.mxu0 %v470
    %1653 = vmatprep.subr.mxu0 %v487
    %1654 = vmatpush1.xpose.msra.mxu0 %v486
    %1655 = vmatprep.subr.mxu0 %v503
    %1656 = vmatpush1.xpose.msra.mxu0 %v502
    %1657 = vmatprep.subr.mxu0 %v519
    %1658 = vmatpush1.xpose.msra.mxu0 %v518
    %1659 = vmatprep.subr.mxu0 %v535
    %1660 = vmatpush1.xpose.msra.mxu0 %v534
    %1661 = vmatprep.subr.mxu0 %v551
    %1662 = vmatpush1.xpose.msra.mxu0 %v550
    %1663 = vmatprep.subr.mxu0 %v567
    %1664 = vmatpush1.xpose.msra.mxu0 %v566
    %1665 = vmatprep.subr.mxu0 %v583
    %1666 = vmatpush1.xpose.msra.mxu0 %v582
    %1667 = vmatprep.subr.mxu0 %v599
    %1668 = vmatpush1.xpose.msra.mxu0 %v598
    %1669 = vmatprep.subr.mxu0 %v615
    %1670 = vmatpush1.xpose.msra.mxu0 %v614
    %1671 = vmatprep.subr.mxu0 %v631
    %1672 = vmatpush1.xpose.msra.mxu0 %v630
    %1673 = vmatprep.subr.mxu0 %v647
    %1674 = vmatpush1.xpose.msra.mxu0 %v646
    %1675 = vmatprep.subr.mxu0 %v663
    %1676 = vmatpush1.xpose.msra.mxu0 %v662
    %1677 = vmatprep.subr.mxu0 %v679
    %1678 = vmatpush1.xpose.msra.mxu0 %v678
    %1679 = vmatprep.subr.mxu0 %v695
    %1680 = vmatpush1.xpose.msra.mxu0 %v694
    %1681 = vmatprep.subr.mxu0 %v711
    %1682 = vmatpush1.xpose.msra.mxu0 %v710
    %1683 = vmatprep.subr.mxu0 %v727
    %1684 = vmatpush1.xpose.msra.mxu0 %v726
    %1685 = vmatprep.subr.mxu0 %v743
    %1686 = vmatpush1.xpose.msra.mxu0 %v742
    %1687 = vmatprep.subr.mxu0 %v759
    %1688 = vmatpush1.xpose.msra.mxu0 %v758
    %1689 = vmatprep.subr.mxu0 %v775
    %1690 = vmatpush1.xpose.msra.mxu0 %v774
    %1691 = vmatprep.subr.mxu0 %v791
    %1692 = vmatpush1.xpose.msra.mxu0 %v790
    %1693 = vmatprep.subr.mxu0 %v807
    %1694 = vmatpush1.xpose.msra.mxu0 %v806
    %1695 = vmatprep.subr.mxu0 %v823
    %1696 = vmatpush1.xpose.msra.mxu0 %v822
    %1697 = vmatprep.mubr.f32.mxu0 %v71
    %1698 = vmatmul.mubr.f32.gmra.mrb[0].mxu0 %v70
    %v1699 = vpop.f32.mrb[0].mxu0
    %v1700 = vadd.f32 %v1539, %v1699
    %v1701 = vpop.f32.mrb[0].mxu0
    %v1702 = vadd.f32 %v1541, %v1701
    %1703 = vmatprep.mubr.f32.mxu0 %v87
    %1704 = vmatmul.mubr.f32.gmra.mrb[0].mxu0 %v86
    %v1705 = vpop.f32.mrb[0].mxu0
    %v1706 = vadd.f32 %v1545, %v1705
    %v1707 = vpop.f32.mrb[0].mxu0
    %v1708 = vadd.f32 %v1547, %v1707
    %1709 = vmatprep.mubr.f32.mxu0 %v103
    %1710 = vmatmul.mubr.f32.gmra.mrb[0].mxu0 %v102
    %v1711 = vpop.f32.mrb[0].mxu0
    %v1712 = vadd.f32 %v1551, %v1711
    %v1713 = vpop.f32.mrb[0].mxu0
    %v1714 = vadd.f32 %v1553, %v1713
    %1715 = vmatprep.mubr.f32.mxu0 %v119
    %1716 = vmatmul.mubr.f32.gmra.mrb[0].mxu0 %v118
    %v1717 = vpop.f32.mrb[0].mxu0
    %v1718 = vadd.f32 %v1557, %v1717
    %v1719 = vpop.f32.mrb[0].mxu0
    %v1720 = vadd.f32 %v1559, %v1719
    %1721 = vmatprep.mubr.f32.mxu0 %v135
    %1722 = vmatmul.mubr.f32.gmra.mrb[0].mxu0 %v134
    %v1723 = vpop.f32.mrb[0].mxu0
    %v1724 = vadd.f32 %v1563, %v1723
    %v1725 = vpop.f32.mrb[0].mxu0
    %v1726 = vadd.f32 %v1565, %v1725
    %1727 = vmatprep.mubr.f32.mxu0 %v151
    %1728 = vmatmul.mubr.f32.gmra.mrb[0].mxu0 %v150
    %v1729 = vpop.f32.mrb[0].mxu0
    %v1730 = vadd.f32 %v1569, %v1729
    %v1731 = vpop.f32.mrb[0].mxu0
    %v1732 = vadd.f32 %v1571, %v1731
    %1733 = vmatprep.mubr.f32.mxu0 %v167
    %1734 = vmatmul.mubr.f32.gmra.mrb[0].mxu0 %v166
    %v1735 = vpop.f32.mrb[0].mxu0
    %v1736 = vadd.f32 %v1575, %v1735
    %v1737 = vpop.f32.mrb[0].mxu0
    %v1738 = vadd.f32 %v1577, %v1737
    %1739 = vmatprep.mubr.f32.mxu0 %v183
    %1740 = vmatmul.mubr.f32.gmra.mrb[0].mxu0 %v182
    %v1741 = vpop.f32.mrb[0].mxu0
    %v1742 = vadd.f32 %v1581, %v1741
    %v1743 = vpop.f32.mrb[0].mxu0
    %v1744 = vadd.f32 %v1583, %v1743
    %1745 = vmatprep.mubr.f32.mxu0 %v199
    %1746 = vmatmul.mubr.f32.gmra.mrb[0].mxu0 %v198
    %v1747 = vpop.f32.mrb[0].mxu0
    %v1748 = vadd.f32 %v1587, %v1747
    %v1749 = vpop.f32.mrb[0].mxu0
    %v1750 = vadd.f32 %v1589, %v1749
    %1751 = vmatprep.mubr.f32.mxu0 %v215
    %1752 = vmatmul.mubr.f32.gmra.mrb[0].mxu0 %v214
    %v1753 = vpop.f32.mrb[0].mxu0
    %v1754 = vadd.f32 %v1593, %v1753
    %v1755 = vpop.f32.mrb[0].mxu0
    %v1756 = vadd.f32 %v1595, %v1755
    %1757 = vmatprep.mubr.f32.mxu0 %v231
    %1758 = vmatmul.mubr.f32.gmra.mrb[0].mxu0 %v230
    %v1759 = vpop.f32.mrb[0].mxu0
    %v1760 = vadd.f32 %v1599, %v1759
    %v1761 = vpop.f32.mrb[0].mxu0
    %v1762 = vadd.f32 %v1601, %v1761
    %1763 = vmatprep.mubr.f32.mxu0 %v247
    %1764 = vmatmul.mubr.f32.gmra.mrb[0].mxu0 %v246
    %v1765 = vpop.f32.mrb[0].mxu0
    %v1766 = vadd.f32 %v1605, %v1765
    %v1767 = vpop.f32.mrb[0].mxu0
    %v1768 = vadd.f32 %v1607, %v1767
    %1769 = vmatprep.mubr.f32.mxu0 %v263
    %1770 = vmatmul.mubr.f32.gmra.mrb[0].mxu0 %v262
    %v1771 = vpop.f32.mrb[0].mxu0
    %v1772 = vadd.f32 %v1611, %v1771
    %v1773 = vpop.f32.mrb[0].mxu0
    %v1774 = vadd.f32 %v1613, %v1773
    %1775 = vmatprep.mubr.f32.mxu0 %v279
    %1776 = vmatmul.mubr.f32.gmra.mrb[0].mxu0 %v278
    %v1777 = vpop.f32.mrb[0].mxu0
    %v1778 = vadd.f32 %v1617, %v1777
    %v1779 = vpop.f32.mrb[0].mxu0
    %v1780 = vadd.f32 %v1619, %v1779
    %1781 = vmatprep.mubr.f32.mxu0 %v295
    %1782 = vmatmul.mubr.f32.gmra.mrb[0].mxu0 %v294
    %v1783 = vpop.f32.mrb[0].mxu0
    %v1784 = vadd.f32 %v1623, %v1783
    %v1785 = vpop.f32.mrb[0].mxu0
    %v1786 = vadd.f32 %v1625, %v1785
    %1787 = vmatprep.mubr.f32.mxu0 %v311
    %1788 = vmatmul.mubr.f32.gmra.mrb[0].mxu0 %v310
    %v1789 = vpop.f32.mrb[0].mxu0
    %v1790 = vadd.f32 %v1629, %v1789
    %v1791 = vpop.f32.mrb[0].mxu0
    %v1792 = vadd.f32 %v1631, %v1791
    %1793 = vdwg.mxu0
    %1794 = vmatprep.subr.mxu0 %v329
    %1795 = vmatpush1.xpose.msra.mxu0 %v328
    %1796 = vmatprep.subr.mxu0 %v345
    %1797 = vmatpush1.xpose.msra.mxu0 %v344
    %1798 = vmatprep.subr.mxu0 %v361
    %1799 = vmatpush1.xpose.msra.mxu0 %v360
    %1800 = vmatprep.subr.mxu0 %v377
    %1801 = vmatpush1.xpose.msra.mxu0 %v376
    %1802 = vmatprep.subr.mxu0 %v393
    %1803 = vmatpush1.xpose.msra.mxu0 %v392
    %1804 = vmatprep.subr.mxu0 %v409
    %1805 = vmatpush1.xpose.msra.mxu0 %v408
    %1806 = vmatprep.subr.mxu0 %v425
    %1807 = vmatpush1.xpose.msra.mxu0 %v424
    %1808 = vmatprep.subr.mxu0 %v441
    %1809 = vmatpush1.xpose.msra.mxu0 %v440
    %1810 = vmatprep.subr.mxu0 %v457
    %1811 = vmatpush1.xpose.msra.mxu0 %v456
    %1812 = vmatprep.subr.mxu0 %v473
    %1813 = vmatpush1.xpose.msra.mxu0 %v472
    %1814 = vmatprep.subr.mxu0 %v489
    %1815 = vmatpush1.xpose.msra.mxu0 %v488
    %1816 = vmatprep.subr.mxu0 %v505
    %1817 = vmatpush1.xpose.msra.mxu0 %v504
    %1818 = vmatprep.subr.mxu0 %v521
    %1819 = vmatpush1.xpose.msra.mxu0 %v520
    %1820 = vmatprep.subr.mxu0 %v537
    %1821 = vmatpush1.xpose.msra.mxu0 %v536
    %1822 = vmatprep.subr.mxu0 %v553
    %1823 = vmatpush1.xpose.msra.mxu0 %v552
    %1824 = vmatprep.subr.mxu0 %v569
    %1825 = vmatpush1.xpose.msra.mxu0 %v568
    %1826 = vmatprep.subr.mxu0 %v585
    %1827 = vmatpush1.xpose.msra.mxu0 %v584
    %1828 = vmatprep.subr.mxu0 %v601
    %1829 = vmatpush1.xpose.msra.mxu0 %v600
    %1830 = vmatprep.subr.mxu0 %v617
    %1831 = vmatpush1.xpose.msra.mxu0 %v616
    %1832 = vmatprep.subr.mxu0 %v633
    %1833 = vmatpush1.xpose.msra.mxu0 %v632
    %1834 = vmatprep.subr.mxu0 %v649
    %1835 = vmatpush1.xpose.msra.mxu0 %v648
    %1836 = vmatprep.subr.mxu0 %v665
    %1837 = vmatpush1.xpose.msra.mxu0 %v664
    %1838 = vmatprep.subr.mxu0 %v681
    %1839 = vmatpush1.xpose.msra.mxu0 %v680
    %1840 = vmatprep.subr.mxu0 %v697
    %1841 = vmatpush1.xpose.msra.mxu0 %v696
    %1842 = vmatprep.subr.mxu0 %v713
    %1843 = vmatpush1.xpose.msra.mxu0 %v712
    %1844 = vmatprep.subr.mxu0 %v729
    %1845 = vmatpush1.xpose.msra.mxu0 %v728
    %1846 = vmatprep.subr.mxu0 %v745
    %1847 = vmatpush1.xpose.msra.mxu0 %v744
    %1848 = vmatprep.subr.mxu0 %v761
    %1849 = vmatpush1.xpose.msra.mxu0 %v760
    %1850 = vmatprep.subr.mxu0 %v777
    %1851 = vmatpush1.xpose.msra.mxu0 %v776
    %1852 = vmatprep.subr.mxu0 %v793
    %1853 = vmatpush1.xpose.msra.mxu0 %v792
    %1854 = vmatprep.subr.mxu0 %v809
    %1855 = vmatpush1.xpose.msra.mxu0 %v808
    %1856 = vmatprep.subr.mxu0 %v825
    %1857 = vmatpush1.xpose.msra.mxu0 %v824
    %1858 = vmatprep.mubr.f32.mxu0 %v73
    %1859 = vmatmul.mubr.f32.gmra.mrb[0].mxu0 %v72
    %v1860 = vpop.f32.mrb[0].mxu0
    %v1861 = vadd.f32 %v1700, %v1860
    %v1862 = vpop.f32.mrb[0].mxu0
    %v1863 = vadd.f32 %v1702, %v1862
    %1864 = vmatprep.mubr.f32.mxu0 %v89
    %1865 = vmatmul.mubr.f32.gmra.mrb[0].mxu0 %v88
    %v1866 = vpop.f32.mrb[0].mxu0
    %v1867 = vadd.f32 %v1706, %v1866
    %v1868 = vpop.f32.mrb[0].mxu0
    %v1869 = vadd.f32 %v1708, %v1868
    %1870 = vmatprep.mubr.f32.mxu0 %v105
    %1871 = vmatmul.mubr.f32.gmra.mrb[0].mxu0 %v104
    %v1872 = vpop.f32.mrb[0].mxu0
    %v1873 = vadd.f32 %v1712, %v1872
    %v1874 = vpop.f32.mrb[0].mxu0
    %v1875 = vadd.f32 %v1714, %v1874
    %1876 = vmatprep.mubr.f32.mxu0 %v121
    %1877 = vmatmul.mubr.f32.gmra.mrb[0].mxu0 %v120
    %v1878 = vpop.f32.mrb[0].mxu0
    %v1879 = vadd.f32 %v1718, %v1878
    %v1880 = vpop.f32.mrb[0].mxu0
    %v1881 = vadd.f32 %v1720, %v1880
    %1882 = vmatprep.mubr.f32.mxu0 %v137
    %1883 = vmatmul.mubr.f32.gmra.mrb[0].mxu0 %v136
    %v1884 = vpop.f32.mrb[0].mxu0
    %v1885 = vadd.f32 %v1724, %v1884
    %v1886 = vpop.f32.mrb[0].mxu0
    %v1887 = vadd.f32 %v1726, %v1886
    %1888 = vmatprep.mubr.f32.mxu0 %v153
    %1889 = vmatmul.mubr.f32.gmra.mrb[0].mxu0 %v152
    %v1890 = vpop.f32.mrb[0].mxu0
    %v1891 = vadd.f32 %v1730, %v1890
    %v1892 = vpop.f32.mrb[0].mxu0
    %v1893 = vadd.f32 %v1732, %v1892
    %1894 = vmatprep.mubr.f32.mxu0 %v169
    %1895 = vmatmul.mubr.f32.gmra.mrb[0].mxu0 %v168
    %v1896 = vpop.f32.mrb[0].mxu0
    %v1897 = vadd.f32 %v1736, %v1896
    %v1898 = vpop.f32.mrb[0].mxu0
    %v1899 = vadd.f32 %v1738, %v1898
    %1900 = vmatprep.mubr.f32.mxu0 %v185
    %1901 = vmatmul.mubr.f32.gmra.mrb[0].mxu0 %v184
    %v1902 = vpop.f32.mrb[0].mxu0
    %v1903 = vadd.f32 %v1742, %v1902
    %v1904 = vpop.f32.mrb[0].mxu0
    %v1905 = vadd.f32 %v1744, %v1904
    %1906 = vmatprep.mubr.f32.mxu0 %v201
    %1907 = vmatmul.mubr.f32.gmra.mrb[0].mxu0 %v200
    %v1908 = vpop.f32.mrb[0].mxu0
    %v1909 = vadd.f32 %v1748, %v1908
    %v1910 = vpop.f32.mrb[0].mxu0
    %v1911 = vadd.f32 %v1750, %v1910
    %1912 = vmatprep.mubr.f32.mxu0 %v217
    %1913 = vmatmul.mubr.f32.gmra.mrb[0].mxu0 %v216
    %v1914 = vpop.f32.mrb[0].mxu0
    %v1915 = vadd.f32 %v1754, %v1914
    %v1916 = vpop.f32.mrb[0].mxu0
    %v1917 = vadd.f32 %v1756, %v1916
    %1918 = vmatprep.mubr.f32.mxu0 %v233
    %1919 = vmatmul.mubr.f32.gmra.mrb[0].mxu0 %v232
    %v1920 = vpop.f32.mrb[0].mxu0
    %v1921 = vadd.f32 %v1760, %v1920
    %v1922 = vpop.f32.mrb[0].mxu0
    %v1923 = vadd.f32 %v1762, %v1922
    %1924 = vmatprep.mubr.f32.mxu0 %v249
    %1925 = vmatmul.mubr.f32.gmra.mrb[0].mxu0 %v248
    %v1926 = vpop.f32.mrb[0].mxu0
    %v1927 = vadd.f32 %v1766, %v1926
    %v1928 = vpop.f32.mrb[0].mxu0
    %v1929 = vadd.f32 %v1768, %v1928
    %1930 = vmatprep.mubr.f32.mxu0 %v265
    %1931 = vmatmul.mubr.f32.gmra.mrb[0].mxu0 %v264
    %v1932 = vpop.f32.mrb[0].mxu0
    %v1933 = vadd.f32 %v1772, %v1932
    %v1934 = vpop.f32.mrb[0].mxu0
    %v1935 = vadd.f32 %v1774, %v1934
    %1936 = vmatprep.mubr.f32.mxu0 %v281
    %1937 = vmatmul.mubr.f32.gmra.mrb[0].mxu0 %v280
    %v1938 = vpop.f32.mrb[0].mxu0
    %v1939 = vadd.f32 %v1778, %v1938
    %v1940 = vpop.f32.mrb[0].mxu0
    %v1941 = vadd.f32 %v1780, %v1940
    %1942 = vmatprep.mubr.f32.mxu0 %v297
    %1943 = vmatmul.mubr.f32.gmra.mrb[0].mxu0 %v296
    %v1944 = vpop.f32.mrb[0].mxu0
    %v1945 = vadd.f32 %v1784, %v1944
    %v1946 = vpop.f32.mrb[0].mxu0
    %v1947 = vadd.f32 %v1786, %v1946
    %1948 = vmatprep.mubr.f32.mxu0 %v313
    %1949 = vmatmul.mubr.f32.gmra.mrb[0].mxu0 %v312
    %v1950 = vpop.f32.mrb[0].mxu0
    %v1951 = vadd.f32 %v1790, %v1950
    %v1952 = vpop.f32.mrb[0].mxu0
    %v1953 = vadd.f32 %v1792, %v1952
    %1954 = vdwg.mxu0
    %1955 = vmatprep.subr.mxu0 %v331
    %1956 = vmatpush1.xpose.msra.mxu0 %v330
    %1957 = vmatprep.subr.mxu0 %v347
    %1958 = vmatpush1.xpose.msra.mxu0 %v346
    %1959 = vmatprep.subr.mxu0 %v363
    %1960 = vmatpush1.xpose.msra.mxu0 %v362
    %1961 = vmatprep.subr.mxu0 %v379
    %1962 = vmatpush1.xpose.msra.mxu0 %v378
    %1963 = vmatprep.subr.mxu0 %v395
    %1964 = vmatpush1.xpose.msra.mxu0 %v394
    %1965 = vmatprep.subr.mxu0 %v411
    %1966 = vmatpush1.xpose.msra.mxu0 %v410
    %1967 = vmatprep.subr.mxu0 %v427
    %1968 = vmatpush1.xpose.msra.mxu0 %v426
    %1969 = vmatprep.subr.mxu0 %v443
    %1970 = vmatpush1.xpose.msra.mxu0 %v442
    %1971 = vmatprep.subr.mxu0 %v459
    %1972 = vmatpush1.xpose.msra.mxu0 %v458
    %1973 = vmatprep.subr.mxu0 %v475
    %1974 = vmatpush1.xpose.msra.mxu0 %v474
    %1975 = vmatprep.subr.mxu0 %v491
    %1976 = vmatpush1.xpose.msra.mxu0 %v490
    %1977 = vmatprep.subr.mxu0 %v507
    %1978 = vmatpush1.xpose.msra.mxu0 %v506
    %1979 = vmatprep.subr.mxu0 %v523
    %1980 = vmatpush1.xpose.msra.mxu0 %v522
    %1981 = vmatprep.subr.mxu0 %v539
    %1982 = vmatpush1.xpose.msra.mxu0 %v538
    %1983 = vmatprep.subr.mxu0 %v555
    %1984 = vmatpush1.xpose.msra.mxu0 %v554
    %1985 = vmatprep.subr.mxu0 %v571
    %1986 = vmatpush1.xpose.msra.mxu0 %v570
    %1987 = vmatprep.subr.mxu0 %v587
    %1988 = vmatpush1.xpose.msra.mxu0 %v586
    %1989 = vmatprep.subr.mxu0 %v603
    %1990 = vmatpush1.xpose.msra.mxu0 %v602
    %1991 = vmatprep.subr.mxu0 %v619
    %1992 = vmatpush1.xpose.msra.mxu0 %v618
    %1993 = vmatprep.subr.mxu0 %v635
    %1994 = vmatpush1.xpose.msra.mxu0 %v634
    %1995 = vmatprep.subr.mxu0 %v651
    %1996 = vmatpush1.xpose.msra.mxu0 %v650
    %1997 = vmatprep.subr.mxu0 %v667
    %1998 = vmatpush1.xpose.msra.mxu0 %v666
    %1999 = vmatprep.subr.mxu0 %v683
    %2000 = vmatpush1.xpose.msra.mxu0 %v682
    %2001 = vmatprep.subr.mxu0 %v699
    %2002 = vmatpush1.xpose.msra.mxu0 %v698
    %2003 = vmatprep.subr.mxu0 %v715
    %2004 = vmatpush1.xpose.msra.mxu0 %v714
    %2005 = vmatprep.subr.mxu0 %v731
    %2006 = vmatpush1.xpose.msra.mxu0 %v730
    %2007 = vmatprep.subr.mxu0 %v747
    %2008 = vmatpush1.xpose.msra.mxu0 %v746
    %2009 = vmatprep.subr.mxu0 %v763
    %2010 = vmatpush1.xpose.msra.mxu0 %v762
    %2011 = vmatprep.subr.mxu0 %v779
    %2012 = vmatpush1.xpose.msra.mxu0 %v778
    %2013 = vmatprep.subr.mxu0 %v795
    %2014 = vmatpush1.xpose.msra.mxu0 %v794
    %2015 = vmatprep.subr.mxu0 %v811
    %2016 = vmatpush1.xpose.msra.mxu0 %v810
    %2017 = vmatprep.subr.mxu0 %v827
    %2018 = vmatpush1.xpose.msra.mxu0 %v826
    %2019 = vmatprep.mubr.f32.mxu0 %v75
    %2020 = vmatmul.mubr.f32.gmra.mrb[0].mxu0 %v74
    %v2021 = vpop.f32.mrb[0].mxu0
    %v2022 = vadd.f32 %v1861, %v2021
    %v2023 = vpop.f32.mrb[0].mxu0
    %v2024 = vadd.f32 %v1863, %v2023
    %2025 = vmatprep.mubr.f32.mxu0 %v91
    %2026 = vmatmul.mubr.f32.gmra.mrb[0].mxu0 %v90
    %v2027 = vpop.f32.mrb[0].mxu0
    %v2028 = vadd.f32 %v1867, %v2027
    %v2029 = vpop.f32.mrb[0].mxu0
    %v2030 = vadd.f32 %v1869, %v2029
    %2031 = vmatprep.mubr.f32.mxu0 %v107
    %2032 = vmatmul.mubr.f32.gmra.mrb[0].mxu0 %v106
    %v2033 = vpop.f32.mrb[0].mxu0
    %v2034 = vadd.f32 %v1873, %v2033
    %v2035 = vpop.f32.mrb[0].mxu0
    %v2036 = vadd.f32 %v1875, %v2035
    %2037 = vmatprep.mubr.f32.mxu0 %v123
    %2038 = vmatmul.mubr.f32.gmra.mrb[0].mxu0 %v122
    %v2039 = vpop.f32.mrb[0].mxu0
    %v2040 = vadd.f32 %v1879, %v2039
    %v2041 = vpop.f32.mrb[0].mxu0
    %v2042 = vadd.f32 %v1881, %v2041
    %2043 = vmatprep.mubr.f32.mxu0 %v139
    %2044 = vmatmul.mubr.f32.gmra.mrb[0].mxu0 %v138
    %v2045 = vpop.f32.mrb[0].mxu0
    %v2046 = vadd.f32 %v1885, %v2045
    %v2047 = vpop.f32.mrb[0].mxu0
    %v2048 = vadd.f32 %v1887, %v2047
    %2049 = vmatprep.mubr.f32.mxu0 %v155
    %2050 = vmatmul.mubr.f32.gmra.mrb[0].mxu0 %v154
    %v2051 = vpop.f32.mrb[0].mxu0
    %v2052 = vadd.f32 %v1891, %v2051
    %v2053 = vpop.f32.mrb[0].mxu0
    %v2054 = vadd.f32 %v1893, %v2053
    %2055 = vmatprep.mubr.f32.mxu0 %v171
    %2056 = vmatmul.mubr.f32.gmra.mrb[0].mxu0 %v170
    %v2057 = vpop.f32.mrb[0].mxu0
    %v2058 = vadd.f32 %v1897, %v2057
    %v2059 = vpop.f32.mrb[0].mxu0
    %v2060 = vadd.f32 %v1899, %v2059
    %2061 = vmatprep.mubr.f32.mxu0 %v187
    %2062 = vmatmul.mubr.f32.gmra.mrb[0].mxu0 %v186
    %v2063 = vpop.f32.mrb[0].mxu0
    %v2064 = vadd.f32 %v1903, %v2063
    %v2065 = vpop.f32.mrb[0].mxu0
    %v2066 = vadd.f32 %v1905, %v2065
    %2067 = vmatprep.mubr.f32.mxu0 %v203
    %2068 = vmatmul.mubr.f32.gmra.mrb[0].mxu0 %v202
    %v2069 = vpop.f32.mrb[0].mxu0
    %v2070 = vadd.f32 %v1909, %v2069
    %v2071 = vpop.f32.mrb[0].mxu0
    %v2072 = vadd.f32 %v1911, %v2071
    %2073 = vmatprep.mubr.f32.mxu0 %v219
    %2074 = vmatmul.mubr.f32.gmra.mrb[0].mxu0 %v218
    %v2075 = vpop.f32.mrb[0].mxu0
    %v2076 = vadd.f32 %v1915, %v2075
    %v2077 = vpop.f32.mrb[0].mxu0
    %v2078 = vadd.f32 %v1917, %v2077
    %2079 = vmatprep.mubr.f32.mxu0 %v235
    %2080 = vmatmul.mubr.f32.gmra.mrb[0].mxu0 %v234
    %v2081 = vpop.f32.mrb[0].mxu0
    %v2082 = vadd.f32 %v1921, %v2081
    %v2083 = vpop.f32.mrb[0].mxu0
    %v2084 = vadd.f32 %v1923, %v2083
    %2085 = vmatprep.mubr.f32.mxu0 %v251
    %2086 = vmatmul.mubr.f32.gmra.mrb[0].mxu0 %v250
    %v2087 = vpop.f32.mrb[0].mxu0
    %v2088 = vadd.f32 %v1927, %v2087
    %v2089 = vpop.f32.mrb[0].mxu0
    %v2090 = vadd.f32 %v1929, %v2089
    %2091 = vmatprep.mubr.f32.mxu0 %v267
    %2092 = vmatmul.mubr.f32.gmra.mrb[0].mxu0 %v266
    %v2093 = vpop.f32.mrb[0].mxu0
    %v2094 = vadd.f32 %v1933, %v2093
    %v2095 = vpop.f32.mrb[0].mxu0
    %v2096 = vadd.f32 %v1935, %v2095
    %2097 = vmatprep.mubr.f32.mxu0 %v283
    %2098 = vmatmul.mubr.f32.gmra.mrb[0].mxu0 %v282
    %v2099 = vpop.f32.mrb[0].mxu0
    %v2100 = vadd.f32 %v1939, %v2099
    %v2101 = vpop.f32.mrb[0].mxu0
    %v2102 = vadd.f32 %v1941, %v2101
    %2103 = vmatprep.mubr.f32.mxu0 %v299
    %2104 = vmatmul.mubr.f32.gmra.mrb[0].mxu0 %v298
    %v2105 = vpop.f32.mrb[0].mxu0
    %v2106 = vadd.f32 %v1945, %v2105
    %v2107 = vpop.f32.mrb[0].mxu0
    %v2108 = vadd.f32 %v1947, %v2107
    %2109 = vmatprep.mubr.f32.mxu0 %v315
    %2110 = vmatmul.mubr.f32.gmra.mrb[0].mxu0 %v314
    %v2111 = vpop.f32.mrb[0].mxu0
    %v2112 = vadd.f32 %v1951, %v2111
    %v2113 = vpop.f32.mrb[0].mxu0
    %v2114 = vadd.f32 %v1953, %v2113
    %2115 = vdwg.mxu0
    %s2116 = sld [smem:[#allocation4]]
    %v2117 = vstv %s2116
    %v2118 = vmul.f32 %v2022, %v2117
    %v2119 = vmul.f32 %v2024, %v2117
    %v2120 = vmul.f32 %v2028, %v2117
    %v2121 = vmul.f32 %v2030, %v2117
    %v2122 = vmul.f32 %v2034, %v2117
    %v2123 = vmul.f32 %v2036, %v2117
    %v2124 = vmul.f32 %v2040, %v2117
    %v2125 = vmul.f32 %v2042, %v2117
    %v2126 = vmul.f32 %v2046, %v2117
    %v2127 = vmul.f32 %v2048, %v2117
    %v2128 = vmul.f32 %v2052, %v2117
    %v2129 = vmul.f32 %v2054, %v2117
    %v2130 = vmul.f32 %v2058, %v2117
    %v2131 = vmul.f32 %v2060, %v2117
    %v2132 = vmul.f32 %v2064, %v2117
    %v2133 = vmul.f32 %v2066, %v2117
    %v2134 = vmul.f32 %v2070, %v2117
    %v2135 = vmul.f32 %v2072, %v2117
    %v2136 = vmul.f32 %v2076, %v2117
    %v2137 = vmul.f32 %v2078, %v2117
    %v2138 = vmul.f32 %v2082, %v2117
    %v2139 = vmul.f32 %v2084, %v2117
    %v2140 = vmul.f32 %v2088, %v2117
    %v2141 = vmul.f32 %v2090, %v2117
    %v2142 = vmul.f32 %v2094, %v2117
    %v2143 = vmul.f32 %v2096, %v2117
    %v2144 = vmul.f32 %v2100, %v2117
    %v2145 = vmul.f32 %v2102, %v2117
    %v2146 = vmul.f32 %v2106, %v2117
    %v2147 = vmul.f32 %v2108, %v2117
    %v2148 = vmul.f32 %v2112, %v2117
    %v2149 = vmul.f32 %v2114, %v2117
    %v2150 = vmax.f32 %v2118, %v2119
    %2151 = vmax.xlane.f32.xlu0 %v2150
    %v2152 = vpop.xlane.xlu0 %2151
    %v2153 = vmax.f32 %v2120, %v2121
    %2154 = vmax.xlane.f32.xlu0 %v2153
    %v2155 = vpop.xlane.xlu0 %2154
    %v2156 = vmax.f32 %v2122, %v2123
    %2157 = vmax.xlane.f32.xlu0 %v2156
    %v2158 = vpop.xlane.xlu0 %2157
    %v2159 = vmax.f32 %v2124, %v2125
    %2160 = vmax.xlane.f32.xlu0 %v2159
    %v2161 = vpop.xlane.xlu0 %2160
    %v2162 = vmax.f32 %v2126, %v2127
    %2163 = vmax.xlane.f32.xlu0 %v2162
    %v2164 = vpop.xlane.xlu0 %2163
    %v2165 = vmax.f32 %v2128, %v2129
    %2166 = vmax.xlane.f32.xlu0 %v2165
    %v2167 = vpop.xlane.xlu0 %2166
    %v2168 = vmax.f32 %v2130, %v2131
    %2169 = vmax.xlane.f32.xlu0 %v2168
    %v2170 = vpop.xlane.xlu0 %2169
    %v2171 = vmax.f32 %v2132, %v2133
    %2172 = vmax.xlane.f32.xlu0 %v2171
    %v2173 = vpop.xlane.xlu0 %2172
    %v2174 = vmax.f32 %v2134, %v2135
    %2175 = vmax.xlane.f32.xlu0 %v2174
    %v2176 = vpop.xlane.xlu0 %2175
    %v2177 = vmax.f32 %v2136, %v2137
    %2178 = vmax.xlane.f32.xlu0 %v2177
    %v2179 = vpop.xlane.xlu0 %2178
    %v2180 = vmax.f32 %v2138, %v2139
    %2181 = vmax.xlane.f32.xlu0 %v2180
    %v2182 = vpop.xlane.xlu0 %2181
    %v2183 = vmax.f32 %v2140, %v2141
    %2184 = vmax.xlane.f32.xlu0 %v2183
    %v2185 = vpop.xlane.xlu0 %2184
    %v2186 = vmax.f32 %v2142, %v2143
    %2187 = vmax.xlane.f32.xlu0 %v2186
    %v2188 = vpop.xlane.xlu0 %2187
    %v2189 = vmax.f32 %v2144, %v2145
    %2190 = vmax.xlane.f32.xlu0 %v2189
    %v2191 = vpop.xlane.xlu0 %2190
    %v2192 = vmax.f32 %v2146, %v2147
    %2193 = vmax.xlane.f32.xlu0 %v2192
    %v2194 = vpop.xlane.xlu0 %2193
    %v2195 = vmax.f32 %v2148, %v2149
    %2196 = vmax.xlane.f32.xlu0 %v2195
    %v2197 = vpop.xlane.xlu0 %2196
    %p2198 = scmp.eq.s32.totalorder 0, 0
    // Predicated region
    $region30: #{attention.1} parent=1 // pred_check
      %p2199 = pneg %p2198
    $region31: #{attention.1} parent=1 // pred_check_branch
      %2201 = sbr.rel (%p2199) target = $region33
    $region32: #{attention.1} parent=1 // pred_region
      %v2202 = vsub.f32 %v2118, %v2152
      %v2203 = vsub.f32 %v2119, %v2152
      %v2204 = vsub.f32 %v2120, %v2155
      %v2205 = vsub.f32 %v2121, %v2155
      %v2206 = vsub.f32 %v2122, %v2158
      %v2207 = vsub.f32 %v2123, %v2158
      %v2208 = vsub.f32 %v2124, %v2161
      %v2209 = vsub.f32 %v2125, %v2161
      %v2210 = vsub.f32 %v2126, %v2164
      %v2211 = vsub.f32 %v2127, %v2164
      %v2212 = vsub.f32 %v2128, %v2167
      %v2213 = vsub.f32 %v2129, %v2167
      %v2214 = vsub.f32 %v2130, %v2170
      %v2215 = vsub.f32 %v2131, %v2170
      %v2216 = vsub.f32 %v2132, %v2173
      %v2217 = vsub.f32 %v2133, %v2173
      %v2218 = vsub.f32 %v2134, %v2176
      %v2219 = vsub.f32 %v2135, %v2176
      %v2220 = vsub.f32 %v2136, %v2179
      %v2221 = vsub.f32 %v2137, %v2179
      %v2222 = vsub.f32 %v2138, %v2182
      %v2223 = vsub.f32 %v2139, %v2182
      %v2224 = vsub.f32 %v2140, %v2185
      %v2225 = vsub.f32 %v2141, %v2185
      %v2226 = vsub.f32 %v2142, %v2188
      %v2227 = vsub.f32 %v2143, %v2188
      %v2228 = vsub.f32 %v2144, %v2191
      %v2229 = vsub.f32 %v2145, %v2191
      %v2230 = vsub.f32 %v2146, %v2194
      %v2231 = vsub.f32 %v2147, %v2194
      %v2232 = vsub.f32 %v2148, %v2197
      %v2233 = vsub.f32 %v2149, %v2197
      %v2234 = vmul.f32 %v2202, 1.442695
      %v2235 = vpow.pop %v2234
      %v2236 = vmul.f32 %v2203, 1.442695
      %v2237 = vpow.pop %v2236
      %v2238 = vmul.f32 %v2204, 1.442695
      %v2239 = vpow.pop %v2238
      %v2240 = vmul.f32 %v2205, 1.442695
      %v2241 = vpow.pop %v2240
      %v2242 = vmul.f32 %v2206, 1.442695
      %v2243 = vpow.pop %v2242
      %v2244 = vmul.f32 %v2207, 1.442695
      %v2245 = vpow.pop %v2244
      %v2246 = vmul.f32 %v2208, 1.442695
      %v2247 = vpow.pop %v2246
      %v2248 = vmul.f32 %v2209, 1.442695
      %v2249 = vpow.pop %v2248
      %v2250 = vmul.f32 %v2210, 1.442695
      %v2251 = vpow.pop %v2250
      %v2252 = vmul.f32 %v2211, 1.442695
      %v2253 = vpow.pop %v2252
      %v2254 = vmul.f32 %v2212, 1.442695
      %v2255 = vpow.pop %v2254
      %v2256 = vmul.f32 %v2213, 1.442695
      %v2257 = vpow.pop %v2256
      %v2258 = vmul.f32 %v2214, 1.442695
      %v2259 = vpow.pop %v2258
      %v2260 = vmul.f32 %v2215, 1.442695
      %v2261 = vpow.pop %v2260
      %v2262 = vmul.f32 %v2216, 1.442695
      %v2263 = vpow.pop %v2262
      %v2264 = vmul.f32 %v2217, 1.442695
      %v2265 = vpow.pop %v2264
      %v2266 = vmul.f32 %v2218, 1.442695
      %v2267 = vpow.pop %v2266
      %v2268 = vmul.f32 %v2219, 1.442695
      %v2269 = vpow.pop %v2268
      %v2270 = vmul.f32 %v2220, 1.442695
      %v2271 = vpow.pop %v2270
      %v2272 = vmul.f32 %v2221, 1.442695
      %v2273 = vpow.pop %v2272
      %v2274 = vmul.f32 %v2222, 1.442695
      %v2275 = vpow.pop %v2274
      %v2276 = vmul.f32 %v2223, 1.442695
      %v2277 = vpow.pop %v2276
      %v2278 = vmul.f32 %v2224, 1.442695
      %v2279 = vpow.pop %v2278
      %v2280 = vmul.f32 %v2225, 1.442695
      %v2281 = vpow.pop %v2280
      %v2282 = vmul.f32 %v2226, 1.442695
      %v2283 = vpow.pop %v2282
      %v2284 = vmul.f32 %v2227, 1.442695
      %v2285 = vpow.pop %v2284
      %v2286 = vmul.f32 %v2228, 1.442695
      %v2287 = vpow.pop %v2286
      %v2288 = vmul.f32 %v2229, 1.442695
      %v2289 = vpow.pop %v2288
      %v2290 = vmul.f32 %v2230, 1.442695
      %v2291 = vpow.pop %v2290
      %v2292 = vmul.f32 %v2231, 1.442695
      %v2293 = vpow.pop %v2292
      %v2294 = vmul.f32 %v2232, 1.442695
      %v2295 = vpow.pop %v2294
      %v2296 = vmul.f32 %v2233, 1.442695
      %v2297 = vpow.pop %v2296
      %vm2298 = vcmask 7168
      %2299 = vst.msk [vmem:[#allocation2] sm:$0xff] %vm2298, %v2152
      %2300 = vst.msk [vmem:[#allocation2 + $0x8] sm:$0xff] %vm2298, %v2155
      %2301 = vst.msk [vmem:[#allocation2 + $0x10] sm:$0xff] %vm2298, %v2158
      %2302 = vst.msk [vmem:[#allocation2 + $0x18] sm:$0xff] %vm2298, %v2161
      %2303 = vst.msk [vmem:[#allocation2 + $0x20] sm:$0xff] %vm2298, %v2164
      %2304 = vst.msk [vmem:[#allocation2 + $0x28] sm:$0xff] %vm2298, %v2167
      %2305 = vst.msk [vmem:[#allocation2 + $0x30] sm:$0xff] %vm2298, %v2170
      %2306 = vst.msk [vmem:[#allocation2 + $0x38] sm:$0xff] %vm2298, %v2173
      %2307 = vst.msk [vmem:[#allocation2 + $0x40] sm:$0xff] %vm2298, %v2176
      %2308 = vst.msk [vmem:[#allocation2 + $0x48] sm:$0xff] %vm2298, %v2179
      %2309 = vst.msk [vmem:[#allocation2 + $0x50] sm:$0xff] %vm2298, %v2182
      %2310 = vst.msk [vmem:[#allocation2 + $0x58] sm:$0xff] %vm2298, %v2185
      %2311 = vst.msk [vmem:[#allocation2 + $0x60] sm:$0xff] %vm2298, %v2188
      %2312 = vst.msk [vmem:[#allocation2 + $0x68] sm:$0xff] %vm2298, %v2191
      %2313 = vst.msk [vmem:[#allocation2 + $0x70] sm:$0xff] %vm2298, %v2194
      %2314 = vst.msk [vmem:[#allocation2 + $0x78] sm:$0xff] %vm2298, %v2197
      %v2315 = vadd.f32 %v2235, %v2237
      %2316 = vadd.xlane.f32.xlu0 %v2315
      %v2317 = vpop.xlane.xlu0 %2316
      %v2318 = vadd.f32 %v2239, %v2241
      %2319 = vadd.xlane.f32.xlu0 %v2318
      %v2320 = vpop.xlane.xlu0 %2319
      %v2321 = vadd.f32 %v2243, %v2245
      %2322 = vadd.xlane.f32.xlu0 %v2321
      %v2323 = vpop.xlane.xlu0 %2322
      %v2324 = vadd.f32 %v2247, %v2249
      %2325 = vadd.xlane.f32.xlu0 %v2324
      %v2326 = vpop.xlane.xlu0 %2325
      %v2327 = vadd.f32 %v2251, %v2253
      %2328 = vadd.xlane.f32.xlu0 %v2327
      %v2329 = vpop.xlane.xlu0 %2328
      %v2330 = vadd.f32 %v2255, %v2257
      %2331 = vadd.xlane.f32.xlu0 %v2330
      %v2332 = vpop.xlane.xlu0 %2331
      %v2333 = vadd.f32 %v2259, %v2261
      %2334 = vadd.xlane.f32.xlu0 %v2333
      %v2335 = vpop.xlane.xlu0 %2334
      %v2336 = vadd.f32 %v2263, %v2265
      %2337 = vadd.xlane.f32.xlu0 %v2336
      %v2338 = vpop.xlane.xlu0 %2337
      %v2339 = vadd.f32 %v2267, %v2269
      %2340 = vadd.xlane.f32.xlu0 %v2339
      %v2341 = vpop.xlane.xlu0 %2340
      %v2342 = vadd.f32 %v2271, %v2273
      %2343 = vadd.xlane.f32.xlu0 %v2342
      %v2344 = vpop.xlane.xlu0 %2343
      %v2345 = vadd.f32 %v2275, %v2277
      %2346 = vadd.xlane.f32.xlu0 %v2345
      %v2347 = vpop.xlane.xlu0 %2346
      %v2348 = vadd.f32 %v2279, %v2281
      %2349 = vadd.xlane.f32.xlu0 %v2348
      %v2350 = vpop.xlane.xlu0 %2349
      %v2351 = vadd.f32 %v2283, %v2285
      %2352 = vadd.xlane.f32.xlu0 %v2351
      %v2353 = vpop.xlane.xlu0 %2352
      %v2354 = vadd.f32 %v2287, %v2289
      %2355 = vadd.xlane.f32.xlu0 %v2354
      %v2356 = vpop.xlane.xlu0 %2355
      %v2357 = vadd.f32 %v2291, %v2293
      %2358 = vadd.xlane.f32.xlu0 %v2357
      %v2359 = vpop.xlane.xlu0 %2358
      %v2360 = vadd.f32 %v2295, %v2297
      %2361 = vadd.xlane.f32.xlu0 %v2360
      %v2362 = vpop.xlane.xlu0 %2361
      %2363 = vst.msk [vmem:[#allocation3] sm:$0xff] %vm2298, %v2317
      %2364 = vst.msk [vmem:[#allocation3 + $0x8] sm:$0xff] %vm2298, %v2320
      %2365 = vst.msk [vmem:[#allocation3 + $0x10] sm:$0xff] %vm2298, %v2323
      %2366 = vst.msk [vmem:[#allocation3 + $0x18] sm:$0xff] %vm2298, %v2326
      %2367 = vst.msk [vmem:[#allocation3 + $0x20] sm:$0xff] %vm2298, %v2329
      %2368 = vst.msk [vmem:[#allocation3 + $0x28] sm:$0xff] %vm2298, %v2332
      %2369 = vst.msk [vmem:[#allocation3 + $0x30] sm:$0xff] %vm2298, %v2335
      %2370 = vst.msk [vmem:[#allocation3 + $0x38] sm:$0xff] %vm2298, %v2338
      %2371 = vst.msk [vmem:[#allocation3 + $0x40] sm:$0xff] %vm2298, %v2341
      %2372 = vst.msk [vmem:[#allocation3 + $0x48] sm:$0xff] %vm2298, %v2344
      %2373 = vst.msk [vmem:[#allocation3 + $0x50] sm:$0xff] %vm2298, %v2347
      %2374 = vst.msk [vmem:[#allocation3 + $0x58] sm:$0xff] %vm2298, %v2350
      %2375 = vst.msk [vmem:[#allocation3 + $0x60] sm:$0xff] %vm2298, %v2353
      %2376 = vst.msk [vmem:[#allocation3 + $0x68] sm:$0xff] %vm2298, %v2356
      %2377 = vst.msk [vmem:[#allocation3 + $0x70] sm:$0xff] %vm2298, %v2359
      %2378 = vst.msk [vmem:[#allocation3 + $0x78] sm:$0xff] %vm2298, %v2362
      %v2379 = vld [vmem:[#allocation10] sm:$0xff]
      %v2380 = vld [vmem:[#allocation10 + $0x8] sm:$0xff]
      %v2381 = vld [vmem:[#allocation10 + $0x10] sm:$0xff]
      %v2382 = vld [vmem:[#allocation10 + $0x18] sm:$0xff]
      %v2383 = vld [vmem:[#allocation10 + $0x20] sm:$0xff]
      %v2384 = vld [vmem:[#allocation10 + $0x28] sm:$0xff]
      %v2385 = vld [vmem:[#allocation10 + $0x30] sm:$0xff]
      %v2386 = vld [vmem:[#allocation10 + $0x38] sm:$0xff]
      %v2387 = vld [vmem:[#allocation10 + $0x40] sm:$0xff]
      %v2388 = vld [vmem:[#allocation10 + $0x48] sm:$0xff]
      %v2389 = vld [vmem:[#allocation10 + $0x50] sm:$0xff]
      %v2390 = vld [vmem:[#allocation10 + $0x58] sm:$0xff]
      %v2391 = vld [vmem:[#allocation10 + $0x60] sm:$0xff]
      %v2392 = vld [vmem:[#allocation10 + $0x68] sm:$0xff]
      %v2393 = vld [vmem:[#allocation10 + $0x70] sm:$0xff]
      %v2394 = vld [vmem:[#allocation10 + $0x78] sm:$0xff]
      %v2395 = vld [vmem:[#allocation10 + $0x80] sm:$0xff]
      %v2396 = vld [vmem:[#allocation10 + $0x88] sm:$0xff]
      %v2397 = vld [vmem:[#allocation10 + $0x90] sm:$0xff]
      %v2398 = vld [vmem:[#allocation10 + $0x98] sm:$0xff]
      %v2399 = vld [vmem:[#allocation10 + $0xa0] sm:$0xff]
      %v2400 = vld [vmem:[#allocation10 + $0xa8] sm:$0xff]
      %v2401 = vld [vmem:[#allocation10 + $0xb0] sm:$0xff]
      %v2402 = vld [vmem:[#allocation10 + $0xb8] sm:$0xff]
      %v2403 = vld [vmem:[#allocation10 + $0xc0] sm:$0xff]
      %v2404 = vld [vmem:[#allocation10 + $0xc8] sm:$0xff]
      %v2405 = vld [vmem:[#allocation10 + $0xd0] sm:$0xff]
      %v2406 = vld [vmem:[#allocation10 + $0xd8] sm:$0xff]
      %v2407 = vld [vmem:[#allocation10 + $0xe0] sm:$0xff]
      %v2408 = vld [vmem:[#allocation10 + $0xe8] sm:$0xff]
      %v2409 = vld [vmem:[#allocation10 + $0xf0] sm:$0xff]
      %v2410 = vld [vmem:[#allocation10 + $0xf8] sm:$0xff]
      %v2411 = vld [vmem:[#allocation10 + $0x100] sm:$0xff]
      %v2412 = vld [vmem:[#allocation10 + $0x108] sm:$0xff]
      %v2413 = vld [vmem:[#allocation10 + $0x110] sm:$0xff]
      %v2414 = vld [vmem:[#allocation10 + $0x118] sm:$0xff]
      %v2415 = vld [vmem:[#allocation10 + $0x120] sm:$0xff]
      %v2416 = vld [vmem:[#allocation10 + $0x128] sm:$0xff]
      %v2417 = vld [vmem:[#allocation10 + $0x130] sm:$0xff]
      %v2418 = vld [vmem:[#allocation10 + $0x138] sm:$0xff]
      %v2419 = vld [vmem:[#allocation10 + $0x140] sm:$0xff]
      %v2420 = vld [vmem:[#allocation10 + $0x148] sm:$0xff]
      %v2421 = vld [vmem:[#allocation10 + $0x150] sm:$0xff]
      %v2422 = vld [vmem:[#allocation10 + $0x158] sm:$0xff]
      %v2423 = vld [vmem:[#allocation10 + $0x160] sm:$0xff]
      %v2424 = vld [vmem:[#allocation10 + $0x168] sm:$0xff]
      %v2425 = vld [vmem:[#allocation10 + $0x170] sm:$0xff]
      %v2426 = vld [vmem:[#allocation10 + $0x178] sm:$0xff]
      %v2427 = vld [vmem:[#allocation10 + $0x180] sm:$0xff]
      %v2428 = vld [vmem:[#allocation10 + $0x188] sm:$0xff]
      %v2429 = vld [vmem:[#allocation10 + $0x190] sm:$0xff]
      %v2430 = vld [vmem:[#allocation10 + $0x198] sm:$0xff]
      %v2431 = vld [vmem:[#allocation10 + $0x1a0] sm:$0xff]
      %v2432 = vld [vmem:[#allocation10 + $0x1a8] sm:$0xff]
      %v2433 = vld [vmem:[#allocation10 + $0x1b0] sm:$0xff]
      %v2434 = vld [vmem:[#allocation10 + $0x1b8] sm:$0xff]
      %v2435 = vld [vmem:[#allocation10 + $0x1c0] sm:$0xff]
      %v2436 = vld [vmem:[#allocation10 + $0x1c8] sm:$0xff]
      %v2437 = vld [vmem:[#allocation10 + $0x1d0] sm:$0xff]
      %v2438 = vld [vmem:[#allocation10 + $0x1d8] sm:$0xff]
      %v2439 = vld [vmem:[#allocation10 + $0x1e0] sm:$0xff]
      %v2440 = vld [vmem:[#allocation10 + $0x1e8] sm:$0xff]
      %v2441 = vld [vmem:[#allocation10 + $0x1f0] sm:$0xff]
      %v2442 = vld [vmem:[#allocation10 + $0x1f8] sm:$0xff]
      %v2443 = vld [vmem:[#allocation10 + $0x200] sm:$0xff]
      %v2444 = vld [vmem:[#allocation10 + $0x208] sm:$0xff]
      %v2445 = vld [vmem:[#allocation10 + $0x210] sm:$0xff]
      %v2446 = vld [vmem:[#allocation10 + $0x218] sm:$0xff]
      %v2447 = vld [vmem:[#allocation10 + $0x220] sm:$0xff]
      %v2448 = vld [vmem:[#allocation10 + $0x228] sm:$0xff]
      %v2449 = vld [vmem:[#allocation10 + $0x230] sm:$0xff]
      %v2450 = vld [vmem:[#allocation10 + $0x238] sm:$0xff]
      %v2451 = vld [vmem:[#allocation10 + $0x240] sm:$0xff]
      %v2452 = vld [vmem:[#allocation10 + $0x248] sm:$0xff]
      %v2453 = vld [vmem:[#allocation10 + $0x250] sm:$0xff]
      %v2454 = vld [vmem:[#allocation10 + $0x258] sm:$0xff]
      %v2455 = vld [vmem:[#allocation10 + $0x260] sm:$0xff]
      %v2456 = vld [vmem:[#allocation10 + $0x268] sm:$0xff]
      %v2457 = vld [vmem:[#allocation10 + $0x270] sm:$0xff]
      %v2458 = vld [vmem:[#allocation10 + $0x278] sm:$0xff]
      %v2459 = vld [vmem:[#allocation10 + $0x280] sm:$0xff]
      %v2460 = vld [vmem:[#allocation10 + $0x288] sm:$0xff]
      %v2461 = vld [vmem:[#allocation10 + $0x290] sm:$0xff]
      %v2462 = vld [vmem:[#allocation10 + $0x298] sm:$0xff]
      %v2463 = vld [vmem:[#allocation10 + $0x2a0] sm:$0xff]
      %v2464 = vld [vmem:[#allocation10 + $0x2a8] sm:$0xff]
      %v2465 = vld [vmem:[#allocation10 + $0x2b0] sm:$0xff]
      %v2466 = vld [vmem:[#allocation10 + $0x2b8] sm:$0xff]
      %v2467 = vld [vmem:[#allocation10 + $0x2c0] sm:$0xff]
      %v2468 = vld [vmem:[#allocation10 + $0x2c8] sm:$0xff]
      %v2469 = vld [vmem:[#allocation10 + $0x2d0] sm:$0xff]
      %v2470 = vld [vmem:[#allocation10 + $0x2d8] sm:$0xff]
      %v2471 = vld [vmem:[#allocation10 + $0x2e0] sm:$0xff]
      %v2472 = vld [vmem:[#allocation10 + $0x2e8] sm:$0xff]
      %v2473 = vld [vmem:[#allocation10 + $0x2f0] sm:$0xff]
      %v2474 = vld [vmem:[#allocation10 + $0x2f8] sm:$0xff]
      %v2475 = vld [vmem:[#allocation10 + $0x300] sm:$0xff]
      %v2476 = vld [vmem:[#allocation10 + $0x308] sm:$0xff]
      %v2477 = vld [vmem:[#allocation10 + $0x310] sm:$0xff]
      %v2478 = vld [vmem:[#allocation10 + $0x318] sm:$0xff]
      %v2479 = vld [vmem:[#allocation10 + $0x320] sm:$0xff]
      %v2480 = vld [vmem:[#allocation10 + $0x328] sm:$0xff]
      %v2481 = vld [vmem:[#allocation10 + $0x330] sm:$0xff]
      %v2482 = vld [vmem:[#allocation10 + $0x338] sm:$0xff]
      %v2483 = vld [vmem:[#allocation10 + $0x340] sm:$0xff]
      %v2484 = vld [vmem:[#allocation10 + $0x348] sm:$0xff]
      %v2485 = vld [vmem:[#allocation10 + $0x350] sm:$0xff]
      %v2486 = vld [vmem:[#allocation10 + $0x358] sm:$0xff]
      %v2487 = vld [vmem:[#allocation10 + $0x360] sm:$0xff]
      %v2488 = vld [vmem:[#allocation10 + $0x368] sm:$0xff]
      %v2489 = vld [vmem:[#allocation10 + $0x370] sm:$0xff]
      %v2490 = vld [vmem:[#allocation10 + $0x378] sm:$0xff]
      %v2491 = vld [vmem:[#allocation10 + $0x380] sm:$0xff]
      %v2492 = vld [vmem:[#allocation10 + $0x388] sm:$0xff]
      %v2493 = vld [vmem:[#allocation10 + $0x390] sm:$0xff]
      %v2494 = vld [vmem:[#allocation10 + $0x398] sm:$0xff]
      %v2495 = vld [vmem:[#allocation10 + $0x3a0] sm:$0xff]
      %v2496 = vld [vmem:[#allocation10 + $0x3a8] sm:$0xff]
      %v2497 = vld [vmem:[#allocation10 + $0x3b0] sm:$0xff]
      %v2498 = vld [vmem:[#allocation10 + $0x3b8] sm:$0xff]
      %v2499 = vld [vmem:[#allocation10 + $0x3c0] sm:$0xff]
      %v2500 = vld [vmem:[#allocation10 + $0x3c8] sm:$0xff]
      %v2501 = vld [vmem:[#allocation10 + $0x3d0] sm:$0xff]
      %v2502 = vld [vmem:[#allocation10 + $0x3d8] sm:$0xff]
      %v2503 = vld [vmem:[#allocation10 + $0x3e0] sm:$0xff]
      %v2504 = vld [vmem:[#allocation10 + $0x3e8] sm:$0xff]
      %v2505 = vld [vmem:[#allocation10 + $0x3f0] sm:$0xff]
      %v2506 = vld [vmem:[#allocation10 + $0x3f8] sm:$0xff]
      %v2507 = vld [vmem:[#allocation10 + $0x400] sm:$0xff]
      %v2508 = vld [vmem:[#allocation10 + $0x408] sm:$0xff]
      %v2509 = vld [vmem:[#allocation10 + $0x410] sm:$0xff]
      %v2510 = vld [vmem:[#allocation10 + $0x418] sm:$0xff]
      %v2511 = vld [vmem:[#allocation10 + $0x420] sm:$0xff]
      %v2512 = vld [vmem:[#allocation10 + $0x428] sm:$0xff]
      %v2513 = vld [vmem:[#allocation10 + $0x430] sm:$0xff]
      %v2514 = vld [vmem:[#allocation10 + $0x438] sm:$0xff]
      %v2515 = vld [vmem:[#allocation10 + $0x440] sm:$0xff]
      %v2516 = vld [vmem:[#allocation10 + $0x448] sm:$0xff]
      %v2517 = vld [vmem:[#allocation10 + $0x450] sm:$0xff]
      %v2518 = vld [vmem:[#allocation10 + $0x458] sm:$0xff]
      %v2519 = vld [vmem:[#allocation10 + $0x460] sm:$0xff]
      %v2520 = vld [vmem:[#allocation10 + $0x468] sm:$0xff]
      %v2521 = vld [vmem:[#allocation10 + $0x470] sm:$0xff]
      %v2522 = vld [vmem:[#allocation10 + $0x478] sm:$0xff]
      %v2523 = vld [vmem:[#allocation10 + $0x480] sm:$0xff]
      %v2524 = vld [vmem:[#allocation10 + $0x488] sm:$0xff]
      %v2525 = vld [vmem:[#allocation10 + $0x490] sm:$0xff]
      %v2526 = vld [vmem:[#allocation10 + $0x498] sm:$0xff]
      %v2527 = vld [vmem:[#allocation10 + $0x4a0] sm:$0xff]
      %v2528 = vld [vmem:[#allocation10 + $0x4a8] sm:$0xff]
      %v2529 = vld [vmem:[#allocation10 + $0x4b0] sm:$0xff]
      %v2530 = vld [vmem:[#allocation10 + $0x4b8] sm:$0xff]
      %v2531 = vld [vmem:[#allocation10 + $0x4c0] sm:$0xff]
      %v2532 = vld [vmem:[#allocation10 + $0x4c8] sm:$0xff]
      %v2533 = vld [vmem:[#allocation10 + $0x4d0] sm:$0xff]
      %v2534 = vld [vmem:[#allocation10 + $0x4d8] sm:$0xff]
      %v2535 = vld [vmem:[#allocation10 + $0x4e0] sm:$0xff]
      %v2536 = vld [vmem:[#allocation10 + $0x4e8] sm:$0xff]
      %v2537 = vld [vmem:[#allocation10 + $0x4f0] sm:$0xff]
      %v2538 = vld [vmem:[#allocation10 + $0x4f8] sm:$0xff]
      %v2539 = vld [vmem:[#allocation10 + $0x500] sm:$0xff]
      %v2540 = vld [vmem:[#allocation10 + $0x508] sm:$0xff]
      %v2541 = vld [vmem:[#allocation10 + $0x510] sm:$0xff]
      %v2542 = vld [vmem:[#allocation10 + $0x518] sm:$0xff]
      %v2543 = vld [vmem:[#allocation10 + $0x520] sm:$0xff]
      %v2544 = vld [vmem:[#allocation10 + $0x528] sm:$0xff]
      %v2545 = vld [vmem:[#allocation10 + $0x530] sm:$0xff]
      %v2546 = vld [vmem:[#allocation10 + $0x538] sm:$0xff]
      %v2547 = vld [vmem:[#allocation10 + $0x540] sm:$0xff]
      %v2548 = vld [vmem:[#allocation10 + $0x548] sm:$0xff]
      %v2549 = vld [vmem:[#allocation10 + $0x550] sm:$0xff]
      %v2550 = vld [vmem:[#allocation10 + $0x558] sm:$0xff]
      %v2551 = vld [vmem:[#allocation10 + $0x560] sm:$0xff]
      %v2552 = vld [vmem:[#allocation10 + $0x568] sm:$0xff]
      %v2553 = vld [vmem:[#allocation10 + $0x570] sm:$0xff]
      %v2554 = vld [vmem:[#allocation10 + $0x578] sm:$0xff]
      %v2555 = vld [vmem:[#allocation10 + $0x580] sm:$0xff]
      %v2556 = vld [vmem:[#allocation10 + $0x588] sm:$0xff]
      %v2557 = vld [vmem:[#allocation10 + $0x590] sm:$0xff]
      %v2558 = vld [vmem:[#allocation10 + $0x598] sm:$0xff]
      %v2559 = vld [vmem:[#allocation10 + $0x5a0] sm:$0xff]
      %v2560 = vld [vmem:[#allocation10 + $0x5a8] sm:$0xff]
      %v2561 = vld [vmem:[#allocation10 + $0x5b0] sm:$0xff]
      %v2562 = vld [vmem:[#allocation10 + $0x5b8] sm:$0xff]
      %v2563 = vld [vmem:[#allocation10 + $0x5c0] sm:$0xff]
      %v2564 = vld [vmem:[#allocation10 + $0x5c8] sm:$0xff]
      %v2565 = vld [vmem:[#allocation10 + $0x5d0] sm:$0xff]
      %v2566 = vld [vmem:[#allocation10 + $0x5d8] sm:$0xff]
      %v2567 = vld [vmem:[#allocation10 + $0x5e0] sm:$0xff]
      %v2568 = vld [vmem:[#allocation10 + $0x5e8] sm:$0xff]
      %v2569 = vld [vmem:[#allocation10 + $0x5f0] sm:$0xff]
      %v2570 = vld [vmem:[#allocation10 + $0x5f8] sm:$0xff]
      %v2571 = vld [vmem:[#allocation10 + $0x600] sm:$0xff]
      %v2572 = vld [vmem:[#allocation10 + $0x608] sm:$0xff]
      %v2573 = vld [vmem:[#allocation10 + $0x610] sm:$0xff]
      %v2574 = vld [vmem:[#allocation10 + $0x618] sm:$0xff]
      %v2575 = vld [vmem:[#allocation10 + $0x620] sm:$0xff]
      %v2576 = vld [vmem:[#allocation10 + $0x628] sm:$0xff]
      %v2577 = vld [vmem:[#allocation10 + $0x630] sm:$0xff]
      %v2578 = vld [vmem:[#allocation10 + $0x638] sm:$0xff]
      %v2579 = vld [vmem:[#allocation10 + $0x640] sm:$0xff]
      %v2580 = vld [vmem:[#allocation10 + $0x648] sm:$0xff]
      %v2581 = vld [vmem:[#allocation10 + $0x650] sm:$0xff]
      %v2582 = vld [vmem:[#allocation10 + $0x658] sm:$0xff]
      %v2583 = vld [vmem:[#allocation10 + $0x660] sm:$0xff]
      %v2584 = vld [vmem:[#allocation10 + $0x668] sm:$0xff]
      %v2585 = vld [vmem:[#allocation10 + $0x670] sm:$0xff]
      %v2586 = vld [vmem:[#allocation10 + $0x678] sm:$0xff]
      %v2587 = vld [vmem:[#allocation10 + $0x680] sm:$0xff]
      %v2588 = vld [vmem:[#allocation10 + $0x688] sm:$0xff]
      %v2589 = vld [vmem:[#allocation10 + $0x690] sm:$0xff]
      %v2590 = vld [vmem:[#allocation10 + $0x698] sm:$0xff]
      %v2591 = vld [vmem:[#allocation10 + $0x6a0] sm:$0xff]
      %v2592 = vld [vmem:[#allocation10 + $0x6a8] sm:$0xff]
      %v2593 = vld [vmem:[#allocation10 + $0x6b0] sm:$0xff]
      %v2594 = vld [vmem:[#allocation10 + $0x6b8] sm:$0xff]
      %v2595 = vld [vmem:[#allocation10 + $0x6c0] sm:$0xff]
      %v2596 = vld [vmem:[#allocation10 + $0x6c8] sm:$0xff]
      %v2597 = vld [vmem:[#allocation10 + $0x6d0] sm:$0xff]
      %v2598 = vld [vmem:[#allocation10 + $0x6d8] sm:$0xff]
      %v2599 = vld [vmem:[#allocation10 + $0x6e0] sm:$0xff]
      %v2600 = vld [vmem:[#allocation10 + $0x6e8] sm:$0xff]
      %v2601 = vld [vmem:[#allocation10 + $0x6f0] sm:$0xff]
      %v2602 = vld [vmem:[#allocation10 + $0x6f8] sm:$0xff]
      %v2603 = vld [vmem:[#allocation10 + $0x700] sm:$0xff]
      %v2604 = vld [vmem:[#allocation10 + $0x708] sm:$0xff]
      %v2605 = vld [vmem:[#allocation10 + $0x710] sm:$0xff]
      %v2606 = vld [vmem:[#allocation10 + $0x718] sm:$0xff]
      %v2607 = vld [vmem:[#allocation10 + $0x720] sm:$0xff]
      %v2608 = vld [vmem:[#allocation10 + $0x728] sm:$0xff]
      %v2609 = vld [vmem:[#allocation10 + $0x730] sm:$0xff]
      %v2610 = vld [vmem:[#allocation10 + $0x738] sm:$0xff]
      %v2611 = vld [vmem:[#allocation10 + $0x740] sm:$0xff]
      %v2612 = vld [vmem:[#allocation10 + $0x748] sm:$0xff]
      %v2613 = vld [vmem:[#allocation10 + $0x750] sm:$0xff]
      %v2614 = vld [vmem:[#allocation10 + $0x758] sm:$0xff]
      %v2615 = vld [vmem:[#allocation10 + $0x760] sm:$0xff]
      %v2616 = vld [vmem:[#allocation10 + $0x768] sm:$0xff]
      %v2617 = vld [vmem:[#allocation10 + $0x770] sm:$0xff]
      %v2618 = vld [vmem:[#allocation10 + $0x778] sm:$0xff]
      %v2619 = vld [vmem:[#allocation10 + $0x780] sm:$0xff]
      %v2620 = vld [vmem:[#allocation10 + $0x788] sm:$0xff]
      %v2621 = vld [vmem:[#allocation10 + $0x790] sm:$0xff]
      %v2622 = vld [vmem:[#allocation10 + $0x798] sm:$0xff]
      %v2623 = vld [vmem:[#allocation10 + $0x7a0] sm:$0xff]
      %v2624 = vld [vmem:[#allocation10 + $0x7a8] sm:$0xff]
      %v2625 = vld [vmem:[#allocation10 + $0x7b0] sm:$0xff]
      %v2626 = vld [vmem:[#allocation10 + $0x7b8] sm:$0xff]
      %v2627 = vld [vmem:[#allocation10 + $0x7c0] sm:$0xff]
      %v2628 = vld [vmem:[#allocation10 + $0x7c8] sm:$0xff]
      %v2629 = vld [vmem:[#allocation10 + $0x7d0] sm:$0xff]
      %v2630 = vld [vmem:[#allocation10 + $0x7d8] sm:$0xff]
      %v2631 = vld [vmem:[#allocation10 + $0x7e0] sm:$0xff]
      %v2632 = vld [vmem:[#allocation10 + $0x7e8] sm:$0xff]
      %v2633 = vld [vmem:[#allocation10 + $0x7f0] sm:$0xff]
      %v2634 = vld [vmem:[#allocation10 + $0x7f8] sm:$0xff]
      %v2635 = vld [vmem:[#allocation10 + $0x800] sm:$0xff]
      %v2636 = vld [vmem:[#allocation10 + $0x808] sm:$0xff]
      %v2637 = vld [vmem:[#allocation10 + $0x810] sm:$0xff]
      %v2638 = vld [vmem:[#allocation10 + $0x818] sm:$0xff]
      %v2639 = vld [vmem:[#allocation10 + $0x820] sm:$0xff]
      %v2640 = vld [vmem:[#allocation10 + $0x828] sm:$0xff]
      %v2641 = vld [vmem:[#allocation10 + $0x830] sm:$0xff]
      %v2642 = vld [vmem:[#allocation10 + $0x838] sm:$0xff]
      %v2643 = vld [vmem:[#allocation10 + $0x840] sm:$0xff]
      %v2644 = vld [vmem:[#allocation10 + $0x848] sm:$0xff]
      %v2645 = vld [vmem:[#allocation10 + $0x850] sm:$0xff]
      %v2646 = vld [vmem:[#allocation10 + $0x858] sm:$0xff]
      %v2647 = vld [vmem:[#allocation10 + $0x860] sm:$0xff]
      %v2648 = vld [vmem:[#allocation10 + $0x868] sm:$0xff]
      %v2649 = vld [vmem:[#allocation10 + $0x870] sm:$0xff]
      %v2650 = vld [vmem:[#allocation10 + $0x878] sm:$0xff]
      %v2651 = vld [vmem:[#allocation10 + $0x880] sm:$0xff]
      %v2652 = vld [vmem:[#allocation10 + $0x888] sm:$0xff]
      %v2653 = vld [vmem:[#allocation10 + $0x890] sm:$0xff]
      %v2654 = vld [vmem:[#allocation10 + $0x898] sm:$0xff]
      %v2655 = vld [vmem:[#allocation10 + $0x8a0] sm:$0xff]
      %v2656 = vld [vmem:[#allocation10 + $0x8a8] sm:$0xff]
      %v2657 = vld [vmem:[#allocation10 + $0x8b0] sm:$0xff]
      %v2658 = vld [vmem:[#allocation10 + $0x8b8] sm:$0xff]
      %v2659 = vld [vmem:[#allocation10 + $0x8c0] sm:$0xff]
      %v2660 = vld [vmem:[#allocation10 + $0x8c8] sm:$0xff]
      %v2661 = vld [vmem:[#allocation10 + $0x8d0] sm:$0xff]
      %v2662 = vld [vmem:[#allocation10 + $0x8d8] sm:$0xff]
      %v2663 = vld [vmem:[#allocation10 + $0x8e0] sm:$0xff]
      %v2664 = vld [vmem:[#allocation10 + $0x8e8] sm:$0xff]
      %v2665 = vld [vmem:[#allocation10 + $0x8f0] sm:$0xff]
      %v2666 = vld [vmem:[#allocation10 + $0x8f8] sm:$0xff]
      %v2667 = vld [vmem:[#allocation10 + $0x900] sm:$0xff]
      %v2668 = vld [vmem:[#allocation10 + $0x908] sm:$0xff]
      %v2669 = vld [vmem:[#allocation10 + $0x910] sm:$0xff]
      %v2670 = vld [vmem:[#allocation10 + $0x918] sm:$0xff]
      %v2671 = vld [vmem:[#allocation10 + $0x920] sm:$0xff]
      %v2672 = vld [vmem:[#allocation10 + $0x928] sm:$0xff]
      %v2673 = vld [vmem:[#allocation10 + $0x930] sm:$0xff]
      %v2674 = vld [vmem:[#allocation10 + $0x938] sm:$0xff]
      %v2675 = vld [vmem:[#allocation10 + $0x940] sm:$0xff]
      %v2676 = vld [vmem:[#allocation10 + $0x948] sm:$0xff]
      %v2677 = vld [vmem:[#allocation10 + $0x950] sm:$0xff]
      %v2678 = vld [vmem:[#allocation10 + $0x958] sm:$0xff]
      %v2679 = vld [vmem:[#allocation10 + $0x960] sm:$0xff]
      %v2680 = vld [vmem:[#allocation10 + $0x968] sm:$0xff]
      %v2681 = vld [vmem:[#allocation10 + $0x970] sm:$0xff]
      %v2682 = vld [vmem:[#allocation10 + $0x978] sm:$0xff]
      %v2683 = vld [vmem:[#allocation10 + $0x980] sm:$0xff]
      %v2684 = vld [vmem:[#allocation10 + $0x988] sm:$0xff]
      %v2685 = vld [vmem:[#allocation10 + $0x990] sm:$0xff]
      %v2686 = vld [vmem:[#allocation10 + $0x998] sm:$0xff]
      %v2687 = vld [vmem:[#allocation10 + $0x9a0] sm:$0xff]
      %v2688 = vld [vmem:[#allocation10 + $0x9a8] sm:$0xff]
      %v2689 = vld [vmem:[#allocation10 + $0x9b0] sm:$0xff]
      %v2690 = vld [vmem:[#allocation10 + $0x9b8] sm:$0xff]
      %v2691 = vld [vmem:[#allocation10 + $0x9c0] sm:$0xff]
      %v2692 = vld [vmem:[#allocation10 + $0x9c8] sm:$0xff]
      %v2693 = vld [vmem:[#allocation10 + $0x9d0] sm:$0xff]
      %v2694 = vld [vmem:[#allocation10 + $0x9d8] sm:$0xff]
      %v2695 = vld [vmem:[#allocation10 + $0x9e0] sm:$0xff]
      %v2696 = vld [vmem:[#allocation10 + $0x9e8] sm:$0xff]
      %v2697 = vld [vmem:[#allocation10 + $0x9f0] sm:$0xff]
      %v2698 = vld [vmem:[#allocation10 + $0x9f8] sm:$0xff]
      %v2699 = vld [vmem:[#allocation10 + $0xa00] sm:$0xff]
      %v2700 = vld [vmem:[#allocation10 + $0xa08] sm:$0xff]
      %v2701 = vld [vmem:[#allocation10 + $0xa10] sm:$0xff]
      %v2702 = vld [vmem:[#allocation10 + $0xa18] sm:$0xff]
      %v2703 = vld [vmem:[#allocation10 + $0xa20] sm:$0xff]
      %v2704 = vld [vmem:[#allocation10 + $0xa28] sm:$0xff]
      %v2705 = vld [vmem:[#allocation10 + $0xa30] sm:$0xff]
      %v2706 = vld [vmem:[#allocation10 + $0xa38] sm:$0xff]
      %v2707 = vld [vmem:[#allocation10 + $0xa40] sm:$0xff]
      %v2708 = vld [vmem:[#allocation10 + $0xa48] sm:$0xff]
      %v2709 = vld [vmem:[#allocation10 + $0xa50] sm:$0xff]
      %v2710 = vld [vmem:[#allocation10 + $0xa58] sm:$0xff]
      %v2711 = vld [vmem:[#allocation10 + $0xa60] sm:$0xff]
      %v2712 = vld [vmem:[#allocation10 + $0xa68] sm:$0xff]
      %v2713 = vld [vmem:[#allocation10 + $0xa70] sm:$0xff]
      %v2714 = vld [vmem:[#allocation10 + $0xa78] sm:$0xff]
      %v2715 = vld [vmem:[#allocation10 + $0xa80] sm:$0xff]
      %v2716 = vld [vmem:[#allocation10 + $0xa88] sm:$0xff]
      %v2717 = vld [vmem:[#allocation10 + $0xa90] sm:$0xff]
      %v2718 = vld [vmem:[#allocation10 + $0xa98] sm:$0xff]
      %v2719 = vld [vmem:[#allocation10 + $0xaa0] sm:$0xff]
      %v2720 = vld [vmem:[#allocation10 + $0xaa8] sm:$0xff]
      %v2721 = vld [vmem:[#allocation10 + $0xab0] sm:$0xff]
      %v2722 = vld [vmem:[#allocation10 + $0xab8] sm:$0xff]
      %v2723 = vld [vmem:[#allocation10 + $0xac0] sm:$0xff]
      %v2724 = vld [vmem:[#allocation10 + $0xac8] sm:$0xff]
      %v2725 = vld [vmem:[#allocation10 + $0xad0] sm:$0xff]
      %v2726 = vld [vmem:[#allocation10 + $0xad8] sm:$0xff]
      %v2727 = vld [vmem:[#allocation10 + $0xae0] sm:$0xff]
      %v2728 = vld [vmem:[#allocation10 + $0xae8] sm:$0xff]
      %v2729 = vld [vmem:[#allocation10 + $0xaf0] sm:$0xff]
      %v2730 = vld [vmem:[#allocation10 + $0xaf8] sm:$0xff]
      %v2731 = vld [vmem:[#allocation10 + $0xb00] sm:$0xff]
      %v2732 = vld [vmem:[#allocation10 + $0xb08] sm:$0xff]
      %v2733 = vld [vmem:[#allocation10 + $0xb10] sm:$0xff]
      %v2734 = vld [vmem:[#allocation10 + $0xb18] sm:$0xff]
      %v2735 = vld [vmem:[#allocation10 + $0xb20] sm:$0xff]
      %v2736 = vld [vmem:[#allocation10 + $0xb28] sm:$0xff]
      %v2737 = vld [vmem:[#allocation10 + $0xb30] sm:$0xff]
      %v2738 = vld [vmem:[#allocation10 + $0xb38] sm:$0xff]
      %v2739 = vld [vmem:[#allocation10 + $0xb40] sm:$0xff]
      %v2740 = vld [vmem:[#allocation10 + $0xb48] sm:$0xff]
      %v2741 = vld [vmem:[#allocation10 + $0xb50] sm:$0xff]
      %v2742 = vld [vmem:[#allocation10 + $0xb58] sm:$0xff]
      %v2743 = vld [vmem:[#allocation10 + $0xb60] sm:$0xff]
      %v2744 = vld [vmem:[#allocation10 + $0xb68] sm:$0xff]
      %v2745 = vld [vmem:[#allocation10 + $0xb70] sm:$0xff]
      %v2746 = vld [vmem:[#allocation10 + $0xb78] sm:$0xff]
      %v2747 = vld [vmem:[#allocation10 + $0xb80] sm:$0xff]
      %v2748 = vld [vmem:[#allocation10 + $0xb88] sm:$0xff]
      %v2749 = vld [vmem:[#allocation10 + $0xb90] sm:$0xff]
      %v2750 = vld [vmem:[#allocation10 + $0xb98] sm:$0xff]
      %v2751 = vld [vmem:[#allocation10 + $0xba0] sm:$0xff]
      %v2752 = vld [vmem:[#allocation10 + $0xba8] sm:$0xff]
      %v2753 = vld [vmem:[#allocation10 + $0xbb0] sm:$0xff]
      %v2754 = vld [vmem:[#allocation10 + $0xbb8] sm:$0xff]
      %v2755 = vld [vmem:[#allocation10 + $0xbc0] sm:$0xff]
      %v2756 = vld [vmem:[#allocation10 + $0xbc8] sm:$0xff]
      %v2757 = vld [vmem:[#allocation10 + $0xbd0] sm:$0xff]
      %v2758 = vld [vmem:[#allocation10 + $0xbd8] sm:$0xff]
      %v2759 = vld [vmem:[#allocation10 + $0xbe0] sm:$0xff]
      %v2760 = vld [vmem:[#allocation10 + $0xbe8] sm:$0xff]
      %v2761 = vld [vmem:[#allocation10 + $0xbf0] sm:$0xff]
      %v2762 = vld [vmem:[#allocation10 + $0xbf8] sm:$0xff]
      %v2763 = vld [vmem:[#allocation10 + $0xc00] sm:$0xff]
      %v2764 = vld [vmem:[#allocation10 + $0xc08] sm:$0xff]
      %v2765 = vld [vmem:[#allocation10 + $0xc10] sm:$0xff]
      %v2766 = vld [vmem:[#allocation10 + $0xc18] sm:$0xff]
      %v2767 = vld [vmem:[#allocation10 + $0xc20] sm:$0xff]
      %v2768 = vld [vmem:[#allocation10 + $0xc28] sm:$0xff]
      %v2769 = vld [vmem:[#allocation10 + $0xc30] sm:$0xff]
      %v2770 = vld [vmem:[#allocation10 + $0xc38] sm:$0xff]
      %v2771 = vld [vmem:[#allocation10 + $0xc40] sm:$0xff]
      %v2772 = vld [vmem:[#allocation10 + $0xc48] sm:$0xff]
      %v2773 = vld [vmem:[#allocation10 + $0xc50] sm:$0xff]
      %v2774 = vld [vmem:[#allocation10 + $0xc58] sm:$0xff]
      %v2775 = vld [vmem:[#allocation10 + $0xc60] sm:$0xff]
      %v2776 = vld [vmem:[#allocation10 + $0xc68] sm:$0xff]
      %v2777 = vld [vmem:[#allocation10 + $0xc70] sm:$0xff]
      %v2778 = vld [vmem:[#allocation10 + $0xc78] sm:$0xff]
      %v2779 = vld [vmem:[#allocation10 + $0xc80] sm:$0xff]
      %v2780 = vld [vmem:[#allocation10 + $0xc88] sm:$0xff]
      %v2781 = vld [vmem:[#allocation10 + $0xc90] sm:$0xff]
      %v2782 = vld [vmem:[#allocation10 + $0xc98] sm:$0xff]
      %v2783 = vld [vmem:[#allocation10 + $0xca0] sm:$0xff]
      %v2784 = vld [vmem:[#allocation10 + $0xca8] sm:$0xff]
      %v2785 = vld [vmem:[#allocation10 + $0xcb0] sm:$0xff]
      %v2786 = vld [vmem:[#allocation10 + $0xcb8] sm:$0xff]
      %v2787 = vld [vmem:[#allocation10 + $0xcc0] sm:$0xff]
      %v2788 = vld [vmem:[#allocation10 + $0xcc8] sm:$0xff]
      %v2789 = vld [vmem:[#allocation10 + $0xcd0] sm:$0xff]
      %v2790 = vld [vmem:[#allocation10 + $0xcd8] sm:$0xff]
      %v2791 = vld [vmem:[#allocation10 + $0xce0] sm:$0xff]
      %v2792 = vld [vmem:[#allocation10 + $0xce8] sm:$0xff]
      %v2793 = vld [vmem:[#allocation10 + $0xcf0] sm:$0xff]
      %v2794 = vld [vmem:[#allocation10 + $0xcf8] sm:$0xff]
      %v2795 = vld [vmem:[#allocation10 + $0xd00] sm:$0xff]
      %v2796 = vld [vmem:[#allocation10 + $0xd08] sm:$0xff]
      %v2797 = vld [vmem:[#allocation10 + $0xd10] sm:$0xff]
      %v2798 = vld [vmem:[#allocation10 + $0xd18] sm:$0xff]
      %v2799 = vld [vmem:[#allocation10 + $0xd20] sm:$0xff]
      %v2800 = vld [vmem:[#allocation10 + $0xd28] sm:$0xff]
      %v2801 = vld [vmem:[#allocation10 + $0xd30] sm:$0xff]
      %v2802 = vld [vmem:[#allocation10 + $0xd38] sm:$0xff]
      %v2803 = vld [vmem:[#allocation10 + $0xd40] sm:$0xff]
      %v2804 = vld [vmem:[#allocation10 + $0xd48] sm:$0xff]
      %v2805 = vld [vmem:[#allocation10 + $0xd50] sm:$0xff]
      %v2806 = vld [vmem:[#allocation10 + $0xd58] sm:$0xff]
      %v2807 = vld [vmem:[#allocation10 + $0xd60] sm:$0xff]
      %v2808 = vld [vmem:[#allocation10 + $0xd68] sm:$0xff]
      %v2809 = vld [vmem:[#allocation10 + $0xd70] sm:$0xff]
      %v2810 = vld [vmem:[#allocation10 + $0xd78] sm:$0xff]
      %v2811 = vld [vmem:[#allocation10 + $0xd80] sm:$0xff]
      %v2812 = vld [vmem:[#allocation10 + $0xd88] sm:$0xff]
      %v2813 = vld [vmem:[#allocation10 + $0xd90] sm:$0xff]
      %v2814 = vld [vmem:[#allocation10 + $0xd98] sm:$0xff]
      %v2815 = vld [vmem:[#allocation10 + $0xda0] sm:$0xff]
      %v2816 = vld [vmem:[#allocation10 + $0xda8] sm:$0xff]
      %v2817 = vld [vmem:[#allocation10 + $0xdb0] sm:$0xff]
      %v2818 = vld [vmem:[#allocation10 + $0xdb8] sm:$0xff]
      %v2819 = vld [vmem:[#allocation10 + $0xdc0] sm:$0xff]
      %v2820 = vld [vmem:[#allocation10 + $0xdc8] sm:$0xff]
      %v2821 = vld [vmem:[#allocation10 + $0xdd0] sm:$0xff]
      %v2822 = vld [vmem:[#allocation10 + $0xdd8] sm:$0xff]
      %v2823 = vld [vmem:[#allocation10 + $0xde0] sm:$0xff]
      %v2824 = vld [vmem:[#allocation10 + $0xde8] sm:$0xff]
      %v2825 = vld [vmem:[#allocation10 + $0xdf0] sm:$0xff]
      %v2826 = vld [vmem:[#allocation10 + $0xdf8] sm:$0xff]
      %v2827 = vld [vmem:[#allocation10 + $0xe00] sm:$0xff]
      %v2828 = vld [vmem:[#allocation10 + $0xe08] sm:$0xff]
      %v2829 = vld [vmem:[#allocation10 + $0xe10] sm:$0xff]
      %v2830 = vld [vmem:[#allocation10 + $0xe18] sm:$0xff]
      %v2831 = vld [vmem:[#allocation10 + $0xe20] sm:$0xff]
      %v2832 = vld [vmem:[#allocation10 + $0xe28] sm:$0xff]
      %v2833 = vld [vmem:[#allocation10 + $0xe30] sm:$0xff]
      %v2834 = vld [vmem:[#allocation10 + $0xe38] sm:$0xff]
      %v2835 = vld [vmem:[#allocation10 + $0xe40] sm:$0xff]
      %v2836 = vld [vmem:[#allocation10 + $0xe48] sm:$0xff]
      %v2837 = vld [vmem:[#allocation10 + $0xe50] sm:$0xff]
      %v2838 = vld [vmem:[#allocation10 + $0xe58] sm:$0xff]
      %v2839 = vld [vmem:[#allocation10 + $0xe60] sm:$0xff]
      %v2840 = vld [vmem:[#allocation10 + $0xe68] sm:$0xff]
      %v2841 = vld [vmem:[#allocation10 + $0xe70] sm:$0xff]
      %v2842 = vld [vmem:[#allocation10 + $0xe78] sm:$0xff]
      %v2843 = vld [vmem:[#allocation10 + $0xe80] sm:$0xff]
      %v2844 = vld [vmem:[#allocation10 + $0xe88] sm:$0xff]
      %v2845 = vld [vmem:[#allocation10 + $0xe90] sm:$0xff]
      %v2846 = vld [vmem:[#allocation10 + $0xe98] sm:$0xff]
      %v2847 = vld [vmem:[#allocation10 + $0xea0] sm:$0xff]
      %v2848 = vld [vmem:[#allocation10 + $0xea8] sm:$0xff]
      %v2849 = vld [vmem:[#allocation10 + $0xeb0] sm:$0xff]
      %v2850 = vld [vmem:[#allocation10 + $0xeb8] sm:$0xff]
      %v2851 = vld [vmem:[#allocation10 + $0xec0] sm:$0xff]
      %v2852 = vld [vmem:[#allocation10 + $0xec8] sm:$0xff]
      %v2853 = vld [vmem:[#allocation10 + $0xed0] sm:$0xff]
      %v2854 = vld [vmem:[#allocation10 + $0xed8] sm:$0xff]
      %v2855 = vld [vmem:[#allocation10 + $0xee0] sm:$0xff]
      %v2856 = vld [vmem:[#allocation10 + $0xee8] sm:$0xff]
      %v2857 = vld [vmem:[#allocation10 + $0xef0] sm:$0xff]
      %v2858 = vld [vmem:[#allocation10 + $0xef8] sm:$0xff]
      %v2859 = vld [vmem:[#allocation10 + $0xf00] sm:$0xff]
      %v2860 = vld [vmem:[#allocation10 + $0xf08] sm:$0xff]
      %v2861 = vld [vmem:[#allocation10 + $0xf10] sm:$0xff]
      %v2862 = vld [vmem:[#allocation10 + $0xf18] sm:$0xff]
      %v2863 = vld [vmem:[#allocation10 + $0xf20] sm:$0xff]
      %v2864 = vld [vmem:[#allocation10 + $0xf28] sm:$0xff]
      %v2865 = vld [vmem:[#allocation10 + $0xf30] sm:$0xff]
      %v2866 = vld [vmem:[#allocation10 + $0xf38] sm:$0xff]
      %v2867 = vld [vmem:[#allocation10 + $0xf40] sm:$0xff]
      %v2868 = vld [vmem:[#allocation10 + $0xf48] sm:$0xff]
      %v2869 = vld [vmem:[#allocation10 + $0xf50] sm:$0xff]
      %v2870 = vld [vmem:[#allocation10 + $0xf58] sm:$0xff]
      %v2871 = vld [vmem:[#allocation10 + $0xf60] sm:$0xff]
      %v2872 = vld [vmem:[#allocation10 + $0xf68] sm:$0xff]
      %v2873 = vld [vmem:[#allocation10 + $0xf70] sm:$0xff]
      %v2874 = vld [vmem:[#allocation10 + $0xf78] sm:$0xff]
      %v2875 = vld [vmem:[#allocation10 + $0xf80] sm:$0xff]
      %v2876 = vld [vmem:[#allocation10 + $0xf88] sm:$0xff]
      %v2877 = vld [vmem:[#allocation10 + $0xf90] sm:$0xff]
      %v2878 = vld [vmem:[#allocation10 + $0xf98] sm:$0xff]
      %v2879 = vld [vmem:[#allocation10 + $0xfa0] sm:$0xff]
      %v2880 = vld [vmem:[#allocation10 + $0xfa8] sm:$0xff]
      %v2881 = vld [vmem:[#allocation10 + $0xfb0] sm:$0xff]
      %v2882 = vld [vmem:[#allocation10 + $0xfb8] sm:$0xff]
      %v2883 = vld [vmem:[#allocation10 + $0xfc0] sm:$0xff]
      %v2884 = vld [vmem:[#allocation10 + $0xfc8] sm:$0xff]
      %v2885 = vld [vmem:[#allocation10 + $0xfd0] sm:$0xff]
      %v2886 = vld [vmem:[#allocation10 + $0xfd8] sm:$0xff]
      %v2887 = vld [vmem:[#allocation10 + $0xfe0] sm:$0xff]
      %v2888 = vld [vmem:[#allocation10 + $0xfe8] sm:$0xff]
      %v2889 = vld [vmem:[#allocation10 + $0xff0] sm:$0xff]
      %v2890 = vld [vmem:[#allocation10 + $0xff8] sm:$0xff]
      %2891 = vmatprep.subr.mxu0 %v2380
      %2892 = vmatpush1.msra.mxu0 %v2379
      %2893 = vmatprep.subr.mxu0 %v2396
      %2894 = vmatpush1.msra.mxu0 %v2395
      %2895 = vmatprep.subr.mxu0 %v2412
      %2896 = vmatpush1.msra.mxu0 %v2411
      %2897 = vmatprep.subr.mxu0 %v2428
      %2898 = vmatpush1.msra.mxu0 %v2427
      %2899 = vmatprep.subr.mxu0 %v2444
      %2900 = vmatpush1.msra.mxu0 %v2443
      %2901 = vmatprep.subr.mxu0 %v2460
      %2902 = vmatpush1.msra.mxu0 %v2459
      %2903 = vmatprep.subr.mxu0 %v2476
      %2904 = vmatpush1.msra.mxu0 %v2475
      %2905 = vmatprep.subr.mxu0 %v2492
      %2906 = vmatpush1.msra.mxu0 %v2491
      %2907 = vmatprep.subr.mxu0 %v2508
      %2908 = vmatpush1.msra.mxu0 %v2507
      %2909 = vmatprep.subr.mxu0 %v2524
      %2910 = vmatpush1.msra.mxu0 %v2523
      %2911 = vmatprep.subr.mxu0 %v2540
      %2912 = vmatpush1.msra.mxu0 %v2539
      %2913 = vmatprep.subr.mxu0 %v2556
      %2914 = vmatpush1.msra.mxu0 %v2555
      %2915 = vmatprep.subr.mxu0 %v2572
      %2916 = vmatpush1.msra.mxu0 %v2571
      %2917 = vmatprep.subr.mxu0 %v2588
      %2918 = vmatpush1.msra.mxu0 %v2587
      %2919 = vmatprep.subr.mxu0 %v2604
      %2920 = vmatpush1.msra.mxu0 %v2603
      %2921 = vmatprep.subr.mxu0 %v2620
      %2922 = vmatpush1.msra.mxu0 %v2619
      %2923 = vmatprep.subr.mxu0 %v2636
      %2924 = vmatpush1.msra.mxu0 %v2635
      %2925 = vmatprep.subr.mxu0 %v2652
      %2926 = vmatpush1.msra.mxu0 %v2651
      %2927 = vmatprep.subr.mxu0 %v2668
      %2928 = vmatpush1.msra.mxu0 %v2667
      %2929 = vmatprep.subr.mxu0 %v2684
      %2930 = vmatpush1.msra.mxu0 %v2683
      %2931 = vmatprep.subr.mxu0 %v2700
      %2932 = vmatpush1.msra.mxu0 %v2699
      %2933 = vmatprep.subr.mxu0 %v2716
      %2934 = vmatpush1.msra.mxu0 %v2715
      %2935 = vmatprep.subr.mxu0 %v2732
      %2936 = vmatpush1.msra.mxu0 %v2731
      %2937 = vmatprep.subr.mxu0 %v2748
      %2938 = vmatpush1.msra.mxu0 %v2747
      %2939 = vmatprep.subr.mxu0 %v2764
      %2940 = vmatpush1.msra.mxu0 %v2763
      %2941 = vmatprep.subr.mxu0 %v2780
      %2942 = vmatpush1.msra.mxu0 %v2779
      %2943 = vmatprep.subr.mxu0 %v2796
      %2944 = vmatpush1.msra.mxu0 %v2795
      %2945 = vmatprep.subr.mxu0 %v2812
      %2946 = vmatpush1.msra.mxu0 %v2811
      %2947 = vmatprep.subr.mxu0 %v2828
      %2948 = vmatpush1.msra.mxu0 %v2827
      %2949 = vmatprep.subr.mxu0 %v2844
      %2950 = vmatpush1.msra.mxu0 %v2843
      %2951 = vmatprep.subr.mxu0 %v2860
      %2952 = vmatpush1.msra.mxu0 %v2859
      %2953 = vmatprep.subr.mxu0 %v2876
      %2954 = vmatpush1.msra.mxu0 %v2875
      %2955 = vmatprep.mubr.f32.mxu0 %v2237
      %2956 = vmatmul.mubr.f32.gmra.mrb[0].mxu0 %v2235
      %v2957 = vpop.f32.mrb[0].mxu0
      %v2958 = vadd.f32 0.0, %v2957
      %v2959 = vpop.f32.mrb[0].mxu0
      %v2960 = vadd.f32 0.0, %v2959
      %2961 = vmatprep.mubr.f32.mxu0 %v2241
      %2962 = vmatmul.mubr.f32.gmra.mrb[0].mxu0 %v2239
      %v2963 = vpop.f32.mrb[0].mxu0
      %v2964 = vadd.f32 0.0, %v2963
      %v2965 = vpop.f32.mrb[0].mxu0
      %v2966 = vadd.f32 0.0, %v2965
      %2967 = vmatprep.mubr.f32.mxu0 %v2245
      %2968 = vmatmul.mubr.f32.gmra.mrb[0].mxu0 %v2243
      %v2969 = vpop.f32.mrb[0].mxu0
      %v2970 = vadd.f32 0.0, %v2969
      %v2971 = vpop.f32.mrb[0].mxu0
      %v2972 = vadd.f32 0.0, %v2971
      %2973 = vmatprep.mubr.f32.mxu0 %v2249
      %2974 = vmatmul.mubr.f32.gmra.mrb[0].mxu0 %v2247
      %v2975 = vpop.f32.mrb[0].mxu0
      %v2976 = vadd.f32 0.0, %v2975
      %v2977 = vpop.f32.mrb[0].mxu0
      %v2978 = vadd.f32 0.0, %v2977
      %2979 = vmatprep.mubr.f32.mxu0 %v2253
      %2980 = vmatmul.mubr.f32.gmra.mrb[0].mxu0 %v2251
      %v2981 = vpop.f32.mrb[0].mxu0
      %v2982 = vadd.f32 0.0, %v2981
      %v2983 = vpop.f32.mrb[0].mxu0
      %v2984 = vadd.f32 0.0, %v2983
      %2985 = vmatprep.mubr.f32.mxu0 %v2257
      %2986 = vmatmul.mubr.f32.gmra.mrb[0].mxu0 %v2255
      %v2987 = vpop.f32.mrb[0].mxu0
      %v2988 = vadd.f32 0.0, %v2987
      %v2989 = vpop.f32.mrb[0].mxu0
      %v2990 = vadd.f32 0.0, %v2989
      %2991 = vmatprep.mubr.f32.mxu0 %v2261
      %2992 = vmatmul.mubr.f32.gmra.mrb[0].mxu0 %v2259
      %v2993 = vpop.f32.mrb[0].mxu0
      %v2994 = vadd.f32 0.0, %v2993
      %v2995 = vpop.f32.mrb[0].mxu0
      %v2996 = vadd.f32 0.0, %v2995
      %2997 = vmatprep.mubr.f32.mxu0 %v2265
      %2998 = vmatmul.mubr.f32.gmra.mrb[0].mxu0 %v2263
      %v2999 = vpop.f32.mrb[0].mxu0
      %v3000 = vadd.f32 0.0, %v2999
      %v3001 = vpop.f32.mrb[0].mxu0
      %v3002 = vadd.f32 0.0, %v3001
      %3003 = vmatprep.mubr.f32.mxu0 %v2269
      %3004 = vmatmul.mubr.f32.gmra.mrb[0].mxu0 %v2267
      %v3005 = vpop.f32.mrb[0].mxu0
      %v3006 = vadd.f32 0.0, %v3005
      %v3007 = vpop.f32.mrb[0].mxu0
      %v3008 = vadd.f32 0.0, %v3007
      %3009 = vmatprep.mubr.f32.mxu0 %v2273
      %3010 = vmatmul.mubr.f32.gmra.mrb[0].mxu0 %v2271
      %v3011 = vpop.f32.mrb[0].mxu0
      %v3012 = vadd.f32 0.0, %v3011
      %v3013 = vpop.f32.mrb[0].mxu0
      %v3014 = vadd.f32 0.0, %v3013
      %3015 = vmatprep.mubr.f32.mxu0 %v2277
      %3016 = vmatmul.mubr.f32.gmra.mrb[0].mxu0 %v2275
      %v3017 = vpop.f32.mrb[0].mxu0
      %v3018 = vadd.f32 0.0, %v3017
      %v3019 = vpop.f32.mrb[0].mxu0
      %v3020 = vadd.f32 0.0, %v3019
      %3021 = vmatprep.mubr.f32.mxu0 %v2281
      %3022 = vmatmul.mubr.f32.gmra.mrb[0].mxu0 %v2279
      %v3023 = vpop.f32.mrb[0].mxu0
      %v3024 = vadd.f32 0.0, %v3023
      %v3025 = vpop.f32.mrb[0].mxu0
      %v3026 = vadd.f32 0.0, %v3025
      %3027 = vmatprep.mubr.f32.mxu0 %v2285
      %3028 = vmatmul.mubr.f32.gmra.mrb[0].mxu0 %v2283
      %v3029 = vpop.f32.mrb[0].mxu0
      %v3030 = vadd.f32 0.0, %v3029
      %v3031 = vpop.f32.mrb[0].mxu0
      %v3032 = vadd.f32 0.0, %v3031
      %3033 = vmatprep.mubr.f32.mxu0 %v2289
      %3034 = vmatmul.mubr.f32.gmra.mrb[0].mxu0 %v2287
      %v3035 = vpop.f32.mrb[0].mxu0
      %v3036 = vadd.f32 0.0, %v3035
      %v3037 = vpop.f32.mrb[0].mxu0
      %v3038 = vadd.f32 0.0, %v3037
      %3039 = vmatprep.mubr.f32.mxu0 %v2293
      %3040 = vmatmul.mubr.f32.gmra.mrb[0].mxu0 %v2291
      %v3041 = vpop.f32.mrb[0].mxu0
      %v3042 = vadd.f32 0.0, %v3041
      %v3043 = vpop.f32.mrb[0].mxu0
      %v3044 = vadd.f32 0.0, %v3043
      %3045 = vmatprep.mubr.f32.mxu0 %v2297
      %3046 = vmatmul.mubr.f32.gmra.mrb[0].mxu0 %v2295
      %v3047 = vpop.f32.mrb[0].mxu0
      %v3048 = vadd.f32 0.0, %v3047
      %v3049 = vpop.f32.mrb[0].mxu0
      %v3050 = vadd.f32 0.0, %v3049
      %3051 = vdwg.mxu0
      %3052 = vmatprep.subr.mxu0 %v2382
      %3053 = vmatpush1.msra.mxu0 %v2381
      %3054 = vmatprep.subr.mxu0 %v2398
      %3055 = vmatpush1.msra.mxu0 %v2397
      %3056 = vmatprep.subr.mxu0 %v2414
      %3057 = vmatpush1.msra.mxu0 %v2413
      %3058 = vmatprep.subr.mxu0 %v2430
      %3059 = vmatpush1.msra.mxu0 %v2429
      %3060 = vmatprep.subr.mxu0 %v2446
      %3061 = vmatpush1.msra.mxu0 %v2445
      %3062 = vmatprep.subr.mxu0 %v2462
      %3063 = vmatpush1.msra.mxu0 %v2461
      %3064 = vmatprep.subr.mxu0 %v2478
      %3065 = vmatpush1.msra.mxu0 %v2477
      %3066 = vmatprep.subr.mxu0 %v2494
      %3067 = vmatpush1.msra.mxu0 %v2493
      %3068 = vmatprep.subr.mxu0 %v2510
      %3069 = vmatpush1.msra.mxu0 %v2509
      %3070 = vmatprep.subr.mxu0 %v2526
      %3071 = vmatpush1.msra.mxu0 %v2525
      %3072 = vmatprep.subr.mxu0 %v2542
      %3073 = vmatpush1.msra.mxu0 %v2541
      %3074 = vmatprep.subr.mxu0 %v2558
      %3075 = vmatpush1.msra.mxu0 %v2557
      %3076 = vmatprep.subr.mxu0 %v2574
      %3077 = vmatpush1.msra.mxu0 %v2573
      %3078 = vmatprep.subr.mxu0 %v2590
      %3079 = vmatpush1.msra.mxu0 %v2589
      %3080 = vmatprep.subr.mxu0 %v2606
      %3081 = vmatpush1.msra.mxu0 %v2605
      %3082 = vmatprep.subr.mxu0 %v2622
      %3083 = vmatpush1.msra.mxu0 %v2621
      %3084 = vmatprep.subr.mxu0 %v2638
      %3085 = vmatpush1.msra.mxu0 %v2637
      %3086 = vmatprep.subr.mxu0 %v2654
      %3087 = vmatpush1.msra.mxu0 %v2653
      %3088 = vmatprep.subr.mxu0 %v2670
      %3089 = vmatpush1.msra.mxu0 %v2669
      %3090 = vmatprep.subr.mxu0 %v2686
      %3091 = vmatpush1.msra.mxu0 %v2685
      %3092 = vmatprep.subr.mxu0 %v2702
      %3093 = vmatpush1.msra.mxu0 %v2701
      %3094 = vmatprep.subr.mxu0 %v2718
      %3095 = vmatpush1.msra.mxu0 %v2717
      %3096 = vmatprep.subr.mxu0 %v2734
      %3097 = vmatpush1.msra.mxu0 %v2733
      %3098 = vmatprep.subr.mxu0 %v2750
      %3099 = vmatpush1.msra.mxu0 %v2749
      %3100 = vmatprep.subr.mxu0 %v2766
      %3101 = vmatpush1.msra.mxu0 %v2765
      %3102 = vmatprep.subr.mxu0 %v2782
      %3103 = vmatpush1.msra.mxu0 %v2781
      %3104 = vmatprep.subr.mxu0 %v2798
      %3105 = vmatpush1.msra.mxu0 %v2797
      %3106 = vmatprep.subr.mxu0 %v2814
      %3107 = vmatpush1.msra.mxu0 %v2813
      %3108 = vmatprep.subr.mxu0 %v2830
      %3109 = vmatpush1.msra.mxu0 %v2829
      %3110 = vmatprep.subr.mxu0 %v2846
      %3111 = vmatpush1.msra.mxu0 %v2845
      %3112 = vmatprep.subr.mxu0 %v2862
      %3113 = vmatpush1.msra.mxu0 %v2861
      %3114 = vmatprep.subr.mxu0 %v2878
      %3115 = vmatpush1.msra.mxu0 %v2877
      %3116 = vmatprep.mubr.f32.mxu0 %v2237
      %3117 = vmatmul.mubr.f32.gmra.mrb[0].mxu0 %v2235
      %v3118 = vpop.f32.mrb[0].mxu0
      %v3119 = vadd.f32 0.0, %v3118
      %v3120 = vpop.f32.mrb[0].mxu0
      %v3121 = vadd.f32 0.0, %v3120
      %3122 = vmatprep.mubr.f32.mxu0 %v2241
      %3123 = vmatmul.mubr.f32.gmra.mrb[0].mxu0 %v2239
      %v3124 = vpop.f32.mrb[0].mxu0
      %v3125 = vadd.f32 0.0, %v3124
      %v3126 = vpop.f32.mrb[0].mxu0
      %v3127 = vadd.f32 0.0, %v3126
      %3128 = vmatprep.mubr.f32.mxu0 %v2245
      %3129 = vmatmul.mubr.f32.gmra.mrb[0].mxu0 %v2243
      %v3130 = vpop.f32.mrb[0].mxu0
      %v3131 = vadd.f32 0.0, %v3130
      %v3132 = vpop.f32.mrb[0].mxu0
      %v3133 = vadd.f32 0.0, %v3132
      %3134 = vmatprep.mubr.f32.mxu0 %v2249
      %3135 = vmatmul.mubr.f32.gmra.mrb[0].mxu0 %v2247
      %v3136 = vpop.f32.mrb[0].mxu0
      %v3137 = vadd.f32 0.0, %v3136
      %v3138 = vpop.f32.mrb[0].mxu0
      %v3139 = vadd.f32 0.0, %v3138
      %3140 = vmatprep.mubr.f32.mxu0 %v2253
      %3141 = vmatmul.mubr.f32.gmra.mrb[0].mxu0 %v2251
      %v3142 = vpop.f32.mrb[0].mxu0
      %v3143 = vadd.f32 0.0, %v3142
      %v3144 = vpop.f32.mrb[0].mxu0
      %v3145 = vadd.f32 0.0, %v3144
      %3146 = vmatprep.mubr.f32.mxu0 %v2257
      %3147 = vmatmul.mubr.f32.gmra.mrb[0].mxu0 %v2255
      %v3148 = vpop.f32.mrb[0].mxu0
      %v3149 = vadd.f32 0.0, %v3148
      %v3150 = vpop.f32.mrb[0].mxu0
      %v3151 = vadd.f32 0.0, %v3150
      %3152 = vmatprep.mubr.f32.mxu0 %v2261
      %3153 = vmatmul.mubr.f32.gmra.mrb[0].mxu0 %v2259
      %v3154 = vpop.f32.mrb[0].mxu0
      %v3155 = vadd.f32 0.0, %v3154
      %v3156 = vpop.f32.mrb[0].mxu0
      %v3157 = vadd.f32 0.0, %v3156
      %3158 = vmatprep.mubr.f32.mxu0 %v2265
      %3159 = vmatmul.mubr.f32.gmra.mrb[0].mxu0 %v2263
      %v3160 = vpop.f32.mrb[0].mxu0
      %v3161 = vadd.f32 0.0, %v3160
      %v3162 = vpop.f32.mrb[0].mxu0
      %v3163 = vadd.f32 0.0, %v3162
      %3164 = vmatprep.mubr.f32.mxu0 %v2269
      %3165 = vmatmul.mubr.f32.gmra.mrb[0].mxu0 %v2267
      %v3166 = vpop.f32.mrb[0].mxu0
      %v3167 = vadd.f32 0.0, %v3166
      %v3168 = vpop.f32.mrb[0].mxu0
      %v3169 = vadd.f32 0.0, %v3168
      %3170 = vmatprep.mubr.f32.mxu0 %v2273
      %3171 = vmatmul.mubr.f32.gmra.mrb[0].mxu0 %v2271
      %v3172 = vpop.f32.mrb[0].mxu0
      %v3173 = vadd.f32 0.0, %v3172
      %v3174 = vpop.f32.mrb[0].mxu0
      %v3175 = vadd.f32 0.0, %v3174
      %3176 = vmatprep.mubr.f32.mxu0 %v2277
      %3177 = vmatmul.mubr.f32.gmra.mrb[0].mxu0 %v2275
      %v3178 = vpop.f32.mrb[0].mxu0
      %v3179 = vadd.f32 0.0, %v3178
      %v3180 = vpop.f32.mrb[0].mxu0
      %v3181 = vadd.f32 0.0, %v3180
      %3182 = vmatprep.mubr.f32.mxu0 %v2281
      %3183 = vmatmul.mubr.f32.gmra.mrb[0].mxu0 %v2279
      %v3184 = vpop.f32.mrb[0].mxu0
      %v3185 = vadd.f32 0.0, %v3184
      %v3186 = vpop.f32.mrb[0].mxu0
      %v3187 = vadd.f32 0.0, %v3186
      %3188 = vmatprep.mubr.f32.mxu0 %v2285
      %3189 = vmatmul.mubr.f32.gmra.mrb[0].mxu0 %v2283
      %v3190 = vpop.f32.mrb[0].mxu0
      %v3191 = vadd.f32 0.0, %v3190
      %v3192 = vpop.f32.mrb[0].mxu0
      %v3193 = vadd.f32 0.0, %v3192
      %3194 = vmatprep.mubr.f32.mxu0 %v2289
      %3195 = vmatmul.mubr.f32.gmra.mrb[0].mxu0 %v2287
      %v3196 = vpop.f32.mrb[0].mxu0
      %v3197 = vadd.f32 0.0, %v3196
      %v3198 = vpop.f32.mrb[0].mxu0
      %v3199 = vadd.f32 0.0, %v3198
      %3200 = vmatprep.mubr.f32.mxu0 %v2293
      %3201 = vmatmul.mubr.f32.gmra.mrb[0].mxu0 %v2291
      %v3202 = vpop.f32.mrb[0].mxu0
      %v3203 = vadd.f32 0.0, %v3202
      %v3204 = vpop.f32.mrb[0].mxu0
      %v3205 = vadd.f32 0.0, %v3204
      %3206 = vmatprep.mubr.f32.mxu0 %v2297
      %3207 = vmatmul.mubr.f32.gmra.mrb[0].mxu0 %v2295
      %v3208 = vpop.f32.mrb[0].mxu0
      %v3209 = vadd.f32 0.0, %v3208
      %v3210 = vpop.f32.mrb[0].mxu0
      %v3211 = vadd.f32 0.0, %v3210
      %3212 = vdwg.mxu0
      %3213 = vmatprep.subr.mxu0 %v2384
      %3214 = vmatpush1.msra.mxu0 %v2383
      %3215 = vmatprep.subr.mxu0 %v2400
      %3216 = vmatpush1.msra.mxu0 %v2399
      %3217 = vmatprep.subr.mxu0 %v2416
      %3218 = vmatpush1.msra.mxu0 %v2415
      %3219 = vmatprep.subr.mxu0 %v2432
      %3220 = vmatpush1.msra.mxu0 %v2431
      %3221 = vmatprep.subr.mxu0 %v2448
      %3222 = vmatpush1.msra.mxu0 %v2447
      %3223 = vmatprep.subr.mxu0 %v2464
      %3224 = vmatpush1.msra.mxu0 %v2463
      %3225 = vmatprep.subr.mxu0 %v2480
      %3226 = vmatpush1.msra.mxu0 %v2479
      %3227 = vmatprep.subr.mxu0 %v2496
      %3228 = vmatpush1.msra.mxu0 %v2495
      %3229 = vmatprep.subr.mxu0 %v2512
      %3230 = vmatpush1.msra.mxu0 %v2511
      %3231 = vmatprep.subr.mxu0 %v2528
      %3232 = vmatpush1.msra.mxu0 %v2527
      %3233 = vmatprep.subr.mxu0 %v2544
      %3234 = vmatpush1.msra.mxu0 %v2543
      %3235 = vmatprep.subr.mxu0 %v2560
      %3236 = vmatpush1.msra.mxu0 %v2559
      %3237 = vmatprep.subr.mxu0 %v2576
      %3238 = vmatpush1.msra.mxu0 %v2575
      %3239 = vmatprep.subr.mxu0 %v2592
      %3240 = vmatpush1.msra.mxu0 %v2591
      %3241 = vmatprep.subr.mxu0 %v2608
      %3242 = vmatpush1.msra.mxu0 %v2607
      %3243 = vmatprep.subr.mxu0 %v2624
      %3244 = vmatpush1.msra.mxu0 %v2623
      %3245 = vmatprep.subr.mxu0 %v2640
      %3246 = vmatpush1.msra.mxu0 %v2639
      %3247 = vmatprep.subr.mxu0 %v2656
      %3248 = vmatpush1.msra.mxu0 %v2655
      %3249 = vmatprep.subr.mxu0 %v2672
      %3250 = vmatpush1.msra.mxu0 %v2671
      %3251 = vmatprep.subr.mxu0 %v2688
      %3252 = vmatpush1.msra.mxu0 %v2687
      %3253 = vmatprep.subr.mxu0 %v2704
      %3254 = vmatpush1.msra.mxu0 %v2703
      %3255 = vmatprep.subr.mxu0 %v2720
      %3256 = vmatpush1.msra.mxu0 %v2719
      %3257 = vmatprep.subr.mxu0 %v2736
      %3258 = vmatpush1.msra.mxu0 %v2735
      %3259 = vmatprep.subr.mxu0 %v2752
      %3260 = vmatpush1.msra.mxu0 %v2751
      %3261 = vmatprep.subr.mxu0 %v2768
      %3262 = vmatpush1.msra.mxu0 %v2767
      %3263 = vmatprep.subr.mxu0 %v2784
      %3264 = vmatpush1.msra.mxu0 %v2783
      %3265 = vmatprep.subr.mxu0 %v2800
      %3266 = vmatpush1.msra.mxu0 %v2799
      %3267 = vmatprep.subr.mxu0 %v2816
      %3268 = vmatpush1.msra.mxu0 %v2815
      %3269 = vmatprep.subr.mxu0 %v2832
      %3270 = vmatpush1.msra.mxu0 %v2831
      %3271 = vmatprep.subr.mxu0 %v2848
      %3272 = vmatpush1.msra.mxu0 %v2847
      %3273 = vmatprep.subr.mxu0 %v2864
      %3274 = vmatpush1.msra.mxu0 %v2863
      %3275 = vmatprep.subr.mxu0 %v2880
      %3276 = vmatpush1.msra.mxu0 %v2879
      %3277 = vmatprep.mubr.f32.mxu0 %v2237
      %3278 = vmatmul.mubr.f32.gmra.mrb[0].mxu0 %v2235
      %v3279 = vpop.f32.mrb[0].mxu0
      %v3280 = vadd.f32 0.0, %v3279
      %v3281 = vpop.f32.mrb[0].mxu0
      %v3282 = vadd.f32 0.0, %v3281
      %3283 = vmatprep.mubr.f32.mxu0 %v2241
      %3284 = vmatmul.mubr.f32.gmra.mrb[0].mxu0 %v2239
      %v3285 = vpop.f32.mrb[0].mxu0
      %v3286 = vadd.f32 0.0, %v3285
      %v3287 = vpop.f32.mrb[0].mxu0
      %v3288 = vadd.f32 0.0, %v3287
      %3289 = vmatprep.mubr.f32.mxu0 %v2245
      %3290 = vmatmul.mubr.f32.gmra.mrb[0].mxu0 %v2243
      %v3291 = vpop.f32.mrb[0].mxu0
      %v3292 = vadd.f32 0.0, %v3291
      %v3293 = vpop.f32.mrb[0].mxu0
      %v3294 = vadd.f32 0.0, %v3293
      %3295 = vmatprep.mubr.f32.mxu0 %v2249
      %3296 = vmatmul.mubr.f32.gmra.mrb[0].mxu0 %v2247
      %v3297 = vpop.f32.mrb[0].mxu0
      %v3298 = vadd.f32 0.0, %v3297
      %v3299 = vpop.f32.mrb[0].mxu0
      %v3300 = vadd.f32 0.0, %v3299
      %3301 = vmatprep.mubr.f32.mxu0 %v2253
      %3302 = vmatmul.mubr.f32.gmra.mrb[0].mxu0 %v2251
      %v3303 = vpop.f32.mrb[0].mxu0
      %v3304 = vadd.f32 0.0, %v3303
      %v3305 = vpop.f32.mrb[0].mxu0
      %v3306 = vadd.f32 0.0, %v3305
      %3307 = vmatprep.mubr.f32.mxu0 %v2257
      %3308 = vmatmul.mubr.f32.gmra.mrb[0].mxu0 %v2255
      %v3309 = vpop.f32.mrb[0].mxu0
      %v3310 = vadd.f32 0.0, %v3309
      %v3311 = vpop.f32.mrb[0].mxu0
      %v3312 = vadd.f32 0.0, %v3311
      %3313 = vmatprep.mubr.f32.mxu0 %v2261
      %3314 = vmatmul.mubr.f32.gmra.mrb[0].mxu0 %v2259
      %v3315 = vpop.f32.mrb[0].mxu0
      %v3316 = vadd.f32 0.0, %v3315
      %v3317 = vpop.f32.mrb[0].mxu0
      %v3318 = vadd.f32 0.0, %v3317
      %3319 = vmatprep.mubr.f32.mxu0 %v2265
      %3320 = vmatmul.mubr.f32.gmra.mrb[0].mxu0 %v2263
      %v3321 = vpop.f32.mrb[0].mxu0
      %v3322 = vadd.f32 0.0, %v3321
      %v3323 = vpop.f32.mrb[0].mxu0
      %v3324 = vadd.f32 0.0, %v3323
      %3325 = vmatprep.mubr.f32.mxu0 %v2269
      %3326 = vmatmul.mubr.f32.gmra.mrb[0].mxu0 %v2267
      %v3327 = vpop.f32.mrb[0].mxu0
      %v3328 = vadd.f32 0.0, %v3327
      %v3329 = vpop.f32.mrb[0].mxu0
      %v3330 = vadd.f32 0.0, %v3329
      %3331 = vmatprep.mubr.f32.mxu0 %v2273
      %3332 = vmatmul.mubr.f32.gmra.mrb[0].mxu0 %v2271
      %v3333 = vpop.f32.mrb[0].mxu0
      %v3334 = vadd.f32 0.0, %v3333
      %v3335 = vpop.f32.mrb[0].mxu0
      %v3336 = vadd.f32 0.0, %v3335
      %3337 = vmatprep.mubr.f32.mxu0 %v2277
      %3338 = vmatmul.mubr.f32.gmra.mrb[0].mxu0 %v2275
      %v3339 = vpop.f32.mrb[0].mxu0
      %v3340 = vadd.f32 0.0, %v3339
      %v3341 = vpop.f32.mrb[0].mxu0
      %v3342 = vadd.f32 0.0, %v3341
      %3343 = vmatprep.mubr.f32.mxu0 %v2281
      %3344 = vmatmul.mubr.f32.gmra.mrb[0].mxu0 %v2279
      %v3345 = vpop.f32.mrb[0].mxu0
      %v3346 = vadd.f32 0.0, %v3345
      %v3347 = vpop.f32.mrb[0].mxu0
      %v3348 = vadd.f32 0.0, %v3347
      %3349 = vmatprep.mubr.f32.mxu0 %v2285
      %3350 = vmatmul.mubr.f32.gmra.mrb[0].mxu0 %v2283
      %v3351 = vpop.f32.mrb[0].mxu0
      %v3352 = vadd.f32 0.0, %v3351
      %v3353 = vpop.f32.mrb[0].mxu0
      %v3354 = vadd.f32 0.0, %v3353
      %3355 = vmatprep.mubr.f32.mxu0 %v2289
      %3356 = vmatmul.mubr.f32.gmra.mrb[0].mxu0 %v2287
      %v3357 = vpop.f32.mrb[0].mxu0
      %v3358 = vadd.f32 0.0, %v3357
      %v3359 = vpop.f32.mrb[0].mxu0
      %v3360 = vadd.f32 0.0, %v3359
      %3361 = vmatprep.mubr.f32.mxu0 %v2293
      %3362 = vmatmul.mubr.f32.gmra.mrb[0].mxu0 %v2291
      %v3363 = vpop.f32.mrb[0].mxu0
      %v3364 = vadd.f32 0.0, %v3363
      %v3365 = vpop.f32.mrb[0].mxu0
      %v3366 = vadd.f32 0.0, %v3365
      %3367 = vmatprep.mubr.f32.mxu0 %v2297
      %3368 = vmatmul.mubr.f32.gmra.mrb[0].mxu0 %v2295
      %v3369 = vpop.f32.mrb[0].mxu0
      %v3370 = vadd.f32 0.0, %v3369
      %v3371 = vpop.f32.mrb[0].mxu0
      %v3372 = vadd.f32 0.0, %v3371
      %3373 = vdwg.mxu0
      %3374 = vmatprep.subr.mxu0 %v2386
      %3375 = vmatpush1.msra.mxu0 %v2385
      %3376 = vmatprep.subr.mxu0 %v2402
      %3377 = vmatpush1.msra.mxu0 %v2401
      %3378 = vmatprep.subr.mxu0 %v2418
      %3379 = vmatpush1.msra.mxu0 %v2417
      %3380 = vmatprep.subr.mxu0 %v2434
      %3381 = vmatpush1.msra.mxu0 %v2433
      %3382 = vmatprep.subr.mxu0 %v2450
      %3383 = vmatpush1.msra.mxu0 %v2449
      %3384 = vmatprep.subr.mxu0 %v2466
      %3385 = vmatpush1.msra.mxu0 %v2465
      %3386 = vmatprep.subr.mxu0 %v2482
      %3387 = vmatpush1.msra.mxu0 %v2481
      %3388 = vmatprep.subr.mxu0 %v2498
      %3389 = vmatpush1.msra.mxu0 %v2497
      %3390 = vmatprep.subr.mxu0 %v2514
      %3391 = vmatpush1.msra.mxu0 %v2513
      %3392 = vmatprep.subr.mxu0 %v2530
      %3393 = vmatpush1.msra.mxu0 %v2529
      %3394 = vmatprep.subr.mxu0 %v2546
      %3395 = vmatpush1.msra.mxu0 %v2545
      %3396 = vmatprep.subr.mxu0 %v2562
      %3397 = vmatpush1.msra.mxu0 %v2561
      %3398 = vmatprep.subr.mxu0 %v2578
      %3399 = vmatpush1.msra.mxu0 %v2577
      %3400 = vmatprep.subr.mxu0 %v2594
      %3401 = vmatpush1.msra.mxu0 %v2593
      %3402 = vmatprep.subr.mxu0 %v2610
      %3403 = vmatpush1.msra.mxu0 %v2609
      %3404 = vmatprep.subr.mxu0 %v2626
      %3405 = vmatpush1.msra.mxu0 %v2625
      %3406 = vmatprep.subr.mxu0 %v2642
      %3407 = vmatpush1.msra.mxu0 %v2641
      %3408 = vmatprep.subr.mxu0 %v2658
      %3409 = vmatpush1.msra.mxu0 %v2657
      %3410 = vmatprep.subr.mxu0 %v2674
      %3411 = vmatpush1.msra.mxu0 %v2673
      %3412 = vmatprep.subr.mxu0 %v2690
      %3413 = vmatpush1.msra.mxu0 %v2689
      %3414 = vmatprep.subr.mxu0 %v2706
      %3415 = vmatpush1.msra.mxu0 %v2705
      %3416 = vmatprep.subr.mxu0 %v2722
      %3417 = vmatpush1.msra.mxu0 %v2721
      %3418 = vmatprep.subr.mxu0 %v2738
      %3419 = vmatpush1.msra.mxu0 %v2737
      %3420 = vmatprep.subr.mxu0 %v2754
      %3421 = vmatpush1.msra.mxu0 %v2753
      %3422 = vmatprep.subr.mxu0 %v2770
      %3423 = vmatpush1.msra.mxu0 %v2769
      %3424 = vmatprep.subr.mxu0 %v2786
      %3425 = vmatpush1.msra.mxu0 %v2785
      %3426 = vmatprep.subr.mxu0 %v2802
      %3427 = vmatpush1.msra.mxu0 %v2801
      %3428 = vmatprep.subr.mxu0 %v2818
      %3429 = vmatpush1.msra.mxu0 %v2817
      %3430 = vmatprep.subr.mxu0 %v2834
      %3431 = vmatpush1.msra.mxu0 %v2833
      %3432 = vmatprep.subr.mxu0 %v2850
      %3433 = vmatpush1.msra.mxu0 %v2849
      %3434 = vmatprep.subr.mxu0 %v2866
      %3435 = vmatpush1.msra.mxu0 %v2865
      %3436 = vmatprep.subr.mxu0 %v2882
      %3437 = vmatpush1.msra.mxu0 %v2881
      %3438 = vmatprep.mubr.f32.mxu0 %v2237
      %3439 = vmatmul.mubr.f32.gmra.mrb[0].mxu0 %v2235
      %v3440 = vpop.f32.mrb[0].mxu0
      %v3441 = vadd.f32 0.0, %v3440
      %v3442 = vpop.f32.mrb[0].mxu0
      %v3443 = vadd.f32 0.0, %v3442
      %3444 = vmatprep.mubr.f32.mxu0 %v2241
      %3445 = vmatmul.mubr.f32.gmra.mrb[0].mxu0 %v2239
      %v3446 = vpop.f32.mrb[0].mxu0
      %v3447 = vadd.f32 0.0, %v3446
      %v3448 = vpop.f32.mrb[0].mxu0
      %v3449 = vadd.f32 0.0, %v3448
      %3450 = vmatprep.mubr.f32.mxu0 %v2245
      %3451 = vmatmul.mubr.f32.gmra.mrb[0].mxu0 %v2243
      %v3452 = vpop.f32.mrb[0].mxu0
      %v3453 = vadd.f32 0.0, %v3452
      %v3454 = vpop.f32.mrb[0].mxu0
      %v3455 = vadd.f32 0.0, %v3454
      %3456 = vmatprep.mubr.f32.mxu0 %v2249
      %3457 = vmatmul.mubr.f32.gmra.mrb[0].mxu0 %v2247
      %v3458 = vpop.f32.mrb[0].mxu0
      %v3459 = vadd.f32 0.0, %v3458
      %v3460 = vpop.f32.mrb[0].mxu0
      %v3461 = vadd.f32 0.0, %v3460
      %3462 = vmatprep.mubr.f32.mxu0 %v2253
      %3463 = vmatmul.mubr.f32.gmra.mrb[0].mxu0 %v2251
      %v3464 = vpop.f32.mrb[0].mxu0
      %v3465 = vadd.f32 0.0, %v3464
      %v3466 = vpop.f32.mrb[0].mxu0
      %v3467 = vadd.f32 0.0, %v3466
      %3468 = vmatprep.mubr.f32.mxu0 %v2257
      %3469 = vmatmul.mubr.f32.gmra.mrb[0].mxu0 %v2255
      %v3470 = vpop.f32.mrb[0].mxu0
      %v3471 = vadd.f32 0.0, %v3470
      %v3472 = vpop.f32.mrb[0].mxu0
      %v3473 = vadd.f32 0.0, %v3472
      %3474 = vmatprep.mubr.f32.mxu0 %v2261
      %3475 = vmatmul.mubr.f32.gmra.mrb[0].mxu0 %v2259
      %v3476 = vpop.f32.mrb[0].mxu0
      %v3477 = vadd.f32 0.0, %v3476
      %v3478 = vpop.f32.mrb[0].mxu0
      %v3479 = vadd.f32 0.0, %v3478
      %3480 = vmatprep.mubr.f32.mxu0 %v2265
      %3481 = vmatmul.mubr.f32.gmra.mrb[0].mxu0 %v2263
      %v3482 = vpop.f32.mrb[0].mxu0
      %v3483 = vadd.f32 0.0, %v3482
      %v3484 = vpop.f32.mrb[0].mxu0
      %v3485 = vadd.f32 0.0, %v3484
      %3486 = vmatprep.mubr.f32.mxu0 %v2269
      %3487 = vmatmul.mubr.f32.gmra.mrb[0].mxu0 %v2267
      %v3488 = vpop.f32.mrb[0].mxu0
      %v3489 = vadd.f32 0.0, %v3488
      %v3490 = vpop.f32.mrb[0].mxu0
      %v3491 = vadd.f32 0.0, %v3490
      %3492 = vmatprep.mubr.f32.mxu0 %v2273
      %3493 = vmatmul.mubr.f32.gmra.mrb[0].mxu0 %v2271
      %v3494 = vpop.f32.mrb[0].mxu0
      %v3495 = vadd.f32 0.0, %v3494
      %v3496 = vpop.f32.mrb[0].mxu0
      %v3497 = vadd.f32 0.0, %v3496
      %3498 = vmatprep.mubr.f32.mxu0 %v2277
      %3499 = vmatmul.mubr.f32.gmra.mrb[0].mxu0 %v2275
      %v3500 = vpop.f32.mrb[0].mxu0
      %v3501 = vadd.f32 0.0, %v3500
      %v3502 = vpop.f32.mrb[0].mxu0
      %v3503 = vadd.f32 0.0, %v3502
      %3504 = vmatprep.mubr.f32.mxu0 %v2281
      %3505 = vmatmul.mubr.f32.gmra.mrb[0].mxu0 %v2279
      %v3506 = vpop.f32.mrb[0].mxu0
      %v3507 = vadd.f32 0.0, %v3506
      %v3508 = vpop.f32.mrb[0].mxu0
      %v3509 = vadd.f32 0.0, %v3508
      %3510 = vmatprep.mubr.f32.mxu0 %v2285
      %3511 = vmatmul.mubr.f32.gmra.mrb[0].mxu0 %v2283
      %v3512 = vpop.f32.mrb[0].mxu0
      %v3513 = vadd.f32 0.0, %v3512
      %v3514 = vpop.f32.mrb[0].mxu0
      %v3515 = vadd.f32 0.0, %v3514
      %3516 = vmatprep.mubr.f32.mxu0 %v2289
      %3517 = vmatmul.mubr.f32.gmra.mrb[0].mxu0 %v2287
      %v3518 = vpop.f32.mrb[0].mxu0
      %v3519 = vadd.f32 0.0, %v3518
      %v3520 = vpop.f32.mrb[0].mxu0
      %v3521 = vadd.f32 0.0, %v3520
      %3522 = vmatprep.mubr.f32.mxu0 %v2293
      %3523 = vmatmul.mubr.f32.gmra.mrb[0].mxu0 %v2291
      %v3524 = vpop.f32.mrb[0].mxu0
      %v3525 = vadd.f32 0.0, %v3524
      %v3526 = vpop.f32.mrb[0].mxu0
      %v3527 = vadd.f32 0.0, %v3526
      %3528 = vmatprep.mubr.f32.mxu0 %v2297
      %3529 = vmatmul.mubr.f32.gmra.mrb[0].mxu0 %v2295
      %v3530 = vpop.f32.mrb[0].mxu0
      %v3531 = vadd.f32 0.0, %v3530
      %v3532 = vpop.f32.mrb[0].mxu0
      %v3533 = vadd.f32 0.0, %v3532
      %3534 = vdwg.mxu0
      %3535 = vmatprep.subr.mxu0 %v2388
      %3536 = vmatpush1.msra.mxu0 %v2387
      %3537 = vmatprep.subr.mxu0 %v2404
      %3538 = vmatpush1.msra.mxu0 %v2403
      %3539 = vmatprep.subr.mxu0 %v2420
      %3540 = vmatpush1.msra.mxu0 %v2419
      %3541 = vmatprep.subr.mxu0 %v2436
      %3542 = vmatpush1.msra.mxu0 %v2435
      %3543 = vmatprep.subr.mxu0 %v2452
      %3544 = vmatpush1.msra.mxu0 %v2451
      %3545 = vmatprep.subr.mxu0 %v2468
      %3546 = vmatpush1.msra.mxu0 %v2467
      %3547 = vmatprep.subr.mxu0 %v2484
      %3548 = vmatpush1.msra.mxu0 %v2483
      %3549 = vmatprep.subr.mxu0 %v2500
      %3550 = vmatpush1.msra.mxu0 %v2499
      %3551 = vmatprep.subr.mxu0 %v2516
      %3552 = vmatpush1.msra.mxu0 %v2515
      %3553 = vmatprep.subr.mxu0 %v2532
      %3554 = vmatpush1.msra.mxu0 %v2531
      %3555 = vmatprep.subr.mxu0 %v2548
      %3556 = vmatpush1.msra.mxu0 %v2547
      %3557 = vmatprep.subr.mxu0 %v2564
      %3558 = vmatpush1.msra.mxu0 %v2563
      %3559 = vmatprep.subr.mxu0 %v2580
      %3560 = vmatpush1.msra.mxu0 %v2579
      %3561 = vmatprep.subr.mxu0 %v2596
      %3562 = vmatpush1.msra.mxu0 %v2595
      %3563 = vmatprep.subr.mxu0 %v2612
      %3564 = vmatpush1.msra.mxu0 %v2611
      %3565 = vmatprep.subr.mxu0 %v2628
      %3566 = vmatpush1.msra.mxu0 %v2627
      %3567 = vmatprep.subr.mxu0 %v2644
      %3568 = vmatpush1.msra.mxu0 %v2643
      %3569 = vmatprep.subr.mxu0 %v2660
      %3570 = vmatpush1.msra.mxu0 %v2659
      %3571 = vmatprep.subr.mxu0 %v2676
      %3572 = vmatpush1.msra.mxu0 %v2675
      %3573 = vmatprep.subr.mxu0 %v2692
      %3574 = vmatpush1.msra.mxu0 %v2691
      %3575 = vmatprep.subr.mxu0 %v2708
      %3576 = vmatpush1.msra.mxu0 %v2707
      %3577 = vmatprep.subr.mxu0 %v2724
      %3578 = vmatpush1.msra.mxu0 %v2723
      %3579 = vmatprep.subr.mxu0 %v2740
      %3580 = vmatpush1.msra.mxu0 %v2739
      %3581 = vmatprep.subr.mxu0 %v2756
      %3582 = vmatpush1.msra.mxu0 %v2755
      %3583 = vmatprep.subr.mxu0 %v2772
      %3584 = vmatpush1.msra.mxu0 %v2771
      %3585 = vmatprep.subr.mxu0 %v2788
      %3586 = vmatpush1.msra.mxu0 %v2787
      %3587 = vmatprep.subr.mxu0 %v2804
      %3588 = vmatpush1.msra.mxu0 %v2803
      %3589 = vmatprep.subr.mxu0 %v2820
      %3590 = vmatpush1.msra.mxu0 %v2819
      %3591 = vmatprep.subr.mxu0 %v2836
      %3592 = vmatpush1.msra.mxu0 %v2835
      %3593 = vmatprep.subr.mxu0 %v2852
      %3594 = vmatpush1.msra.mxu0 %v2851
      %3595 = vmatprep.subr.mxu0 %v2868
      %3596 = vmatpush1.msra.mxu0 %v2867
      %3597 = vmatprep.subr.mxu0 %v2884
      %3598 = vmatpush1.msra.mxu0 %v2883
      %3599 = vmatprep.mubr.f32.mxu0 %v2237
      %3600 = vmatmul.mubr.f32.gmra.mrb[0].mxu0 %v2235
      %v3601 = vpop.f32.mrb[0].mxu0
      %v3602 = vadd.f32 0.0, %v3601
      %v3603 = vpop.f32.mrb[0].mxu0
      %v3604 = vadd.f32 0.0, %v3603
      %3605 = vmatprep.mubr.f32.mxu0 %v2241
      %3606 = vmatmul.mubr.f32.gmra.mrb[0].mxu0 %v2239
      %v3607 = vpop.f32.mrb[0].mxu0
      %v3608 = vadd.f32 0.0, %v3607
      %v3609 = vpop.f32.mrb[0].mxu0
      %v3610 = vadd.f32 0.0, %v3609
      %3611 = vmatprep.mubr.f32.mxu0 %v2245
      %3612 = vmatmul.mubr.f32.gmra.mrb[0].mxu0 %v2243
      %v3613 = vpop.f32.mrb[0].mxu0
      %v3614 = vadd.f32 0.0, %v3613
      %v3615 = vpop.f32.mrb[0].mxu0
      %v3616 = vadd.f32 0.0, %v3615
      %3617 = vmatprep.mubr.f32.mxu0 %v2249
      %3618 = vmatmul.mubr.f32.gmra.mrb[0].mxu0 %v2247
      %v3619 = vpop.f32.mrb[0].mxu0
      %v3620 = vadd.f32 0.0, %v3619
      %v3621 = vpop.f32.mrb[0].mxu0
      %v3622 = vadd.f32 0.0, %v3621
      %3623 = vmatprep.mubr.f32.mxu0 %v2253
      %3624 = vmatmul.mubr.f32.gmra.mrb[0].mxu0 %v2251
      %v3625 = vpop.f32.mrb[0].mxu0
      %v3626 = vadd.f32 0.0, %v3625
      %v3627 = vpop.f32.mrb[0].mxu0
      %v3628 = vadd.f32 0.0, %v3627
      %3629 = vmatprep.mubr.f32.mxu0 %v2257
      %3630 = vmatmul.mubr.f32.gmra.mrb[0].mxu0 %v2255
      %v3631 = vpop.f32.mrb[0].mxu0
      %v3632 = vadd.f32 0.0, %v3631
      %v3633 = vpop.f32.mrb[0].mxu0
      %v3634 = vadd.f32 0.0, %v3633
      %3635 = vmatprep.mubr.f32.mxu0 %v2261
      %3636 = vmatmul.mubr.f32.gmra.mrb[0].mxu0 %v2259
      %v3637 = vpop.f32.mrb[0].mxu0
      %v3638 = vadd.f32 0.0, %v3637
      %v3639 = vpop.f32.mrb[0].mxu0
      %v3640 = vadd.f32 0.0, %v3639
      %3641 = vmatprep.mubr.f32.mxu0 %v2265
      %3642 = vmatmul.mubr.f32.gmra.mrb[0].mxu0 %v2263
      %v3643 = vpop.f32.mrb[0].mxu0
      %v3644 = vadd.f32 0.0, %v3643
      %v3645 = vpop.f32.mrb[0].mxu0
      %v3646 = vadd.f32 0.0, %v3645
      %3647 = vmatprep.mubr.f32.mxu0 %v2269
      %3648 = vmatmul.mubr.f32.gmra.mrb[0].mxu0 %v2267
      %v3649 = vpop.f32.mrb[0].mxu0
      %v3650 = vadd.f32 0.0, %v3649
      %v3651 = vpop.f32.mrb[0].mxu0
      %v3652 = vadd.f32 0.0, %v3651
      %3653 = vmatprep.mubr.f32.mxu0 %v2273
      %3654 = vmatmul.mubr.f32.gmra.mrb[0].mxu0 %v2271
      %v3655 = vpop.f32.mrb[0].mxu0
      %v3656 = vadd.f32 0.0, %v3655
      %v3657 = vpop.f32.mrb[0].mxu0
      %v3658 = vadd.f32 0.0, %v3657
      %3659 = vmatprep.mubr.f32.mxu0 %v2277
      %3660 = vmatmul.mubr.f32.gmra.mrb[0].mxu0 %v2275
      %v3661 = vpop.f32.mrb[0].mxu0
      %v3662 = vadd.f32 0.0, %v3661
      %v3663 = vpop.f32.mrb[0].mxu0
      %v3664 = vadd.f32 0.0, %v3663
      %3665 = vmatprep.mubr.f32.mxu0 %v2281
      %3666 = vmatmul.mubr.f32.gmra.mrb[0].mxu0 %v2279
      %v3667 = vpop.f32.mrb[0].mxu0
      %v3668 = vadd.f32 0.0, %v3667
      %v3669 = vpop.f32.mrb[0].mxu0
      %v3670 = vadd.f32 0.0, %v3669
      %3671 = vmatprep.mubr.f32.mxu0 %v2285
      %3672 = vmatmul.mubr.f32.gmra.mrb[0].mxu0 %v2283
      %v3673 = vpop.f32.mrb[0].mxu0
      %v3674 = vadd.f32 0.0, %v3673
      %v3675 = vpop.f32.mrb[0].mxu0
      %v3676 = vadd.f32 0.0, %v3675
      %3677 = vmatprep.mubr.f32.mxu0 %v2289
      %3678 = vmatmul.mubr.f32.gmra.mrb[0].mxu0 %v2287
      %v3679 = vpop.f32.mrb[0].mxu0
      %v3680 = vadd.f32 0.0, %v3679
      %v3681 = vpop.f32.mrb[0].mxu0
      %v3682 = vadd.f32 0.0, %v3681
      %3683 = vmatprep.mubr.f32.mxu0 %v2293
      %3684 = vmatmul.mubr.f32.gmra.mrb[0].mxu0 %v2291
      %v3685 = vpop.f32.mrb[0].mxu0
      %v3686 = vadd.f32 0.0, %v3685
      %v3687 = vpop.f32.mrb[0].mxu0
      %v3688 = vadd.f32 0.0, %v3687
      %3689 = vmatprep.mubr.f32.mxu0 %v2297
      %3690 = vmatmul.mubr.f32.gmra.mrb[0].mxu0 %v2295
      %v3691 = vpop.f32.mrb[0].mxu0
      %v3692 = vadd.f32 0.0, %v3691
      %v3693 = vpop.f32.mrb[0].mxu0
      %v3694 = vadd.f32 0.0, %v3693
      %3695 = vdwg.mxu0
      %3696 = vmatprep.subr.mxu0 %v2390
      %3697 = vmatpush1.msra.mxu0 %v2389
      %3698 = vmatprep.subr.mxu0 %v2406
      %3699 = vmatpush1.msra.mxu0 %v2405
      %3700 = vmatprep.subr.mxu0 %v2422
      %3701 = vmatpush1.msra.mxu0 %v2421
      %3702 = vmatprep.subr.mxu0 %v2438
      %3703 = vmatpush1.msra.mxu0 %v2437
      %3704 = vmatprep.subr.mxu0 %v2454
      %3705 = vmatpush1.msra.mxu0 %v2453
      %3706 = vmatprep.subr.mxu0 %v2470
      %3707 = vmatpush1.msra.mxu0 %v2469
      %3708 = vmatprep.subr.mxu0 %v2486
      %3709 = vmatpush1.msra.mxu0 %v2485
      %3710 = vmatprep.subr.mxu0 %v2502
      %3711 = vmatpush1.msra.mxu0 %v2501
      %3712 = vmatprep.subr.mxu0 %v2518
      %3713 = vmatpush1.msra.mxu0 %v2517
      %3714 = vmatprep.subr.mxu0 %v2534
      %3715 = vmatpush1.msra.mxu0 %v2533
      %3716 = vmatprep.subr.mxu0 %v2550
      %3717 = vmatpush1.msra.mxu0 %v2549
      %3718 = vmatprep.subr.mxu0 %v2566
      %3719 = vmatpush1.msra.mxu0 %v2565
      %3720 = vmatprep.subr.mxu0 %v2582
      %3721 = vmatpush1.msra.mxu0 %v2581
      %3722 = vmatprep.subr.mxu0 %v2598
      %3723 = vmatpush1.msra.mxu0 %v2597
      %3724 = vmatprep.subr.mxu0 %v2614
      %3725 = vmatpush1.msra.mxu0 %v2613
      %3726 = vmatprep.subr.mxu0 %v2630
      %3727 = vmatpush1.msra.mxu0 %v2629
      %3728 = vmatprep.subr.mxu0 %v2646
      %3729 = vmatpush1.msra.mxu0 %v2645
      %3730 = vmatprep.subr.mxu0 %v2662
      %3731 = vmatpush1.msra.mxu0 %v2661
      %3732 = vmatprep.subr.mxu0 %v2678
      %3733 = vmatpush1.msra.mxu0 %v2677
      %3734 = vmatprep.subr.mxu0 %v2694
      %3735 = vmatpush1.msra.mxu0 %v2693
      %3736 = vmatprep.subr.mxu0 %v2710
      %3737 = vmatpush1.msra.mxu0 %v2709
      %3738 = vmatprep.subr.mxu0 %v2726
      %3739 = vmatpush1.msra.mxu0 %v2725
      %3740 = vmatprep.subr.mxu0 %v2742
      %3741 = vmatpush1.msra.mxu0 %v2741
      %3742 = vmatprep.subr.mxu0 %v2758
      %3743 = vmatpush1.msra.mxu0 %v2757
      %3744 = vmatprep.subr.mxu0 %v2774
      %3745 = vmatpush1.msra.mxu0 %v2773
      %3746 = vmatprep.subr.mxu0 %v2790
      %3747 = vmatpush1.msra.mxu0 %v2789
      %3748 = vmatprep.subr.mxu0 %v2806
      %3749 = vmatpush1.msra.mxu0 %v2805
      %3750 = vmatprep.subr.mxu0 %v2822
      %3751 = vmatpush1.msra.mxu0 %v2821
      %3752 = vmatprep.subr.mxu0 %v2838
      %3753 = vmatpush1.msra.mxu0 %v2837
      %3754 = vmatprep.subr.mxu0 %v2854
      %3755 = vmatpush1.msra.mxu0 %v2853
      %3756 = vmatprep.subr.mxu0 %v2870
      %3757 = vmatpush1.msra.mxu0 %v2869
      %3758 = vmatprep.subr.mxu0 %v2886
      %3759 = vmatpush1.msra.mxu0 %v2885
      %3760 = vmatprep.mubr.f32.mxu0 %v2237
      %3761 = vmatmul.mubr.f32.gmra.mrb[0].mxu0 %v2235
      %v3762 = vpop.f32.mrb[0].mxu0
      %v3763 = vadd.f32 0.0, %v3762
      %v3764 = vpop.f32.mrb[0].mxu0
      %v3765 = vadd.f32 0.0, %v3764
      %3766 = vmatprep.mubr.f32.mxu0 %v2241
      %3767 = vmatmul.mubr.f32.gmra.mrb[0].mxu0 %v2239
      %v3768 = vpop.f32.mrb[0].mxu0
      %v3769 = vadd.f32 0.0, %v3768
      %v3770 = vpop.f32.mrb[0].mxu0
      %v3771 = vadd.f32 0.0, %v3770
      %3772 = vmatprep.mubr.f32.mxu0 %v2245
      %3773 = vmatmul.mubr.f32.gmra.mrb[0].mxu0 %v2243
      %v3774 = vpop.f32.mrb[0].mxu0
      %v3775 = vadd.f32 0.0, %v3774
      %v3776 = vpop.f32.mrb[0].mxu0
      %v3777 = vadd.f32 0.0, %v3776
      %3778 = vmatprep.mubr.f32.mxu0 %v2249
      %3779 = vmatmul.mubr.f32.gmra.mrb[0].mxu0 %v2247
      %v3780 = vpop.f32.mrb[0].mxu0
      %v3781 = vadd.f32 0.0, %v3780
      %v3782 = vpop.f32.mrb[0].mxu0
      %v3783 = vadd.f32 0.0, %v3782
      %3784 = vmatprep.mubr.f32.mxu0 %v2253
      %3785 = vmatmul.mubr.f32.gmra.mrb[0].mxu0 %v2251
      %v3786 = vpop.f32.mrb[0].mxu0
      %v3787 = vadd.f32 0.0, %v3786
      %v3788 = vpop.f32.mrb[0].mxu0
      %v3789 = vadd.f32 0.0, %v3788
      %3790 = vmatprep.mubr.f32.mxu0 %v2257
      %3791 = vmatmul.mubr.f32.gmra.mrb[0].mxu0 %v2255
      %v3792 = vpop.f32.mrb[0].mxu0
      %v3793 = vadd.f32 0.0, %v3792
      %v3794 = vpop.f32.mrb[0].mxu0
      %v3795 = vadd.f32 0.0, %v3794
      %3796 = vmatprep.mubr.f32.mxu0 %v2261
      %3797 = vmatmul.mubr.f32.gmra.mrb[0].mxu0 %v2259
      %v3798 = vpop.f32.mrb[0].mxu0
      %v3799 = vadd.f32 0.0, %v3798
      %v3800 = vpop.f32.mrb[0].mxu0
      %v3801 = vadd.f32 0.0, %v3800
      %3802 = vmatprep.mubr.f32.mxu0 %v2265
      %3803 = vmatmul.mubr.f32.gmra.mrb[0].mxu0 %v2263
      %v3804 = vpop.f32.mrb[0].mxu0
      %v3805 = vadd.f32 0.0, %v3804
      %v3806 = vpop.f32.mrb[0].mxu0
      %v3807 = vadd.f32 0.0, %v3806
      %3808 = vmatprep.mubr.f32.mxu0 %v2269
      %3809 = vmatmul.mubr.f32.gmra.mrb[0].mxu0 %v2267
      %v3810 = vpop.f32.mrb[0].mxu0
      %v3811 = vadd.f32 0.0, %v3810
      %v3812 = vpop.f32.mrb[0].mxu0
      %v3813 = vadd.f32 0.0, %v3812
      %3814 = vmatprep.mubr.f32.mxu0 %v2273
      %3815 = vmatmul.mubr.f32.gmra.mrb[0].mxu0 %v2271
      %v3816 = vpop.f32.mrb[0].mxu0
      %v3817 = vadd.f32 0.0, %v3816
      %v3818 = vpop.f32.mrb[0].mxu0
      %v3819 = vadd.f32 0.0, %v3818
      %3820 = vmatprep.mubr.f32.mxu0 %v2277
      %3821 = vmatmul.mubr.f32.gmra.mrb[0].mxu0 %v2275
      %v3822 = vpop.f32.mrb[0].mxu0
      %v3823 = vadd.f32 0.0, %v3822
      %v3824 = vpop.f32.mrb[0].mxu0
      %v3825 = vadd.f32 0.0, %v3824
      %3826 = vmatprep.mubr.f32.mxu0 %v2281
      %3827 = vmatmul.mubr.f32.gmra.mrb[0].mxu0 %v2279
      %v3828 = vpop.f32.mrb[0].mxu0
      %v3829 = vadd.f32 0.0, %v3828
      %v3830 = vpop.f32.mrb[0].mxu0
      %v3831 = vadd.f32 0.0, %v3830
      %3832 = vmatprep.mubr.f32.mxu0 %v2285
      %3833 = vmatmul.mubr.f32.gmra.mrb[0].mxu0 %v2283
      %v3834 = vpop.f32.mrb[0].mxu0
      %v3835 = vadd.f32 0.0, %v3834
      %v3836 = vpop.f32.mrb[0].mxu0
      %v3837 = vadd.f32 0.0, %v3836
      %3838 = vmatprep.mubr.f32.mxu0 %v2289
      %3839 = vmatmul.mubr.f32.gmra.mrb[0].mxu0 %v2287
      %v3840 = vpop.f32.mrb[0].mxu0
      %v3841 = vadd.f32 0.0, %v3840
      %v3842 = vpop.f32.mrb[0].mxu0
      %v3843 = vadd.f32 0.0, %v3842
      %3844 = vmatprep.mubr.f32.mxu0 %v2293
      %3845 = vmatmul.mubr.f32.gmra.mrb[0].mxu0 %v2291
      %v3846 = vpop.f32.mrb[0].mxu0
      %v3847 = vadd.f32 0.0, %v3846
      %v3848 = vpop.f32.mrb[0].mxu0
      %v3849 = vadd.f32 0.0, %v3848
      %3850 = vmatprep.mubr.f32.mxu0 %v2297
      %3851 = vmatmul.mubr.f32.gmra.mrb[0].mxu0 %v2295
      %v3852 = vpop.f32.mrb[0].mxu0
      %v3853 = vadd.f32 0.0, %v3852
      %v3854 = vpop.f32.mrb[0].mxu0
      %v3855 = vadd.f32 0.0, %v3854
      %3856 = vdwg.mxu0
      %3857 = vmatprep.subr.mxu0 %v2392
      %3858 = vmatpush1.msra.mxu0 %v2391
      %3859 = vmatprep.subr.mxu0 %v2408
      %3860 = vmatpush1.msra.mxu0 %v2407
      %3861 = vmatprep.subr.mxu0 %v2424
      %3862 = vmatpush1.msra.mxu0 %v2423
      %3863 = vmatprep.subr.mxu0 %v2440
      %3864 = vmatpush1.msra.mxu0 %v2439
      %3865 = vmatprep.subr.mxu0 %v2456
      %3866 = vmatpush1.msra.mxu0 %v2455
      %3867 = vmatprep.subr.mxu0 %v2472
      %3868 = vmatpush1.msra.mxu0 %v2471
      %3869 = vmatprep.subr.mxu0 %v2488
      %3870 = vmatpush1.msra.mxu0 %v2487
      %3871 = vmatprep.subr.mxu0 %v2504
      %3872 = vmatpush1.msra.mxu0 %v2503
      %3873 = vmatprep.subr.mxu0 %v2520
      %3874 = vmatpush1.msra.mxu0 %v2519
      %3875 = vmatprep.subr.mxu0 %v2536
      %3876 = vmatpush1.msra.mxu0 %v2535
      %3877 = vmatprep.subr.mxu0 %v2552
      %3878 = vmatpush1.msra.mxu0 %v2551
      %3879 = vmatprep.subr.mxu0 %v2568
      %3880 = vmatpush1.msra.mxu0 %v2567
      %3881 = vmatprep.subr.mxu0 %v2584
      %3882 = vmatpush1.msra.mxu0 %v2583
      %3883 = vmatprep.subr.mxu0 %v2600
      %3884 = vmatpush1.msra.mxu0 %v2599
      %3885 = vmatprep.subr.mxu0 %v2616
      %3886 = vmatpush1.msra.mxu0 %v2615
      %3887 = vmatprep.subr.mxu0 %v2632
      %3888 = vmatpush1.msra.mxu0 %v2631
      %3889 = vmatprep.subr.mxu0 %v2648
      %3890 = vmatpush1.msra.mxu0 %v2647
      %3891 = vmatprep.subr.mxu0 %v2664
      %3892 = vmatpush1.msra.mxu0 %v2663
      %3893 = vmatprep.subr.mxu0 %v2680
      %3894 = vmatpush1.msra.mxu0 %v2679
      %3895 = vmatprep.subr.mxu0 %v2696
      %3896 = vmatpush1.msra.mxu0 %v2695
      %3897 = vmatprep.subr.mxu0 %v2712
      %3898 = vmatpush1.msra.mxu0 %v2711
      %3899 = vmatprep.subr.mxu0 %v2728
      %3900 = vmatpush1.msra.mxu0 %v2727
      %3901 = vmatprep.subr.mxu0 %v2744
      %3902 = vmatpush1.msra.mxu0 %v2743
      %3903 = vmatprep.subr.mxu0 %v2760
      %3904 = vmatpush1.msra.mxu0 %v2759
      %3905 = vmatprep.subr.mxu0 %v2776
      %3906 = vmatpush1.msra.mxu0 %v2775
      %3907 = vmatprep.subr.mxu0 %v2792
      %3908 = vmatpush1.msra.mxu0 %v2791
      %3909 = vmatprep.subr.mxu0 %v2808
      %3910 = vmatpush1.msra.mxu0 %v2807
      %3911 = vmatprep.subr.mxu0 %v2824
      %3912 = vmatpush1.msra.mxu0 %v2823
      %3913 = vmatprep.subr.mxu0 %v2840
      %3914 = vmatpush1.msra.mxu0 %v2839
      %3915 = vmatprep.subr.mxu0 %v2856
      %3916 = vmatpush1.msra.mxu0 %v2855
      %3917 = vmatprep.subr.mxu0 %v2872
      %3918 = vmatpush1.msra.mxu0 %v2871
      %3919 = vmatprep.subr.mxu0 %v2888
      %3920 = vmatpush1.msra.mxu0 %v2887
      %3921 = vmatprep.mubr.f32.mxu0 %v2237
      %3922 = vmatmul.mubr.f32.gmra.mrb[0].mxu0 %v2235
      %v3923 = vpop.f32.mrb[0].mxu0
      %v3924 = vadd.f32 0.0, %v3923
      %v3925 = vpop.f32.mrb[0].mxu0
      %v3926 = vadd.f32 0.0, %v3925
      %3927 = vmatprep.mubr.f32.mxu0 %v2241
      %3928 = vmatmul.mubr.f32.gmra.mrb[0].mxu0 %v2239
      %v3929 = vpop.f32.mrb[0].mxu0
      %v3930 = vadd.f32 0.0, %v3929
      %v3931 = vpop.f32.mrb[0].mxu0
      %v3932 = vadd.f32 0.0, %v3931
      %3933 = vmatprep.mubr.f32.mxu0 %v2245
      %3934 = vmatmul.mubr.f32.gmra.mrb[0].mxu0 %v2243
      %v3935 = vpop.f32.mrb[0].mxu0
      %v3936 = vadd.f32 0.0, %v3935
      %v3937 = vpop.f32.mrb[0].mxu0
      %v3938 = vadd.f32 0.0, %v3937
      %3939 = vmatprep.mubr.f32.mxu0 %v2249
      %3940 = vmatmul.mubr.f32.gmra.mrb[0].mxu0 %v2247
      %v3941 = vpop.f32.mrb[0].mxu0
      %v3942 = vadd.f32 0.0, %v3941
      %v3943 = vpop.f32.mrb[0].mxu0
      %v3944 = vadd.f32 0.0, %v3943
      %3945 = vmatprep.mubr.f32.mxu0 %v2253
      %3946 = vmatmul.mubr.f32.gmra.mrb[0].mxu0 %v2251
      %v3947 = vpop.f32.mrb[0].mxu0
      %v3948 = vadd.f32 0.0, %v3947
      %v3949 = vpop.f32.mrb[0].mxu0
      %v3950 = vadd.f32 0.0, %v3949
      %3951 = vmatprep.mubr.f32.mxu0 %v2257
      %3952 = vmatmul.mubr.f32.gmra.mrb[0].mxu0 %v2255
      %v3953 = vpop.f32.mrb[0].mxu0
      %v3954 = vadd.f32 0.0, %v3953
      %v3955 = vpop.f32.mrb[0].mxu0
      %v3956 = vadd.f32 0.0, %v3955
      %3957 = vmatprep.mubr.f32.mxu0 %v2261
      %3958 = vmatmul.mubr.f32.gmra.mrb[0].mxu0 %v2259
      %v3959 = vpop.f32.mrb[0].mxu0
      %v3960 = vadd.f32 0.0, %v3959
      %v3961 = vpop.f32.mrb[0].mxu0
      %v3962 = vadd.f32 0.0, %v3961
      %3963 = vmatprep.mubr.f32.mxu0 %v2265
      %3964 = vmatmul.mubr.f32.gmra.mrb[0].mxu0 %v2263
      %v3965 = vpop.f32.mrb[0].mxu0
      %v3966 = vadd.f32 0.0, %v3965
      %v3967 = vpop.f32.mrb[0].mxu0
      %v3968 = vadd.f32 0.0, %v3967
      %3969 = vmatprep.mubr.f32.mxu0 %v2269
      %3970 = vmatmul.mubr.f32.gmra.mrb[0].mxu0 %v2267
      %v3971 = vpop.f32.mrb[0].mxu0
      %v3972 = vadd.f32 0.0, %v3971
      %v3973 = vpop.f32.mrb[0].mxu0
      %v3974 = vadd.f32 0.0, %v3973
      %3975 = vmatprep.mubr.f32.mxu0 %v2273
      %3976 = vmatmul.mubr.f32.gmra.mrb[0].mxu0 %v2271
      %v3977 = vpop.f32.mrb[0].mxu0
      %v3978 = vadd.f32 0.0, %v3977
      %v3979 = vpop.f32.mrb[0].mxu0
      %v3980 = vadd.f32 0.0, %v3979
      %3981 = vmatprep.mubr.f32.mxu0 %v2277
      %3982 = vmatmul.mubr.f32.gmra.mrb[0].mxu0 %v2275
      %v3983 = vpop.f32.mrb[0].mxu0
      %v3984 = vadd.f32 0.0, %v3983
      %v3985 = vpop.f32.mrb[0].mxu0
      %v3986 = vadd.f32 0.0, %v3985
      %3987 = vmatprep.mubr.f32.mxu0 %v2281
      %3988 = vmatmul.mubr.f32.gmra.mrb[0].mxu0 %v2279
      %v3989 = vpop.f32.mrb[0].mxu0
      %v3990 = vadd.f32 0.0, %v3989
      %v3991 = vpop.f32.mrb[0].mxu0
      %v3992 = vadd.f32 0.0, %v3991
      %3993 = vmatprep.mubr.f32.mxu0 %v2285
      %3994 = vmatmul.mubr.f32.gmra.mrb[0].mxu0 %v2283
      %v3995 = vpop.f32.mrb[0].mxu0
      %v3996 = vadd.f32 0.0, %v3995
      %v3997 = vpop.f32.mrb[0].mxu0
      %v3998 = vadd.f32 0.0, %v3997
      %3999 = vmatprep.mubr.f32.mxu0 %v2289
      %4000 = vmatmul.mubr.f32.gmra.mrb[0].mxu0 %v2287
      %v4001 = vpop.f32.mrb[0].mxu0
      %v4002 = vadd.f32 0.0, %v4001
      %v4003 = vpop.f32.mrb[0].mxu0
      %v4004 = vadd.f32 0.0, %v4003
      %4005 = vmatprep.mubr.f32.mxu0 %v2293
      %4006 = vmatmul.mubr.f32.gmra.mrb[0].mxu0 %v2291
      %v4007 = vpop.f32.mrb[0].mxu0
      %v4008 = vadd.f32 0.0, %v4007
      %v4009 = vpop.f32.mrb[0].mxu0
      %v4010 = vadd.f32 0.0, %v4009
      %4011 = vmatprep.mubr.f32.mxu0 %v2297
      %4012 = vmatmul.mubr.f32.gmra.mrb[0].mxu0 %v2295
      %v4013 = vpop.f32.mrb[0].mxu0
      %v4014 = vadd.f32 0.0, %v4013
      %v4015 = vpop.f32.mrb[0].mxu0
      %v4016 = vadd.f32 0.0, %v4015
      %4017 = vdwg.mxu0
      %4018 = vmatprep.subr.mxu0 %v2394
      %4019 = vmatpush1.msra.mxu0 %v2393
      %4020 = vmatprep.subr.mxu0 %v2410
      %4021 = vmatpush1.msra.mxu0 %v2409
      %4022 = vmatprep.subr.mxu0 %v2426
      %4023 = vmatpush1.msra.mxu0 %v2425
      %4024 = vmatprep.subr.mxu0 %v2442
      %4025 = vmatpush1.msra.mxu0 %v2441
      %4026 = vmatprep.subr.mxu0 %v2458
      %4027 = vmatpush1.msra.mxu0 %v2457
      %4028 = vmatprep.subr.mxu0 %v2474
      %4029 = vmatpush1.msra.mxu0 %v2473
      %4030 = vmatprep.subr.mxu0 %v2490
      %4031 = vmatpush1.msra.mxu0 %v2489
      %4032 = vmatprep.subr.mxu0 %v2506
      %4033 = vmatpush1.msra.mxu0 %v2505
      %4034 = vmatprep.subr.mxu0 %v2522
      %4035 = vmatpush1.msra.mxu0 %v2521
      %4036 = vmatprep.subr.mxu0 %v2538
      %4037 = vmatpush1.msra.mxu0 %v2537
      %4038 = vmatprep.subr.mxu0 %v2554
      %4039 = vmatpush1.msra.mxu0 %v2553
      %4040 = vmatprep.subr.mxu0 %v2570
      %4041 = vmatpush1.msra.mxu0 %v2569
      %4042 = vmatprep.subr.mxu0 %v2586
      %4043 = vmatpush1.msra.mxu0 %v2585
      %4044 = vmatprep.subr.mxu0 %v2602
      %4045 = vmatpush1.msra.mxu0 %v2601
      %4046 = vmatprep.subr.mxu0 %v2618
      %4047 = vmatpush1.msra.mxu0 %v2617
      %4048 = vmatprep.subr.mxu0 %v2634
      %4049 = vmatpush1.msra.mxu0 %v2633
      %4050 = vmatprep.subr.mxu0 %v2650
      %4051 = vmatpush1.msra.mxu0 %v2649
      %4052 = vmatprep.subr.mxu0 %v2666
      %4053 = vmatpush1.msra.mxu0 %v2665
      %4054 = vmatprep.subr.mxu0 %v2682
      %4055 = vmatpush1.msra.mxu0 %v2681
      %4056 = vmatprep.subr.mxu0 %v2698
      %4057 = vmatpush1.msra.mxu0 %v2697
      %4058 = vmatprep.subr.mxu0 %v2714
      %4059 = vmatpush1.msra.mxu0 %v2713
      %4060 = vmatprep.subr.mxu0 %v2730
      %4061 = vmatpush1.msra.mxu0 %v2729
      %4062 = vmatprep.subr.mxu0 %v2746
      %4063 = vmatpush1.msra.mxu0 %v2745
      %4064 = vmatprep.subr.mxu0 %v2762
      %4065 = vmatpush1.msra.mxu0 %v2761
      %4066 = vmatprep.subr.mxu0 %v2778
      %4067 = vmatpush1.msra.mxu0 %v2777
      %4068 = vmatprep.subr.mxu0 %v2794
      %4069 = vmatpush1.msra.mxu0 %v2793
      %4070 = vmatprep.subr.mxu0 %v2810
      %4071 = vmatpush1.msra.mxu0 %v2809
      %4072 = vmatprep.subr.mxu0 %v2826
      %4073 = vmatpush1.msra.mxu0 %v2825
      %4074 = vmatprep.subr.mxu0 %v2842
      %4075 = vmatpush1.msra.mxu0 %v2841
      %4076 = vmatprep.subr.mxu0 %v2858
      %4077 = vmatpush1.msra.mxu0 %v2857
      %4078 = vmatprep.subr.mxu0 %v2874
      %4079 = vmatpush1.msra.mxu0 %v2873
      %4080 = vmatprep.subr.mxu0 %v2890
      %4081 = vmatpush1.msra.mxu0 %v2889
      %4082 = vmatprep.mubr.f32.mxu0 %v2237
      %4083 = vmatmul.mubr.f32.gmra.mrb[0].mxu0 %v2235
      %v4084 = vpop.f32.mrb[0].mxu0
      %v4085 = vadd.f32 0.0, %v4084
      %v4086 = vpop.f32.mrb[0].mxu0
      %v4087 = vadd.f32 0.0, %v4086
      %4088 = vmatprep.mubr.f32.mxu0 %v2241
      %4089 = vmatmul.mubr.f32.gmra.mrb[0].mxu0 %v2239
      %v4090 = vpop.f32.mrb[0].mxu0
      %v4091 = vadd.f32 0.0, %v4090
      %v4092 = vpop.f32.mrb[0].mxu0
      %v4093 = vadd.f32 0.0, %v4092
      %4094 = vmatprep.mubr.f32.mxu0 %v2245
      %4095 = vmatmul.mubr.f32.gmra.mrb[0].mxu0 %v2243
      %v4096 = vpop.f32.mrb[0].mxu0
      %v4097 = vadd.f32 0.0, %v4096
      %v4098 = vpop.f32.mrb[0].mxu0
      %v4099 = vadd.f32 0.0, %v4098
      %4100 = vmatprep.mubr.f32.mxu0 %v2249
      %4101 = vmatmul.mubr.f32.gmra.mrb[0].mxu0 %v2247
      %v4102 = vpop.f32.mrb[0].mxu0
      %v4103 = vadd.f32 0.0, %v4102
      %v4104 = vpop.f32.mrb[0].mxu0
      %v4105 = vadd.f32 0.0, %v4104
      %4106 = vmatprep.mubr.f32.mxu0 %v2253
      %4107 = vmatmul.mubr.f32.gmra.mrb[0].mxu0 %v2251
      %v4108 = vpop.f32.mrb[0].mxu0
      %v4109 = vadd.f32 0.0, %v4108
      %v4110 = vpop.f32.mrb[0].mxu0
      %v4111 = vadd.f32 0.0, %v4110
      %4112 = vmatprep.mubr.f32.mxu0 %v2257
      %4113 = vmatmul.mubr.f32.gmra.mrb[0].mxu0 %v2255
      %v4114 = vpop.f32.mrb[0].mxu0
      %v4115 = vadd.f32 0.0, %v4114
      %v4116 = vpop.f32.mrb[0].mxu0
      %v4117 = vadd.f32 0.0, %v4116
      %4118 = vmatprep.mubr.f32.mxu0 %v2261
      %4119 = vmatmul.mubr.f32.gmra.mrb[0].mxu0 %v2259
      %v4120 = vpop.f32.mrb[0].mxu0
      %v4121 = vadd.f32 0.0, %v4120
      %v4122 = vpop.f32.mrb[0].mxu0
      %v4123 = vadd.f32 0.0, %v4122
      %4124 = vmatprep.mubr.f32.mxu0 %v2265
      %4125 = vmatmul.mubr.f32.gmra.mrb[0].mxu0 %v2263
      %v4126 = vpop.f32.mrb[0].mxu0
      %v4127 = vadd.f32 0.0, %v4126
      %v4128 = vpop.f32.mrb[0].mxu0
      %v4129 = vadd.f32 0.0, %v4128
      %4130 = vmatprep.mubr.f32.mxu0 %v2269
      %4131 = vmatmul.mubr.f32.gmra.mrb[0].mxu0 %v2267
      %v4132 = vpop.f32.mrb[0].mxu0
      %v4133 = vadd.f32 0.0, %v4132
      %v4134 = vpop.f32.mrb[0].mxu0
      %v4135 = vadd.f32 0.0, %v4134
      %4136 = vmatprep.mubr.f32.mxu0 %v2273
      %4137 = vmatmul.mubr.f32.gmra.mrb[0].mxu0 %v2271
      %v4138 = vpop.f32.mrb[0].mxu0
      %v4139 = vadd.f32 0.0, %v4138
      %v4140 = vpop.f32.mrb[0].mxu0
      %v4141 = vadd.f32 0.0, %v4140
      %4142 = vmatprep.mubr.f32.mxu0 %v2277
      %4143 = vmatmul.mubr.f32.gmra.mrb[0].mxu0 %v2275
      %v4144 = vpop.f32.mrb[0].mxu0
      %v4145 = vadd.f32 0.0, %v4144
      %v4146 = vpop.f32.mrb[0].mxu0
      %v4147 = vadd.f32 0.0, %v4146
      %4148 = vmatprep.mubr.f32.mxu0 %v2281
      %4149 = vmatmul.mubr.f32.gmra.mrb[0].mxu0 %v2279
      %v4150 = vpop.f32.mrb[0].mxu0
      %v4151 = vadd.f32 0.0, %v4150
      %v4152 = vpop.f32.mrb[0].mxu0
      %v4153 = vadd.f32 0.0, %v4152
      %4154 = vmatprep.mubr.f32.mxu0 %v2285
      %4155 = vmatmul.mubr.f32.gmra.mrb[0].mxu0 %v2283
      %v4156 = vpop.f32.mrb[0].mxu0
      %v4157 = vadd.f32 0.0, %v4156
      %v4158 = vpop.f32.mrb[0].mxu0
      %v4159 = vadd.f32 0.0, %v4158
      %4160 = vmatprep.mubr.f32.mxu0 %v2289
      %4161 = vmatmul.mubr.f32.gmra.mrb[0].mxu0 %v2287
      %v4162 = vpop.f32.mrb[0].mxu0
      %v4163 = vadd.f32 0.0, %v4162
      %v4164 = vpop.f32.mrb[0].mxu0
      %v4165 = vadd.f32 0.0, %v4164
      %4166 = vmatprep.mubr.f32.mxu0 %v2293
      %4167 = vmatmul.mubr.f32.gmra.mrb[0].mxu0 %v2291
      %v4168 = vpop.f32.mrb[0].mxu0
      %v4169 = vadd.f32 0.0, %v4168
      %v4170 = vpop.f32.mrb[0].mxu0
      %v4171 = vadd.f32 0.0, %v4170
      %4172 = vmatprep.mubr.f32.mxu0 %v2297
      %4173 = vmatmul.mubr.f32.gmra.mrb[0].mxu0 %v2295
      %v4174 = vpop.f32.mrb[0].mxu0
      %v4175 = vadd.f32 0.0, %v4174
      %v4176 = vpop.f32.mrb[0].mxu0
      %v4177 = vadd.f32 0.0, %v4176
      %4178 = vdwg.mxu0
      %4179 = vst [vmem:[#allocation11] sm:$0xff] %v2958
      %4180 = vst [vmem:[#allocation11 + $0x8] sm:$0xff] %v2960
      %4181 = vst [vmem:[#allocation11 + $0x10] sm:$0xff] %v3119
      %4182 = vst [vmem:[#allocation11 + $0x18] sm:$0xff] %v3121
      %4183 = vst [vmem:[#allocation11 + $0x20] sm:$0xff] %v3280
      %4184 = vst [vmem:[#allocation11 + $0x28] sm:$0xff] %v3282
      %4185 = vst [vmem:[#allocation11 + $0x30] sm:$0xff] %v3441
      %4186 = vst [vmem:[#allocation11 + $0x38] sm:$0xff] %v3443
      %4187 = vst [vmem:[#allocation11 + $0x40] sm:$0xff] %v3602
      %4188 = vst [vmem:[#allocation11 + $0x48] sm:$0xff] %v3604
      %4189 = vst [vmem:[#allocation11 + $0x50] sm:$0xff] %v3763
      %4190 = vst [vmem:[#allocation11 + $0x58] sm:$0xff] %v3765
      %4191 = vst [vmem:[#allocation11 + $0x60] sm:$0xff] %v3924
      %4192 = vst [vmem:[#allocation11 + $0x68] sm:$0xff] %v3926
      %4193 = vst [vmem:[#allocation11 + $0x70] sm:$0xff] %v4085
      %4194 = vst [vmem:[#allocation11 + $0x78] sm:$0xff] %v4087
      %4195 = vst [vmem:[#allocation11 + $0x80] sm:$0xff] %v2964
      %4196 = vst [vmem:[#allocation11 + $0x88] sm:$0xff] %v2966
      %4197 = vst [vmem:[#allocation11 + $0x90] sm:$0xff] %v3125
      %4198 = vst [vmem:[#allocation11 + $0x98] sm:$0xff] %v3127
      %4199 = vst [vmem:[#allocation11 + $0xa0] sm:$0xff] %v3286
      %4200 = vst [vmem:[#allocation11 + $0xa8] sm:$0xff] %v3288
      %4201 = vst [vmem:[#allocation11 + $0xb0] sm:$0xff] %v3447
      %4202 = vst [vmem:[#allocation11 + $0xb8] sm:$0xff] %v3449
      %4203 = vst [vmem:[#allocation11 + $0xc0] sm:$0xff] %v3608
      %4204 = vst [vmem:[#allocation11 + $0xc8] sm:$0xff] %v3610
      %4205 = vst [vmem:[#allocation11 + $0xd0] sm:$0xff] %v3769
      %4206 = vst [vmem:[#allocation11 + $0xd8] sm:$0xff] %v3771
      %4207 = vst [vmem:[#allocation11 + $0xe0] sm:$0xff] %v3930
      %4208 = vst [vmem:[#allocation11 + $0xe8] sm:$0xff] %v3932
      %4209 = vst [vmem:[#allocation11 + $0xf0] sm:$0xff] %v4091
      %4210 = vst [vmem:[#allocation11 + $0xf8] sm:$0xff] %v4093
      %4211 = vst [vmem:[#allocation11 + $0x100] sm:$0xff] %v2970
      %4212 = vst [vmem:[#allocation11 + $0x108] sm:$0xff] %v2972
      %4213 = vst [vmem:[#allocation11 + $0x110] sm:$0xff] %v3131
      %4214 = vst [vmem:[#allocation11 + $0x118] sm:$0xff] %v3133
      %4215 = vst [vmem:[#allocation11 + $0x120] sm:$0xff] %v3292
      %4216 = vst [vmem:[#allocation11 + $0x128] sm:$0xff] %v3294
      %4217 = vst [vmem:[#allocation11 + $0x130] sm:$0xff] %v3453
      %4218 = vst [vmem:[#allocation11 + $0x138] sm:$0xff] %v3455
      %4219 = vst [vmem:[#allocation11 + $0x140] sm:$0xff] %v3614
      %4220 = vst [vmem:[#allocation11 + $0x148] sm:$0xff] %v3616
      %4221 = vst [vmem:[#allocation11 + $0x150] sm:$0xff] %v3775
      %4222 = vst [vmem:[#allocation11 + $0x158] sm:$0xff] %v3777
      %4223 = vst [vmem:[#allocation11 + $0x160] sm:$0xff] %v3936
      %4224 = vst [vmem:[#allocation11 + $0x168] sm:$0xff] %v3938
      %4225 = vst [vmem:[#allocation11 + $0x170] sm:$0xff] %v4097
      %4226 = vst [vmem:[#allocation11 + $0x178] sm:$0xff] %v4099
      %4227 = vst [vmem:[#allocation11 + $0x180] sm:$0xff] %v2976
      %4228 = vst [vmem:[#allocation11 + $0x188] sm:$0xff] %v2978
      %4229 = vst [vmem:[#allocation11 + $0x190] sm:$0xff] %v3137
      %4230 = vst [vmem:[#allocation11 + $0x198] sm:$0xff] %v3139
      %4231 = vst [vmem:[#allocation11 + $0x1a0] sm:$0xff] %v3298
      %4232 = vst [vmem:[#allocation11 + $0x1a8] sm:$0xff] %v3300
      %4233 = vst [vmem:[#allocation11 + $0x1b0] sm:$0xff] %v3459
      %4234 = vst [vmem:[#allocation11 + $0x1b8] sm:$0xff] %v3461
      %4235 = vst [vmem:[#allocation11 + $0x1c0] sm:$0xff] %v3620
      %4236 = vst [vmem:[#allocation11 + $0x1c8] sm:$0xff] %v3622
      %4237 = vst [vmem:[#allocation11 + $0x1d0] sm:$0xff] %v3781
      %4238 = vst [vmem:[#allocation11 + $0x1d8] sm:$0xff] %v3783
      %4239 = vst [vmem:[#allocation11 + $0x1e0] sm:$0xff] %v3942
      %4240 = vst [vmem:[#allocation11 + $0x1e8] sm:$0xff] %v3944
      %4241 = vst [vmem:[#allocation11 + $0x1f0] sm:$0xff] %v4103
      %4242 = vst [vmem:[#allocation11 + $0x1f8] sm:$0xff] %v4105
      %4243 = vst [vmem:[#allocation11 + $0x200] sm:$0xff] %v2982
      %4244 = vst [vmem:[#allocation11 + $0x208] sm:$0xff] %v2984
      %4245 = vst [vmem:[#allocation11 + $0x210] sm:$0xff] %v3143
      %4246 = vst [vmem:[#allocation11 + $0x218] sm:$0xff] %v3145
      %4247 = vst [vmem:[#allocation11 + $0x220] sm:$0xff] %v3304
      %4248 = vst [vmem:[#allocation11 + $0x228] sm:$0xff] %v3306
      %4249 = vst [vmem:[#allocation11 + $0x230] sm:$0xff] %v3465
      %4250 = vst [vmem:[#allocation11 + $0x238] sm:$0xff] %v3467
      %4251 = vst [vmem:[#allocation11 + $0x240] sm:$0xff] %v3626
      %4252 = vst [vmem:[#allocation11 + $0x248] sm:$0xff] %v3628
      %4253 = vst [vmem:[#allocation11 + $0x250] sm:$0xff] %v3787
      %4254 = vst [vmem:[#allocation11 + $0x258] sm:$0xff] %v3789
      %4255 = vst [vmem:[#allocation11 + $0x260] sm:$0xff] %v3948
      %4256 = vst [vmem:[#allocation11 + $0x268] sm:$0xff] %v3950
      %4257 = vst [vmem:[#allocation11 + $0x270] sm:$0xff] %v4109
      %4258 = vst [vmem:[#allocation11 + $0x278] sm:$0xff] %v4111
      %4259 = vst [vmem:[#allocation11 + $0x280] sm:$0xff] %v2988
      %4260 = vst [vmem:[#allocation11 + $0x288] sm:$0xff] %v2990
      %4261 = vst [vmem:[#allocation11 + $0x290] sm:$0xff] %v3149
      %4262 = vst [vmem:[#allocation11 + $0x298] sm:$0xff] %v3151
      %4263 = vst [vmem:[#allocation11 + $0x2a0] sm:$0xff] %v3310
      %4264 = vst [vmem:[#allocation11 + $0x2a8] sm:$0xff] %v3312
      %4265 = vst [vmem:[#allocation11 + $0x2b0] sm:$0xff] %v3471
      %4266 = vst [vmem:[#allocation11 + $0x2b8] sm:$0xff] %v3473
      %4267 = vst [vmem:[#allocation11 + $0x2c0] sm:$0xff] %v3632
      %4268 = vst [vmem:[#allocation11 + $0x2c8] sm:$0xff] %v3634
      %4269 = vst [vmem:[#allocation11 + $0x2d0] sm:$0xff] %v3793
      %4270 = vst [vmem:[#allocation11 + $0x2d8] sm:$0xff] %v3795
      %4271 = vst [vmem:[#allocation11 + $0x2e0] sm:$0xff] %v3954
      %4272 = vst [vmem:[#allocation11 + $0x2e8] sm:$0xff] %v3956
      %4273 = vst [vmem:[#allocation11 + $0x2f0] sm:$0xff] %v4115
      %4274 = vst [vmem:[#allocation11 + $0x2f8] sm:$0xff] %v4117
      %4275 = vst [vmem:[#allocation11 + $0x300] sm:$0xff] %v2994
      %4276 = vst [vmem:[#allocation11 + $0x308] sm:$0xff] %v2996
      %4277 = vst [vmem:[#allocation11 + $0x310] sm:$0xff] %v3155
      %4278 = vst [vmem:[#allocation11 + $0x318] sm:$0xff] %v3157
      %4279 = vst [vmem:[#allocation11 + $0x320] sm:$0xff] %v3316
      %4280 = vst [vmem:[#allocation11 + $0x328] sm:$0xff] %v3318
      %4281 = vst [vmem:[#allocation11 + $0x330] sm:$0xff] %v3477
      %4282 = vst [vmem:[#allocation11 + $0x338] sm:$0xff] %v3479
      %4283 = vst [vmem:[#allocation11 + $0x340] sm:$0xff] %v3638
      %4284 = vst [vmem:[#allocation11 + $0x348] sm:$0xff] %v3640
      %4285 = vst [vmem:[#allocation11 + $0x350] sm:$0xff] %v3799
      %4286 = vst [vmem:[#allocation11 + $0x358] sm:$0xff] %v3801
      %4287 = vst [vmem:[#allocation11 + $0x360] sm:$0xff] %v3960
      %4288 = vst [vmem:[#allocation11 + $0x368] sm:$0xff] %v3962
      %4289 = vst [vmem:[#allocation11 + $0x370] sm:$0xff] %v4121
      %4290 = vst [vmem:[#allocation11 + $0x378] sm:$0xff] %v4123
      %4291 = vst [vmem:[#allocation11 + $0x380] sm:$0xff] %v3000
      %4292 = vst [vmem:[#allocation11 + $0x388] sm:$0xff] %v3002
      %4293 = vst [vmem:[#allocation11 + $0x390] sm:$0xff] %v3161
      %4294 = vst [vmem:[#allocation11 + $0x398] sm:$0xff] %v3163
      %4295 = vst [vmem:[#allocation11 + $0x3a0] sm:$0xff] %v3322
      %4296 = vst [vmem:[#allocation11 + $0x3a8] sm:$0xff] %v3324
      %4297 = vst [vmem:[#allocation11 + $0x3b0] sm:$0xff] %v3483
      %4298 = vst [vmem:[#allocation11 + $0x3b8] sm:$0xff] %v3485
      %4299 = vst [vmem:[#allocation11 + $0x3c0] sm:$0xff] %v3644
      %4300 = vst [vmem:[#allocation11 + $0x3c8] sm:$0xff] %v3646
      %4301 = vst [vmem:[#allocation11 + $0x3d0] sm:$0xff] %v3805
      %4302 = vst [vmem:[#allocation11 + $0x3d8] sm:$0xff] %v3807
      %4303 = vst [vmem:[#allocation11 + $0x3e0] sm:$0xff] %v3966
      %4304 = vst [vmem:[#allocation11 + $0x3e8] sm:$0xff] %v3968
      %4305 = vst [vmem:[#allocation11 + $0x3f0] sm:$0xff] %v4127
      %4306 = vst [vmem:[#allocation11 + $0x3f8] sm:$0xff] %v4129
      %4307 = vst [vmem:[#allocation11 + $0x400] sm:$0xff] %v3006
      %4308 = vst [vmem:[#allocation11 + $0x408] sm:$0xff] %v3008
      %4309 = vst [vmem:[#allocation11 + $0x410] sm:$0xff] %v3167
      %4310 = vst [vmem:[#allocation11 + $0x418] sm:$0xff] %v3169
      %4311 = vst [vmem:[#allocation11 + $0x420] sm:$0xff] %v3328
      %4312 = vst [vmem:[#allocation11 + $0x428] sm:$0xff] %v3330
      %4313 = vst [vmem:[#allocation11 + $0x430] sm:$0xff] %v3489
      %4314 = vst [vmem:[#allocation11 + $0x438] sm:$0xff] %v3491
      %4315 = vst [vmem:[#allocation11 + $0x440] sm:$0xff] %v3650
      %4316 = vst [vmem:[#allocation11 + $0x448] sm:$0xff] %v3652
      %4317 = vst [vmem:[#allocation11 + $0x450] sm:$0xff] %v3811
      %4318 = vst [vmem:[#allocation11 + $0x458] sm:$0xff] %v3813
      %4319 = vst [vmem:[#allocation11 + $0x460] sm:$0xff] %v3972
      %4320 = vst [vmem:[#allocation11 + $0x468] sm:$0xff] %v3974
      %4321 = vst [vmem:[#allocation11 + $0x470] sm:$0xff] %v4133
      %4322 = vst [vmem:[#allocation11 + $0x478] sm:$0xff] %v4135
      %4323 = vst [vmem:[#allocation11 + $0x480] sm:$0xff] %v3012
      %4324 = vst [vmem:[#allocation11 + $0x488] sm:$0xff] %v3014
      %4325 = vst [vmem:[#allocation11 + $0x490] sm:$0xff] %v3173
      %4326 = vst [vmem:[#allocation11 + $0x498] sm:$0xff] %v3175
      %4327 = vst [vmem:[#allocation11 + $0x4a0] sm:$0xff] %v3334
      %4328 = vst [vmem:[#allocation11 + $0x4a8] sm:$0xff] %v3336
      %4329 = vst [vmem:[#allocation11 + $0x4b0] sm:$0xff] %v3495
      %4330 = vst [vmem:[#allocation11 + $0x4b8] sm:$0xff] %v3497
      %4331 = vst [vmem:[#allocation11 + $0x4c0] sm:$0xff] %v3656
      %4332 = vst [vmem:[#allocation11 + $0x4c8] sm:$0xff] %v3658
      %4333 = vst [vmem:[#allocation11 + $0x4d0] sm:$0xff] %v3817
      %4334 = vst [vmem:[#allocation11 + $0x4d8] sm:$0xff] %v3819
      %4335 = vst [vmem:[#allocation11 + $0x4e0] sm:$0xff] %v3978
      %4336 = vst [vmem:[#allocation11 + $0x4e8] sm:$0xff] %v3980
      %4337 = vst [vmem:[#allocation11 + $0x4f0] sm:$0xff] %v4139
      %4338 = vst [vmem:[#allocation11 + $0x4f8] sm:$0xff] %v4141
      %4339 = vst [vmem:[#allocation11 + $0x500] sm:$0xff] %v3018
      %4340 = vst [vmem:[#allocation11 + $0x508] sm:$0xff] %v3020
      %4341 = vst [vmem:[#allocation11 + $0x510] sm:$0xff] %v3179
      %4342 = vst [vmem:[#allocation11 + $0x518] sm:$0xff] %v3181
      %4343 = vst [vmem:[#allocation11 + $0x520] sm:$0xff] %v3340
      %4344 = vst [vmem:[#allocation11 + $0x528] sm:$0xff] %v3342
      %4345 = vst [vmem:[#allocation11 + $0x530] sm:$0xff] %v3501
      %4346 = vst [vmem:[#allocation11 + $0x538] sm:$0xff] %v3503
      %4347 = vst [vmem:[#allocation11 + $0x540] sm:$0xff] %v3662
      %4348 = vst [vmem:[#allocation11 + $0x548] sm:$0xff] %v3664
      %4349 = vst [vmem:[#allocation11 + $0x550] sm:$0xff] %v3823
      %4350 = vst [vmem:[#allocation11 + $0x558] sm:$0xff] %v3825
      %4351 = vst [vmem:[#allocation11 + $0x560] sm:$0xff] %v3984
      %4352 = vst [vmem:[#allocation11 + $0x568] sm:$0xff] %v3986
      %4353 = vst [vmem:[#allocation11 + $0x570] sm:$0xff] %v4145
      %4354 = vst [vmem:[#allocation11 + $0x578] sm:$0xff] %v4147
      %4355 = vst [vmem:[#allocation11 + $0x580] sm:$0xff] %v3024
      %4356 = vst [vmem:[#allocation11 + $0x588] sm:$0xff] %v3026
      %4357 = vst [vmem:[#allocation11 + $0x590] sm:$0xff] %v3185
      %4358 = vst [vmem:[#allocation11 + $0x598] sm:$0xff] %v3187
      %4359 = vst [vmem:[#allocation11 + $0x5a0] sm:$0xff] %v3346
      %4360 = vst [vmem:[#allocation11 + $0x5a8] sm:$0xff] %v3348
      %4361 = vst [vmem:[#allocation11 + $0x5b0] sm:$0xff] %v3507
      %4362 = vst [vmem:[#allocation11 + $0x5b8] sm:$0xff] %v3509
      %4363 = vst [vmem:[#allocation11 + $0x5c0] sm:$0xff] %v3668
      %4364 = vst [vmem:[#allocation11 + $0x5c8] sm:$0xff] %v3670
      %4365 = vst [vmem:[#allocation11 + $0x5d0] sm:$0xff] %v3829
      %4366 = vst [vmem:[#allocation11 + $0x5d8] sm:$0xff] %v3831
      %4367 = vst [vmem:[#allocation11 + $0x5e0] sm:$0xff] %v3990
      %4368 = vst [vmem:[#allocation11 + $0x5e8] sm:$0xff] %v3992
      %4369 = vst [vmem:[#allocation11 + $0x5f0] sm:$0xff] %v4151
      %4370 = vst [vmem:[#allocation11 + $0x5f8] sm:$0xff] %v4153
      %4371 = vst [vmem:[#allocation11 + $0x600] sm:$0xff] %v3030
      %4372 = vst [vmem:[#allocation11 + $0x608] sm:$0xff] %v3032
      %4373 = vst [vmem:[#allocation11 + $0x610] sm:$0xff] %v3191
      %4374 = vst [vmem:[#allocation11 + $0x618] sm:$0xff] %v3193
      %4375 = vst [vmem:[#allocation11 + $0x620] sm:$0xff] %v3352
      %4376 = vst [vmem:[#allocation11 + $0x628] sm:$0xff] %v3354
      %4377 = vst [vmem:[#allocation11 + $0x630] sm:$0xff] %v3513
      %4378 = vst [vmem:[#allocation11 + $0x638] sm:$0xff] %v3515
      %4379 = vst [vmem:[#allocation11 + $0x640] sm:$0xff] %v3674
      %4380 = vst [vmem:[#allocation11 + $0x648] sm:$0xff] %v3676
      %4381 = vst [vmem:[#allocation11 + $0x650] sm:$0xff] %v3835
      %4382 = vst [vmem:[#allocation11 + $0x658] sm:$0xff] %v3837
      %4383 = vst [vmem:[#allocation11 + $0x660] sm:$0xff] %v3996
      %4384 = vst [vmem:[#allocation11 + $0x668] sm:$0xff] %v3998
      %4385 = vst [vmem:[#allocation11 + $0x670] sm:$0xff] %v4157
      %4386 = vst [vmem:[#allocation11 + $0x678] sm:$0xff] %v4159
      %4387 = vst [vmem:[#allocation11 + $0x680] sm:$0xff] %v3036
      %4388 = vst [vmem:[#allocation11 + $0x688] sm:$0xff] %v3038
      %4389 = vst [vmem:[#allocation11 + $0x690] sm:$0xff] %v3197
      %4390 = vst [vmem:[#allocation11 + $0x698] sm:$0xff] %v3199
      %4391 = vst [vmem:[#allocation11 + $0x6a0] sm:$0xff] %v3358
      %4392 = vst [vmem:[#allocation11 + $0x6a8] sm:$0xff] %v3360
      %4393 = vst [vmem:[#allocation11 + $0x6b0] sm:$0xff] %v3519
      %4394 = vst [vmem:[#allocation11 + $0x6b8] sm:$0xff] %v3521
      %4395 = vst [vmem:[#allocation11 + $0x6c0] sm:$0xff] %v3680
      %4396 = vst [vmem:[#allocation11 + $0x6c8] sm:$0xff] %v3682
      %4397 = vst [vmem:[#allocation11 + $0x6d0] sm:$0xff] %v3841
      %4398 = vst [vmem:[#allocation11 + $0x6d8] sm:$0xff] %v3843
      %4399 = vst [vmem:[#allocation11 + $0x6e0] sm:$0xff] %v4002
      %4400 = vst [vmem:[#allocation11 + $0x6e8] sm:$0xff] %v4004
      %4401 = vst [vmem:[#allocation11 + $0x6f0] sm:$0xff] %v4163
      %4402 = vst [vmem:[#allocation11 + $0x6f8] sm:$0xff] %v4165
      %4403 = vst [vmem:[#allocation11 + $0x700] sm:$0xff] %v3042
      %4404 = vst [vmem:[#allocation11 + $0x708] sm:$0xff] %v3044
      %4405 = vst [vmem:[#allocation11 + $0x710] sm:$0xff] %v3203
      %4406 = vst [vmem:[#allocation11 + $0x718] sm:$0xff] %v3205
      %4407 = vst [vmem:[#allocation11 + $0x720] sm:$0xff] %v3364
      %4408 = vst [vmem:[#allocation11 + $0x728] sm:$0xff] %v3366
      %4409 = vst [vmem:[#allocation11 + $0x730] sm:$0xff] %v3525
      %4410 = vst [vmem:[#allocation11 + $0x738] sm:$0xff] %v3527
      %4411 = vst [vmem:[#allocation11 + $0x740] sm:$0xff] %v3686
      %4412 = vst [vmem:[#allocation11 + $0x748] sm:$0xff] %v3688
      %4413 = vst [vmem:[#allocation11 + $0x750] sm:$0xff] %v3847
      %4414 = vst [vmem:[#allocation11 + $0x758] sm:$0xff] %v3849
      %4415 = vst [vmem:[#allocation11 + $0x760] sm:$0xff] %v4008
      %4416 = vst [vmem:[#allocation11 + $0x768] sm:$0xff] %v4010
      %4417 = vst [vmem:[#allocation11 + $0x770] sm:$0xff] %v4169
      %4418 = vst [vmem:[#allocation11 + $0x778] sm:$0xff] %v4171
      %4419 = vst [vmem:[#allocation11 + $0x780] sm:$0xff] %v3048
      %4420 = vst [vmem:[#allocation11 + $0x788] sm:$0xff] %v3050
      %4421 = vst [vmem:[#allocation11 + $0x790] sm:$0xff] %v3209
      %4422 = vst [vmem:[#allocation11 + $0x798] sm:$0xff] %v3211
      %4423 = vst [vmem:[#allocation11 + $0x7a0] sm:$0xff] %v3370
      %4424 = vst [vmem:[#allocation11 + $0x7a8] sm:$0xff] %v3372
      %4425 = vst [vmem:[#allocation11 + $0x7b0] sm:$0xff] %v3531
      %4426 = vst [vmem:[#allocation11 + $0x7b8] sm:$0xff] %v3533
      %4427 = vst [vmem:[#allocation11 + $0x7c0] sm:$0xff] %v3692
      %4428 = vst [vmem:[#allocation11 + $0x7c8] sm:$0xff] %v3694
      %4429 = vst [vmem:[#allocation11 + $0x7d0] sm:$0xff] %v3853
      %4430 = vst [vmem:[#allocation11 + $0x7d8] sm:$0xff] %v3855
      %4431 = vst [vmem:[#allocation11 + $0x7e0] sm:$0xff] %v4014
      %4432 = vst [vmem:[#allocation11 + $0x7e8] sm:$0xff] %v4016
      %4433 = vst [vmem:[#allocation11 + $0x7f0] sm:$0xff] %v4175
      %4434 = vst [vmem:[#allocation11 + $0x7f8] sm:$0xff] %v4177
    $region33: #{attention.1} parent=1 // pred_fallthru
      _
    %p4435 = scmp.gt.s32.totalorder 0, 0
    // Predicated region
    $region34: #{attention.1} parent=1 // pred_check
      %p4436 = pneg %p4435
    $region35: #{attention.1} parent=1 // pred_check_branch
      %4438 = sbr.rel (%p4436) target = $region37
    $region36: #{attention.1} parent=1 // pred_region
      %v4439 = vld [vmem:[#allocation2] sm:$0xff]
      %v4440 = vld [vmem:[#allocation2 + $0x8] sm:$0xff]
      %v4441 = vld [vmem:[#allocation2 + $0x10] sm:$0xff]
      %v4442 = vld [vmem:[#allocation2 + $0x18] sm:$0xff]
      %v4443 = vld [vmem:[#allocation2 + $0x20] sm:$0xff]
      %v4444 = vld [vmem:[#allocation2 + $0x28] sm:$0xff]
      %v4445 = vld [vmem:[#allocation2 + $0x30] sm:$0xff]
      %v4446 = vld [vmem:[#allocation2 + $0x38] sm:$0xff]
      %v4447 = vld [vmem:[#allocation2 + $0x40] sm:$0xff]
      %v4448 = vld [vmem:[#allocation2 + $0x48] sm:$0xff]
      %v4449 = vld [vmem:[#allocation2 + $0x50] sm:$0xff]
      %v4450 = vld [vmem:[#allocation2 + $0x58] sm:$0xff]
      %v4451 = vld [vmem:[#allocation2 + $0x60] sm:$0xff]
      %v4452 = vld [vmem:[#allocation2 + $0x68] sm:$0xff]
      %v4453 = vld [vmem:[#allocation2 + $0x70] sm:$0xff]
      %v4454 = vld [vmem:[#allocation2 + $0x78] sm:$0xff]
      %v4455 = vmax.f32 %v4439, %v2152
      %v4456 = vmax.f32 %v4440, %v2155
      %v4457 = vmax.f32 %v4441, %v2158
      %v4458 = vmax.f32 %v4442, %v2161
      %v4459 = vmax.f32 %v4443, %v2164
      %v4460 = vmax.f32 %v4444, %v2167
      %v4461 = vmax.f32 %v4445, %v2170
      %v4462 = vmax.f32 %v4446, %v2173
      %v4463 = vmax.f32 %v4447, %v2176
      %v4464 = vmax.f32 %v4448, %v2179
      %v4465 = vmax.f32 %v4449, %v2182
      %v4466 = vmax.f32 %v4450, %v2185
      %v4467 = vmax.f32 %v4451, %v2188
      %v4468 = vmax.f32 %v4452, %v2191
      %v4469 = vmax.f32 %v4453, %v2194
      %v4470 = vmax.f32 %v4454, %v2197
      %v4471 = vsub.f32 %v4439, %v4455
      %v4472 = vsub.f32 %v4440, %v4456
      %v4473 = vsub.f32 %v4441, %v4457
      %v4474 = vsub.f32 %v4442, %v4458
      %v4475 = vsub.f32 %v4443, %v4459
      %v4476 = vsub.f32 %v4444, %v4460
      %v4477 = vsub.f32 %v4445, %v4461
      %v4478 = vsub.f32 %v4446, %v4462
      %v4479 = vsub.f32 %v4447, %v4463
      %v4480 = vsub.f32 %v4448, %v4464
      %v4481 = vsub.f32 %v4449, %v4465
      %v4482 = vsub.f32 %v4450, %v4466
      %v4483 = vsub.f32 %v4451, %v4467
      %v4484 = vsub.f32 %v4452, %v4468
      %v4485 = vsub.f32 %v4453, %v4469
      %v4486 = vsub.f32 %v4454, %v4470
      %v4487 = vmul.f32 %v4471, 1.442695
      %v4488 = vpow.pop %v4487
      %v4489 = vmul.f32 %v4472, 1.442695
      %v4490 = vpow.pop %v4489
      %v4491 = vmul.f32 %v4473, 1.442695
      %v4492 = vpow.pop %v4491
      %v4493 = vmul.f32 %v4474, 1.442695
      %v4494 = vpow.pop %v4493
      %v4495 = vmul.f32 %v4475, 1.442695
      %v4496 = vpow.pop %v4495
      %v4497 = vmul.f32 %v4476, 1.442695
      %v4498 = vpow.pop %v4497
      %v4499 = vmul.f32 %v4477, 1.442695
      %v4500 = vpow.pop %v4499
      %v4501 = vmul.f32 %v4478, 1.442695
      %v4502 = vpow.pop %v4501
      %v4503 = vmul.f32 %v4479, 1.442695
      %v4504 = vpow.pop %v4503
      %v4505 = vmul.f32 %v4480, 1.442695
      %v4506 = vpow.pop %v4505
      %v4507 = vmul.f32 %v4481, 1.442695
      %v4508 = vpow.pop %v4507
      %v4509 = vmul.f32 %v4482, 1.442695
      %v4510 = vpow.pop %v4509
      %v4511 = vmul.f32 %v4483, 1.442695
      %v4512 = vpow.pop %v4511
      %v4513 = vmul.f32 %v4484, 1.442695
      %v4514 = vpow.pop %v4513
      %v4515 = vmul.f32 %v4485, 1.442695
      %v4516 = vpow.pop %v4515
      %v4517 = vmul.f32 %v4486, 1.442695
      %v4518 = vpow.pop %v4517
      %4520 = vset.pattern.permute.xlu0 0
      %4521 = vperm.xlu0 %4520, %v4455
      %v4522 = vpop.permute.xlu0 %4521
      %4525 = vset.pattern.permute.xlu0 0
      %4526 = vperm.xlu0 %4525, %v4456
      %v4527 = vpop.permute.xlu0 %4526
      %4530 = vset.pattern.permute.xlu0 0
      %4531 = vperm.xlu0 %4530, %v4457
      %v4532 = vpop.permute.xlu0 %4531
      %4535 = vset.pattern.permute.xlu0 0
      %4536 = vperm.xlu0 %4535, %v4458
      %v4537 = vpop.permute.xlu0 %4536
      %4540 = vset.pattern.permute.xlu0 0
      %4541 = vperm.xlu0 %4540, %v4459
      %v4542 = vpop.permute.xlu0 %4541
      %4545 = vset.pattern.permute.xlu0 0
      %4546 = vperm.xlu0 %4545, %v4460
      %v4547 = vpop.permute.xlu0 %4546
      %4550 = vset.pattern.permute.xlu0 0
      %4551 = vperm.xlu0 %4550, %v4461
      %v4552 = vpop.permute.xlu0 %4551
      %4555 = vset.pattern.permute.xlu0 0
      %4556 = vperm.xlu0 %4555, %v4462
      %v4557 = vpop.permute.xlu0 %4556
      %4560 = vset.pattern.permute.xlu0 0
      %4561 = vperm.xlu0 %4560, %v4463
      %v4562 = vpop.permute.xlu0 %4561
      %4565 = vset.pattern.permute.xlu0 0
      %4566 = vperm.xlu0 %4565, %v4464
      %v4567 = vpop.permute.xlu0 %4566
      %4570 = vset.pattern.permute.xlu0 0
      %4571 = vperm.xlu0 %4570, %v4465
      %v4572 = vpop.permute.xlu0 %4571
      %4575 = vset.pattern.permute.xlu0 0
      %4576 = vperm.xlu0 %4575, %v4466
      %v4577 = vpop.permute.xlu0 %4576
      %4580 = vset.pattern.permute.xlu0 0
      %4581 = vperm.xlu0 %4580, %v4467
      %v4582 = vpop.permute.xlu0 %4581
      %4585 = vset.pattern.permute.xlu0 0
      %4586 = vperm.xlu0 %4585, %v4468
      %v4587 = vpop.permute.xlu0 %4586
      %4590 = vset.pattern.permute.xlu0 0
      %4591 = vperm.xlu0 %4590, %v4469
      %v4592 = vpop.permute.xlu0 %4591
      %4595 = vset.pattern.permute.xlu0 0
      %4596 = vperm.xlu0 %4595, %v4470
      %v4597 = vpop.permute.xlu0 %4596
      %v4599 = vsub.f32 %v2118, %v4522
      %v4600 = vsub.f32 %v2119, %v4522
      %v4601 = vsub.f32 %v2120, %v4527
      %v4602 = vsub.f32 %v2121, %v4527
      %v4603 = vsub.f32 %v2122, %v4532
      %v4604 = vsub.f32 %v2123, %v4532
      %v4605 = vsub.f32 %v2124, %v4537
      %v4606 = vsub.f32 %v2125, %v4537
      %v4607 = vsub.f32 %v2126, %v4542
      %v4608 = vsub.f32 %v2127, %v4542
      %v4609 = vsub.f32 %v2128, %v4547
      %v4610 = vsub.f32 %v2129, %v4547
      %v4611 = vsub.f32 %v2130, %v4552
      %v4612 = vsub.f32 %v2131, %v4552
      %v4613 = vsub.f32 %v2132, %v4557
      %v4614 = vsub.f32 %v2133, %v4557
      %v4615 = vsub.f32 %v2134, %v4562
      %v4616 = vsub.f32 %v2135, %v4562
      %v4617 = vsub.f32 %v2136, %v4567
      %v4618 = vsub.f32 %v2137, %v4567
      %v4619 = vsub.f32 %v2138, %v4572
      %v4620 = vsub.f32 %v2139, %v4572
      %v4621 = vsub.f32 %v2140, %v4577
      %v4622 = vsub.f32 %v2141, %v4577
      %v4623 = vsub.f32 %v2142, %v4582
      %v4624 = vsub.f32 %v2143, %v4582
      %v4625 = vsub.f32 %v2144, %v4587
      %v4626 = vsub.f32 %v2145, %v4587
      %v4627 = vsub.f32 %v2146, %v4592
      %v4628 = vsub.f32 %v2147, %v4592
      %v4629 = vsub.f32 %v2148, %v4597
      %v4630 = vsub.f32 %v2149, %v4597
      %v4631 = vmul.f32 %v4599, 1.442695
      %v4632 = vpow.pop %v4631
      %v4633 = vmul.f32 %v4600, 1.442695
      %v4634 = vpow.pop %v4633
      %v4635 = vmul.f32 %v4601, 1.442695
      %v4636 = vpow.pop %v4635
      %v4637 = vmul.f32 %v4602, 1.442695
      %v4638 = vpow.pop %v4637
      %v4639 = vmul.f32 %v4603, 1.442695
      %v4640 = vpow.pop %v4639
      %v4641 = vmul.f32 %v4604, 1.442695
      %v4642 = vpow.pop %v4641
      %v4643 = vmul.f32 %v4605, 1.442695
      %v4644 = vpow.pop %v4643
      %v4645 = vmul.f32 %v4606, 1.442695
      %v4646 = vpow.pop %v4645
      %v4647 = vmul.f32 %v4607, 1.442695
      %v4648 = vpow.pop %v4647
      %v4649 = vmul.f32 %v4608, 1.442695
      %v4650 = vpow.pop %v4649
      %v4651 = vmul.f32 %v4609, 1.442695
      %v4652 = vpow.pop %v4651
      %v4653 = vmul.f32 %v4610, 1.442695
      %v4654 = vpow.pop %v4653
      %v4655 = vmul.f32 %v4611, 1.442695
      %v4656 = vpow.pop %v4655
      %v4657 = vmul.f32 %v4612, 1.442695
      %v4658 = vpow.pop %v4657
      %v4659 = vmul.f32 %v4613, 1.442695
      %v4660 = vpow.pop %v4659
      %v4661 = vmul.f32 %v4614, 1.442695
      %v4662 = vpow.pop %v4661
      %v4663 = vmul.f32 %v4615, 1.442695
      %v4664 = vpow.pop %v4663
      %v4665 = vmul.f32 %v4616, 1.442695
      %v4666 = vpow.pop %v4665
      %v4667 = vmul.f32 %v4617, 1.442695
      %v4668 = vpow.pop %v4667
      %v4669 = vmul.f32 %v4618, 1.442695
      %v4670 = vpow.pop %v4669
      %v4671 = vmul.f32 %v4619, 1.442695
      %v4672 = vpow.pop %v4671
      %v4673 = vmul.f32 %v4620, 1.442695
      %v4674 = vpow.pop %v4673
      %v4675 = vmul.f32 %v4621, 1.442695
      %v4676 = vpow.pop %v4675
      %v4677 = vmul.f32 %v4622, 1.442695
      %v4678 = vpow.pop %v4677
      %v4679 = vmul.f32 %v4623, 1.442695
      %v4680 = vpow.pop %v4679
      %v4681 = vmul.f32 %v4624, 1.442695
      %v4682 = vpow.pop %v4681
      %v4683 = vmul.f32 %v4625, 1.442695
      %v4684 = vpow.pop %v4683
      %v4685 = vmul.f32 %v4626, 1.442695
      %v4686 = vpow.pop %v4685
      %v4687 = vmul.f32 %v4627, 1.442695
      %v4688 = vpow.pop %v4687
      %v4689 = vmul.f32 %v4628, 1.442695
      %v4690 = vpow.pop %v4689
      %v4691 = vmul.f32 %v4629, 1.442695
      %v4692 = vpow.pop %v4691
      %v4693 = vmul.f32 %v4630, 1.442695
      %v4694 = vpow.pop %v4693
      %vm4695 = vcmask 7168
      %4696 = vst.msk [vmem:[#allocation2] sm:$0xff] %vm4695, %v4455
      %4697 = vst.msk [vmem:[#allocation2 + $0x8] sm:$0xff] %vm4695, %v4456
      %4698 = vst.msk [vmem:[#allocation2 + $0x10] sm:$0xff] %vm4695, %v4457
      %4699 = vst.msk [vmem:[#allocation2 + $0x18] sm:$0xff] %vm4695, %v4458
      %4700 = vst.msk [vmem:[#allocation2 + $0x20] sm:$0xff] %vm4695, %v4459
      %4701 = vst.msk [vmem:[#allocation2 + $0x28] sm:$0xff] %vm4695, %v4460
      %4702 = vst.msk [vmem:[#allocation2 + $0x30] sm:$0xff] %vm4695, %v4461
      %4703 = vst.msk [vmem:[#allocation2 + $0x38] sm:$0xff] %vm4695, %v4462
      %4704 = vst.msk [vmem:[#allocation2 + $0x40] sm:$0xff] %vm4695, %v4463
      %4705 = vst.msk [vmem:[#allocation2 + $0x48] sm:$0xff] %vm4695, %v4464
      %4706 = vst.msk [vmem:[#allocation2 + $0x50] sm:$0xff] %vm4695, %v4465
      %4707 = vst.msk [vmem:[#allocation2 + $0x58] sm:$0xff] %vm4695, %v4466
      %4708 = vst.msk [vmem:[#allocation2 + $0x60] sm:$0xff] %vm4695, %v4467
      %4709 = vst.msk [vmem:[#allocation2 + $0x68] sm:$0xff] %vm4695, %v4468
      %4710 = vst.msk [vmem:[#allocation2 + $0x70] sm:$0xff] %vm4695, %v4469
      %4711 = vst.msk [vmem:[#allocation2 + $0x78] sm:$0xff] %vm4695, %v4470
      %v4712 = vld [vmem:[#allocation3] sm:$0xff]
      %v4713 = vld [vmem:[#allocation3 + $0x8] sm:$0xff]
      %v4714 = vld [vmem:[#allocation3 + $0x10] sm:$0xff]
      %v4715 = vld [vmem:[#allocation3 + $0x18] sm:$0xff]
      %v4716 = vld [vmem:[#allocation3 + $0x20] sm:$0xff]
      %v4717 = vld [vmem:[#allocation3 + $0x28] sm:$0xff]
      %v4718 = vld [vmem:[#allocation3 + $0x30] sm:$0xff]
      %v4719 = vld [vmem:[#allocation3 + $0x38] sm:$0xff]
      %v4720 = vld [vmem:[#allocation3 + $0x40] sm:$0xff]
      %v4721 = vld [vmem:[#allocation3 + $0x48] sm:$0xff]
      %v4722 = vld [vmem:[#allocation3 + $0x50] sm:$0xff]
      %v4723 = vld [vmem:[#allocation3 + $0x58] sm:$0xff]
      %v4724 = vld [vmem:[#allocation3 + $0x60] sm:$0xff]
      %v4725 = vld [vmem:[#allocation3 + $0x68] sm:$0xff]
      %v4726 = vld [vmem:[#allocation3 + $0x70] sm:$0xff]
      %v4727 = vld [vmem:[#allocation3 + $0x78] sm:$0xff]
      %v4728 = vmul.f32 %v4488, %v4712
      %v4729 = vmul.f32 %v4490, %v4713
      %v4730 = vmul.f32 %v4492, %v4714
      %v4731 = vmul.f32 %v4494, %v4715
      %v4732 = vmul.f32 %v4496, %v4716
      %v4733 = vmul.f32 %v4498, %v4717
      %v4734 = vmul.f32 %v4500, %v4718
      %v4735 = vmul.f32 %v4502, %v4719
      %v4736 = vmul.f32 %v4504, %v4720
      %v4737 = vmul.f32 %v4506, %v4721
      %v4738 = vmul.f32 %v4508, %v4722
      %v4739 = vmul.f32 %v4510, %v4723
      %v4740 = vmul.f32 %v4512, %v4724
      %v4741 = vmul.f32 %v4514, %v4725
      %v4742 = vmul.f32 %v4516, %v4726
      %v4743 = vmul.f32 %v4518, %v4727
      %v4744 = vadd.f32 %v4632, %v4634
      %4745 = vadd.xlane.f32.xlu0 %v4744
      %v4746 = vpop.xlane.xlu0 %4745
      %v4747 = vadd.f32 %v4636, %v4638
      %4748 = vadd.xlane.f32.xlu0 %v4747
      %v4749 = vpop.xlane.xlu0 %4748
      %v4750 = vadd.f32 %v4640, %v4642
      %4751 = vadd.xlane.f32.xlu0 %v4750
      %v4752 = vpop.xlane.xlu0 %4751
      %v4753 = vadd.f32 %v4644, %v4646
      %4754 = vadd.xlane.f32.xlu0 %v4753
      %v4755 = vpop.xlane.xlu0 %4754
      %v4756 = vadd.f32 %v4648, %v4650
      %4757 = vadd.xlane.f32.xlu0 %v4756
      %v4758 = vpop.xlane.xlu0 %4757
      %v4759 = vadd.f32 %v4652, %v4654
      %4760 = vadd.xlane.f32.xlu0 %v4759
      %v4761 = vpop.xlane.xlu0 %4760
      %v4762 = vadd.f32 %v4656, %v4658
      %4763 = vadd.xlane.f32.xlu0 %v4762
      %v4764 = vpop.xlane.xlu0 %4763
      %v4765 = vadd.f32 %v4660, %v4662
      %4766 = vadd.xlane.f32.xlu0 %v4765
      %v4767 = vpop.xlane.xlu0 %4766
      %v4768 = vadd.f32 %v4664, %v4666
      %4769 = vadd.xlane.f32.xlu0 %v4768
      %v4770 = vpop.xlane.xlu0 %4769
      %v4771 = vadd.f32 %v4668, %v4670
      %4772 = vadd.xlane.f32.xlu0 %v4771
      %v4773 = vpop.xlane.xlu0 %4772
      %v4774 = vadd.f32 %v4672, %v4674
      %4775 = vadd.xlane.f32.xlu0 %v4774
      %v4776 = vpop.xlane.xlu0 %4775
      %v4777 = vadd.f32 %v4676, %v4678
      %4778 = vadd.xlane.f32.xlu0 %v4777
      %v4779 = vpop.xlane.xlu0 %4778
      %v4780 = vadd.f32 %v4680, %v4682
      %4781 = vadd.xlane.f32.xlu0 %v4780
      %v4782 = vpop.xlane.xlu0 %4781
      %v4783 = vadd.f32 %v4684, %v4686
      %4784 = vadd.xlane.f32.xlu0 %v4783
      %v4785 = vpop.xlane.xlu0 %4784
      %v4786 = vadd.f32 %v4688, %v4690
      %4787 = vadd.xlane.f32.xlu0 %v4786
      %v4788 = vpop.xlane.xlu0 %4787
      %v4789 = vadd.f32 %v4692, %v4694
      %4790 = vadd.xlane.f32.xlu0 %v4789
      %v4791 = vpop.xlane.xlu0 %4790
      %v4792 = vadd.f32 %v4728, %v4746
      %v4793 = vadd.f32 %v4729, %v4749
      %v4794 = vadd.f32 %v4730, %v4752
      %v4795 = vadd.f32 %v4731, %v4755
      %v4796 = vadd.f32 %v4732, %v4758
      %v4797 = vadd.f32 %v4733, %v4761
      %v4798 = vadd.f32 %v4734, %v4764
      %v4799 = vadd.f32 %v4735, %v4767
      %v4800 = vadd.f32 %v4736, %v4770
      %v4801 = vadd.f32 %v4737, %v4773
      %v4802 = vadd.f32 %v4738, %v4776
      %v4803 = vadd.f32 %v4739, %v4779
      %v4804 = vadd.f32 %v4740, %v4782
      %v4805 = vadd.f32 %v4741, %v4785
      %v4806 = vadd.f32 %v4742, %v4788
      %v4807 = vadd.f32 %v4743, %v4791
      %4808 = vst.msk [vmem:[#allocation3] sm:$0xff] %vm4695, %v4792
      %4809 = vst.msk [vmem:[#allocation3 + $0x8] sm:$0xff] %vm4695, %v4793
      %4810 = vst.msk [vmem:[#allocation3 + $0x10] sm:$0xff] %vm4695, %v4794
      %4811 = vst.msk [vmem:[#allocation3 + $0x18] sm:$0xff] %vm4695, %v4795
      %4812 = vst.msk [vmem:[#allocation3 + $0x20] sm:$0xff] %vm4695, %v4796
      %4813 = vst.msk [vmem:[#allocation3 + $0x28] sm:$0xff] %vm4695, %v4797
      %4814 = vst.msk [vmem:[#allocation3 + $0x30] sm:$0xff] %vm4695, %v4798
      %4815 = vst.msk [vmem:[#allocation3 + $0x38] sm:$0xff] %vm4695, %v4799
      %4816 = vst.msk [vmem:[#allocation3 + $0x40] sm:$0xff] %vm4695, %v4800
      %4817 = vst.msk [vmem:[#allocation3 + $0x48] sm:$0xff] %vm4695, %v4801
      %4818 = vst.msk [vmem:[#allocation3 + $0x50] sm:$0xff] %vm4695, %v4802
      %4819 = vst.msk [vmem:[#allocation3 + $0x58] sm:$0xff] %vm4695, %v4803
      %4820 = vst.msk [vmem:[#allocation3 + $0x60] sm:$0xff] %vm4695, %v4804
      %4821 = vst.msk [vmem:[#allocation3 + $0x68] sm:$0xff] %vm4695, %v4805
      %4822 = vst.msk [vmem:[#allocation3 + $0x70] sm:$0xff] %vm4695, %v4806
      %4823 = vst.msk [vmem:[#allocation3 + $0x78] sm:$0xff] %vm4695, %v4807
      %v4824 = vld [vmem:[#allocation11] sm:$0xff]
      %v4825 = vld [vmem:[#allocation11 + $0x8] sm:$0xff]
      %v4826 = vld [vmem:[#allocation11 + $0x10] sm:$0xff]
      %v4827 = vld [vmem:[#allocation11 + $0x18] sm:$0xff]
      %v4828 = vld [vmem:[#allocation11 + $0x20] sm:$0xff]
      %v4829 = vld [vmem:[#allocation11 + $0x28] sm:$0xff]
      %v4830 = vld [vmem:[#allocation11 + $0x30] sm:$0xff]
      %v4831 = vld [vmem:[#allocation11 + $0x38] sm:$0xff]
      %v4832 = vld [vmem:[#allocation11 + $0x40] sm:$0xff]
      %v4833 = vld [vmem:[#allocation11 + $0x48] sm:$0xff]
      %v4834 = vld [vmem:[#allocation11 + $0x50] sm:$0xff]
      %v4835 = vld [vmem:[#allocation11 + $0x58] sm:$0xff]
      %v4836 = vld [vmem:[#allocation11 + $0x60] sm:$0xff]
      %v4837 = vld [vmem:[#allocation11 + $0x68] sm:$0xff]
      %v4838 = vld [vmem:[#allocation11 + $0x70] sm:$0xff]
      %v4839 = vld [vmem:[#allocation11 + $0x78] sm:$0xff]
      %v4840 = vld [vmem:[#allocation11 + $0x80] sm:$0xff]
      %v4841 = vld [vmem:[#allocation11 + $0x88] sm:$0xff]
      %v4842 = vld [vmem:[#allocation11 + $0x90] sm:$0xff]
      %v4843 = vld [vmem:[#allocation11 + $0x98] sm:$0xff]
      %v4844 = vld [vmem:[#allocation11 + $0xa0] sm:$0xff]
      %v4845 = vld [vmem:[#allocation11 + $0xa8] sm:$0xff]
      %v4846 = vld [vmem:[#allocation11 + $0xb0] sm:$0xff]
      %v4847 = vld [vmem:[#allocation11 + $0xb8] sm:$0xff]
      %v4848 = vld [vmem:[#allocation11 + $0xc0] sm:$0xff]
      %v4849 = vld [vmem:[#allocation11 + $0xc8] sm:$0xff]
      %v4850 = vld [vmem:[#allocation11 + $0xd0] sm:$0xff]
      %v4851 = vld [vmem:[#allocation11 + $0xd8] sm:$0xff]
      %v4852 = vld [vmem:[#allocation11 + $0xe0] sm:$0xff]
      %v4853 = vld [vmem:[#allocation11 + $0xe8] sm:$0xff]
      %v4854 = vld [vmem:[#allocation11 + $0xf0] sm:$0xff]
      %v4855 = vld [vmem:[#allocation11 + $0xf8] sm:$0xff]
      %v4856 = vld [vmem:[#allocation11 + $0x100] sm:$0xff]
      %v4857 = vld [vmem:[#allocation11 + $0x108] sm:$0xff]
      %v4858 = vld [vmem:[#allocation11 + $0x110] sm:$0xff]
      %v4859 = vld [vmem:[#allocation11 + $0x118] sm:$0xff]
      %v4860 = vld [vmem:[#allocation11 + $0x120] sm:$0xff]
      %v4861 = vld [vmem:[#allocation11 + $0x128] sm:$0xff]
      %v4862 = vld [vmem:[#allocation11 + $0x130] sm:$0xff]
      %v4863 = vld [vmem:[#allocation11 + $0x138] sm:$0xff]
      %v4864 = vld [vmem:[#allocation11 + $0x140] sm:$0xff]
      %v4865 = vld [vmem:[#allocation11 + $0x148] sm:$0xff]
      %v4866 = vld [vmem:[#allocation11 + $0x150] sm:$0xff]
      %v4867 = vld [vmem:[#allocation11 + $0x158] sm:$0xff]
      %v4868 = vld [vmem:[#allocation11 + $0x160] sm:$0xff]
      %v4869 = vld [vmem:[#allocation11 + $0x168] sm:$0xff]
      %v4870 = vld [vmem:[#allocation11 + $0x170] sm:$0xff]
      %v4871 = vld [vmem:[#allocation11 + $0x178] sm:$0xff]
      %v4872 = vld [vmem:[#allocation11 + $0x180] sm:$0xff]
      %v4873 = vld [vmem:[#allocation11 + $0x188] sm:$0xff]
      %v4874 = vld [vmem:[#allocation11 + $0x190] sm:$0xff]
      %v4875 = vld [vmem:[#allocation11 + $0x198] sm:$0xff]
      %v4876 = vld [vmem:[#allocation11 + $0x1a0] sm:$0xff]
      %v4877 = vld [vmem:[#allocation11 + $0x1a8] sm:$0xff]
      %v4878 = vld [vmem:[#allocation11 + $0x1b0] sm:$0xff]
      %v4879 = vld [vmem:[#allocation11 + $0x1b8] sm:$0xff]
      %v4880 = vld [vmem:[#allocation11 + $0x1c0] sm:$0xff]
      %v4881 = vld [vmem:[#allocation11 + $0x1c8] sm:$0xff]
      %v4882 = vld [vmem:[#allocation11 + $0x1d0] sm:$0xff]
      %v4883 = vld [vmem:[#allocation11 + $0x1d8] sm:$0xff]
      %v4884 = vld [vmem:[#allocation11 + $0x1e0] sm:$0xff]
      %v4885 = vld [vmem:[#allocation11 + $0x1e8] sm:$0xff]
      %v4886 = vld [vmem:[#allocation11 + $0x1f0] sm:$0xff]
      %v4887 = vld [vmem:[#allocation11 + $0x1f8] sm:$0xff]
      %v4888 = vld [vmem:[#allocation11 + $0x200] sm:$0xff]
      %v4889 = vld [vmem:[#allocation11 + $0x208] sm:$0xff]
      %v4890 = vld [vmem:[#allocation11 + $0x210] sm:$0xff]
      %v4891 = vld [vmem:[#allocation11 + $0x218] sm:$0xff]
      %v4892 = vld [vmem:[#allocation11 + $0x220] sm:$0xff]
      %v4893 = vld [vmem:[#allocation11 + $0x228] sm:$0xff]
      %v4894 = vld [vmem:[#allocation11 + $0x230] sm:$0xff]
      %v4895 = vld [vmem:[#allocation11 + $0x238] sm:$0xff]
      %v4896 = vld [vmem:[#allocation11 + $0x240] sm:$0xff]
      %v4897 = vld [vmem:[#allocation11 + $0x248] sm:$0xff]
      %v4898 = vld [vmem:[#allocation11 + $0x250] sm:$0xff]
      %v4899 = vld [vmem:[#allocation11 + $0x258] sm:$0xff]
      %v4900 = vld [vmem:[#allocation11 + $0x260] sm:$0xff]
      %v4901 = vld [vmem:[#allocation11 + $0x268] sm:$0xff]
      %v4902 = vld [vmem:[#allocation11 + $0x270] sm:$0xff]
      %v4903 = vld [vmem:[#allocation11 + $0x278] sm:$0xff]
      %v4904 = vld [vmem:[#allocation11 + $0x280] sm:$0xff]
      %v4905 = vld [vmem:[#allocation11 + $0x288] sm:$0xff]
      %v4906 = vld [vmem:[#allocation11 + $0x290] sm:$0xff]
      %v4907 = vld [vmem:[#allocation11 + $0x298] sm:$0xff]
      %v4908 = vld [vmem:[#allocation11 + $0x2a0] sm:$0xff]
      %v4909 = vld [vmem:[#allocation11 + $0x2a8] sm:$0xff]
      %v4910 = vld [vmem:[#allocation11 + $0x2b0] sm:$0xff]
      %v4911 = vld [vmem:[#allocation11 + $0x2b8] sm:$0xff]
      %v4912 = vld [vmem:[#allocation11 + $0x2c0] sm:$0xff]
      %v4913 = vld [vmem:[#allocation11 + $0x2c8] sm:$0xff]
      %v4914 = vld [vmem:[#allocation11 + $0x2d0] sm:$0xff]
      %v4915 = vld [vmem:[#allocation11 + $0x2d8] sm:$0xff]
      %v4916 = vld [vmem:[#allocation11 + $0x2e0] sm:$0xff]
      %v4917 = vld [vmem:[#allocation11 + $0x2e8] sm:$0xff]
      %v4918 = vld [vmem:[#allocation11 + $0x2f0] sm:$0xff]
      %v4919 = vld [vmem:[#allocation11 + $0x2f8] sm:$0xff]
      %v4920 = vld [vmem:[#allocation11 + $0x300] sm:$0xff]
      %v4921 = vld [vmem:[#allocation11 + $0x308] sm:$0xff]
      %v4922 = vld [vmem:[#allocation11 + $0x310] sm:$0xff]
      %v4923 = vld [vmem:[#allocation11 + $0x318] sm:$0xff]
      %v4924 = vld [vmem:[#allocation11 + $0x320] sm:$0xff]
      %v4925 = vld [vmem:[#allocation11 + $0x328] sm:$0xff]
      %v4926 = vld [vmem:[#allocation11 + $0x330] sm:$0xff]
      %v4927 = vld [vmem:[#allocation11 + $0x338] sm:$0xff]
      %v4928 = vld [vmem:[#allocation11 + $0x340] sm:$0xff]
      %v4929 = vld [vmem:[#allocation11 + $0x348] sm:$0xff]
      %v4930 = vld [vmem:[#allocation11 + $0x350] sm:$0xff]
      %v4931 = vld [vmem:[#allocation11 + $0x358] sm:$0xff]
      %v4932 = vld [vmem:[#allocation11 + $0x360] sm:$0xff]
      %v4933 = vld [vmem:[#allocation11 + $0x368] sm:$0xff]
      %v4934 = vld [vmem:[#allocation11 + $0x370] sm:$0xff]
      %v4935 = vld [vmem:[#allocation11 + $0x378] sm:$0xff]
      %v4936 = vld [vmem:[#allocation11 + $0x380] sm:$0xff]
      %v4937 = vld [vmem:[#allocation11 + $0x388] sm:$0xff]
      %v4938 = vld [vmem:[#allocation11 + $0x390] sm:$0xff]
      %v4939 = vld [vmem:[#allocation11 + $0x398] sm:$0xff]
      %v4940 = vld [vmem:[#allocation11 + $0x3a0] sm:$0xff]
      %v4941 = vld [vmem:[#allocation11 + $0x3a8] sm:$0xff]
      %v4942 = vld [vmem:[#allocation11 + $0x3b0] sm:$0xff]
      %v4943 = vld [vmem:[#allocation11 + $0x3b8] sm:$0xff]
      %v4944 = vld [vmem:[#allocation11 + $0x3c0] sm:$0xff]
      %v4945 = vld [vmem:[#allocation11 + $0x3c8] sm:$0xff]
      %v4946 = vld [vmem:[#allocation11 + $0x3d0] sm:$0xff]
      %v4947 = vld [vmem:[#allocation11 + $0x3d8] sm:$0xff]
      %v4948 = vld [vmem:[#allocation11 + $0x3e0] sm:$0xff]
      %v4949 = vld [vmem:[#allocation11 + $0x3e8] sm:$0xff]
      %v4950 = vld [vmem:[#allocation11 + $0x3f0] sm:$0xff]
      %v4951 = vld [vmem:[#allocation11 + $0x3f8] sm:$0xff]
      %v4952 = vld [vmem:[#allocation11 + $0x400] sm:$0xff]
      %v4953 = vld [vmem:[#allocation11 + $0x408] sm:$0xff]
      %v4954 = vld [vmem:[#allocation11 + $0x410] sm:$0xff]
      %v4955 = vld [vmem:[#allocation11 + $0x418] sm:$0xff]
      %v4956 = vld [vmem:[#allocation11 + $0x420] sm:$0xff]
      %v4957 = vld [vmem:[#allocation11 + $0x428] sm:$0xff]
      %v4958 = vld [vmem:[#allocation11 + $0x430] sm:$0xff]
      %v4959 = vld [vmem:[#allocation11 + $0x438] sm:$0xff]
      %v4960 = vld [vmem:[#allocation11 + $0x440] sm:$0xff]
      %v4961 = vld [vmem:[#allocation11 + $0x448] sm:$0xff]
      %v4962 = vld [vmem:[#allocation11 + $0x450] sm:$0xff]
      %v4963 = vld [vmem:[#allocation11 + $0x458] sm:$0xff]
      %v4964 = vld [vmem:[#allocation11 + $0x460] sm:$0xff]
      %v4965 = vld [vmem:[#allocation11 + $0x468] sm:$0xff]
      %v4966 = vld [vmem:[#allocation11 + $0x470] sm:$0xff]
      %v4967 = vld [vmem:[#allocation11 + $0x478] sm:$0xff]
      %v4968 = vld [vmem:[#allocation11 + $0x480] sm:$0xff]
      %v4969 = vld [vmem:[#allocation11 + $0x488] sm:$0xff]
      %v4970 = vld [vmem:[#allocation11 + $0x490] sm:$0xff]
      %v4971 = vld [vmem:[#allocation11 + $0x498] sm:$0xff]
      %v4972 = vld [vmem:[#allocation11 + $0x4a0] sm:$0xff]
      %v4973 = vld [vmem:[#allocation11 + $0x4a8] sm:$0xff]
      %v4974 = vld [vmem:[#allocation11 + $0x4b0] sm:$0xff]
      %v4975 = vld [vmem:[#allocation11 + $0x4b8] sm:$0xff]
      %v4976 = vld [vmem:[#allocation11 + $0x4c0] sm:$0xff]
      %v4977 = vld [vmem:[#allocation11 + $0x4c8] sm:$0xff]
      %v4978 = vld [vmem:[#allocation11 + $0x4d0] sm:$0xff]
      %v4979 = vld [vmem:[#allocation11 + $0x4d8] sm:$0xff]
      %v4980 = vld [vmem:[#allocation11 + $0x4e0] sm:$0xff]
      %v4981 = vld [vmem:[#allocation11 + $0x4e8] sm:$0xff]
      %v4982 = vld [vmem:[#allocation11 + $0x4f0] sm:$0xff]
      %v4983 = vld [vmem:[#allocation11 + $0x4f8] sm:$0xff]
      %v4984 = vld [vmem:[#allocation11 + $0x500] sm:$0xff]
      %v4985 = vld [vmem:[#allocation11 + $0x508] sm:$0xff]
      %v4986 = vld [vmem:[#allocation11 + $0x510] sm:$0xff]
      %v4987 = vld [vmem:[#allocation11 + $0x518] sm:$0xff]
      %v4988 = vld [vmem:[#allocation11 + $0x520] sm:$0xff]
      %v4989 = vld [vmem:[#allocation11 + $0x528] sm:$0xff]
      %v4990 = vld [vmem:[#allocation11 + $0x530] sm:$0xff]
      %v4991 = vld [vmem:[#allocation11 + $0x538] sm:$0xff]
      %v4992 = vld [vmem:[#allocation11 + $0x540] sm:$0xff]
      %v4993 = vld [vmem:[#allocation11 + $0x548] sm:$0xff]
      %v4994 = vld [vmem:[#allocation11 + $0x550] sm:$0xff]
      %v4995 = vld [vmem:[#allocation11 + $0x558] sm:$0xff]
      %v4996 = vld [vmem:[#allocation11 + $0x560] sm:$0xff]
      %v4997 = vld [vmem:[#allocation11 + $0x568] sm:$0xff]
      %v4998 = vld [vmem:[#allocation11 + $0x570] sm:$0xff]
      %v4999 = vld [vmem:[#allocation11 + $0x578] sm:$0xff]
      %v5000 = vld [vmem:[#allocation11 + $0x580] sm:$0xff]
      %v5001 = vld [vmem:[#allocation11 + $0x588] sm:$0xff]
      %v5002 = vld [vmem:[#allocation11 + $0x590] sm:$0xff]
      %v5003 = vld [vmem:[#allocation11 + $0x598] sm:$0xff]
      %v5004 = vld [vmem:[#allocation11 + $0x5a0] sm:$0xff]
      %v5005 = vld [vmem:[#allocation11 + $0x5a8] sm:$0xff]
      %v5006 = vld [vmem:[#allocation11 + $0x5b0] sm:$0xff]
      %v5007 = vld [vmem:[#allocation11 + $0x5b8] sm:$0xff]
      %v5008 = vld [vmem:[#allocation11 + $0x5c0] sm:$0xff]
      %v5009 = vld [vmem:[#allocation11 + $0x5c8] sm:$0xff]
      %v5010 = vld [vmem:[#allocation11 + $0x5d0] sm:$0xff]
      %v5011 = vld [vmem:[#allocation11 + $0x5d8] sm:$0xff]
      %v5012 = vld [vmem:[#allocation11 + $0x5e0] sm:$0xff]
      %v5013 = vld [vmem:[#allocation11 + $0x5e8] sm:$0xff]
      %v5014 = vld [vmem:[#allocation11 + $0x5f0] sm:$0xff]
      %v5015 = vld [vmem:[#allocation11 + $0x5f8] sm:$0xff]
      %v5016 = vld [vmem:[#allocation11 + $0x600] sm:$0xff]
      %v5017 = vld [vmem:[#allocation11 + $0x608] sm:$0xff]
      %v5018 = vld [vmem:[#allocation11 + $0x610] sm:$0xff]
      %v5019 = vld [vmem:[#allocation11 + $0x618] sm:$0xff]
      %v5020 = vld [vmem:[#allocation11 + $0x620] sm:$0xff]
      %v5021 = vld [vmem:[#allocation11 + $0x628] sm:$0xff]
      %v5022 = vld [vmem:[#allocation11 + $0x630] sm:$0xff]
      %v5023 = vld [vmem:[#allocation11 + $0x638] sm:$0xff]
      %v5024 = vld [vmem:[#allocation11 + $0x640] sm:$0xff]
      %v5025 = vld [vmem:[#allocation11 + $0x648] sm:$0xff]
      %v5026 = vld [vmem:[#allocation11 + $0x650] sm:$0xff]
      %v5027 = vld [vmem:[#allocation11 + $0x658] sm:$0xff]
      %v5028 = vld [vmem:[#allocation11 + $0x660] sm:$0xff]
      %v5029 = vld [vmem:[#allocation11 + $0x668] sm:$0xff]
      %v5030 = vld [vmem:[#allocation11 + $0x670] sm:$0xff]
      %v5031 = vld [vmem:[#allocation11 + $0x678] sm:$0xff]
      %v5032 = vld [vmem:[#allocation11 + $0x680] sm:$0xff]
      %v5033 = vld [vmem:[#allocation11 + $0x688] sm:$0xff]
      %v5034 = vld [vmem:[#allocation11 + $0x690] sm:$0xff]
      %v5035 = vld [vmem:[#allocation11 + $0x698] sm:$0xff]
      %v5036 = vld [vmem:[#allocation11 + $0x6a0] sm:$0xff]
      %v5037 = vld [vmem:[#allocation11 + $0x6a8] sm:$0xff]
      %v5038 = vld [vmem:[#allocation11 + $0x6b0] sm:$0xff]
      %v5039 = vld [vmem:[#allocation11 + $0x6b8] sm:$0xff]
      %v5040 = vld [vmem:[#allocation11 + $0x6c0] sm:$0xff]
      %v5041 = vld [vmem:[#allocation11 + $0x6c8] sm:$0xff]
      %v5042 = vld [vmem:[#allocation11 + $0x6d0] sm:$0xff]
      %v5043 = vld [vmem:[#allocation11 + $0x6d8] sm:$0xff]
      %v5044 = vld [vmem:[#allocation11 + $0x6e0] sm:$0xff]
      %v5045 = vld [vmem:[#allocation11 + $0x6e8] sm:$0xff]
      %v5046 = vld [vmem:[#allocation11 + $0x6f0] sm:$0xff]
      %v5047 = vld [vmem:[#allocation11 + $0x6f8] sm:$0xff]
      %v5048 = vld [vmem:[#allocation11 + $0x700] sm:$0xff]
      %v5049 = vld [vmem:[#allocation11 + $0x708] sm:$0xff]
      %v5050 = vld [vmem:[#allocation11 + $0x710] sm:$0xff]
      %v5051 = vld [vmem:[#allocation11 + $0x718] sm:$0xff]
      %v5052 = vld [vmem:[#allocation11 + $0x720] sm:$0xff]
      %v5053 = vld [vmem:[#allocation11 + $0x728] sm:$0xff]
      %v5054 = vld [vmem:[#allocation11 + $0x730] sm:$0xff]
      %v5055 = vld [vmem:[#allocation11 + $0x738] sm:$0xff]
      %v5056 = vld [vmem:[#allocation11 + $0x740] sm:$0xff]
      %v5057 = vld [vmem:[#allocation11 + $0x748] sm:$0xff]
      %v5058 = vld [vmem:[#allocation11 + $0x750] sm:$0xff]
      %v5059 = vld [vmem:[#allocation11 + $0x758] sm:$0xff]
      %v5060 = vld [vmem:[#allocation11 + $0x760] sm:$0xff]
      %v5061 = vld [vmem:[#allocation11 + $0x768] sm:$0xff]
      %v5062 = vld [vmem:[#allocation11 + $0x770] sm:$0xff]
      %v5063 = vld [vmem:[#allocation11 + $0x778] sm:$0xff]
      %v5064 = vld [vmem:[#allocation11 + $0x780] sm:$0xff]
      %v5065 = vld [vmem:[#allocation11 + $0x788] sm:$0xff]
      %v5066 = vld [vmem:[#allocation11 + $0x790] sm:$0xff]
      %v5067 = vld [vmem:[#allocation11 + $0x798] sm:$0xff]
      %v5068 = vld [vmem:[#allocation11 + $0x7a0] sm:$0xff]
      %v5069 = vld [vmem:[#allocation11 + $0x7a8] sm:$0xff]
      %v5070 = vld [vmem:[#allocation11 + $0x7b0] sm:$0xff]
      %v5071 = vld [vmem:[#allocation11 + $0x7b8] sm:$0xff]
      %v5072 = vld [vmem:[#allocation11 + $0x7c0] sm:$0xff]
      %v5073 = vld [vmem:[#allocation11 + $0x7c8] sm:$0xff]
      %v5074 = vld [vmem:[#allocation11 + $0x7d0] sm:$0xff]
      %v5075 = vld [vmem:[#allocation11 + $0x7d8] sm:$0xff]
      %v5076 = vld [vmem:[#allocation11 + $0x7e0] sm:$0xff]
      %v5077 = vld [vmem:[#allocation11 + $0x7e8] sm:$0xff]
      %v5078 = vld [vmem:[#allocation11 + $0x7f0] sm:$0xff]
      %v5079 = vld [vmem:[#allocation11 + $0x7f8] sm:$0xff]
      %5081 = vset.pattern.permute.xlu0 0
      %5082 = vperm.xlu0 %5081, %v4488
      %v5083 = vpop.permute.xlu0 %5082
      %5086 = vset.pattern.permute.xlu0 0
      %5087 = vperm.xlu0 %5086, %v4490
      %v5088 = vpop.permute.xlu0 %5087
      %5091 = vset.pattern.permute.xlu0 0
      %5092 = vperm.xlu0 %5091, %v4492
      %v5093 = vpop.permute.xlu0 %5092
      %5096 = vset.pattern.permute.xlu0 0
      %5097 = vperm.xlu0 %5096, %v4494
      %v5098 = vpop.permute.xlu0 %5097
      %5101 = vset.pattern.permute.xlu0 0
      %5102 = vperm.xlu0 %5101, %v4496
      %v5103 = vpop.permute.xlu0 %5102
      %5106 = vset.pattern.permute.xlu0 0
      %5107 = vperm.xlu0 %5106, %v4498
      %v5108 = vpop.permute.xlu0 %5107
      %5111 = vset.pattern.permute.xlu0 0
      %5112 = vperm.xlu0 %5111, %v4500
      %v5113 = vpop.permute.xlu0 %5112
      %5116 = vset.pattern.permute.xlu0 0
      %5117 = vperm.xlu0 %5116, %v4502
      %v5118 = vpop.permute.xlu0 %5117
      %5121 = vset.pattern.permute.xlu0 0
      %5122 = vperm.xlu0 %5121, %v4504
      %v5123 = vpop.permute.xlu0 %5122
      %5126 = vset.pattern.permute.xlu0 0
      %5127 = vperm.xlu0 %5126, %v4506
      %v5128 = vpop.permute.xlu0 %5127
      %5131 = vset.pattern.permute.xlu0 0
      %5132 = vperm.xlu0 %5131, %v4508
      %v5133 = vpop.permute.xlu0 %5132
      %5136 = vset.pattern.permute.xlu0 0
      %5137 = vperm.xlu0 %5136, %v4510
      %v5138 = vpop.permute.xlu0 %5137
      %5141 = vset.pattern.permute.xlu0 0
      %5142 = vperm.xlu0 %5141, %v4512
      %v5143 = vpop.permute.xlu0 %5142
      %5146 = vset.pattern.permute.xlu0 0
      %5147 = vperm.xlu0 %5146, %v4514
      %v5148 = vpop.permute.xlu0 %5147
      %5151 = vset.pattern.permute.xlu0 0
      %5152 = vperm.xlu0 %5151, %v4516
      %v5153 = vpop.permute.xlu0 %5152
      %5156 = vset.pattern.permute.xlu0 0
      %5157 = vperm.xlu0 %5156, %v4518
      %v5158 = vpop.permute.xlu0 %5157
      %v5160 = vmul.f32 %v5083, %v4824
      %v5161 = vmul.f32 %v5083, %v4825
      %v5162 = vmul.f32 %v5083, %v4826
      %v5163 = vmul.f32 %v5083, %v4827
      %v5164 = vmul.f32 %v5083, %v4828
      %v5165 = vmul.f32 %v5083, %v4829
      %v5166 = vmul.f32 %v5083, %v4830
      %v5167 = vmul.f32 %v5083, %v4831
      %v5168 = vmul.f32 %v5083, %v4832
      %v5169 = vmul.f32 %v5083, %v4833
      %v5170 = vmul.f32 %v5083, %v4834
      %v5171 = vmul.f32 %v5083, %v4835
      %v5172 = vmul.f32 %v5083, %v4836
      %v5173 = vmul.f32 %v5083, %v4837
      %v5174 = vmul.f32 %v5083, %v4838
      %v5175 = vmul.f32 %v5083, %v4839
      %v5176 = vmul.f32 %v5088, %v4840
      %v5177 = vmul.f32 %v5088, %v4841
      %v5178 = vmul.f32 %v5088, %v4842
      %v5179 = vmul.f32 %v5088, %v4843
      %v5180 = vmul.f32 %v5088, %v4844
      %v5181 = vmul.f32 %v5088, %v4845
      %v5182 = vmul.f32 %v5088, %v4846
      %v5183 = vmul.f32 %v5088, %v4847
      %v5184 = vmul.f32 %v5088, %v4848
      %v5185 = vmul.f32 %v5088, %v4849
      %v5186 = vmul.f32 %v5088, %v4850
      %v5187 = vmul.f32 %v5088, %v4851
      %v5188 = vmul.f32 %v5088, %v4852
      %v5189 = vmul.f32 %v5088, %v4853
      %v5190 = vmul.f32 %v5088, %v4854
      %v5191 = vmul.f32 %v5088, %v4855
      %v5192 = vmul.f32 %v5093, %v4856
      %v5193 = vmul.f32 %v5093, %v4857
      %v5194 = vmul.f32 %v5093, %v4858
      %v5195 = vmul.f32 %v5093, %v4859
      %v5196 = vmul.f32 %v5093, %v4860
      %v5197 = vmul.f32 %v5093, %v4861
      %v5198 = vmul.f32 %v5093, %v4862
      %v5199 = vmul.f32 %v5093, %v4863
      %v5200 = vmul.f32 %v5093, %v4864
      %v5201 = vmul.f32 %v5093, %v4865
      %v5202 = vmul.f32 %v5093, %v4866
      %v5203 = vmul.f32 %v5093, %v4867
      %v5204 = vmul.f32 %v5093, %v4868
      %v5205 = vmul.f32 %v5093, %v4869
      %v5206 = vmul.f32 %v5093, %v4870
      %v5207 = vmul.f32 %v5093, %v4871
      %v5208 = vmul.f32 %v5098, %v4872
      %v5209 = vmul.f32 %v5098, %v4873
      %v5210 = vmul.f32 %v5098, %v4874
      %v5211 = vmul.f32 %v5098, %v4875
      %v5212 = vmul.f32 %v5098, %v4876
      %v5213 = vmul.f32 %v5098, %v4877
      %v5214 = vmul.f32 %v5098, %v4878
      %v5215 = vmul.f32 %v5098, %v4879
      %v5216 = vmul.f32 %v5098, %v4880
      %v5217 = vmul.f32 %v5098, %v4881
      %v5218 = vmul.f32 %v5098, %v4882
      %v5219 = vmul.f32 %v5098, %v4883
      %v5220 = vmul.f32 %v5098, %v4884
      %v5221 = vmul.f32 %v5098, %v4885
      %v5222 = vmul.f32 %v5098, %v4886
      %v5223 = vmul.f32 %v5098, %v4887
      %v5224 = vmul.f32 %v5103, %v4888
      %v5225 = vmul.f32 %v5103, %v4889
      %v5226 = vmul.f32 %v5103, %v4890
      %v5227 = vmul.f32 %v5103, %v4891
      %v5228 = vmul.f32 %v5103, %v4892
      %v5229 = vmul.f32 %v5103, %v4893
      %v5230 = vmul.f32 %v5103, %v4894
      %v5231 = vmul.f32 %v5103, %v4895
      %v5232 = vmul.f32 %v5103, %v4896
      %v5233 = vmul.f32 %v5103, %v4897
      %v5234 = vmul.f32 %v5103, %v4898
      %v5235 = vmul.f32 %v5103, %v4899
      %v5236 = vmul.f32 %v5103, %v4900
      %v5237 = vmul.f32 %v5103, %v4901
      %v5238 = vmul.f32 %v5103, %v4902
      %v5239 = vmul.f32 %v5103, %v4903
      %v5240 = vmul.f32 %v5108, %v4904
      %v5241 = vmul.f32 %v5108, %v4905
      %v5242 = vmul.f32 %v5108, %v4906
      %v5243 = vmul.f32 %v5108, %v4907
      %v5244 = vmul.f32 %v5108, %v4908
      %v5245 = vmul.f32 %v5108, %v4909
      %v5246 = vmul.f32 %v5108, %v4910
      %v5247 = vmul.f32 %v5108, %v4911
      %v5248 = vmul.f32 %v5108, %v4912
      %v5249 = vmul.f32 %v5108, %v4913
      %v5250 = vmul.f32 %v5108, %v4914
      %v5251 = vmul.f32 %v5108, %v4915
      %v5252 = vmul.f32 %v5108, %v4916
      %v5253 = vmul.f32 %v5108, %v4917
      %v5254 = vmul.f32 %v5108, %v4918
      %v5255 = vmul.f32 %v5108, %v4919
      %v5256 = vmul.f32 %v5113, %v4920
      %v5257 = vmul.f32 %v5113, %v4921
      %v5258 = vmul.f32 %v5113, %v4922
      %v5259 = vmul.f32 %v5113, %v4923
      %v5260 = vmul.f32 %v5113, %v4924
      %v5261 = vmul.f32 %v5113, %v4925
      %v5262 = vmul.f32 %v5113, %v4926
      %v5263 = vmul.f32 %v5113, %v4927
      %v5264 = vmul.f32 %v5113, %v4928
      %v5265 = vmul.f32 %v5113, %v4929
      %v5266 = vmul.f32 %v5113, %v4930
      %v5267 = vmul.f32 %v5113, %v4931
      %v5268 = vmul.f32 %v5113, %v4932
      %v5269 = vmul.f32 %v5113, %v4933
      %v5270 = vmul.f32 %v5113, %v4934
      %v5271 = vmul.f32 %v5113, %v4935
      %v5272 = vmul.f32 %v5118, %v4936
      %v5273 = vmul.f32 %v5118, %v4937
      %v5274 = vmul.f32 %v5118, %v4938
      %v5275 = vmul.f32 %v5118, %v4939
      %v5276 = vmul.f32 %v5118, %v4940
      %v5277 = vmul.f32 %v5118, %v4941
      %v5278 = vmul.f32 %v5118, %v4942
      %v5279 = vmul.f32 %v5118, %v4943
      %v5280 = vmul.f32 %v5118, %v4944
      %v5281 = vmul.f32 %v5118, %v4945
      %v5282 = vmul.f32 %v5118, %v4946
      %v5283 = vmul.f32 %v5118, %v4947
      %v5284 = vmul.f32 %v5118, %v4948
      %v5285 = vmul.f32 %v5118, %v4949
      %v5286 = vmul.f32 %v5118, %v4950
      %v5287 = vmul.f32 %v5118, %v4951
      %v5288 = vmul.f32 %v5123, %v4952
      %v5289 = vmul.f32 %v5123, %v4953
      %v5290 = vmul.f32 %v5123, %v4954
      %v5291 = vmul.f32 %v5123, %v4955
      %v5292 = vmul.f32 %v5123, %v4956
      %v5293 = vmul.f32 %v5123, %v4957
      %v5294 = vmul.f32 %v5123, %v4958
      %v5295 = vmul.f32 %v5123, %v4959
      %v5296 = vmul.f32 %v5123, %v4960
      %v5297 = vmul.f32 %v5123, %v4961
      %v5298 = vmul.f32 %v5123, %v4962
      %v5299 = vmul.f32 %v5123, %v4963
      %v5300 = vmul.f32 %v5123, %v4964
      %v5301 = vmul.f32 %v5123, %v4965
      %v5302 = vmul.f32 %v5123, %v4966
      %v5303 = vmul.f32 %v5123, %v4967
      %v5304 = vmul.f32 %v5128, %v4968
      %v5305 = vmul.f32 %v5128, %v4969
      %v5306 = vmul.f32 %v5128, %v4970
      %v5307 = vmul.f32 %v5128, %v4971
      %v5308 = vmul.f32 %v5128, %v4972
      %v5309 = vmul.f32 %v5128, %v4973
      %v5310 = vmul.f32 %v5128, %v4974
      %v5311 = vmul.f32 %v5128, %v4975
      %v5312 = vmul.f32 %v5128, %v4976
      %v5313 = vmul.f32 %v5128, %v4977
      %v5314 = vmul.f32 %v5128, %v4978
      %v5315 = vmul.f32 %v5128, %v4979
      %v5316 = vmul.f32 %v5128, %v4980
      %v5317 = vmul.f32 %v5128, %v4981
      %v5318 = vmul.f32 %v5128, %v4982
      %v5319 = vmul.f32 %v5128, %v4983
      %v5320 = vmul.f32 %v5133, %v4984
      %v5321 = vmul.f32 %v5133, %v4985
      %v5322 = vmul.f32 %v5133, %v4986
      %v5323 = vmul.f32 %v5133, %v4987
      %v5324 = vmul.f32 %v5133, %v4988
      %v5325 = vmul.f32 %v5133, %v4989
      %v5326 = vmul.f32 %v5133, %v4990
      %v5327 = vmul.f32 %v5133, %v4991
      %v5328 = vmul.f32 %v5133, %v4992
      %v5329 = vmul.f32 %v5133, %v4993
      %v5330 = vmul.f32 %v5133, %v4994
      %v5331 = vmul.f32 %v5133, %v4995
      %v5332 = vmul.f32 %v5133, %v4996
      %v5333 = vmul.f32 %v5133, %v4997
      %v5334 = vmul.f32 %v5133, %v4998
      %v5335 = vmul.f32 %v5133, %v4999
      %v5336 = vmul.f32 %v5138, %v5000
      %v5337 = vmul.f32 %v5138, %v5001
      %v5338 = vmul.f32 %v5138, %v5002
      %v5339 = vmul.f32 %v5138, %v5003
      %v5340 = vmul.f32 %v5138, %v5004
      %v5341 = vmul.f32 %v5138, %v5005
      %v5342 = vmul.f32 %v5138, %v5006
      %v5343 = vmul.f32 %v5138, %v5007
      %v5344 = vmul.f32 %v5138, %v5008
      %v5345 = vmul.f32 %v5138, %v5009
      %v5346 = vmul.f32 %v5138, %v5010
      %v5347 = vmul.f32 %v5138, %v5011
      %v5348 = vmul.f32 %v5138, %v5012
      %v5349 = vmul.f32 %v5138, %v5013
      %v5350 = vmul.f32 %v5138, %v5014
      %v5351 = vmul.f32 %v5138, %v5015
      %v5352 = vmul.f32 %v5143, %v5016
      %v5353 = vmul.f32 %v5143, %v5017
      %v5354 = vmul.f32 %v5143, %v5018
      %v5355 = vmul.f32 %v5143, %v5019
      %v5356 = vmul.f32 %v5143, %v5020
      %v5357 = vmul.f32 %v5143, %v5021
      %v5358 = vmul.f32 %v5143, %v5022
      %v5359 = vmul.f32 %v5143, %v5023
      %v5360 = vmul.f32 %v5143, %v5024
      %v5361 = vmul.f32 %v5143, %v5025
      %v5362 = vmul.f32 %v5143, %v5026
      %v5363 = vmul.f32 %v5143, %v5027
      %v5364 = vmul.f32 %v5143, %v5028
      %v5365 = vmul.f32 %v5143, %v5029
      %v5366 = vmul.f32 %v5143, %v5030
      %v5367 = vmul.f32 %v5143, %v5031
      %v5368 = vmul.f32 %v5148, %v5032
      %v5369 = vmul.f32 %v5148, %v5033
      %v5370 = vmul.f32 %v5148, %v5034
      %v5371 = vmul.f32 %v5148, %v5035
      %v5372 = vmul.f32 %v5148, %v5036
      %v5373 = vmul.f32 %v5148, %v5037
      %v5374 = vmul.f32 %v5148, %v5038
      %v5375 = vmul.f32 %v5148, %v5039
      %v5376 = vmul.f32 %v5148, %v5040
      %v5377 = vmul.f32 %v5148, %v5041
      %v5378 = vmul.f32 %v5148, %v5042
      %v5379 = vmul.f32 %v5148, %v5043
      %v5380 = vmul.f32 %v5148, %v5044
      %v5381 = vmul.f32 %v5148, %v5045
      %v5382 = vmul.f32 %v5148, %v5046
      %v5383 = vmul.f32 %v5148, %v5047
      %v5384 = vmul.f32 %v5153, %v5048
      %v5385 = vmul.f32 %v5153, %v5049
      %v5386 = vmul.f32 %v5153, %v5050
      %v5387 = vmul.f32 %v5153, %v5051
      %v5388 = vmul.f32 %v5153, %v5052
      %v5389 = vmul.f32 %v5153, %v5053
      %v5390 = vmul.f32 %v5153, %v5054
      %v5391 = vmul.f32 %v5153, %v5055
      %v5392 = vmul.f32 %v5153, %v5056
      %v5393 = vmul.f32 %v5153, %v5057
      %v5394 = vmul.f32 %v5153, %v5058
      %v5395 = vmul.f32 %v5153, %v5059
      %v5396 = vmul.f32 %v5153, %v5060
      %v5397 = vmul.f32 %v5153, %v5061
      %v5398 = vmul.f32 %v5153, %v5062
      %v5399 = vmul.f32 %v5153, %v5063
      %v5400 = vmul.f32 %v5158, %v5064
      %v5401 = vmul.f32 %v5158, %v5065
      %v5402 = vmul.f32 %v5158, %v5066
      %v5403 = vmul.f32 %v5158, %v5067
      %v5404 = vmul.f32 %v5158, %v5068
      %v5405 = vmul.f32 %v5158, %v5069
      %v5406 = vmul.f32 %v5158, %v5070
      %v5407 = vmul.f32 %v5158, %v5071
      %v5408 = vmul.f32 %v5158, %v5072
      %v5409 = vmul.f32 %v5158, %v5073
      %v5410 = vmul.f32 %v5158, %v5074
      %v5411 = vmul.f32 %v5158, %v5075
      %v5412 = vmul.f32 %v5158, %v5076
      %v5413 = vmul.f32 %v5158, %v5077
      %v5414 = vmul.f32 %v5158, %v5078
      %v5415 = vmul.f32 %v5158, %v5079
      %v5416 = vld [vmem:[#allocation10] sm:$0xff]
      %v5417 = vld [vmem:[#allocation10 + $0x8] sm:$0xff]
      %v5418 = vld [vmem:[#allocation10 + $0x10] sm:$0xff]
      %v5419 = vld [vmem:[#allocation10 + $0x18] sm:$0xff]
      %v5420 = vld [vmem:[#allocation10 + $0x20] sm:$0xff]
      %v5421 = vld [vmem:[#allocation10 + $0x28] sm:$0xff]
      %v5422 = vld [vmem:[#allocation10 + $0x30] sm:$0xff]
      %v5423 = vld [vmem:[#allocation10 + $0x38] sm:$0xff]
      %v5424 = vld [vmem:[#allocation10 + $0x40] sm:$0xff]
      %v5425 = vld [vmem:[#allocation10 + $0x48] sm:$0xff]
      %v5426 = vld [vmem:[#allocation10 + $0x50] sm:$0xff]
      %v5427 = vld [vmem:[#allocation10 + $0x58] sm:$0xff]
      %v5428 = vld [vmem:[#allocation10 + $0x60] sm:$0xff]
      %v5429 = vld [vmem:[#allocation10 + $0x68] sm:$0xff]
      %v5430 = vld [vmem:[#allocation10 + $0x70] sm:$0xff]
      %v5431 = vld [vmem:[#allocation10 + $0x78] sm:$0xff]
      %v5432 = vld [vmem:[#allocation10 + $0x80] sm:$0xff]
      %v5433 = vld [vmem:[#allocation10 + $0x88] sm:$0xff]
      %v5434 = vld [vmem:[#allocation10 + $0x90] sm:$0xff]
      %v5435 = vld [vmem:[#allocation10 + $0x98] sm:$0xff]
      %v5436 = vld [vmem:[#allocation10 + $0xa0] sm:$0xff]
      %v5437 = vld [vmem:[#allocation10 + $0xa8] sm:$0xff]
      %v5438 = vld [vmem:[#allocation10 + $0xb0] sm:$0xff]
      %v5439 = vld [vmem:[#allocation10 + $0xb8] sm:$0xff]
      %v5440 = vld [vmem:[#allocation10 + $0xc0] sm:$0xff]
      %v5441 = vld [vmem:[#allocation10 + $0xc8] sm:$0xff]
      %v5442 = vld [vmem:[#allocation10 + $0xd0] sm:$0xff]
      %v5443 = vld [vmem:[#allocation10 + $0xd8] sm:$0xff]
      %v5444 = vld [vmem:[#allocation10 + $0xe0] sm:$0xff]
      %v5445 = vld [vmem:[#allocation10 + $0xe8] sm:$0xff]
      %v5446 = vld [vmem:[#allocation10 + $0xf0] sm:$0xff]
      %v5447 = vld [vmem:[#allocation10 + $0xf8] sm:$0xff]
      %v5448 = vld [vmem:[#allocation10 + $0x100] sm:$0xff]
      %v5449 = vld [vmem:[#allocation10 + $0x108] sm:$0xff]
      %v5450 = vld [vmem:[#allocation10 + $0x110] sm:$0xff]
      %v5451 = vld [vmem:[#allocation10 + $0x118] sm:$0xff]
      %v5452 = vld [vmem:[#allocation10 + $0x120] sm:$0xff]
      %v5453 = vld [vmem:[#allocation10 + $0x128] sm:$0xff]
      %v5454 = vld [vmem:[#allocation10 + $0x130] sm:$0xff]
      %v5455 = vld [vmem:[#allocation10 + $0x138] sm:$0xff]
      %v5456 = vld [vmem:[#allocation10 + $0x140] sm:$0xff]
      %v5457 = vld [vmem:[#allocation10 + $0x148] sm:$0xff]
      %v5458 = vld [vmem:[#allocation10 + $0x150] sm:$0xff]
      %v5459 = vld [vmem:[#allocation10 + $0x158] sm:$0xff]
      %v5460 = vld [vmem:[#allocation10 + $0x160] sm:$0xff]
      %v5461 = vld [vmem:[#allocation10 + $0x168] sm:$0xff]
      %v5462 = vld [vmem:[#allocation10 + $0x170] sm:$0xff]
      %v5463 = vld [vmem:[#allocation10 + $0x178] sm:$0xff]
      %v5464 = vld [vmem:[#allocation10 + $0x180] sm:$0xff]
      %v5465 = vld [vmem:[#allocation10 + $0x188] sm:$0xff]
      %v5466 = vld [vmem:[#allocation10 + $0x190] sm:$0xff]
      %v5467 = vld [vmem:[#allocation10 + $0x198] sm:$0xff]
      %v5468 = vld [vmem:[#allocation10 + $0x1a0] sm:$0xff]
      %v5469 = vld [vmem:[#allocation10 + $0x1a8] sm:$0xff]
      %v5470 = vld [vmem:[#allocation10 + $0x1b0] sm:$0xff]
      %v5471 = vld [vmem:[#allocation10 + $0x1b8] sm:$0xff]
      %v5472 = vld [vmem:[#allocation10 + $0x1c0] sm:$0xff]
      %v5473 = vld [vmem:[#allocation10 + $0x1c8] sm:$0xff]
      %v5474 = vld [vmem:[#allocation10 + $0x1d0] sm:$0xff]
      %v5475 = vld [vmem:[#allocation10 + $0x1d8] sm:$0xff]
      %v5476 = vld [vmem:[#allocation10 + $0x1e0] sm:$0xff]
      %v5477 = vld [vmem:[#allocation10 + $0x1e8] sm:$0xff]
      %v5478 = vld [vmem:[#allocation10 + $0x1f0] sm:$0xff]
      %v5479 = vld [vmem:[#allocation10 + $0x1f8] sm:$0xff]
      %v5480 = vld [vmem:[#allocation10 + $0x200] sm:$0xff]
      %v5481 = vld [vmem:[#allocation10 + $0x208] sm:$0xff]
      %v5482 = vld [vmem:[#allocation10 + $0x210] sm:$0xff]
      %v5483 = vld [vmem:[#allocation10 + $0x218] sm:$0xff]
      %v5484 = vld [vmem:[#allocation10 + $0x220] sm:$0xff]
      %v5485 = vld [vmem:[#allocation10 + $0x228] sm:$0xff]
      %v5486 = vld [vmem:[#allocation10 + $0x230] sm:$0xff]
      %v5487 = vld [vmem:[#allocation10 + $0x238] sm:$0xff]
      %v5488 = vld [vmem:[#allocation10 + $0x240] sm:$0xff]
      %v5489 = vld [vmem:[#allocation10 + $0x248] sm:$0xff]
      %v5490 = vld [vmem:[#allocation10 + $0x250] sm:$0xff]
      %v5491 = vld [vmem:[#allocation10 + $0x258] sm:$0xff]
      %v5492 = vld [vmem:[#allocation10 + $0x260] sm:$0xff]
      %v5493 = vld [vmem:[#allocation10 + $0x268] sm:$0xff]
      %v5494 = vld [vmem:[#allocation10 + $0x270] sm:$0xff]
      %v5495 = vld [vmem:[#allocation10 + $0x278] sm:$0xff]
      %v5496 = vld [vmem:[#allocation10 + $0x280] sm:$0xff]
      %v5497 = vld [vmem:[#allocation10 + $0x288] sm:$0xff]
      %v5498 = vld [vmem:[#allocation10 + $0x290] sm:$0xff]
      %v5499 = vld [vmem:[#allocation10 + $0x298] sm:$0xff]
      %v5500 = vld [vmem:[#allocation10 + $0x2a0] sm:$0xff]
      %v5501 = vld [vmem:[#allocation10 + $0x2a8] sm:$0xff]
      %v5502 = vld [vmem:[#allocation10 + $0x2b0] sm:$0xff]
      %v5503 = vld [vmem:[#allocation10 + $0x2b8] sm:$0xff]
      %v5504 = vld [vmem:[#allocation10 + $0x2c0] sm:$0xff]
      %v5505 = vld [vmem:[#allocation10 + $0x2c8] sm:$0xff]
      %v5506 = vld [vmem:[#allocation10 + $0x2d0] sm:$0xff]
      %v5507 = vld [vmem:[#allocation10 + $0x2d8] sm:$0xff]
      %v5508 = vld [vmem:[#allocation10 + $0x2e0] sm:$0xff]
      %v5509 = vld [vmem:[#allocation10 + $0x2e8] sm:$0xff]
      %v5510 = vld [vmem:[#allocation10 + $0x2f0] sm:$0xff]
      %v5511 = vld [vmem:[#allocation10 + $0x2f8] sm:$0xff]
      %v5512 = vld [vmem:[#allocation10 + $0x300] sm:$0xff]
      %v5513 = vld [vmem:[#allocation10 + $0x308] sm:$0xff]
      %v5514 = vld [vmem:[#allocation10 + $0x310] sm:$0xff]
      %v5515 = vld [vmem:[#allocation10 + $0x318] sm:$0xff]
      %v5516 = vld [vmem:[#allocation10 + $0x320] sm:$0xff]
      %v5517 = vld [vmem:[#allocation10 + $0x328] sm:$0xff]
      %v5518 = vld [vmem:[#allocation10 + $0x330] sm:$0xff]
      %v5519 = vld [vmem:[#allocation10 + $0x338] sm:$0xff]
      %v5520 = vld [vmem:[#allocation10 + $0x340] sm:$0xff]
      %v5521 = vld [vmem:[#allocation10 + $0x348] sm:$0xff]
      %v5522 = vld [vmem:[#allocation10 + $0x350] sm:$0xff]
      %v5523 = vld [vmem:[#allocation10 + $0x358] sm:$0xff]
      %v5524 = vld [vmem:[#allocation10 + $0x360] sm:$0xff]
      %v5525 = vld [vmem:[#allocation10 + $0x368] sm:$0xff]
      %v5526 = vld [vmem:[#allocation10 + $0x370] sm:$0xff]
      %v5527 = vld [vmem:[#allocation10 + $0x378] sm:$0xff]
      %v5528 = vld [vmem:[#allocation10 + $0x380] sm:$0xff]
      %v5529 = vld [vmem:[#allocation10 + $0x388] sm:$0xff]
      %v5530 = vld [vmem:[#allocation10 + $0x390] sm:$0xff]
      %v5531 = vld [vmem:[#allocation10 + $0x398] sm:$0xff]
      %v5532 = vld [vmem:[#allocation10 + $0x3a0] sm:$0xff]
      %v5533 = vld [vmem:[#allocation10 + $0x3a8] sm:$0xff]
      %v5534 = vld [vmem:[#allocation10 + $0x3b0] sm:$0xff]
      %v5535 = vld [vmem:[#allocation10 + $0x3b8] sm:$0xff]
      %v5536 = vld [vmem:[#allocation10 + $0x3c0] sm:$0xff]
      %v5537 = vld [vmem:[#allocation10 + $0x3c8] sm:$0xff]
      %v5538 = vld [vmem:[#allocation10 + $0x3d0] sm:$0xff]
      %v5539 = vld [vmem:[#allocation10 + $0x3d8] sm:$0xff]
      %v5540 = vld [vmem:[#allocation10 + $0x3e0] sm:$0xff]
      %v5541 = vld [vmem:[#allocation10 + $0x3e8] sm:$0xff]
      %v5542 = vld [vmem:[#allocation10 + $0x3f0] sm:$0xff]
      %v5543 = vld [vmem:[#allocation10 + $0x3f8] sm:$0xff]
      %v5544 = vld [vmem:[#allocation10 + $0x400] sm:$0xff]
      %v5545 = vld [vmem:[#allocation10 + $0x408] sm:$0xff]
      %v5546 = vld [vmem:[#allocation10 + $0x410] sm:$0xff]
      %v5547 = vld [vmem:[#allocation10 + $0x418] sm:$0xff]
      %v5548 = vld [vmem:[#allocation10 + $0x420] sm:$0xff]
      %v5549 = vld [vmem:[#allocation10 + $0x428] sm:$0xff]
      %v5550 = vld [vmem:[#allocation10 + $0x430] sm:$0xff]
      %v5551 = vld [vmem:[#allocation10 + $0x438] sm:$0xff]
      %v5552 = vld [vmem:[#allocation10 + $0x440] sm:$0xff]
      %v5553 = vld [vmem:[#allocation10 + $0x448] sm:$0xff]
      %v5554 = vld [vmem:[#allocation10 + $0x450] sm:$0xff]
      %v5555 = vld [vmem:[#allocation10 + $0x458] sm:$0xff]
      %v5556 = vld [vmem:[#allocation10 + $0x460] sm:$0xff]
      %v5557 = vld [vmem:[#allocation10 + $0x468] sm:$0xff]
      %v5558 = vld [vmem:[#allocation10 + $0x470] sm:$0xff]
      %v5559 = vld [vmem:[#allocation10 + $0x478] sm:$0xff]
      %v5560 = vld [vmem:[#allocation10 + $0x480] sm:$0xff]
      %v5561 = vld [vmem:[#allocation10 + $0x488] sm:$0xff]
      %v5562 = vld [vmem:[#allocation10 + $0x490] sm:$0xff]
      %v5563 = vld [vmem:[#allocation10 + $0x498] sm:$0xff]
      %v5564 = vld [vmem:[#allocation10 + $0x4a0] sm:$0xff]
      %v5565 = vld [vmem:[#allocation10 + $0x4a8] sm:$0xff]
      %v5566 = vld [vmem:[#allocation10 + $0x4b0] sm:$0xff]
      %v5567 = vld [vmem:[#allocation10 + $0x4b8] sm:$0xff]
      %v5568 = vld [vmem:[#allocation10 + $0x4c0] sm:$0xff]
      %v5569 = vld [vmem:[#allocation10 + $0x4c8] sm:$0xff]
      %v5570 = vld [vmem:[#allocation10 + $0x4d0] sm:$0xff]
      %v5571 = vld [vmem:[#allocation10 + $0x4d8] sm:$0xff]
      %v5572 = vld [vmem:[#allocation10 + $0x4e0] sm:$0xff]
      %v5573 = vld [vmem:[#allocation10 + $0x4e8] sm:$0xff]
      %v5574 = vld [vmem:[#allocation10 + $0x4f0] sm:$0xff]
      %v5575 = vld [vmem:[#allocation10 + $0x4f8] sm:$0xff]
      %v5576 = vld [vmem:[#allocation10 + $0x500] sm:$0xff]
      %v5577 = vld [vmem:[#allocation10 + $0x508] sm:$0xff]
      %v5578 = vld [vmem:[#allocation10 + $0x510] sm:$0xff]
      %v5579 = vld [vmem:[#allocation10 + $0x518] sm:$0xff]
      %v5580 = vld [vmem:[#allocation10 + $0x520] sm:$0xff]
      %v5581 = vld [vmem:[#allocation10 + $0x528] sm:$0xff]
      %v5582 = vld [vmem:[#allocation10 + $0x530] sm:$0xff]
      %v5583 = vld [vmem:[#allocation10 + $0x538] sm:$0xff]
      %v5584 = vld [vmem:[#allocation10 + $0x540] sm:$0xff]
      %v5585 = vld [vmem:[#allocation10 + $0x548] sm:$0xff]
      %v5586 = vld [vmem:[#allocation10 + $0x550] sm:$0xff]
      %v5587 = vld [vmem:[#allocation10 + $0x558] sm:$0xff]
      %v5588 = vld [vmem:[#allocation10 + $0x560] sm:$0xff]
      %v5589 = vld [vmem:[#allocation10 + $0x568] sm:$0xff]
      %v5590 = vld [vmem:[#allocation10 + $0x570] sm:$0xff]
      %v5591 = vld [vmem:[#allocation10 + $0x578] sm:$0xff]
      %v5592 = vld [vmem:[#allocation10 + $0x580] sm:$0xff]
      %v5593 = vld [vmem:[#allocation10 + $0x588] sm:$0xff]
      %v5594 = vld [vmem:[#allocation10 + $0x590] sm:$0xff]
      %v5595 = vld [vmem:[#allocation10 + $0x598] sm:$0xff]
      %v5596 = vld [vmem:[#allocation10 + $0x5a0] sm:$0xff]
      %v5597 = vld [vmem:[#allocation10 + $0x5a8] sm:$0xff]
      %v5598 = vld [vmem:[#allocation10 + $0x5b0] sm:$0xff]
      %v5599 = vld [vmem:[#allocation10 + $0x5b8] sm:$0xff]
      %v5600 = vld [vmem:[#allocation10 + $0x5c0] sm:$0xff]
      %v5601 = vld [vmem:[#allocation10 + $0x5c8] sm:$0xff]
      %v5602 = vld [vmem:[#allocation10 + $0x5d0] sm:$0xff]
      %v5603 = vld [vmem:[#allocation10 + $0x5d8] sm:$0xff]
      %v5604 = vld [vmem:[#allocation10 + $0x5e0] sm:$0xff]
      %v5605 = vld [vmem:[#allocation10 + $0x5e8] sm:$0xff]
      %v5606 = vld [vmem:[#allocation10 + $0x5f0] sm:$0xff]
      %v5607 = vld [vmem:[#allocation10 + $0x5f8] sm:$0xff]
      %v5608 = vld [vmem:[#allocation10 + $0x600] sm:$0xff]
      %v5609 = vld [vmem:[#allocation10 + $0x608] sm:$0xff]
      %v5610 = vld [vmem:[#allocation10 + $0x610] sm:$0xff]
      %v5611 = vld [vmem:[#allocation10 + $0x618] sm:$0xff]
      %v5612 = vld [vmem:[#allocation10 + $0x620] sm:$0xff]
      %v5613 = vld [vmem:[#allocation10 + $0x628] sm:$0xff]
      %v5614 = vld [vmem:[#allocation10 + $0x630] sm:$0xff]
      %v5615 = vld [vmem:[#allocation10 + $0x638] sm:$0xff]
      %v5616 = vld [vmem:[#allocation10 + $0x640] sm:$0xff]
      %v5617 = vld [vmem:[#allocation10 + $0x648] sm:$0xff]
      %v5618 = vld [vmem:[#allocation10 + $0x650] sm:$0xff]
      %v5619 = vld [vmem:[#allocation10 + $0x658] sm:$0xff]
      %v5620 = vld [vmem:[#allocation10 + $0x660] sm:$0xff]
      %v5621 = vld [vmem:[#allocation10 + $0x668] sm:$0xff]
      %v5622 = vld [vmem:[#allocation10 + $0x670] sm:$0xff]
      %v5623 = vld [vmem:[#allocation10 + $0x678] sm:$0xff]
      %v5624 = vld [vmem:[#allocation10 + $0x680] sm:$0xff]
      %v5625 = vld [vmem:[#allocation10 + $0x688] sm:$0xff]
      %v5626 = vld [vmem:[#allocation10 + $0x690] sm:$0xff]
      %v5627 = vld [vmem:[#allocation10 + $0x698] sm:$0xff]
      %v5628 = vld [vmem:[#allocation10 + $0x6a0] sm:$0xff]
      %v5629 = vld [vmem:[#allocation10 + $0x6a8] sm:$0xff]
      %v5630 = vld [vmem:[#allocation10 + $0x6b0] sm:$0xff]
      %v5631 = vld [vmem:[#allocation10 + $0x6b8] sm:$0xff]
      %v5632 = vld [vmem:[#allocation10 + $0x6c0] sm:$0xff]
      %v5633 = vld [vmem:[#allocation10 + $0x6c8] sm:$0xff]
      %v5634 = vld [vmem:[#allocation10 + $0x6d0] sm:$0xff]
      %v5635 = vld [vmem:[#allocation10 + $0x6d8] sm:$0xff]
      %v5636 = vld [vmem:[#allocation10 + $0x6e0] sm:$0xff]
      %v5637 = vld [vmem:[#allocation10 + $0x6e8] sm:$0xff]
      %v5638 = vld [vmem:[#allocation10 + $0x6f0] sm:$0xff]
      %v5639 = vld [vmem:[#allocation10 + $0x6f8] sm:$0xff]
      %v5640 = vld [vmem:[#allocation10 + $0x700] sm:$0xff]
      %v5641 = vld [vmem:[#allocation10 + $0x708] sm:$0xff]
      %v5642 = vld [vmem:[#allocation10 + $0x710] sm:$0xff]
      %v5643 = vld [vmem:[#allocation10 + $0x718] sm:$0xff]
      %v5644 = vld [vmem:[#allocation10 + $0x720] sm:$0xff]
      %v5645 = vld [vmem:[#allocation10 + $0x728] sm:$0xff]
      %v5646 = vld [vmem:[#allocation10 + $0x730] sm:$0xff]
      %v5647 = vld [vmem:[#allocation10 + $0x738] sm:$0xff]
      %v5648 = vld [vmem:[#allocation10 + $0x740] sm:$0xff]
      %v5649 = vld [vmem:[#allocation10 + $0x748] sm:$0xff]
      %v5650 = vld [vmem:[#allocation10 + $0x750] sm:$0xff]
      %v5651 = vld [vmem:[#allocation10 + $0x758] sm:$0xff]
      %v5652 = vld [vmem:[#allocation10 + $0x760] sm:$0xff]
      %v5653 = vld [vmem:[#allocation10 + $0x768] sm:$0xff]
      %v5654 = vld [vmem:[#allocation10 + $0x770] sm:$0xff]
      %v5655 = vld [vmem:[#allocation10 + $0x778] sm:$0xff]
      %v5656 = vld [vmem:[#allocation10 + $0x780] sm:$0xff]
      %v5657 = vld [vmem:[#allocation10 + $0x788] sm:$0xff]
      %v5658 = vld [vmem:[#allocation10 + $0x790] sm:$0xff]
      %v5659 = vld [vmem:[#allocation10 + $0x798] sm:$0xff]
      %v5660 = vld [vmem:[#allocation10 + $0x7a0] sm:$0xff]
      %v5661 = vld [vmem:[#allocation10 + $0x7a8] sm:$0xff]
      %v5662 = vld [vmem:[#allocation10 + $0x7b0] sm:$0xff]
      %v5663 = vld [vmem:[#allocation10 + $0x7b8] sm:$0xff]
      %v5664 = vld [vmem:[#allocation10 + $0x7c0] sm:$0xff]
      %v5665 = vld [vmem:[#allocation10 + $0x7c8] sm:$0xff]
      %v5666 = vld [vmem:[#allocation10 + $0x7d0] sm:$0xff]
      %v5667 = vld [vmem:[#allocation10 + $0x7d8] sm:$0xff]
      %v5668 = vld [vmem:[#allocation10 + $0x7e0] sm:$0xff]
      %v5669 = vld [vmem:[#allocation10 + $0x7e8] sm:$0xff]
      %v5670 = vld [vmem:[#allocation10 + $0x7f0] sm:$0xff]
      %v5671 = vld [vmem:[#allocation10 + $0x7f8] sm:$0xff]
      %v5672 = vld [vmem:[#allocation10 + $0x800] sm:$0xff]
      %v5673 = vld [vmem:[#allocation10 + $0x808] sm:$0xff]
      %v5674 = vld [vmem:[#allocation10 + $0x810] sm:$0xff]
      %v5675 = vld [vmem:[#allocation10 + $0x818] sm:$0xff]
      %v5676 = vld [vmem:[#allocation10 + $0x820] sm:$0xff]
      %v5677 = vld [vmem:[#allocation10 + $0x828] sm:$0xff]
      %v5678 = vld [vmem:[#allocation10 + $0x830] sm:$0xff]
      %v5679 = vld [vmem:[#allocation10 + $0x838] sm:$0xff]
      %v5680 = vld [vmem:[#allocation10 + $0x840] sm:$0xff]
      %v5681 = vld [vmem:[#allocation10 + $0x848] sm:$0xff]
      %v5682 = vld [vmem:[#allocation10 + $0x850] sm:$0xff]
      %v5683 = vld [vmem:[#allocation10 + $0x858] sm:$0xff]
      %v5684 = vld [vmem:[#allocation10 + $0x860] sm:$0xff]
      %v5685 = vld [vmem:[#allocation10 + $0x868] sm:$0xff]
      %v5686 = vld [vmem:[#allocation10 + $0x870] sm:$0xff]
      %v5687 = vld [vmem:[#allocation10 + $0x878] sm:$0xff]
      %v5688 = vld [vmem:[#allocation10 + $0x880] sm:$0xff]
      %v5689 = vld [vmem:[#allocation10 + $0x888] sm:$0xff]
      %v5690 = vld [vmem:[#allocation10 + $0x890] sm:$0xff]
      %v5691 = vld [vmem:[#allocation10 + $0x898] sm:$0xff]
      %v5692 = vld [vmem:[#allocation10 + $0x8a0] sm:$0xff]
      %v5693 = vld [vmem:[#allocation10 + $0x8a8] sm:$0xff]
      %v5694 = vld [vmem:[#allocation10 + $0x8b0] sm:$0xff]
      %v5695 = vld [vmem:[#allocation10 + $0x8b8] sm:$0xff]
      %v5696 = vld [vmem:[#allocation10 + $0x8c0] sm:$0xff]
      %v5697 = vld [vmem:[#allocation10 + $0x8c8] sm:$0xff]
      %v5698 = vld [vmem:[#allocation10 + $0x8d0] sm:$0xff]
      %v5699 = vld [vmem:[#allocation10 + $0x8d8] sm:$0xff]
      %v5700 = vld [vmem:[#allocation10 + $0x8e0] sm:$0xff]
      %v5701 = vld [vmem:[#allocation10 + $0x8e8] sm:$0xff]
      %v5702 = vld [vmem:[#allocation10 + $0x8f0] sm:$0xff]
      %v5703 = vld [vmem:[#allocation10 + $0x8f8] sm:$0xff]
      %v5704 = vld [vmem:[#allocation10 + $0x900] sm:$0xff]
      %v5705 = vld [vmem:[#allocation10 + $0x908] sm:$0xff]
      %v5706 = vld [vmem:[#allocation10 + $0x910] sm:$0xff]
      %v5707 = vld [vmem:[#allocation10 + $0x918] sm:$0xff]
      %v5708 = vld [vmem:[#allocation10 + $0x920] sm:$0xff]
      %v5709 = vld [vmem:[#allocation10 + $0x928] sm:$0xff]
      %v5710 = vld [vmem:[#allocation10 + $0x930] sm:$0xff]
      %v5711 = vld [vmem:[#allocation10 + $0x938] sm:$0xff]
      %v5712 = vld [vmem:[#allocation10 + $0x940] sm:$0xff]
      %v5713 = vld [vmem:[#allocation10 + $0x948] sm:$0xff]
      %v5714 = vld [vmem:[#allocation10 + $0x950] sm:$0xff]
      %v5715 = vld [vmem:[#allocation10 + $0x958] sm:$0xff]
      %v5716 = vld [vmem:[#allocation10 + $0x960] sm:$0xff]
      %v5717 = vld [vmem:[#allocation10 + $0x968] sm:$0xff]
      %v5718 = vld [vmem:[#allocation10 + $0x970] sm:$0xff]
      %v5719 = vld [vmem:[#allocation10 + $0x978] sm:$0xff]
      %v5720 = vld [vmem:[#allocation10 + $0x980] sm:$0xff]
      %v5721 = vld [vmem:[#allocation10 + $0x988] sm:$0xff]
      %v5722 = vld [vmem:[#allocation10 + $0x990] sm:$0xff]
      %v5723 = vld [vmem:[#allocation10 + $0x998] sm:$0xff]
      %v5724 = vld [vmem:[#allocation10 + $0x9a0] sm:$0xff]
      %v5725 = vld [vmem:[#allocation10 + $0x9a8] sm:$0xff]
      %v5726 = vld [vmem:[#allocation10 + $0x9b0] sm:$0xff]
      %v5727 = vld [vmem:[#allocation10 + $0x9b8] sm:$0xff]
      %v5728 = vld [vmem:[#allocation10 + $0x9c0] sm:$0xff]
      %v5729 = vld [vmem:[#allocation10 + $0x9c8] sm:$0xff]
      %v5730 = vld [vmem:[#allocation10 + $0x9d0] sm:$0xff]
      %v5731 = vld [vmem:[#allocation10 + $0x9d8] sm:$0xff]
      %v5732 = vld [vmem:[#allocation10 + $0x9e0] sm:$0xff]
      %v5733 = vld [vmem:[#allocation10 + $0x9e8] sm:$0xff]
      %v5734 = vld [vmem:[#allocation10 + $0x9f0] sm:$0xff]
      %v5735 = vld [vmem:[#allocation10 + $0x9f8] sm:$0xff]
      %v5736 = vld [vmem:[#allocation10 + $0xa00] sm:$0xff]
      %v5737 = vld [vmem:[#allocation10 + $0xa08] sm:$0xff]
      %v5738 = vld [vmem:[#allocation10 + $0xa10] sm:$0xff]
      %v5739 = vld [vmem:[#allocation10 + $0xa18] sm:$0xff]
      %v5740 = vld [vmem:[#allocation10 + $0xa20] sm:$0xff]
      %v5741 = vld [vmem:[#allocation10 + $0xa28] sm:$0xff]
      %v5742 = vld [vmem:[#allocation10 + $0xa30] sm:$0xff]
      %v5743 = vld [vmem:[#allocation10 + $0xa38] sm:$0xff]
      %v5744 = vld [vmem:[#allocation10 + $0xa40] sm:$0xff]
      %v5745 = vld [vmem:[#allocation10 + $0xa48] sm:$0xff]
      %v5746 = vld [vmem:[#allocation10 + $0xa50] sm:$0xff]
      %v5747 = vld [vmem:[#allocation10 + $0xa58] sm:$0xff]
      %v5748 = vld [vmem:[#allocation10 + $0xa60] sm:$0xff]
      %v5749 = vld [vmem:[#allocation10 + $0xa68] sm:$0xff]
      %v5750 = vld [vmem:[#allocation10 + $0xa70] sm:$0xff]
      %v5751 = vld [vmem:[#allocation10 + $0xa78] sm:$0xff]
      %v5752 = vld [vmem:[#allocation10 + $0xa80] sm:$0xff]
      %v5753 = vld [vmem:[#allocation10 + $0xa88] sm:$0xff]
      %v5754 = vld [vmem:[#allocation10 + $0xa90] sm:$0xff]
      %v5755 = vld [vmem:[#allocation10 + $0xa98] sm:$0xff]
      %v5756 = vld [vmem:[#allocation10 + $0xaa0] sm:$0xff]
      %v5757 = vld [vmem:[#allocation10 + $0xaa8] sm:$0xff]
      %v5758 = vld [vmem:[#allocation10 + $0xab0] sm:$0xff]
      %v5759 = vld [vmem:[#allocation10 + $0xab8] sm:$0xff]
      %v5760 = vld [vmem:[#allocation10 + $0xac0] sm:$0xff]
      %v5761 = vld [vmem:[#allocation10 + $0xac8] sm:$0xff]
      %v5762 = vld [vmem:[#allocation10 + $0xad0] sm:$0xff]
      %v5763 = vld [vmem:[#allocation10 + $0xad8] sm:$0xff]
      %v5764 = vld [vmem:[#allocation10 + $0xae0] sm:$0xff]
      %v5765 = vld [vmem:[#allocation10 + $0xae8] sm:$0xff]
      %v5766 = vld [vmem:[#allocation10 + $0xaf0] sm:$0xff]
      %v5767 = vld [vmem:[#allocation10 + $0xaf8] sm:$0xff]
      %v5768 = vld [vmem:[#allocation10 + $0xb00] sm:$0xff]
      %v5769 = vld [vmem:[#allocation10 + $0xb08] sm:$0xff]
      %v5770 = vld [vmem:[#allocation10 + $0xb10] sm:$0xff]
      %v5771 = vld [vmem:[#allocation10 + $0xb18] sm:$0xff]
      %v5772 = vld [vmem:[#allocation10 + $0xb20] sm:$0xff]
      %v5773 = vld [vmem:[#allocation10 + $0xb28] sm:$0xff]
      %v5774 = vld [vmem:[#allocation10 + $0xb30] sm:$0xff]
      %v5775 = vld [vmem:[#allocation10 + $0xb38] sm:$0xff]
      %v5776 = vld [vmem:[#allocation10 + $0xb40] sm:$0xff]
      %v5777 = vld [vmem:[#allocation10 + $0xb48] sm:$0xff]
      %v5778 = vld [vmem:[#allocation10 + $0xb50] sm:$0xff]
      %v5779 = vld [vmem:[#allocation10 + $0xb58] sm:$0xff]
      %v5780 = vld [vmem:[#allocation10 + $0xb60] sm:$0xff]
      %v5781 = vld [vmem:[#allocation10 + $0xb68] sm:$0xff]
      %v5782 = vld [vmem:[#allocation10 + $0xb70] sm:$0xff]
      %v5783 = vld [vmem:[#allocation10 + $0xb78] sm:$0xff]
      %v5784 = vld [vmem:[#allocation10 + $0xb80] sm:$0xff]
      %v5785 = vld [vmem:[#allocation10 + $0xb88] sm:$0xff]
      %v5786 = vld [vmem:[#allocation10 + $0xb90] sm:$0xff]
      %v5787 = vld [vmem:[#allocation10 + $0xb98] sm:$0xff]
      %v5788 = vld [vmem:[#allocation10 + $0xba0] sm:$0xff]
      %v5789 = vld [vmem:[#allocation10 + $0xba8] sm:$0xff]
      %v5790 = vld [vmem:[#allocation10 + $0xbb0] sm:$0xff]
      %v5791 = vld [vmem:[#allocation10 + $0xbb8] sm:$0xff]
      %v5792 = vld [vmem:[#allocation10 + $0xbc0] sm:$0xff]
      %v5793 = vld [vmem:[#allocation10 + $0xbc8] sm:$0xff]
      %v5794 = vld [vmem:[#allocation10 + $0xbd0] sm:$0xff]
      %v5795 = vld [vmem:[#allocation10 + $0xbd8] sm:$0xff]
      %v5796 = vld [vmem:[#allocation10 + $0xbe0] sm:$0xff]
      %v5797 = vld [vmem:[#allocation10 + $0xbe8] sm:$0xff]
      %v5798 = vld [vmem:[#allocation10 + $0xbf0] sm:$0xff]
      %v5799 = vld [vmem:[#allocation10 + $0xbf8] sm:$0xff]
      %v5800 = vld [vmem:[#allocation10 + $0xc00] sm:$0xff]
      %v5801 = vld [vmem:[#allocation10 + $0xc08] sm:$0xff]
      %v5802 = vld [vmem:[#allocation10 + $0xc10] sm:$0xff]
      %v5803 = vld [vmem:[#allocation10 + $0xc18] sm:$0xff]
      %v5804 = vld [vmem:[#allocation10 + $0xc20] sm:$0xff]
      %v5805 = vld [vmem:[#allocation10 + $0xc28] sm:$0xff]
      %v5806 = vld [vmem:[#allocation10 + $0xc30] sm:$0xff]
      %v5807 = vld [vmem:[#allocation10 + $0xc38] sm:$0xff]
      %v5808 = vld [vmem:[#allocation10 + $0xc40] sm:$0xff]
      %v5809 = vld [vmem:[#allocation10 + $0xc48] sm:$0xff]
      %v5810 = vld [vmem:[#allocation10 + $0xc50] sm:$0xff]
      %v5811 = vld [vmem:[#allocation10 + $0xc58] sm:$0xff]
      %v5812 = vld [vmem:[#allocation10 + $0xc60] sm:$0xff]
      %v5813 = vld [vmem:[#allocation10 + $0xc68] sm:$0xff]
      %v5814 = vld [vmem:[#allocation10 + $0xc70] sm:$0xff]
      %v5815 = vld [vmem:[#allocation10 + $0xc78] sm:$0xff]
      %v5816 = vld [vmem:[#allocation10 + $0xc80] sm:$0xff]
      %v5817 = vld [vmem:[#allocation10 + $0xc88] sm:$0xff]
      %v5818 = vld [vmem:[#allocation10 + $0xc90] sm:$0xff]
      %v5819 = vld [vmem:[#allocation10 + $0xc98] sm:$0xff]
      %v5820 = vld [vmem:[#allocation10 + $0xca0] sm:$0xff]
      %v5821 = vld [vmem:[#allocation10 + $0xca8] sm:$0xff]
      %v5822 = vld [vmem:[#allocation10 + $0xcb0] sm:$0xff]
      %v5823 = vld [vmem:[#allocation10 + $0xcb8] sm:$0xff]
      %v5824 = vld [vmem:[#allocation10 + $0xcc0] sm:$0xff]
      %v5825 = vld [vmem:[#allocation10 + $0xcc8] sm:$0xff]
      %v5826 = vld [vmem:[#allocation10 + $0xcd0] sm:$0xff]
      %v5827 = vld [vmem:[#allocation10 + $0xcd8] sm:$0xff]
      %v5828 = vld [vmem:[#allocation10 + $0xce0] sm:$0xff]
      %v5829 = vld [vmem:[#allocation10 + $0xce8] sm:$0xff]
      %v5830 = vld [vmem:[#allocation10 + $0xcf0] sm:$0xff]
      %v5831 = vld [vmem:[#allocation10 + $0xcf8] sm:$0xff]
      %v5832 = vld [vmem:[#allocation10 + $0xd00] sm:$0xff]
      %v5833 = vld [vmem:[#allocation10 + $0xd08] sm:$0xff]
      %v5834 = vld [vmem:[#allocation10 + $0xd10] sm:$0xff]
      %v5835 = vld [vmem:[#allocation10 + $0xd18] sm:$0xff]
      %v5836 = vld [vmem:[#allocation10 + $0xd20] sm:$0xff]
      %v5837 = vld [vmem:[#allocation10 + $0xd28] sm:$0xff]
      %v5838 = vld [vmem:[#allocation10 + $0xd30] sm:$0xff]
      %v5839 = vld [vmem:[#allocation10 + $0xd38] sm:$0xff]
      %v5840 = vld [vmem:[#allocation10 + $0xd40] sm:$0xff]
      %v5841 = vld [vmem:[#allocation10 + $0xd48] sm:$0xff]
      %v5842 = vld [vmem:[#allocation10 + $0xd50] sm:$0xff]
      %v5843 = vld [vmem:[#allocation10 + $0xd58] sm:$0xff]
      %v5844 = vld [vmem:[#allocation10 + $0xd60] sm:$0xff]
      %v5845 = vld [vmem:[#allocation10 + $0xd68] sm:$0xff]
      %v5846 = vld [vmem:[#allocation10 + $0xd70] sm:$0xff]
      %v5847 = vld [vmem:[#allocation10 + $0xd78] sm:$0xff]
      %v5848 = vld [vmem:[#allocation10 + $0xd80] sm:$0xff]
      %v5849 = vld [vmem:[#allocation10 + $0xd88] sm:$0xff]
      %v5850 = vld [vmem:[#allocation10 + $0xd90] sm:$0xff]
      %v5851 = vld [vmem:[#allocation10 + $0xd98] sm:$0xff]
      %v5852 = vld [vmem:[#allocation10 + $0xda0] sm:$0xff]
      %v5853 = vld [vmem:[#allocation10 + $0xda8] sm:$0xff]
      %v5854 = vld [vmem:[#allocation10 + $0xdb0] sm:$0xff]
      %v5855 = vld [vmem:[#allocation10 + $0xdb8] sm:$0xff]
      %v5856 = vld [vmem:[#allocation10 + $0xdc0] sm:$0xff]
      %v5857 = vld [vmem:[#allocation10 + $0xdc8] sm:$0xff]
      %v5858 = vld [vmem:[#allocation10 + $0xdd0] sm:$0xff]
      %v5859 = vld [vmem:[#allocation10 + $0xdd8] sm:$0xff]
      %v5860 = vld [vmem:[#allocation10 + $0xde0] sm:$0xff]
      %v5861 = vld [vmem:[#allocation10 + $0xde8] sm:$0xff]
      %v5862 = vld [vmem:[#allocation10 + $0xdf0] sm:$0xff]
      %v5863 = vld [vmem:[#allocation10 + $0xdf8] sm:$0xff]
      %v5864 = vld [vmem:[#allocation10 + $0xe00] sm:$0xff]
      %v5865 = vld [vmem:[#allocation10 + $0xe08] sm:$0xff]
      %v5866 = vld [vmem:[#allocation10 + $0xe10] sm:$0xff]
      %v5867 = vld [vmem:[#allocation10 + $0xe18] sm:$0xff]
      %v5868 = vld [vmem:[#allocation10 + $0xe20] sm:$0xff]
      %v5869 = vld [vmem:[#allocation10 + $0xe28] sm:$0xff]
      %v5870 = vld [vmem:[#allocation10 + $0xe30] sm:$0xff]
      %v5871 = vld [vmem:[#allocation10 + $0xe38] sm:$0xff]
      %v5872 = vld [vmem:[#allocation10 + $0xe40] sm:$0xff]
      %v5873 = vld [vmem:[#allocation10 + $0xe48] sm:$0xff]
      %v5874 = vld [vmem:[#allocation10 + $0xe50] sm:$0xff]
      %v5875 = vld [vmem:[#allocation10 + $0xe58] sm:$0xff]
      %v5876 = vld [vmem:[#allocation10 + $0xe60] sm:$0xff]
      %v5877 = vld [vmem:[#allocation10 + $0xe68] sm:$0xff]
      %v5878 = vld [vmem:[#allocation10 + $0xe70] sm:$0xff]
      %v5879 = vld [vmem:[#allocation10 + $0xe78] sm:$0xff]
      %v5880 = vld [vmem:[#allocation10 + $0xe80] sm:$0xff]
      %v5881 = vld [vmem:[#allocation10 + $0xe88] sm:$0xff]
      %v5882 = vld [vmem:[#allocation10 + $0xe90] sm:$0xff]
      %v5883 = vld [vmem:[#allocation10 + $0xe98] sm:$0xff]
      %v5884 = vld [vmem:[#allocation10 + $0xea0] sm:$0xff]
      %v5885 = vld [vmem:[#allocation10 + $0xea8] sm:$0xff]
      %v5886 = vld [vmem:[#allocation10 + $0xeb0] sm:$0xff]
      %v5887 = vld [vmem:[#allocation10 + $0xeb8] sm:$0xff]
      %v5888 = vld [vmem:[#allocation10 + $0xec0] sm:$0xff]
      %v5889 = vld [vmem:[#allocation10 + $0xec8] sm:$0xff]
      %v5890 = vld [vmem:[#allocation10 + $0xed0] sm:$0xff]
      %v5891 = vld [vmem:[#allocation10 + $0xed8] sm:$0xff]
      %v5892 = vld [vmem:[#allocation10 + $0xee0] sm:$0xff]
      %v5893 = vld [vmem:[#allocation10 + $0xee8] sm:$0xff]
      %v5894 = vld [vmem:[#allocation10 + $0xef0] sm:$0xff]
      %v5895 = vld [vmem:[#allocation10 + $0xef8] sm:$0xff]
      %v5896 = vld [vmem:[#allocation10 + $0xf00] sm:$0xff]
      %v5897 = vld [vmem:[#allocation10 + $0xf08] sm:$0xff]
      %v5898 = vld [vmem:[#allocation10 + $0xf10] sm:$0xff]
      %v5899 = vld [vmem:[#allocation10 + $0xf18] sm:$0xff]
      %v5900 = vld [vmem:[#allocation10 + $0xf20] sm:$0xff]
      %v5901 = vld [vmem:[#allocation10 + $0xf28] sm:$0xff]
      %v5902 = vld [vmem:[#allocation10 + $0xf30] sm:$0xff]
      %v5903 = vld [vmem:[#allocation10 + $0xf38] sm:$0xff]
      %v5904 = vld [vmem:[#allocation10 + $0xf40] sm:$0xff]
      %v5905 = vld [vmem:[#allocation10 + $0xf48] sm:$0xff]
      %v5906 = vld [vmem:[#allocation10 + $0xf50] sm:$0xff]
      %v5907 = vld [vmem:[#allocation10 + $0xf58] sm:$0xff]
      %v5908 = vld [vmem:[#allocation10 + $0xf60] sm:$0xff]
      %v5909 = vld [vmem:[#allocation10 + $0xf68] sm:$0xff]
      %v5910 = vld [vmem:[#allocation10 + $0xf70] sm:$0xff]
      %v5911 = vld [vmem:[#allocation10 + $0xf78] sm:$0xff]
      %v5912 = vld [vmem:[#allocation10 + $0xf80] sm:$0xff]
      %v5913 = vld [vmem:[#allocation10 + $0xf88] sm:$0xff]
      %v5914 = vld [vmem:[#allocation10 + $0xf90] sm:$0xff]
      %v5915 = vld [vmem:[#allocation10 + $0xf98] sm:$0xff]
      %v5916 = vld [vmem:[#allocation10 + $0xfa0] sm:$0xff]
      %v5917 = vld [vmem:[#allocation10 + $0xfa8] sm:$0xff]
      %v5918 = vld [vmem:[#allocation10 + $0xfb0] sm:$0xff]
      %v5919 = vld [vmem:[#allocation10 + $0xfb8] sm:$0xff]
      %v5920 = vld [vmem:[#allocation10 + $0xfc0] sm:$0xff]
      %v5921 = vld [vmem:[#allocation10 + $0xfc8] sm:$0xff]
      %v5922 = vld [vmem:[#allocation10 + $0xfd0] sm:$0xff]
      %v5923 = vld [vmem:[#allocation10 + $0xfd8] sm:$0xff]
      %v5924 = vld [vmem:[#allocation10 + $0xfe0] sm:$0xff]
      %v5925 = vld [vmem:[#allocation10 + $0xfe8] sm:$0xff]
      %v5926 = vld [vmem:[#allocation10 + $0xff0] sm:$0xff]
      %v5927 = vld [vmem:[#allocation10 + $0xff8] sm:$0xff]
      %5928 = vmatprep.subr.mxu0 %v5417
      %5929 = vmatpush1.msra.mxu0 %v5416
      %5930 = vmatprep.subr.mxu0 %v5433
      %5931 = vmatpush1.msra.mxu0 %v5432
      %5932 = vmatprep.subr.mxu0 %v5449
      %5933 = vmatpush1.msra.mxu0 %v5448
      %5934 = vmatprep.subr.mxu0 %v5465
      %5935 = vmatpush1.msra.mxu0 %v5464
      %5936 = vmatprep.subr.mxu0 %v5481
      %5937 = vmatpush1.msra.mxu0 %v5480
      %5938 = vmatprep.subr.mxu0 %v5497
      %5939 = vmatpush1.msra.mxu0 %v5496
      %5940 = vmatprep.subr.mxu0 %v5513
      %5941 = vmatpush1.msra.mxu0 %v5512
      %5942 = vmatprep.subr.mxu0 %v5529
      %5943 = vmatpush1.msra.mxu0 %v5528
      %5944 = vmatprep.subr.mxu0 %v5545
      %5945 = vmatpush1.msra.mxu0 %v5544
      %5946 = vmatprep.subr.mxu0 %v5561
      %5947 = vmatpush1.msra.mxu0 %v5560
      %5948 = vmatprep.subr.mxu0 %v5577
      %5949 = vmatpush1.msra.mxu0 %v5576
      %5950 = vmatprep.subr.mxu0 %v5593
      %5951 = vmatpush1.msra.mxu0 %v5592
      %5952 = vmatprep.subr.mxu0 %v5609
      %5953 = vmatpush1.msra.mxu0 %v5608
      %5954 = vmatprep.subr.mxu0 %v5625
      %5955 = vmatpush1.msra.mxu0 %v5624
      %5956 = vmatprep.subr.mxu0 %v5641
      %5957 = vmatpush1.msra.mxu0 %v5640
      %5958 = vmatprep.subr.mxu0 %v5657
      %5959 = vmatpush1.msra.mxu0 %v5656
      %5960 = vmatprep.subr.mxu0 %v5673
      %5961 = vmatpush1.msra.mxu0 %v5672
      %5962 = vmatprep.subr.mxu0 %v5689
      %5963 = vmatpush1.msra.mxu0 %v5688
      %5964 = vmatprep.subr.mxu0 %v5705
      %5965 = vmatpush1.msra.mxu0 %v5704
      %5966 = vmatprep.subr.mxu0 %v5721
      %5967 = vmatpush1.msra.mxu0 %v5720
      %5968 = vmatprep.subr.mxu0 %v5737
      %5969 = vmatpush1.msra.mxu0 %v5736
      %5970 = vmatprep.subr.mxu0 %v5753
      %5971 = vmatpush1.msra.mxu0 %v5752
      %5972 = vmatprep.subr.mxu0 %v5769
      %5973 = vmatpush1.msra.mxu0 %v5768
      %5974 = vmatprep.subr.mxu0 %v5785
      %5975 = vmatpush1.msra.mxu0 %v5784
      %5976 = vmatprep.subr.mxu0 %v5801
      %5977 = vmatpush1.msra.mxu0 %v5800
      %5978 = vmatprep.subr.mxu0 %v5817
      %5979 = vmatpush1.msra.mxu0 %v5816
      %5980 = vmatprep.subr.mxu0 %v5833
      %5981 = vmatpush1.msra.mxu0 %v5832
      %5982 = vmatprep.subr.mxu0 %v5849
      %5983 = vmatpush1.msra.mxu0 %v5848
      %5984 = vmatprep.subr.mxu0 %v5865
      %5985 = vmatpush1.msra.mxu0 %v5864
      %5986 = vmatprep.subr.mxu0 %v5881
      %5987 = vmatpush1.msra.mxu0 %v5880
      %5988 = vmatprep.subr.mxu0 %v5897
      %5989 = vmatpush1.msra.mxu0 %v5896
      %5990 = vmatprep.subr.mxu0 %v5913
      %5991 = vmatpush1.msra.mxu0 %v5912
      %5992 = vmatprep.mubr.f32.mxu0 %v4634
      %5993 = vmatmul.mubr.f32.gmra.mrb[0].mxu0 %v4632
      %v5994 = vpop.f32.mrb[0].mxu0
      %v5995 = vadd.f32 0.0, %v5994
      %v5996 = vpop.f32.mrb[0].mxu0
      %v5997 = vadd.f32 0.0, %v5996
      %5998 = vmatprep.mubr.f32.mxu0 %v4638
      %5999 = vmatmul.mubr.f32.gmra.mrb[0].mxu0 %v4636
      %v6000 = vpop.f32.mrb[0].mxu0
      %v6001 = vadd.f32 0.0, %v6000
      %v6002 = vpop.f32.mrb[0].mxu0
      %v6003 = vadd.f32 0.0, %v6002
      %6004 = vmatprep.mubr.f32.mxu0 %v4642
      %6005 = vmatmul.mubr.f32.gmra.mrb[0].mxu0 %v4640
      %v6006 = vpop.f32.mrb[0].mxu0
      %v6007 = vadd.f32 0.0, %v6006
      %v6008 = vpop.f32.mrb[0].mxu0
      %v6009 = vadd.f32 0.0, %v6008
      %6010 = vmatprep.mubr.f32.mxu0 %v4646
      %6011 = vmatmul.mubr.f32.gmra.mrb[0].mxu0 %v4644
      %v6012 = vpop.f32.mrb[0].mxu0
      %v6013 = vadd.f32 0.0, %v6012
      %v6014 = vpop.f32.mrb[0].mxu0
      %v6015 = vadd.f32 0.0, %v6014
      %6016 = vmatprep.mubr.f32.mxu0 %v4650
      %6017 = vmatmul.mubr.f32.gmra.mrb[0].mxu0 %v4648
      %v6018 = vpop.f32.mrb[0].mxu0
      %v6019 = vadd.f32 0.0, %v6018
      %v6020 = vpop.f32.mrb[0].mxu0
      %v6021 = vadd.f32 0.0, %v6020
      %6022 = vmatprep.mubr.f32.mxu0 %v4654
      %6023 = vmatmul.mubr.f32.gmra.mrb[0].mxu0 %v4652
      %v6024 = vpop.f32.mrb[0].mxu0
      %v6025 = vadd.f32 0.0, %v6024
      %v6026 = vpop.f32.mrb[0].mxu0
      %v6027 = vadd.f32 0.0, %v6026
      %6028 = vmatprep.mubr.f32.mxu0 %v4658
      %6029 = vmatmul.mubr.f32.gmra.mrb[0].mxu0 %v4656
      %v6030 = vpop.f32.mrb[0].mxu0
      %v6031 = vadd.f32 0.0, %v6030
      %v6032 = vpop.f32.mrb[0].mxu0
      %v6033 = vadd.f32 0.0, %v6032
      %6034 = vmatprep.mubr.f32.mxu0 %v4662
      %6035 = vmatmul.mubr.f32.gmra.mrb[0].mxu0 %v4660
      %v6036 = vpop.f32.mrb[0].mxu0
      %v6037 = vadd.f32 0.0, %v6036
      %v6038 = vpop.f32.mrb[0].mxu0
      %v6039 = vadd.f32 0.0, %v6038
      %6040 = vmatprep.mubr.f32.mxu0 %v4666
      %6041 = vmatmul.mubr.f32.gmra.mrb[0].mxu0 %v4664
      %v6042 = vpop.f32.mrb[0].mxu0
      %v6043 = vadd.f32 0.0, %v6042
      %v6044 = vpop.f32.mrb[0].mxu0
      %v6045 = vadd.f32 0.0, %v6044
      %6046 = vmatprep.mubr.f32.mxu0 %v4670
      %6047 = vmatmul.mubr.f32.gmra.mrb[0].mxu0 %v4668
      %v6048 = vpop.f32.mrb[0].mxu0
      %v6049 = vadd.f32 0.0, %v6048
      %v6050 = vpop.f32.mrb[0].mxu0
      %v6051 = vadd.f32 0.0, %v6050
      %6052 = vmatprep.mubr.f32.mxu0 %v4674
      %6053 = vmatmul.mubr.f32.gmra.mrb[0].mxu0 %v4672
      %v6054 = vpop.f32.mrb[0].mxu0
      %v6055 = vadd.f32 0.0, %v6054
      %v6056 = vpop.f32.mrb[0].mxu0
      %v6057 = vadd.f32 0.0, %v6056
      %6058 = vmatprep.mubr.f32.mxu0 %v4678
      %6059 = vmatmul.mubr.f32.gmra.mrb[0].mxu0 %v4676
      %v6060 = vpop.f32.mrb[0].mxu0
      %v6061 = vadd.f32 0.0, %v6060
      %v6062 = vpop.f32.mrb[0].mxu0
      %v6063 = vadd.f32 0.0, %v6062
      %6064 = vmatprep.mubr.f32.mxu0 %v4682
      %6065 = vmatmul.mubr.f32.gmra.mrb[0].mxu0 %v4680
      %v6066 = vpop.f32.mrb[0].mxu0
      %v6067 = vadd.f32 0.0, %v6066
      %v6068 = vpop.f32.mrb[0].mxu0
      %v6069 = vadd.f32 0.0, %v6068
      %6070 = vmatprep.mubr.f32.mxu0 %v4686
      %6071 = vmatmul.mubr.f32.gmra.mrb[0].mxu0 %v4684
      %v6072 = vpop.f32.mrb[0].mxu0
      %v6073 = vadd.f32 0.0, %v6072
      %v6074 = vpop.f32.mrb[0].mxu0
      %v6075 = vadd.f32 0.0, %v6074
      %6076 = vmatprep.mubr.f32.mxu0 %v4690
      %6077 = vmatmul.mubr.f32.gmra.mrb[0].mxu0 %v4688
      %v6078 = vpop.f32.mrb[0].mxu0
      %v6079 = vadd.f32 0.0, %v6078
      %v6080 = vpop.f32.mrb[0].mxu0
      %v6081 = vadd.f32 0.0, %v6080
      %6082 = vmatprep.mubr.f32.mxu0 %v4694
      %6083 = vmatmul.mubr.f32.gmra.mrb[0].mxu0 %v4692
      %v6084 = vpop.f32.mrb[0].mxu0
      %v6085 = vadd.f32 0.0, %v6084
      %v6086 = vpop.f32.mrb[0].mxu0
      %v6087 = vadd.f32 0.0, %v6086
      %6088 = vdwg.mxu0
      %6089 = vmatprep.subr.mxu0 %v5419
      %6090 = vmatpush1.msra.mxu0 %v5418
      %6091 = vmatprep.subr.mxu0 %v5435
      %6092 = vmatpush1.msra.mxu0 %v5434
      %6093 = vmatprep.subr.mxu0 %v5451
      %6094 = vmatpush1.msra.mxu0 %v5450
      %6095 = vmatprep.subr.mxu0 %v5467
      %6096 = vmatpush1.msra.mxu0 %v5466
      %6097 = vmatprep.subr.mxu0 %v5483
      %6098 = vmatpush1.msra.mxu0 %v5482
      %6099 = vmatprep.subr.mxu0 %v5499
      %6100 = vmatpush1.msra.mxu0 %v5498
      %6101 = vmatprep.subr.mxu0 %v5515
      %6102 = vmatpush1.msra.mxu0 %v5514
      %6103 = vmatprep.subr.mxu0 %v5531
      %6104 = vmatpush1.msra.mxu0 %v5530
      %6105 = vmatprep.subr.mxu0 %v5547
      %6106 = vmatpush1.msra.mxu0 %v5546
      %6107 = vmatprep.subr.mxu0 %v5563
      %6108 = vmatpush1.msra.mxu0 %v5562
      %6109 = vmatprep.subr.mxu0 %v5579
      %6110 = vmatpush1.msra.mxu0 %v5578
      %6111 = vmatprep.subr.mxu0 %v5595
      %6112 = vmatpush1.msra.mxu0 %v5594
      %6113 = vmatprep.subr.mxu0 %v5611
      %6114 = vmatpush1.msra.mxu0 %v5610
      %6115 = vmatprep.subr.mxu0 %v5627
      %6116 = vmatpush1.msra.mxu0 %v5626
      %6117 = vmatprep.subr.mxu0 %v5643
      %6118 = vmatpush1.msra.mxu0 %v5642
      %6119 = vmatprep.subr.mxu0 %v5659
      %6120 = vmatpush1.msra.mxu0 %v5658
      %6121 = vmatprep.subr.mxu0 %v5675
      %6122 = vmatpush1.msra.mxu0 %v5674
      %6123 = vmatprep.subr.mxu0 %v5691
      %6124 = vmatpush1.msra.mxu0 %v5690
      %6125 = vmatprep.subr.mxu0 %v5707
      %6126 = vmatpush1.msra.mxu0 %v5706
      %6127 = vmatprep.subr.mxu0 %v5723
      %6128 = vmatpush1.msra.mxu0 %v5722
      %6129 = vmatprep.subr.mxu0 %v5739
      %6130 = vmatpush1.msra.mxu0 %v5738
      %6131 = vmatprep.subr.mxu0 %v5755
      %6132 = vmatpush1.msra.mxu0 %v5754
      %6133 = vmatprep.subr.mxu0 %v5771
      %6134 = vmatpush1.msra.mxu0 %v5770
      %6135 = vmatprep.subr.mxu0 %v5787
      %6136 = vmatpush1.msra.mxu0 %v5786
      %6137 = vmatprep.subr.mxu0 %v5803
      %6138 = vmatpush1.msra.mxu0 %v5802
      %6139 = vmatprep.subr.mxu0 %v5819
      %6140 = vmatpush1.msra.mxu0 %v5818
      %6141 = vmatprep.subr.mxu0 %v5835
      %6142 = vmatpush1.msra.mxu0 %v5834
      %6143 = vmatprep.subr.mxu0 %v5851
      %6144 = vmatpush1.msra.mxu0 %v5850
      %6145 = vmatprep.subr.mxu0 %v5867
      %6146 = vmatpush1.msra.mxu0 %v5866
      %6147 = vmatprep.subr.mxu0 %v5883
      %6148 = vmatpush1.msra.mxu0 %v5882
      %6149 = vmatprep.subr.mxu0 %v5899
      %6150 = vmatpush1.msra.mxu0 %v5898
      %6151 = vmatprep.subr.mxu0 %v5915
      %6152 = vmatpush1.msra.mxu0 %v5914
      %6153 = vmatprep.mubr.f32.mxu0 %v4634
      %6154 = vmatmul.mubr.f32.gmra.mrb[0].mxu0 %v4632
      %v6155 = vpop.f32.mrb[0].mxu0
      %v6156 = vadd.f32 0.0, %v6155
      %v6157 = vpop.f32.mrb[0].mxu0
      %v6158 = vadd.f32 0.0, %v6157
      %6159 = vmatprep.mubr.f32.mxu0 %v4638
      %6160 = vmatmul.mubr.f32.gmra.mrb[0].mxu0 %v4636
      %v6161 = vpop.f32.mrb[0].mxu0
      %v6162 = vadd.f32 0.0, %v6161
      %v6163 = vpop.f32.mrb[0].mxu0
      %v6164 = vadd.f32 0.0, %v6163
      %6165 = vmatprep.mubr.f32.mxu0 %v4642
      %6166 = vmatmul.mubr.f32.gmra.mrb[0].mxu0 %v4640
      %v6167 = vpop.f32.mrb[0].mxu0
      %v6168 = vadd.f32 0.0, %v6167
      %v6169 = vpop.f32.mrb[0].mxu0
      %v6170 = vadd.f32 0.0, %v6169
      %6171 = vmatprep.mubr.f32.mxu0 %v4646
      %6172 = vmatmul.mubr.f32.gmra.mrb[0].mxu0 %v4644
      %v6173 = vpop.f32.mrb[0].mxu0
      %v6174 = vadd.f32 0.0, %v6173
      %v6175 = vpop.f32.mrb[0].mxu0
      %v6176 = vadd.f32 0.0, %v6175
      %6177 = vmatprep.mubr.f32.mxu0 %v4650
      %6178 = vmatmul.mubr.f32.gmra.mrb[0].mxu0 %v4648
      %v6179 = vpop.f32.mrb[0].mxu0
      %v6180 = vadd.f32 0.0, %v6179
      %v6181 = vpop.f32.mrb[0].mxu0
      %v6182 = vadd.f32 0.0, %v6181
      %6183 = vmatprep.mubr.f32.mxu0 %v4654
      %6184 = vmatmul.mubr.f32.gmra.mrb[0].mxu0 %v4652
      %v6185 = vpop.f32.mrb[0].mxu0
      %v6186 = vadd.f32 0.0, %v6185
      %v6187 = vpop.f32.mrb[0].mxu0
      %v6188 = vadd.f32 0.0, %v6187
      %6189 = vmatprep.mubr.f32.mxu0 %v4658
      %6190 = vmatmul.mubr.f32.gmra.mrb[0].mxu0 %v4656
      %v6191 = vpop.f32.mrb[0].mxu0
      %v6192 = vadd.f32 0.0, %v6191
      %v6193 = vpop.f32.mrb[0].mxu0
      %v6194 = vadd.f32 0.0, %v6193
      %6195 = vmatprep.mubr.f32.mxu0 %v4662
      %6196 = vmatmul.mubr.f32.gmra.mrb[0].mxu0 %v4660
      %v6197 = vpop.f32.mrb[0].mxu0
      %v6198 = vadd.f32 0.0, %v6197
      %v6199 = vpop.f32.mrb[0].mxu0
      %v6200 = vadd.f32 0.0, %v6199
      %6201 = vmatprep.mubr.f32.mxu0 %v4666
      %6202 = vmatmul.mubr.f32.gmra.mrb[0].mxu0 %v4664
      %v6203 = vpop.f32.mrb[0].mxu0
      %v6204 = vadd.f32 0.0, %v6203
      %v6205 = vpop.f32.mrb[0].mxu0
      %v6206 = vadd.f32 0.0, %v6205
      %6207 = vmatprep.mubr.f32.mxu0 %v4670
      %6208 = vmatmul.mubr.f32.gmra.mrb[0].mxu0 %v4668
      %v6209 = vpop.f32.mrb[0].mxu0
      %v6210 = vadd.f32 0.0, %v6209
      %v6211 = vpop.f32.mrb[0].mxu0
      %v6212 = vadd.f32 0.0, %v6211
      %6213 = vmatprep.mubr.f32.mxu0 %v4674
      %6214 = vmatmul.mubr.f32.gmra.mrb[0].mxu0 %v4672
      %v6215 = vpop.f32.mrb[0].mxu0
      %v6216 = vadd.f32 0.0, %v6215
      %v6217 = vpop.f32.mrb[0].mxu0
      %v6218 = vadd.f32 0.0, %v6217
      %6219 = vmatprep.mubr.f32.mxu0 %v4678
      %6220 = vmatmul.mubr.f32.gmra.mrb[0].mxu0 %v4676
      %v6221 = vpop.f32.mrb[0].mxu0
      %v6222 = vadd.f32 0.0, %v6221
      %v6223 = vpop.f32.mrb[0].mxu0
      %v6224 = vadd.f32 0.0, %v6223
      %6225 = vmatprep.mubr.f32.mxu0 %v4682
      %6226 = vmatmul.mubr.f32.gmra.mrb[0].mxu0 %v4680
      %v6227 = vpop.f32.mrb[0].mxu0
      %v6228 = vadd.f32 0.0, %v6227
      %v6229 = vpop.f32.mrb[0].mxu0
      %v6230 = vadd.f32 0.0, %v6229
      %6231 = vmatprep.mubr.f32.mxu0 %v4686
      %6232 = vmatmul.mubr.f32.gmra.mrb[0].mxu0 %v4684
      %v6233 = vpop.f32.mrb[0].mxu0
      %v6234 = vadd.f32 0.0, %v6233
      %v6235 = vpop.f32.mrb[0].mxu0
      %v6236 = vadd.f32 0.0, %v6235
      %6237 = vmatprep.mubr.f32.mxu0 %v4690
      %6238 = vmatmul.mubr.f32.gmra.mrb[0].mxu0 %v4688
      %v6239 = vpop.f32.mrb[0].mxu0
      %v6240 = vadd.f32 0.0, %v6239
      %v6241 = vpop.f32.mrb[0].mxu0
      %v6242 = vadd.f32 0.0, %v6241
      %6243 = vmatprep.mubr.f32.mxu0 %v4694
      %6244 = vmatmul.mubr.f32.gmra.mrb[0].mxu0 %v4692
      %v6245 = vpop.f32.mrb[0].mxu0
      %v6246 = vadd.f32 0.0, %v6245
      %v6247 = vpop.f32.mrb[0].mxu0
      %v6248 = vadd.f32 0.0, %v6247
      %6249 = vdwg.mxu0
      %6250 = vmatprep.subr.mxu0 %v5421
      %6251 = vmatpush1.msra.mxu0 %v5420
      %6252 = vmatprep.subr.mxu0 %v5437
      %6253 = vmatpush1.msra.mxu0 %v5436
      %6254 = vmatprep.subr.mxu0 %v5453
      %6255 = vmatpush1.msra.mxu0 %v5452
      %6256 = vmatprep.subr.mxu0 %v5469
      %6257 = vmatpush1.msra.mxu0 %v5468
      %6258 = vmatprep.subr.mxu0 %v5485
      %6259 = vmatpush1.msra.mxu0 %v5484
      %6260 = vmatprep.subr.mxu0 %v5501
      %6261 = vmatpush1.msra.mxu0 %v5500
      %6262 = vmatprep.subr.mxu0 %v5517
      %6263 = vmatpush1.msra.mxu0 %v5516
      %6264 = vmatprep.subr.mxu0 %v5533
      %6265 = vmatpush1.msra.mxu0 %v5532
      %6266 = vmatprep.subr.mxu0 %v5549
      %6267 = vmatpush1.msra.mxu0 %v5548
      %6268 = vmatprep.subr.mxu0 %v5565
      %6269 = vmatpush1.msra.mxu0 %v5564
      %6270 = vmatprep.subr.mxu0 %v5581
      %6271 = vmatpush1.msra.mxu0 %v5580
      %6272 = vmatprep.subr.mxu0 %v5597
      %6273 = vmatpush1.msra.mxu0 %v5596
      %6274 = vmatprep.subr.mxu0 %v5613
      %6275 = vmatpush1.msra.mxu0 %v5612
      %6276 = vmatprep.subr.mxu0 %v5629
      %6277 = vmatpush1.msra.mxu0 %v5628
      %6278 = vmatprep.subr.mxu0 %v5645
      %6279 = vmatpush1.msra.mxu0 %v5644
      %6280 = vmatprep.subr.mxu0 %v5661
      %6281 = vmatpush1.msra.mxu0 %v5660
      %6282 = vmatprep.subr.mxu0 %v5677
      %6283 = vmatpush1.msra.mxu0 %v5676
      %6284 = vmatprep.subr.mxu0 %v5693
      %6285 = vmatpush1.msra.mxu0 %v5692
      %6286 = vmatprep.subr.mxu0 %v5709
      %6287 = vmatpush1.msra.mxu0 %v5708
      %6288 = vmatprep.subr.mxu0 %v5725
      %6289 = vmatpush1.msra.mxu0 %v5724
      %6290 = vmatprep.subr.mxu0 %v5741
      %6291 = vmatpush1.msra.mxu0 %v5740
      %6292 = vmatprep.subr.mxu0 %v5757
      %6293 = vmatpush1.msra.mxu0 %v5756
      %6294 = vmatprep.subr.mxu0 %v5773
      %6295 = vmatpush1.msra.mxu0 %v5772
      %6296 = vmatprep.subr.mxu0 %v5789
      %6297 = vmatpush1.msra.mxu0 %v5788
      %6298 = vmatprep.subr.mxu0 %v5805
      %6299 = vmatpush1.msra.mxu0 %v5804
      %6300 = vmatprep.subr.mxu0 %v5821
      %6301 = vmatpush1.msra.mxu0 %v5820
      %6302 = vmatprep.subr.mxu0 %v5837
      %6303 = vmatpush1.msra.mxu0 %v5836
      %6304 = vmatprep.subr.mxu0 %v5853
      %6305 = vmatpush1.msra.mxu0 %v5852
      %6306 = vmatprep.subr.mxu0 %v5869
      %6307 = vmatpush1.msra.mxu0 %v5868
      %6308 = vmatprep.subr.mxu0 %v5885
      %6309 = vmatpush1.msra.mxu0 %v5884
      %6310 = vmatprep.subr.mxu0 %v5901
      %6311 = vmatpush1.msra.mxu0 %v5900
      %6312 = vmatprep.subr.mxu0 %v5917
      %6313 = vmatpush1.msra.mxu0 %v5916
      %6314 = vmatprep.mubr.f32.mxu0 %v4634
      %6315 = vmatmul.mubr.f32.gmra.mrb[0].mxu0 %v4632
      %v6316 = vpop.f32.mrb[0].mxu0
      %v6317 = vadd.f32 0.0, %v6316
      %v6318 = vpop.f32.mrb[0].mxu0
      %v6319 = vadd.f32 0.0, %v6318
      %6320 = vmatprep.mubr.f32.mxu0 %v4638
      %6321 = vmatmul.mubr.f32.gmra.mrb[0].mxu0 %v4636
      %v6322 = vpop.f32.mrb[0].mxu0
      %v6323 = vadd.f32 0.0, %v6322
      %v6324 = vpop.f32.mrb[0].mxu0
      %v6325 = vadd.f32 0.0, %v6324
      %6326 = vmatprep.mubr.f32.mxu0 %v4642
      %6327 = vmatmul.mubr.f32.gmra.mrb[0].mxu0 %v4640
      %v6328 = vpop.f32.mrb[0].mxu0
      %v6329 = vadd.f32 0.0, %v6328
      %v6330 = vpop.f32.mrb[0].mxu0
      %v6331 = vadd.f32 0.0, %v6330
      %6332 = vmatprep.mubr.f32.mxu0 %v4646
      %6333 = vmatmul.mubr.f32.gmra.mrb[0].mxu0 %v4644
      %v6334 = vpop.f32.mrb[0].mxu0
      %v6335 = vadd.f32 0.0, %v6334
      %v6336 = vpop.f32.mrb[0].mxu0
      %v6337 = vadd.f32 0.0, %v6336
      %6338 = vmatprep.mubr.f32.mxu0 %v4650
      %6339 = vmatmul.mubr.f32.gmra.mrb[0].mxu0 %v4648
      %v6340 = vpop.f32.mrb[0].mxu0
      %v6341 = vadd.f32 0.0, %v6340
      %v6342 = vpop.f32.mrb[0].mxu0
      %v6343 = vadd.f32 0.0, %v6342
      %6344 = vmatprep.mubr.f32.mxu0 %v4654
      %6345 = vmatmul.mubr.f32.gmra.mrb[0].mxu0 %v4652
      %v6346 = vpop.f32.mrb[0].mxu0
      %v6347 = vadd.f32 0.0, %v6346
      %v6348 = vpop.f32.mrb[0].mxu0
      %v6349 = vadd.f32 0.0, %v6348
      %6350 = vmatprep.mubr.f32.mxu0 %v4658
      %6351 = vmatmul.mubr.f32.gmra.mrb[0].mxu0 %v4656
      %v6352 = vpop.f32.mrb[0].mxu0
      %v6353 = vadd.f32 0.0, %v6352
      %v6354 = vpop.f32.mrb[0].mxu0
      %v6355 = vadd.f32 0.0, %v6354
      %6356 = vmatprep.mubr.f32.mxu0 %v4662
      %6357 = vmatmul.mubr.f32.gmra.mrb[0].mxu0 %v4660
      %v6358 = vpop.f32.mrb[0].mxu0
      %v6359 = vadd.f32 0.0, %v6358
      %v6360 = vpop.f32.mrb[0].mxu0
      %v6361 = vadd.f32 0.0, %v6360
      %6362 = vmatprep.mubr.f32.mxu0 %v4666
      %6363 = vmatmul.mubr.f32.gmra.mrb[0].mxu0 %v4664
      %v6364 = vpop.f32.mrb[0].mxu0
      %v6365 = vadd.f32 0.0, %v6364
      %v6366 = vpop.f32.mrb[0].mxu0
      %v6367 = vadd.f32 0.0, %v6366
      %6368 = vmatprep.mubr.f32.mxu0 %v4670
      %6369 = vmatmul.mubr.f32.gmra.mrb[0].mxu0 %v4668
      %v6370 = vpop.f32.mrb[0].mxu0
      %v6371 = vadd.f32 0.0, %v6370
      %v6372 = vpop.f32.mrb[0].mxu0
      %v6373 = vadd.f32 0.0, %v6372
      %6374 = vmatprep.mubr.f32.mxu0 %v4674
      %6375 = vmatmul.mubr.f32.gmra.mrb[0].mxu0 %v4672
      %v6376 = vpop.f32.mrb[0].mxu0
      %v6377 = vadd.f32 0.0, %v6376
      %v6378 = vpop.f32.mrb[0].mxu0
      %v6379 = vadd.f32 0.0, %v6378
      %6380 = vmatprep.mubr.f32.mxu0 %v4678
      %6381 = vmatmul.mubr.f32.gmra.mrb[0].mxu0 %v4676
      %v6382 = vpop.f32.mrb[0].mxu0
      %v6383 = vadd.f32 0.0, %v6382
      %v6384 = vpop.f32.mrb[0].mxu0
      %v6385 = vadd.f32 0.0, %v6384
      %6386 = vmatprep.mubr.f32.mxu0 %v4682
      %6387 = vmatmul.mubr.f32.gmra.mrb[0].mxu0 %v4680
      %v6388 = vpop.f32.mrb[0].mxu0
      %v6389 = vadd.f32 0.0, %v6388
      %v6390 = vpop.f32.mrb[0].mxu0
      %v6391 = vadd.f32 0.0, %v6390
      %6392 = vmatprep.mubr.f32.mxu0 %v4686
      %6393 = vmatmul.mubr.f32.gmra.mrb[0].mxu0 %v4684
      %v6394 = vpop.f32.mrb[0].mxu0
      %v6395 = vadd.f32 0.0, %v6394
      %v6396 = vpop.f32.mrb[0].mxu0
      %v6397 = vadd.f32 0.0, %v6396
      %6398 = vmatprep.mubr.f32.mxu0 %v4690
      %6399 = vmatmul.mubr.f32.gmra.mrb[0].mxu0 %v4688
      %v6400 = vpop.f32.mrb[0].mxu0
      %v6401 = vadd.f32 0.0, %v6400
      %v6402 = vpop.f32.mrb[0].mxu0
      %v6403 = vadd.f32 0.0, %v6402
      %6404 = vmatprep.mubr.f32.mxu0 %v4694
      %6405 = vmatmul.mubr.f32.gmra.mrb[0].mxu0 %v4692
      %v6406 = vpop.f32.mrb[0].mxu0
      %v6407 = vadd.f32 0.0, %v6406
      %v6408 = vpop.f32.mrb[0].mxu0
      %v6409 = vadd.f32 0.0, %v6408
      %6410 = vdwg.mxu0
      %6411 = vmatprep.subr.mxu0 %v5423
      %6412 = vmatpush1.msra.mxu0 %v5422
      %6413 = vmatprep.subr.mxu0 %v5439
      %6414 = vmatpush1.msra.mxu0 %v5438
      %6415 = vmatprep.subr.mxu0 %v5455
      %6416 = vmatpush1.msra.mxu0 %v5454
      %6417 = vmatprep.subr.mxu0 %v5471
      %6418 = vmatpush1.msra.mxu0 %v5470
      %6419 = vmatprep.subr.mxu0 %v5487
      %6420 = vmatpush1.msra.mxu0 %v5486
      %6421 = vmatprep.subr.mxu0 %v5503
      %6422 = vmatpush1.msra.mxu0 %v5502
      %6423 = vmatprep.subr.mxu0 %v5519
      %6424 = vmatpush1.msra.mxu0 %v5518
      %6425 = vmatprep.subr.mxu0 %v5535
      %6426 = vmatpush1.msra.mxu0 %v5534
      %6427 = vmatprep.subr.mxu0 %v5551
      %6428 = vmatpush1.msra.mxu0 %v5550
      %6429 = vmatprep.subr.mxu0 %v5567
      %6430 = vmatpush1.msra.mxu0 %v5566
      %6431 = vmatprep.subr.mxu0 %v5583
      %6432 = vmatpush1.msra.mxu0 %v5582
      %6433 = vmatprep.subr.mxu0 %v5599
      %6434 = vmatpush1.msra.mxu0 %v5598
      %6435 = vmatprep.subr.mxu0 %v5615
      %6436 = vmatpush1.msra.mxu0 %v5614
      %6437 = vmatprep.subr.mxu0 %v5631
      %6438 = vmatpush1.msra.mxu0 %v5630
      %6439 = vmatprep.subr.mxu0 %v5647
      %6440 = vmatpush1.msra.mxu0 %v5646
      %6441 = vmatprep.subr.mxu0 %v5663
      %6442 = vmatpush1.msra.mxu0 %v5662
      %6443 = vmatprep.subr.mxu0 %v5679
      %6444 = vmatpush1.msra.mxu0 %v5678
      %6445 = vmatprep.subr.mxu0 %v5695
      %6446 = vmatpush1.msra.mxu0 %v5694
      %6447 = vmatprep.subr.mxu0 %v5711
      %6448 = vmatpush1.msra.mxu0 %v5710
      %6449 = vmatprep.subr.mxu0 %v5727
      %6450 = vmatpush1.msra.mxu0 %v5726
      %6451 = vmatprep.subr.mxu0 %v5743
      %6452 = vmatpush1.msra.mxu0 %v5742
      %6453 = vmatprep.subr.mxu0 %v5759
      %6454 = vmatpush1.msra.mxu0 %v5758
      %6455 = vmatprep.subr.mxu0 %v5775
      %6456 = vmatpush1.msra.mxu0 %v5774
      %6457 = vmatprep.subr.mxu0 %v5791
      %6458 = vmatpush1.msra.mxu0 %v5790
      %6459 = vmatprep.subr.mxu0 %v5807
      %6460 = vmatpush1.msra.mxu0 %v5806
      %6461 = vmatprep.subr.mxu0 %v5823
      %6462 = vmatpush1.msra.mxu0 %v5822
      %6463 = vmatprep.subr.mxu0 %v5839
      %6464 = vmatpush1.msra.mxu0 %v5838
      %6465 = vmatprep.subr.mxu0 %v5855
      %6466 = vmatpush1.msra.mxu0 %v5854
      %6467 = vmatprep.subr.mxu0 %v5871
      %6468 = vmatpush1.msra.mxu0 %v5870
      %6469 = vmatprep.subr.mxu0 %v5887
      %6470 = vmatpush1.msra.mxu0 %v5886
      %6471 = vmatprep.subr.mxu0 %v5903
      %6472 = vmatpush1.msra.mxu0 %v5902
      %6473 = vmatprep.subr.mxu0 %v5919
      %6474 = vmatpush1.msra.mxu0 %v5918
      %6475 = vmatprep.mubr.f32.mxu0 %v4634
      %6476 = vmatmul.mubr.f32.gmra.mrb[0].mxu0 %v4632
      %v6477 = vpop.f32.mrb[0].mxu0
      %v6478 = vadd.f32 0.0, %v6477
      %v6479 = vpop.f32.mrb[0].mxu0
      %v6480 = vadd.f32 0.0, %v6479
      %6481 = vmatprep.mubr.f32.mxu0 %v4638
      %6482 = vmatmul.mubr.f32.gmra.mrb[0].mxu0 %v4636
      %v6483 = vpop.f32.mrb[0].mxu0
      %v6484 = vadd.f32 0.0, %v6483
      %v6485 = vpop.f32.mrb[0].mxu0
      %v6486 = vadd.f32 0.0, %v6485
      %6487 = vmatprep.mubr.f32.mxu0 %v4642
      %6488 = vmatmul.mubr.f32.gmra.mrb[0].mxu0 %v4640
      %v6489 = vpop.f32.mrb[0].mxu0
      %v6490 = vadd.f32 0.0, %v6489
      %v6491 = vpop.f32.mrb[0].mxu0
      %v6492 = vadd.f32 0.0, %v6491
      %6493 = vmatprep.mubr.f32.mxu0 %v4646
      %6494 = vmatmul.mubr.f32.gmra.mrb[0].mxu0 %v4644
      %v6495 = vpop.f32.mrb[0].mxu0
      %v6496 = vadd.f32 0.0, %v6495
      %v6497 = vpop.f32.mrb[0].mxu0
      %v6498 = vadd.f32 0.0, %v6497
      %6499 = vmatprep.mubr.f32.mxu0 %v4650
      %6500 = vmatmul.mubr.f32.gmra.mrb[0].mxu0 %v4648
      %v6501 = vpop.f32.mrb[0].mxu0
      %v6502 = vadd.f32 0.0, %v6501
      %v6503 = vpop.f32.mrb[0].mxu0
      %v6504 = vadd.f32 0.0, %v6503
      %6505 = vmatprep.mubr.f32.mxu0 %v4654
      %6506 = vmatmul.mubr.f32.gmra.mrb[0].mxu0 %v4652
      %v6507 = vpop.f32.mrb[0].mxu0
      %v6508 = vadd.f32 0.0, %v6507
      %v6509 = vpop.f32.mrb[0].mxu0
      %v6510 = vadd.f32 0.0, %v6509
      %6511 = vmatprep.mubr.f32.mxu0 %v4658
      %6512 = vmatmul.mubr.f32.gmra.mrb[0].mxu0 %v4656
      %v6513 = vpop.f32.mrb[0].mxu0
      %v6514 = vadd.f32 0.0, %v6513
      %v6515 = vpop.f32.mrb[0].mxu0
      %v6516 = vadd.f32 0.0, %v6515
      %6517 = vmatprep.mubr.f32.mxu0 %v4662
      %6518 = vmatmul.mubr.f32.gmra.mrb[0].mxu0 %v4660
      %v6519 = vpop.f32.mrb[0].mxu0
      %v6520 = vadd.f32 0.0, %v6519
      %v6521 = vpop.f32.mrb[0].mxu0
      %v6522 = vadd.f32 0.0, %v6521
      %6523 = vmatprep.mubr.f32.mxu0 %v4666
      %6524 = vmatmul.mubr.f32.gmra.mrb[0].mxu0 %v4664
      %v6525 = vpop.f32.mrb[0].mxu0
      %v6526 = vadd.f32 0.0, %v6525
      %v6527 = vpop.f32.mrb[0].mxu0
      %v6528 = vadd.f32 0.0, %v6527
      %6529 = vmatprep.mubr.f32.mxu0 %v4670
      %6530 = vmatmul.mubr.f32.gmra.mrb[0].mxu0 %v4668
      %v6531 = vpop.f32.mrb[0].mxu0
      %v6532 = vadd.f32 0.0, %v6531
      %v6533 = vpop.f32.mrb[0].mxu0
      %v6534 = vadd.f32 0.0, %v6533
      %6535 = vmatprep.mubr.f32.mxu0 %v4674
      %6536 = vmatmul.mubr.f32.gmra.mrb[0].mxu0 %v4672
      %v6537 = vpop.f32.mrb[0].mxu0
      %v6538 = vadd.f32 0.0, %v6537
      %v6539 = vpop.f32.mrb[0].mxu0
      %v6540 = vadd.f32 0.0, %v6539
      %6541 = vmatprep.mubr.f32.mxu0 %v4678
      %6542 = vmatmul.mubr.f32.gmra.mrb[0].mxu0 %v4676
      %v6543 = vpop.f32.mrb[0].mxu0
      %v6544 = vadd.f32 0.0, %v6543
      %v6545 = vpop.f32.mrb[0].mxu0
      %v6546 = vadd.f32 0.0, %v6545
      %6547 = vmatprep.mubr.f32.mxu0 %v4682
      %6548 = vmatmul.mubr.f32.gmra.mrb[0].mxu0 %v4680
      %v6549 = vpop.f32.mrb[0].mxu0
      %v6550 = vadd.f32 0.0, %v6549
      %v6551 = vpop.f32.mrb[0].mxu0
      %v6552 = vadd.f32 0.0, %v6551
      %6553 = vmatprep.mubr.f32.mxu0 %v4686
      %6554 = vmatmul.mubr.f32.gmra.mrb[0].mxu0 %v4684
      %v6555 = vpop.f32.mrb[0].mxu0
      %v6556 = vadd.f32 0.0, %v6555
      %v6557 = vpop.f32.mrb[0].mxu0
      %v6558 = vadd.f32 0.0, %v6557
      %6559 = vmatprep.mubr.f32.mxu0 %v4690
      %6560 = vmatmul.mubr.f32.gmra.mrb[0].mxu0 %v4688
      %v6561 = vpop.f32.mrb[0].mxu0
      %v6562 = vadd.f32 0.0, %v6561
      %v6563 = vpop.f32.mrb[0].mxu0
      %v6564 = vadd.f32 0.0, %v6563
      %6565 = vmatprep.mubr.f32.mxu0 %v4694
      %6566 = vmatmul.mubr.f32.gmra.mrb[0].mxu0 %v4692
      %v6567 = vpop.f32.mrb[0].mxu0
      %v6568 = vadd.f32 0.0, %v6567
      %v6569 = vpop.f32.mrb[0].mxu0
      %v6570 = vadd.f32 0.0, %v6569
      %6571 = vdwg.mxu0
      %6572 = vmatprep.subr.mxu0 %v5425
      %6573 = vmatpush1.msra.mxu0 %v5424
      %6574 = vmatprep.subr.mxu0 %v5441
      %6575 = vmatpush1.msra.mxu0 %v5440
      %6576 = vmatprep.subr.mxu0 %v5457
      %6577 = vmatpush1.msra.mxu0 %v5456
      %6578 = vmatprep.subr.mxu0 %v5473
      %6579 = vmatpush1.msra.mxu0 %v5472
      %6580 = vmatprep.subr.mxu0 %v5489
      %6581 = vmatpush1.msra.mxu0 %v5488
      %6582 = vmatprep.subr.mxu0 %v5505
      %6583 = vmatpush1.msra.mxu0 %v5504
      %6584 = vmatprep.subr.mxu0 %v5521
      %6585 = vmatpush1.msra.mxu0 %v5520
      %6586 = vmatprep.subr.mxu0 %v5537
      %6587 = vmatpush1.msra.mxu0 %v5536
      %6588 = vmatprep.subr.mxu0 %v5553
      %6589 = vmatpush1.msra.mxu0 %v5552
      %6590 = vmatprep.subr.mxu0 %v5569
      %6591 = vmatpush1.msra.mxu0 %v5568
      %6592 = vmatprep.subr.mxu0 %v5585
      %6593 = vmatpush1.msra.mxu0 %v5584
      %6594 = vmatprep.subr.mxu0 %v5601
      %6595 = vmatpush1.msra.mxu0 %v5600
      %6596 = vmatprep.subr.mxu0 %v5617
      %6597 = vmatpush1.msra.mxu0 %v5616
      %6598 = vmatprep.subr.mxu0 %v5633
      %6599 = vmatpush1.msra.mxu0 %v5632
      %6600 = vmatprep.subr.mxu0 %v5649
      %6601 = vmatpush1.msra.mxu0 %v5648
      %6602 = vmatprep.subr.mxu0 %v5665
      %6603 = vmatpush1.msra.mxu0 %v5664
      %6604 = vmatprep.subr.mxu0 %v5681
      %6605 = vmatpush1.msra.mxu0 %v5680
      %6606 = vmatprep.subr.mxu0 %v5697
      %6607 = vmatpush1.msra.mxu0 %v5696
      %6608 = vmatprep.subr.mxu0 %v5713
      %6609 = vmatpush1.msra.mxu0 %v5712
      %6610 = vmatprep.subr.mxu0 %v5729
      %6611 = vmatpush1.msra.mxu0 %v5728
      %6612 = vmatprep.subr.mxu0 %v5745
      %6613 = vmatpush1.msra.mxu0 %v5744
      %6614 = vmatprep.subr.mxu0 %v5761
      %6615 = vmatpush1.msra.mxu0 %v5760
      %6616 = vmatprep.subr.mxu0 %v5777
      %6617 = vmatpush1.msra.mxu0 %v5776
      %6618 = vmatprep.subr.mxu0 %v5793
      %6619 = vmatpush1.msra.mxu0 %v5792
      %6620 = vmatprep.subr.mxu0 %v5809
      %6621 = vmatpush1.msra.mxu0 %v5808
      %6622 = vmatprep.subr.mxu0 %v5825
      %6623 = vmatpush1.msra.mxu0 %v5824
      %6624 = vmatprep.subr.mxu0 %v5841
      %6625 = vmatpush1.msra.mxu0 %v5840
      %6626 = vmatprep.subr.mxu0 %v5857
      %6627 = vmatpush1.msra.mxu0 %v5856
      %6628 = vmatprep.subr.mxu0 %v5873
      %6629 = vmatpush1.msra.mxu0 %v5872
      %6630 = vmatprep.subr.mxu0 %v5889
      %6631 = vmatpush1.msra.mxu0 %v5888
      %6632 = vmatprep.subr.mxu0 %v5905
      %6633 = vmatpush1.msra.mxu0 %v5904
      %6634 = vmatprep.subr.mxu0 %v5921
      %6635 = vmatpush1.msra.mxu0 %v5920
      %6636 = vmatprep.mubr.f32.mxu0 %v4634
      %6637 = vmatmul.mubr.f32.gmra.mrb[0].mxu0 %v4632
      %v6638 = vpop.f32.mrb[0].mxu0
      %v6639 = vadd.f32 0.0, %v6638
      %v6640 = vpop.f32.mrb[0].mxu0
      %v6641 = vadd.f32 0.0, %v6640
      %6642 = vmatprep.mubr.f32.mxu0 %v4638
      %6643 = vmatmul.mubr.f32.gmra.mrb[0].mxu0 %v4636
      %v6644 = vpop.f32.mrb[0].mxu0
      %v6645 = vadd.f32 0.0, %v6644
      %v6646 = vpop.f32.mrb[0].mxu0
      %v6647 = vadd.f32 0.0, %v6646
      %6648 = vmatprep.mubr.f32.mxu0 %v4642
      %6649 = vmatmul.mubr.f32.gmra.mrb[0].mxu0 %v4640
      %v6650 = vpop.f32.mrb[0].mxu0
      %v6651 = vadd.f32 0.0, %v6650
      %v6652 = vpop.f32.mrb[0].mxu0
      %v6653 = vadd.f32 0.0, %v6652
      %6654 = vmatprep.mubr.f32.mxu0 %v4646
      %6655 = vmatmul.mubr.f32.gmra.mrb[0].mxu0 %v4644
      %v6656 = vpop.f32.mrb[0].mxu0
      %v6657 = vadd.f32 0.0, %v6656
      %v6658 = vpop.f32.mrb[0].mxu0
      %v6659 = vadd.f32 0.0, %v6658
      %6660 = vmatprep.mubr.f32.mxu0 %v4650
      %6661 = vmatmul.mubr.f32.gmra.mrb[0].mxu0 %v4648
      %v6662 = vpop.f32.mrb[0].mxu0
      %v6663 = vadd.f32 0.0, %v6662
      %v6664 = vpop.f32.mrb[0].mxu0
      %v6665 = vadd.f32 0.0, %v6664
      %6666 = vmatprep.mubr.f32.mxu0 %v4654
      %6667 = vmatmul.mubr.f32.gmra.mrb[0].mxu0 %v4652
      %v6668 = vpop.f32.mrb[0].mxu0
      %v6669 = vadd.f32 0.0, %v6668
      %v6670 = vpop.f32.mrb[0].mxu0
      %v6671 = vadd.f32 0.0, %v6670
      %6672 = vmatprep.mubr.f32.mxu0 %v4658
      %6673 = vmatmul.mubr.f32.gmra.mrb[0].mxu0 %v4656
      %v6674 = vpop.f32.mrb[0].mxu0
      %v6675 = vadd.f32 0.0, %v6674
      %v6676 = vpop.f32.mrb[0].mxu0
      %v6677 = vadd.f32 0.0, %v6676
      %6678 = vmatprep.mubr.f32.mxu0 %v4662
      %6679 = vmatmul.mubr.f32.gmra.mrb[0].mxu0 %v4660
      %v6680 = vpop.f32.mrb[0].mxu0
      %v6681 = vadd.f32 0.0, %v6680
      %v6682 = vpop.f32.mrb[0].mxu0
      %v6683 = vadd.f32 0.0, %v6682
      %6684 = vmatprep.mubr.f32.mxu0 %v4666
      %6685 = vmatmul.mubr.f32.gmra.mrb[0].mxu0 %v4664
      %v6686 = vpop.f32.mrb[0].mxu0
      %v6687 = vadd.f32 0.0, %v6686
      %v6688 = vpop.f32.mrb[0].mxu0
      %v6689 = vadd.f32 0.0, %v6688
      %6690 = vmatprep.mubr.f32.mxu0 %v4670
      %6691 = vmatmul.mubr.f32.gmra.mrb[0].mxu0 %v4668
      %v6692 = vpop.f32.mrb[0].mxu0
      %v6693 = vadd.f32 0.0, %v6692
      %v6694 = vpop.f32.mrb[0].mxu0
      %v6695 = vadd.f32 0.0, %v6694
      %6696 = vmatprep.mubr.f32.mxu0 %v4674
      %6697 = vmatmul.mubr.f32.gmra.mrb[0].mxu0 %v4672
      %v6698 = vpop.f32.mrb[0].mxu0
      %v6699 = vadd.f32 0.0, %v6698
      %v6700 = vpop.f32.mrb[0].mxu0
      %v6701 = vadd.f32 0.0, %v6700
      %6702 = vmatprep.mubr.f32.mxu0 %v4678
      %6703 = vmatmul.mubr.f32.gmra.mrb[0].mxu0 %v4676
      %v6704 = vpop.f32.mrb[0].mxu0
      %v6705 = vadd.f32 0.0, %v6704
      %v6706 = vpop.f32.mrb[0].mxu0
      %v6707 = vadd.f32 0.0, %v6706
      %6708 = vmatprep.mubr.f32.mxu0 %v4682
      %6709 = vmatmul.mubr.f32.gmra.mrb[0].mxu0 %v4680
      %v6710 = vpop.f32.mrb[0].mxu0
      %v6711 = vadd.f32 0.0, %v6710
      %v6712 = vpop.f32.mrb[0].mxu0
      %v6713 = vadd.f32 0.0, %v6712
      %6714 = vmatprep.mubr.f32.mxu0 %v4686
      %6715 = vmatmul.mubr.f32.gmra.mrb[0].mxu0 %v4684
      %v6716 = vpop.f32.mrb[0].mxu0
      %v6717 = vadd.f32 0.0, %v6716
      %v6718 = vpop.f32.mrb[0].mxu0
      %v6719 = vadd.f32 0.0, %v6718
      %6720 = vmatprep.mubr.f32.mxu0 %v4690
      %6721 = vmatmul.mubr.f32.gmra.mrb[0].mxu0 %v4688
      %v6722 = vpop.f32.mrb[0].mxu0
      %v6723 = vadd.f32 0.0, %v6722
      %v6724 = vpop.f32.mrb[0].mxu0
      %v6725 = vadd.f32 0.0, %v6724
      %6726 = vmatprep.mubr.f32.mxu0 %v4694
      %6727 = vmatmul.mubr.f32.gmra.mrb[0].mxu0 %v4692
      %v6728 = vpop.f32.mrb[0].mxu0
      %v6729 = vadd.f32 0.0, %v6728
      %v6730 = vpop.f32.mrb[0].mxu0
      %v6731 = vadd.f32 0.0, %v6730
      %6732 = vdwg.mxu0
      %6733 = vmatprep.subr.mxu0 %v5427
      %6734 = vmatpush1.msra.mxu0 %v5426
      %6735 = vmatprep.subr.mxu0 %v5443
      %6736 = vmatpush1.msra.mxu0 %v5442
      %6737 = vmatprep.subr.mxu0 %v5459
      %6738 = vmatpush1.msra.mxu0 %v5458
      %6739 = vmatprep.subr.mxu0 %v5475
      %6740 = vmatpush1.msra.mxu0 %v5474
      %6741 = vmatprep.subr.mxu0 %v5491
      %6742 = vmatpush1.msra.mxu0 %v5490
      %6743 = vmatprep.subr.mxu0 %v5507
      %6744 = vmatpush1.msra.mxu0 %v5506
      %6745 = vmatprep.subr.mxu0 %v5523
      %6746 = vmatpush1.msra.mxu0 %v5522
      %6747 = vmatprep.subr.mxu0 %v5539
      %6748 = vmatpush1.msra.mxu0 %v5538
      %6749 = vmatprep.subr.mxu0 %v5555
      %6750 = vmatpush1.msra.mxu0 %v5554
      %6751 = vmatprep.subr.mxu0 %v5571
      %6752 = vmatpush1.msra.mxu0 %v5570
      %6753 = vmatprep.subr.mxu0 %v5587
      %6754 = vmatpush1.msra.mxu0 %v5586
      %6755 = vmatprep.subr.mxu0 %v5603
      %6756 = vmatpush1.msra.mxu0 %v5602
      %6757 = vmatprep.subr.mxu0 %v5619
      %6758 = vmatpush1.msra.mxu0 %v5618
      %6759 = vmatprep.subr.mxu0 %v5635
      %6760 = vmatpush1.msra.mxu0 %v5634
      %6761 = vmatprep.subr.mxu0 %v5651
      %6762 = vmatpush1.msra.mxu0 %v5650
      %6763 = vmatprep.subr.mxu0 %v5667
      %6764 = vmatpush1.msra.mxu0 %v5666
      %6765 = vmatprep.subr.mxu0 %v5683
      %6766 = vmatpush1.msra.mxu0 %v5682
      %6767 = vmatprep.subr.mxu0 %v5699
      %6768 = vmatpush1.msra.mxu0 %v5698
      %6769 = vmatprep.subr.mxu0 %v5715
      %6770 = vmatpush1.msra.mxu0 %v5714
      %6771 = vmatprep.subr.mxu0 %v5731
      %6772 = vmatpush1.msra.mxu0 %v5730
      %6773 = vmatprep.subr.mxu0 %v5747
      %6774 = vmatpush1.msra.mxu0 %v5746
      %6775 = vmatprep.subr.mxu0 %v5763
      %6776 = vmatpush1.msra.mxu0 %v5762
      %6777 = vmatprep.subr.mxu0 %v5779
      %6778 = vmatpush1.msra.mxu0 %v5778
      %6779 = vmatprep.subr.mxu0 %v5795
      %6780 = vmatpush1.msra.mxu0 %v5794
      %6781 = vmatprep.subr.mxu0 %v5811
      %6782 = vmatpush1.msra.mxu0 %v5810
      %6783 = vmatprep.subr.mxu0 %v5827
      %6784 = vmatpush1.msra.mxu0 %v5826
      %6785 = vmatprep.subr.mxu0 %v5843
      %6786 = vmatpush1.msra.mxu0 %v5842
      %6787 = vmatprep.subr.mxu0 %v5859
      %6788 = vmatpush1.msra.mxu0 %v5858
      %6789 = vmatprep.subr.mxu0 %v5875
      %6790 = vmatpush1.msra.mxu0 %v5874
      %6791 = vmatprep.subr.mxu0 %v5891
      %6792 = vmatpush1.msra.mxu0 %v5890
      %6793 = vmatprep.subr.mxu0 %v5907
      %6794 = vmatpush1.msra.mxu0 %v5906
      %6795 = vmatprep.subr.mxu0 %v5923
      %6796 = vmatpush1.msra.mxu0 %v5922
      %6797 = vmatprep.mubr.f32.mxu0 %v4634
      %6798 = vmatmul.mubr.f32.gmra.mrb[0].mxu0 %v4632
      %v6799 = vpop.f32.mrb[0].mxu0
      %v6800 = vadd.f32 0.0, %v6799
      %v6801 = vpop.f32.mrb[0].mxu0
      %v6802 = vadd.f32 0.0, %v6801
      %6803 = vmatprep.mubr.f32.mxu0 %v4638
      %6804 = vmatmul.mubr.f32.gmra.mrb[0].mxu0 %v4636
      %v6805 = vpop.f32.mrb[0].mxu0
      %v6806 = vadd.f32 0.0, %v6805
      %v6807 = vpop.f32.mrb[0].mxu0
      %v6808 = vadd.f32 0.0, %v6807
      %6809 = vmatprep.mubr.f32.mxu0 %v4642
      %6810 = vmatmul.mubr.f32.gmra.mrb[0].mxu0 %v4640
      %v6811 = vpop.f32.mrb[0].mxu0
      %v6812 = vadd.f32 0.0, %v6811
      %v6813 = vpop.f32.mrb[0].mxu0
      %v6814 = vadd.f32 0.0, %v6813
      %6815 = vmatprep.mubr.f32.mxu0 %v4646
      %6816 = vmatmul.mubr.f32.gmra.mrb[0].mxu0 %v4644
      %v6817 = vpop.f32.mrb[0].mxu0
      %v6818 = vadd.f32 0.0, %v6817
      %v6819 = vpop.f32.mrb[0].mxu0
      %v6820 = vadd.f32 0.0, %v6819
      %6821 = vmatprep.mubr.f32.mxu0 %v4650
      %6822 = vmatmul.mubr.f32.gmra.mrb[0].mxu0 %v4648
      %v6823 = vpop.f32.mrb[0].mxu0
      %v6824 = vadd.f32 0.0, %v6823
      %v6825 = vpop.f32.mrb[0].mxu0
      %v6826 = vadd.f32 0.0, %v6825
      %6827 = vmatprep.mubr.f32.mxu0 %v4654
      %6828 = vmatmul.mubr.f32.gmra.mrb[0].mxu0 %v4652
      %v6829 = vpop.f32.mrb[0].mxu0
      %v6830 = vadd.f32 0.0, %v6829
      %v6831 = vpop.f32.mrb[0].mxu0
      %v6832 = vadd.f32 0.0, %v6831
      %6833 = vmatprep.mubr.f32.mxu0 %v4658
      %6834 = vmatmul.mubr.f32.gmra.mrb[0].mxu0 %v4656
      %v6835 = vpop.f32.mrb[0].mxu0
      %v6836 = vadd.f32 0.0, %v6835
      %v6837 = vpop.f32.mrb[0].mxu0
      %v6838 = vadd.f32 0.0, %v6837
      %6839 = vmatprep.mubr.f32.mxu0 %v4662
      %6840 = vmatmul.mubr.f32.gmra.mrb[0].mxu0 %v4660
      %v6841 = vpop.f32.mrb[0].mxu0
      %v6842 = vadd.f32 0.0, %v6841
      %v6843 = vpop.f32.mrb[0].mxu0
      %v6844 = vadd.f32 0.0, %v6843
      %6845 = vmatprep.mubr.f32.mxu0 %v4666
      %6846 = vmatmul.mubr.f32.gmra.mrb[0].mxu0 %v4664
      %v6847 = vpop.f32.mrb[0].mxu0
      %v6848 = vadd.f32 0.0, %v6847
      %v6849 = vpop.f32.mrb[0].mxu0
      %v6850 = vadd.f32 0.0, %v6849
      %6851 = vmatprep.mubr.f32.mxu0 %v4670
      %6852 = vmatmul.mubr.f32.gmra.mrb[0].mxu0 %v4668
      %v6853 = vpop.f32.mrb[0].mxu0
      %v6854 = vadd.f32 0.0, %v6853
      %v6855 = vpop.f32.mrb[0].mxu0
      %v6856 = vadd.f32 0.0, %v6855
      %6857 = vmatprep.mubr.f32.mxu0 %v4674
      %6858 = vmatmul.mubr.f32.gmra.mrb[0].mxu0 %v4672
      %v6859 = vpop.f32.mrb[0].mxu0
      %v6860 = vadd.f32 0.0, %v6859
      %v6861 = vpop.f32.mrb[0].mxu0
      %v6862 = vadd.f32 0.0, %v6861
      %6863 = vmatprep.mubr.f32.mxu0 %v4678
      %6864 = vmatmul.mubr.f32.gmra.mrb[0].mxu0 %v4676
      %v6865 = vpop.f32.mrb[0].mxu0
      %v6866 = vadd.f32 0.0, %v6865
      %v6867 = vpop.f32.mrb[0].mxu0
      %v6868 = vadd.f32 0.0, %v6867
      %6869 = vmatprep.mubr.f32.mxu0 %v4682
      %6870 = vmatmul.mubr.f32.gmra.mrb[0].mxu0 %v4680
      %v6871 = vpop.f32.mrb[0].mxu0
      %v6872 = vadd.f32 0.0, %v6871
      %v6873 = vpop.f32.mrb[0].mxu0
      %v6874 = vadd.f32 0.0, %v6873
      %6875 = vmatprep.mubr.f32.mxu0 %v4686
      %6876 = vmatmul.mubr.f32.gmra.mrb[0].mxu0 %v4684
      %v6877 = vpop.f32.mrb[0].mxu0
      %v6878 = vadd.f32 0.0, %v6877
      %v6879 = vpop.f32.mrb[0].mxu0
      %v6880 = vadd.f32 0.0, %v6879
      %6881 = vmatprep.mubr.f32.mxu0 %v4690
      %6882 = vmatmul.mubr.f32.gmra.mrb[0].mxu0 %v4688
      %v6883 = vpop.f32.mrb[0].mxu0
      %v6884 = vadd.f32 0.0, %v6883
      %v6885 = vpop.f32.mrb[0].mxu0
      %v6886 = vadd.f32 0.0, %v6885
      %6887 = vmatprep.mubr.f32.mxu0 %v4694
      %6888 = vmatmul.mubr.f32.gmra.mrb[0].mxu0 %v4692
      %v6889 = vpop.f32.mrb[0].mxu0
      %v6890 = vadd.f32 0.0, %v6889
      %v6891 = vpop.f32.mrb[0].mxu0
      %v6892 = vadd.f32 0.0, %v6891
      %6893 = vdwg.mxu0
      %6894 = vmatprep.subr.mxu0 %v5429
      %6895 = vmatpush1.msra.mxu0 %v5428
      %6896 = vmatprep.subr.mxu0 %v5445
      %6897 = vmatpush1.msra.mxu0 %v5444
      %6898 = vmatprep.subr.mxu0 %v5461
      %6899 = vmatpush1.msra.mxu0 %v5460
      %6900 = vmatprep.subr.mxu0 %v5477
      %6901 = vmatpush1.msra.mxu0 %v5476
      %6902 = vmatprep.subr.mxu0 %v5493
      %6903 = vmatpush1.msra.mxu0 %v5492
      %6904 = vmatprep.subr.mxu0 %v5509
      %6905 = vmatpush1.msra.mxu0 %v5508
      %6906 = vmatprep.subr.mxu0 %v5525
      %6907 = vmatpush1.msra.mxu0 %v5524
      %6908 = vmatprep.subr.mxu0 %v5541
      %6909 = vmatpush1.msra.mxu0 %v5540
      %6910 = vmatprep.subr.mxu0 %v5557
      %6911 = vmatpush1.msra.mxu0 %v5556
      %6912 = vmatprep.subr.mxu0 %v5573
      %6913 = vmatpush1.msra.mxu0 %v5572
      %6914 = vmatprep.subr.mxu0 %v5589
      %6915 = vmatpush1.msra.mxu0 %v5588
      %6916 = vmatprep.subr.mxu0 %v5605
      %6917 = vmatpush1.msra.mxu0 %v5604
      %6918 = vmatprep.subr.mxu0 %v5621
      %6919 = vmatpush1.msra.mxu0 %v5620
      %6920 = vmatprep.subr.mxu0 %v5637
      %6921 = vmatpush1.msra.mxu0 %v5636
      %6922 = vmatprep.subr.mxu0 %v5653
      %6923 = vmatpush1.msra.mxu0 %v5652
      %6924 = vmatprep.subr.mxu0 %v5669
      %6925 = vmatpush1.msra.mxu0 %v5668
      %6926 = vmatprep.subr.mxu0 %v5685
      %6927 = vmatpush1.msra.mxu0 %v5684
      %6928 = vmatprep.subr.mxu0 %v5701
      %6929 = vmatpush1.msra.mxu0 %v5700
      %6930 = vmatprep.subr.mxu0 %v5717
      %6931 = vmatpush1.msra.mxu0 %v5716
      %6932 = vmatprep.subr.mxu0 %v5733
      %6933 = vmatpush1.msra.mxu0 %v5732
      %6934 = vmatprep.subr.mxu0 %v5749
      %6935 = vmatpush1.msra.mxu0 %v5748
      %6936 = vmatprep.subr.mxu0 %v5765
      %6937 = vmatpush1.msra.mxu0 %v5764
      %6938 = vmatprep.subr.mxu0 %v5781
      %6939 = vmatpush1.msra.mxu0 %v5780
      %6940 = vmatprep.subr.mxu0 %v5797
      %6941 = vmatpush1.msra.mxu0 %v5796
      %6942 = vmatprep.subr.mxu0 %v5813
      %6943 = vmatpush1.msra.mxu0 %v5812
      %6944 = vmatprep.subr.mxu0 %v5829
      %6945 = vmatpush1.msra.mxu0 %v5828
      %6946 = vmatprep.subr.mxu0 %v5845
      %6947 = vmatpush1.msra.mxu0 %v5844
      %6948 = vmatprep.subr.mxu0 %v5861
      %6949 = vmatpush1.msra.mxu0 %v5860
      %6950 = vmatprep.subr.mxu0 %v5877
      %6951 = vmatpush1.msra.mxu0 %v5876
      %6952 = vmatprep.subr.mxu0 %v5893
      %6953 = vmatpush1.msra.mxu0 %v5892
      %6954 = vmatprep.subr.mxu0 %v5909
      %6955 = vmatpush1.msra.mxu0 %v5908
      %6956 = vmatprep.subr.mxu0 %v5925
      %6957 = vmatpush1.msra.mxu0 %v5924
      %6958 = vmatprep.mubr.f32.mxu0 %v4634
      %6959 = vmatmul.mubr.f32.gmra.mrb[0].mxu0 %v4632
      %v6960 = vpop.f32.mrb[0].mxu0
      %v6961 = vadd.f32 0.0, %v6960
      %v6962 = vpop.f32.mrb[0].mxu0
      %v6963 = vadd.f32 0.0, %v6962
      %6964 = vmatprep.mubr.f32.mxu0 %v4638
      %6965 = vmatmul.mubr.f32.gmra.mrb[0].mxu0 %v4636
      %v6966 = vpop.f32.mrb[0].mxu0
      %v6967 = vadd.f32 0.0, %v6966
      %v6968 = vpop.f32.mrb[0].mxu0
      %v6969 = vadd.f32 0.0, %v6968
      %6970 = vmatprep.mubr.f32.mxu0 %v4642
      %6971 = vmatmul.mubr.f32.gmra.mrb[0].mxu0 %v4640
      %v6972 = vpop.f32.mrb[0].mxu0
      %v6973 = vadd.f32 0.0, %v6972
      %v6974 = vpop.f32.mrb[0].mxu0
      %v6975 = vadd.f32 0.0, %v6974
      %6976 = vmatprep.mubr.f32.mxu0 %v4646
      %6977 = vmatmul.mubr.f32.gmra.mrb[0].mxu0 %v4644
      %v6978 = vpop.f32.mrb[0].mxu0
      %v6979 = vadd.f32 0.0, %v6978
      %v6980 = vpop.f32.mrb[0].mxu0
      %v6981 = vadd.f32 0.0, %v6980
      %6982 = vmatprep.mubr.f32.mxu0 %v4650
      %6983 = vmatmul.mubr.f32.gmra.mrb[0].mxu0 %v4648
      %v6984 = vpop.f32.mrb[0].mxu0
      %v6985 = vadd.f32 0.0, %v6984
      %v6986 = vpop.f32.mrb[0].mxu0
      %v6987 = vadd.f32 0.0, %v6986
      %6988 = vmatprep.mubr.f32.mxu0 %v4654
      %6989 = vmatmul.mubr.f32.gmra.mrb[0].mxu0 %v4652
      %v6990 = vpop.f32.mrb[0].mxu0
      %v6991 = vadd.f32 0.0, %v6990
      %v6992 = vpop.f32.mrb[0].mxu0
      %v6993 = vadd.f32 0.0, %v6992
      %6994 = vmatprep.mubr.f32.mxu0 %v4658
      %6995 = vmatmul.mubr.f32.gmra.mrb[0].mxu0 %v4656
      %v6996 = vpop.f32.mrb[0].mxu0
      %v6997 = vadd.f32 0.0, %v6996
      %v6998 = vpop.f32.mrb[0].mxu0
      %v6999 = vadd.f32 0.0, %v6998
      %7000 = vmatprep.mubr.f32.mxu0 %v4662
      %7001 = vmatmul.mubr.f32.gmra.mrb[0].mxu0 %v4660
      %v7002 = vpop.f32.mrb[0].mxu0
      %v7003 = vadd.f32 0.0, %v7002
      %v7004 = vpop.f32.mrb[0].mxu0
      %v7005 = vadd.f32 0.0, %v7004
      %7006 = vmatprep.mubr.f32.mxu0 %v4666
      %7007 = vmatmul.mubr.f32.gmra.mrb[0].mxu0 %v4664
      %v7008 = vpop.f32.mrb[0].mxu0
      %v7009 = vadd.f32 0.0, %v7008
      %v7010 = vpop.f32.mrb[0].mxu0
      %v7011 = vadd.f32 0.0, %v7010
      %7012 = vmatprep.mubr.f32.mxu0 %v4670
      %7013 = vmatmul.mubr.f32.gmra.mrb[0].mxu0 %v4668
      %v7014 = vpop.f32.mrb[0].mxu0
      %v7015 = vadd.f32 0.0, %v7014
      %v7016 = vpop.f32.mrb[0].mxu0
      %v7017 = vadd.f32 0.0, %v7016
      %7018 = vmatprep.mubr.f32.mxu0 %v4674
      %7019 = vmatmul.mubr.f32.gmra.mrb[0].mxu0 %v4672
      %v7020 = vpop.f32.mrb[0].mxu0
      %v7021 = vadd.f32 0.0, %v7020
      %v7022 = vpop.f32.mrb[0].mxu0
      %v7023 = vadd.f32 0.0, %v7022
      %7024 = vmatprep.mubr.f32.mxu0 %v4678
      %7025 = vmatmul.mubr.f32.gmra.mrb[0].mxu0 %v4676
      %v7026 = vpop.f32.mrb[0].mxu0
      %v7027 = vadd.f32 0.0, %v7026
      %v7028 = vpop.f32.mrb[0].mxu0
      %v7029 = vadd.f32 0.0, %v7028
      %7030 = vmatprep.mubr.f32.mxu0 %v4682
      %7031 = vmatmul.mubr.f32.gmra.mrb[0].mxu0 %v4680
      %v7032 = vpop.f32.mrb[0].mxu0
      %v7033 = vadd.f32 0.0, %v7032
      %v7034 = vpop.f32.mrb[0].mxu0
      %v7035 = vadd.f32 0.0, %v7034
      %7036 = vmatprep.mubr.f32.mxu0 %v4686
      %7037 = vmatmul.mubr.f32.gmra.mrb[0].mxu0 %v4684
      %v7038 = vpop.f32.mrb[0].mxu0
      %v7039 = vadd.f32 0.0, %v7038
      %v7040 = vpop.f32.mrb[0].mxu0
      %v7041 = vadd.f32 0.0, %v7040
      %7042 = vmatprep.mubr.f32.mxu0 %v4690
      %7043 = vmatmul.mubr.f32.gmra.mrb[0].mxu0 %v4688
      %v7044 = vpop.f32.mrb[0].mxu0
      %v7045 = vadd.f32 0.0, %v7044
      %v7046 = vpop.f32.mrb[0].mxu0
      %v7047 = vadd.f32 0.0, %v7046
      %7048 = vmatprep.mubr.f32.mxu0 %v4694
      %7049 = vmatmul.mubr.f32.gmra.mrb[0].mxu0 %v4692
      %v7050 = vpop.f32.mrb[0].mxu0
      %v7051 = vadd.f32 0.0, %v7050
      %v7052 = vpop.f32.mrb[0].mxu0
      %v7053 = vadd.f32 0.0, %v7052
      %7054 = vdwg.mxu0
      %7055 = vmatprep.subr.mxu0 %v5431
      %7056 = vmatpush1.msra.mxu0 %v5430
      %7057 = vmatprep.subr.mxu0 %v5447
      %7058 = vmatpush1.msra.mxu0 %v5446
      %7059 = vmatprep.subr.mxu0 %v5463
      %7060 = vmatpush1.msra.mxu0 %v5462
      %7061 = vmatprep.subr.mxu0 %v5479
      %7062 = vmatpush1.msra.mxu0 %v5478
      %7063 = vmatprep.subr.mxu0 %v5495
      %7064 = vmatpush1.msra.mxu0 %v5494
      %7065 = vmatprep.subr.mxu0 %v5511
      %7066 = vmatpush1.msra.mxu0 %v5510
      %7067 = vmatprep.subr.mxu0 %v5527
      %7068 = vmatpush1.msra.mxu0 %v5526
      %7069 = vmatprep.subr.mxu0 %v5543
      %7070 = vmatpush1.msra.mxu0 %v5542
      %7071 = vmatprep.subr.mxu0 %v5559
      %7072 = vmatpush1.msra.mxu0 %v5558
      %7073 = vmatprep.subr.mxu0 %v5575
      %7074 = vmatpush1.msra.mxu0 %v5574
      %7075 = vmatprep.subr.mxu0 %v5591
      %7076 = vmatpush1.msra.mxu0 %v5590
      %7077 = vmatprep.subr.mxu0 %v5607
      %7078 = vmatpush1.msra.mxu0 %v5606
      %7079 = vmatprep.subr.mxu0 %v5623
      %7080 = vmatpush1.msra.mxu0 %v5622
      %7081 = vmatprep.subr.mxu0 %v5639
      %7082 = vmatpush1.msra.mxu0 %v5638
      %7083 = vmatprep.subr.mxu0 %v5655
      %7084 = vmatpush1.msra.mxu0 %v5654
      %7085 = vmatprep.subr.mxu0 %v5671
      %7086 = vmatpush1.msra.mxu0 %v5670
      %7087 = vmatprep.subr.mxu0 %v5687
      %7088 = vmatpush1.msra.mxu0 %v5686
      %7089 = vmatprep.subr.mxu0 %v5703
      %7090 = vmatpush1.msra.mxu0 %v5702
      %7091 = vmatprep.subr.mxu0 %v5719
      %7092 = vmatpush1.msra.mxu0 %v5718
      %7093 = vmatprep.subr.mxu0 %v5735
      %7094 = vmatpush1.msra.mxu0 %v5734
      %7095 = vmatprep.subr.mxu0 %v5751
      %7096 = vmatpush1.msra.mxu0 %v5750
      %7097 = vmatprep.subr.mxu0 %v5767
      %7098 = vmatpush1.msra.mxu0 %v5766
      %7099 = vmatprep.subr.mxu0 %v5783
      %7100 = vmatpush1.msra.mxu0 %v5782
      %7101 = vmatprep.subr.mxu0 %v5799
      %7102 = vmatpush1.msra.mxu0 %v5798
      %7103 = vmatprep.subr.mxu0 %v5815
      %7104 = vmatpush1.msra.mxu0 %v5814
      %7105 = vmatprep.subr.mxu0 %v5831
      %7106 = vmatpush1.msra.mxu0 %v5830
      %7107 = vmatprep.subr.mxu0 %v5847
      %7108 = vmatpush1.msra.mxu0 %v5846
      %7109 = vmatprep.subr.mxu0 %v5863
      %7110 = vmatpush1.msra.mxu0 %v5862
      %7111 = vmatprep.subr.mxu0 %v5879
      %7112 = vmatpush1.msra.mxu0 %v5878
      %7113 = vmatprep.subr.mxu0 %v5895
      %7114 = vmatpush1.msra.mxu0 %v5894
      %7115 = vmatprep.subr.mxu0 %v5911
      %7116 = vmatpush1.msra.mxu0 %v5910
      %7117 = vmatprep.subr.mxu0 %v5927
      %7118 = vmatpush1.msra.mxu0 %v5926
      %7119 = vmatprep.mubr.f32.mxu0 %v4634
      %7120 = vmatmul.mubr.f32.gmra.mrb[0].mxu0 %v4632
      %v7121 = vpop.f32.mrb[0].mxu0
      %v7122 = vadd.f32 0.0, %v7121
      %v7123 = vpop.f32.mrb[0].mxu0
      %v7124 = vadd.f32 0.0, %v7123
      %7125 = vmatprep.mubr.f32.mxu0 %v4638
      %7126 = vmatmul.mubr.f32.gmra.mrb[0].mxu0 %v4636
      %v7127 = vpop.f32.mrb[0].mxu0
      %v7128 = vadd.f32 0.0, %v7127
      %v7129 = vpop.f32.mrb[0].mxu0
      %v7130 = vadd.f32 0.0, %v7129
      %7131 = vmatprep.mubr.f32.mxu0 %v4642
      %7132 = vmatmul.mubr.f32.gmra.mrb[0].mxu0 %v4640
      %v7133 = vpop.f32.mrb[0].mxu0
      %v7134 = vadd.f32 0.0, %v7133
      %v7135 = vpop.f32.mrb[0].mxu0
      %v7136 = vadd.f32 0.0, %v7135
      %7137 = vmatprep.mubr.f32.mxu0 %v4646
      %7138 = vmatmul.mubr.f32.gmra.mrb[0].mxu0 %v4644
      %v7139 = vpop.f32.mrb[0].mxu0
      %v7140 = vadd.f32 0.0, %v7139
      %v7141 = vpop.f32.mrb[0].mxu0
      %v7142 = vadd.f32 0.0, %v7141
      %7143 = vmatprep.mubr.f32.mxu0 %v4650
      %7144 = vmatmul.mubr.f32.gmra.mrb[0].mxu0 %v4648
      %v7145 = vpop.f32.mrb[0].mxu0
      %v7146 = vadd.f32 0.0, %v7145
      %v7147 = vpop.f32.mrb[0].mxu0
      %v7148 = vadd.f32 0.0, %v7147
      %7149 = vmatprep.mubr.f32.mxu0 %v4654
      %7150 = vmatmul.mubr.f32.gmra.mrb[0].mxu0 %v4652
      %v7151 = vpop.f32.mrb[0].mxu0
      %v7152 = vadd.f32 0.0, %v7151
      %v7153 = vpop.f32.mrb[0].mxu0
      %v7154 = vadd.f32 0.0, %v7153
      %7155 = vmatprep.mubr.f32.mxu0 %v4658
      %7156 = vmatmul.mubr.f32.gmra.mrb[0].mxu0 %v4656
      %v7157 = vpop.f32.mrb[0].mxu0
      %v7158 = vadd.f32 0.0, %v7157
      %v7159 = vpop.f32.mrb[0].mxu0
      %v7160 = vadd.f32 0.0, %v7159
      %7161 = vmatprep.mubr.f32.mxu0 %v4662
      %7162 = vmatmul.mubr.f32.gmra.mrb[0].mxu0 %v4660
      %v7163 = vpop.f32.mrb[0].mxu0
      %v7164 = vadd.f32 0.0, %v7163
      %v7165 = vpop.f32.mrb[0].mxu0
      %v7166 = vadd.f32 0.0, %v7165
      %7167 = vmatprep.mubr.f32.mxu0 %v4666
      %7168 = vmatmul.mubr.f32.gmra.mrb[0].mxu0 %v4664
      %v7169 = vpop.f32.mrb[0].mxu0
      %v7170 = vadd.f32 0.0, %v7169
      %v7171 = vpop.f32.mrb[0].mxu0
      %v7172 = vadd.f32 0.0, %v7171
      %7173 = vmatprep.mubr.f32.mxu0 %v4670
      %7174 = vmatmul.mubr.f32.gmra.mrb[0].mxu0 %v4668
      %v7175 = vpop.f32.mrb[0].mxu0
      %v7176 = vadd.f32 0.0, %v7175
      %v7177 = vpop.f32.mrb[0].mxu0
      %v7178 = vadd.f32 0.0, %v7177
      %7179 = vmatprep.mubr.f32.mxu0 %v4674
      %7180 = vmatmul.mubr.f32.gmra.mrb[0].mxu0 %v4672
      %v7181 = vpop.f32.mrb[0].mxu0
      %v7182 = vadd.f32 0.0, %v7181
      %v7183 = vpop.f32.mrb[0].mxu0
      %v7184 = vadd.f32 0.0, %v7183
      %7185 = vmatprep.mubr.f32.mxu0 %v4678
      %7186 = vmatmul.mubr.f32.gmra.mrb[0].mxu0 %v4676
      %v7187 = vpop.f32.mrb[0].mxu0
      %v7188 = vadd.f32 0.0, %v7187
      %v7189 = vpop.f32.mrb[0].mxu0
      %v7190 = vadd.f32 0.0, %v7189
      %7191 = vmatprep.mubr.f32.mxu0 %v4682
      %7192 = vmatmul.mubr.f32.gmra.mrb[0].mxu0 %v4680
      %v7193 = vpop.f32.mrb[0].mxu0
      %v7194 = vadd.f32 0.0, %v7193
      %v7195 = vpop.f32.mrb[0].mxu0
      %v7196 = vadd.f32 0.0, %v7195
      %7197 = vmatprep.mubr.f32.mxu0 %v4686
      %7198 = vmatmul.mubr.f32.gmra.mrb[0].mxu0 %v4684
      %v7199 = vpop.f32.mrb[0].mxu0
      %v7200 = vadd.f32 0.0, %v7199
      %v7201 = vpop.f32.mrb[0].mxu0
      %v7202 = vadd.f32 0.0, %v7201
      %7203 = vmatprep.mubr.f32.mxu0 %v4690
      %7204 = vmatmul.mubr.f32.gmra.mrb[0].mxu0 %v4688
      %v7205 = vpop.f32.mrb[0].mxu0
      %v7206 = vadd.f32 0.0, %v7205
      %v7207 = vpop.f32.mrb[0].mxu0
      %v7208 = vadd.f32 0.0, %v7207
      %7209 = vmatprep.mubr.f32.mxu0 %v4694
      %7210 = vmatmul.mubr.f32.gmra.mrb[0].mxu0 %v4692
      %v7211 = vpop.f32.mrb[0].mxu0
      %v7212 = vadd.f32 0.0, %v7211
      %v7213 = vpop.f32.mrb[0].mxu0
      %v7214 = vadd.f32 0.0, %v7213
      %7215 = vdwg.mxu0
      %v7216 = vadd.f32 %v5160, %v5995
      %v7217 = vadd.f32 %v5161, %v5997
      %v7218 = vadd.f32 %v5162, %v6156
      %v7219 = vadd.f32 %v5163, %v6158
      %v7220 = vadd.f32 %v5164, %v6317
      %v7221 = vadd.f32 %v5165, %v6319
      %v7222 = vadd.f32 %v5166, %v6478
      %v7223 = vadd.f32 %v5167, %v6480
      %v7224 = vadd.f32 %v5168, %v6639
      %v7225 = vadd.f32 %v5169, %v6641
      %v7226 = vadd.f32 %v5170, %v6800
      %v7227 = vadd.f32 %v5171, %v6802
      %v7228 = vadd.f32 %v5172, %v6961
      %v7229 = vadd.f32 %v5173, %v6963
      %v7230 = vadd.f32 %v5174, %v7122
      %v7231 = vadd.f32 %v5175, %v7124
      %v7232 = vadd.f32 %v5176, %v6001
      %v7233 = vadd.f32 %v5177, %v6003
      %v7234 = vadd.f32 %v5178, %v6162
      %v7235 = vadd.f32 %v5179, %v6164
      %v7236 = vadd.f32 %v5180, %v6323
      %v7237 = vadd.f32 %v5181, %v6325
      %v7238 = vadd.f32 %v5182, %v6484
      %v7239 = vadd.f32 %v5183, %v6486
      %v7240 = vadd.f32 %v5184, %v6645
      %v7241 = vadd.f32 %v5185, %v6647
      %v7242 = vadd.f32 %v5186, %v6806
      %v7243 = vadd.f32 %v5187, %v6808
      %v7244 = vadd.f32 %v5188, %v6967
      %v7245 = vadd.f32 %v5189, %v6969
      %v7246 = vadd.f32 %v5190, %v7128
      %v7247 = vadd.f32 %v5191, %v7130
      %v7248 = vadd.f32 %v5192, %v6007
      %v7249 = vadd.f32 %v5193, %v6009
      %v7250 = vadd.f32 %v5194, %v6168
      %v7251 = vadd.f32 %v5195, %v6170
      %v7252 = vadd.f32 %v5196, %v6329
      %v7253 = vadd.f32 %v5197, %v6331
      %v7254 = vadd.f32 %v5198, %v6490
      %v7255 = vadd.f32 %v5199, %v6492
      %v7256 = vadd.f32 %v5200, %v6651
      %v7257 = vadd.f32 %v5201, %v6653
      %v7258 = vadd.f32 %v5202, %v6812
      %v7259 = vadd.f32 %v5203, %v6814
      %v7260 = vadd.f32 %v5204, %v6973
      %v7261 = vadd.f32 %v5205, %v6975
      %v7262 = vadd.f32 %v5206, %v7134
      %v7263 = vadd.f32 %v5207, %v7136
      %v7264 = vadd.f32 %v5208, %v6013
      %v7265 = vadd.f32 %v5209, %v6015
      %v7266 = vadd.f32 %v5210, %v6174
      %v7267 = vadd.f32 %v5211, %v6176
      %v7268 = vadd.f32 %v5212, %v6335
      %v7269 = vadd.f32 %v5213, %v6337
      %v7270 = vadd.f32 %v5214, %v6496
      %v7271 = vadd.f32 %v5215, %v6498
      %v7272 = vadd.f32 %v5216, %v6657
      %v7273 = vadd.f32 %v5217, %v6659
      %v7274 = vadd.f32 %v5218, %v6818
      %v7275 = vadd.f32 %v5219, %v6820
      %v7276 = vadd.f32 %v5220, %v6979
      %v7277 = vadd.f32 %v5221, %v6981
      %v7278 = vadd.f32 %v5222, %v7140
      %v7279 = vadd.f32 %v5223, %v7142
      %v7280 = vadd.f32 %v5224, %v6019
      %v7281 = vadd.f32 %v5225, %v6021
      %v7282 = vadd.f32 %v5226, %v6180
      %v7283 = vadd.f32 %v5227, %v6182
      %v7284 = vadd.f32 %v5228, %v6341
      %v7285 = vadd.f32 %v5229, %v6343
      %v7286 = vadd.f32 %v5230, %v6502
      %v7287 = vadd.f32 %v5231, %v6504
      %v7288 = vadd.f32 %v5232, %v6663
      %v7289 = vadd.f32 %v5233, %v6665
      %v7290 = vadd.f32 %v5234, %v6824
      %v7291 = vadd.f32 %v5235, %v6826
      %v7292 = vadd.f32 %v5236, %v6985
      %v7293 = vadd.f32 %v5237, %v6987
      %v7294 = vadd.f32 %v5238, %v7146
      %v7295 = vadd.f32 %v5239, %v7148
      %v7296 = vadd.f32 %v5240, %v6025
      %v7297 = vadd.f32 %v5241, %v6027
      %v7298 = vadd.f32 %v5242, %v6186
      %v7299 = vadd.f32 %v5243, %v6188
      %v7300 = vadd.f32 %v5244, %v6347
      %v7301 = vadd.f32 %v5245, %v6349
      %v7302 = vadd.f32 %v5246, %v6508
      %v7303 = vadd.f32 %v5247, %v6510
      %v7304 = vadd.f32 %v5248, %v6669
      %v7305 = vadd.f32 %v5249, %v6671
      %v7306 = vadd.f32 %v5250, %v6830
      %v7307 = vadd.f32 %v5251, %v6832
      %v7308 = vadd.f32 %v5252, %v6991
      %v7309 = vadd.f32 %v5253, %v6993
      %v7310 = vadd.f32 %v5254, %v7152
      %v7311 = vadd.f32 %v5255, %v7154
      %v7312 = vadd.f32 %v5256, %v6031
      %v7313 = vadd.f32 %v5257, %v6033
      %v7314 = vadd.f32 %v5258, %v6192
      %v7315 = vadd.f32 %v5259, %v6194
      %v7316 = vadd.f32 %v5260, %v6353
      %v7317 = vadd.f32 %v5261, %v6355
      %v7318 = vadd.f32 %v5262, %v6514
      %v7319 = vadd.f32 %v5263, %v6516
      %v7320 = vadd.f32 %v5264, %v6675
      %v7321 = vadd.f32 %v5265, %v6677
      %v7322 = vadd.f32 %v5266, %v6836
      %v7323 = vadd.f32 %v5267, %v6838
      %v7324 = vadd.f32 %v5268, %v6997
      %v7325 = vadd.f32 %v5269, %v6999
      %v7326 = vadd.f32 %v5270, %v7158
      %v7327 = vadd.f32 %v5271, %v7160
      %v7328 = vadd.f32 %v5272, %v6037
      %v7329 = vadd.f32 %v5273, %v6039
      %v7330 = vadd.f32 %v5274, %v6198
      %v7331 = vadd.f32 %v5275, %v6200
      %v7332 = vadd.f32 %v5276, %v6359
      %v7333 = vadd.f32 %v5277, %v6361
      %v7334 = vadd.f32 %v5278, %v6520
      %v7335 = vadd.f32 %v5279, %v6522
      %v7336 = vadd.f32 %v5280, %v6681
      %v7337 = vadd.f32 %v5281, %v6683
      %v7338 = vadd.f32 %v5282, %v6842
      %v7339 = vadd.f32 %v5283, %v6844
      %v7340 = vadd.f32 %v5284, %v7003
      %v7341 = vadd.f32 %v5285, %v7005
      %v7342 = vadd.f32 %v5286, %v7164
      %v7343 = vadd.f32 %v5287, %v7166
      %v7344 = vadd.f32 %v5288, %v6043
      %v7345 = vadd.f32 %v5289, %v6045
      %v7346 = vadd.f32 %v5290, %v6204
      %v7347 = vadd.f32 %v5291, %v6206
      %v7348 = vadd.f32 %v5292, %v6365
      %v7349 = vadd.f32 %v5293, %v6367
      %v7350 = vadd.f32 %v5294, %v6526
      %v7351 = vadd.f32 %v5295, %v6528
      %v7352 = vadd.f32 %v5296, %v6687
      %v7353 = vadd.f32 %v5297, %v6689
      %v7354 = vadd.f32 %v5298, %v6848
      %v7355 = vadd.f32 %v5299, %v6850
      %v7356 = vadd.f32 %v5300, %v7009
      %v7357 = vadd.f32 %v5301, %v7011
      %v7358 = vadd.f32 %v5302, %v7170
      %v7359 = vadd.f32 %v5303, %v7172
      %v7360 = vadd.f32 %v5304, %v6049
      %v7361 = vadd.f32 %v5305, %v6051
      %v7362 = vadd.f32 %v5306, %v6210
      %v7363 = vadd.f32 %v5307, %v6212
      %v7364 = vadd.f32 %v5308, %v6371
      %v7365 = vadd.f32 %v5309, %v6373
      %v7366 = vadd.f32 %v5310, %v6532
      %v7367 = vadd.f32 %v5311, %v6534
      %v7368 = vadd.f32 %v5312, %v6693
      %v7369 = vadd.f32 %v5313, %v6695
      %v7370 = vadd.f32 %v5314, %v6854
      %v7371 = vadd.f32 %v5315, %v6856
      %v7372 = vadd.f32 %v5316, %v7015
      %v7373 = vadd.f32 %v5317, %v7017
      %v7374 = vadd.f32 %v5318, %v7176
      %v7375 = vadd.f32 %v5319, %v7178
      %v7376 = vadd.f32 %v5320, %v6055
      %v7377 = vadd.f32 %v5321, %v6057
      %v7378 = vadd.f32 %v5322, %v6216
      %v7379 = vadd.f32 %v5323, %v6218
      %v7380 = vadd.f32 %v5324, %v6377
      %v7381 = vadd.f32 %v5325, %v6379
      %v7382 = vadd.f32 %v5326, %v6538
      %v7383 = vadd.f32 %v5327, %v6540
      %v7384 = vadd.f32 %v5328, %v6699
      %v7385 = vadd.f32 %v5329, %v6701
      %v7386 = vadd.f32 %v5330, %v6860
      %v7387 = vadd.f32 %v5331, %v6862
      %v7388 = vadd.f32 %v5332, %v7021
      %v7389 = vadd.f32 %v5333, %v7023
      %v7390 = vadd.f32 %v5334, %v7182
      %v7391 = vadd.f32 %v5335, %v7184
      %v7392 = vadd.f32 %v5336, %v6061
      %v7393 = vadd.f32 %v5337, %v6063
      %v7394 = vadd.f32 %v5338, %v6222
      %v7395 = vadd.f32 %v5339, %v6224
      %v7396 = vadd.f32 %v5340, %v6383
      %v7397 = vadd.f32 %v5341, %v6385
      %v7398 = vadd.f32 %v5342, %v6544
      %v7399 = vadd.f32 %v5343, %v6546
      %v7400 = vadd.f32 %v5344, %v6705
      %v7401 = vadd.f32 %v5345, %v6707
      %v7402 = vadd.f32 %v5346, %v6866
      %v7403 = vadd.f32 %v5347, %v6868
      %v7404 = vadd.f32 %v5348, %v7027
      %v7405 = vadd.f32 %v5349, %v7029
      %v7406 = vadd.f32 %v5350, %v7188
      %v7407 = vadd.f32 %v5351, %v7190
      %v7408 = vadd.f32 %v5352, %v6067
      %v7409 = vadd.f32 %v5353, %v6069
      %v7410 = vadd.f32 %v5354, %v6228
      %v7411 = vadd.f32 %v5355, %v6230
      %v7412 = vadd.f32 %v5356, %v6389
      %v7413 = vadd.f32 %v5357, %v6391
      %v7414 = vadd.f32 %v5358, %v6550
      %v7415 = vadd.f32 %v5359, %v6552
      %v7416 = vadd.f32 %v5360, %v6711
      %v7417 = vadd.f32 %v5361, %v6713
      %v7418 = vadd.f32 %v5362, %v6872
      %v7419 = vadd.f32 %v5363, %v6874
      %v7420 = vadd.f32 %v5364, %v7033
      %v7421 = vadd.f32 %v5365, %v7035
      %v7422 = vadd.f32 %v5366, %v7194
      %v7423 = vadd.f32 %v5367, %v7196
      %v7424 = vadd.f32 %v5368, %v6073
      %v7425 = vadd.f32 %v5369, %v6075
      %v7426 = vadd.f32 %v5370, %v6234
      %v7427 = vadd.f32 %v5371, %v6236
      %v7428 = vadd.f32 %v5372, %v6395
      %v7429 = vadd.f32 %v5373, %v6397
      %v7430 = vadd.f32 %v5374, %v6556
      %v7431 = vadd.f32 %v5375, %v6558
      %v7432 = vadd.f32 %v5376, %v6717
      %v7433 = vadd.f32 %v5377, %v6719
      %v7434 = vadd.f32 %v5378, %v6878
      %v7435 = vadd.f32 %v5379, %v6880
      %v7436 = vadd.f32 %v5380, %v7039
      %v7437 = vadd.f32 %v5381, %v7041
      %v7438 = vadd.f32 %v5382, %v7200
      %v7439 = vadd.f32 %v5383, %v7202
      %v7440 = vadd.f32 %v5384, %v6079
      %v7441 = vadd.f32 %v5385, %v6081
      %v7442 = vadd.f32 %v5386, %v6240
      %v7443 = vadd.f32 %v5387, %v6242
      %v7444 = vadd.f32 %v5388, %v6401
      %v7445 = vadd.f32 %v5389, %v6403
      %v7446 = vadd.f32 %v5390, %v6562
      %v7447 = vadd.f32 %v5391, %v6564
      %v7448 = vadd.f32 %v5392, %v6723
      %v7449 = vadd.f32 %v5393, %v6725
      %v7450 = vadd.f32 %v5394, %v6884
      %v7451 = vadd.f32 %v5395, %v6886
      %v7452 = vadd.f32 %v5396, %v7045
      %v7453 = vadd.f32 %v5397, %v7047
      %v7454 = vadd.f32 %v5398, %v7206
      %v7455 = vadd.f32 %v5399, %v7208
      %v7456 = vadd.f32 %v5400, %v6085
      %v7457 = vadd.f32 %v5401, %v6087
      %v7458 = vadd.f32 %v5402, %v6246
      %v7459 = vadd.f32 %v5403, %v6248
      %v7460 = vadd.f32 %v5404, %v6407
      %v7461 = vadd.f32 %v5405, %v6409
      %v7462 = vadd.f32 %v5406, %v6568
      %v7463 = vadd.f32 %v5407, %v6570
      %v7464 = vadd.f32 %v5408, %v6729
      %v7465 = vadd.f32 %v5409, %v6731
      %v7466 = vadd.f32 %v5410, %v6890
      %v7467 = vadd.f32 %v5411, %v6892
      %v7468 = vadd.f32 %v5412, %v7051
      %v7469 = vadd.f32 %v5413, %v7053
      %v7470 = vadd.f32 %v5414, %v7212
      %v7471 = vadd.f32 %v5415, %v7214
      %7472 = vst [vmem:[#allocation11] sm:$0xff] %v7216
      %7473 = vst [vmem:[#allocation11 + $0x8] sm:$0xff] %v7217
      %7474 = vst [vmem:[#allocation11 + $0x10] sm:$0xff] %v7218
      %7475 = vst [vmem:[#allocation11 + $0x18] sm:$0xff] %v7219
      %7476 = vst [vmem:[#allocation11 + $0x20] sm:$0xff] %v7220
      %7477 = vst [vmem:[#allocation11 + $0x28] sm:$0xff] %v7221
      %7478 = vst [vmem:[#allocation11 + $0x30] sm:$0xff] %v7222
      %7479 = vst [vmem:[#allocation11 + $0x38] sm:$0xff] %v7223
      %7480 = vst [vmem:[#allocation11 + $0x40] sm:$0xff] %v7224
      %7481 = vst [vmem:[#allocation11 + $0x48] sm:$0xff] %v7225
      %7482 = vst [vmem:[#allocation11 + $0x50] sm:$0xff] %v7226
      %7483 = vst [vmem:[#allocation11 + $0x58] sm:$0xff] %v7227
      %7484 = vst [vmem:[#allocation11 + $0x60] sm:$0xff] %v7228
      %7485 = vst [vmem:[#allocation11 + $0x68] sm:$0xff] %v7229
      %7486 = vst [vmem:[#allocation11 + $0x70] sm:$0xff] %v7230
      %7487 = vst [vmem:[#allocation11 + $0x78] sm:$0xff] %v7231
      %7488 = vst [vmem:[#allocation11 + $0x80] sm:$0xff] %v7232
      %7489 = vst [vmem:[#allocation11 + $0x88] sm:$0xff] %v7233
      %7490 = vst [vmem:[#allocation11 + $0x90] sm:$0xff] %v7234
      %7491 = vst [vmem:[#allocation11 + $0x98] sm:$0xff] %v7235
      %7492 = vst [vmem:[#allocation11 + $0xa0] sm:$0xff] %v7236
      %7493 = vst [vmem:[#allocation11 + $0xa8] sm:$0xff] %v7237
      %7494 = vst [vmem:[#allocation11 + $0xb0] sm:$0xff] %v7238
      %7495 = vst [vmem:[#allocation11 + $0xb8] sm:$0xff] %v7239
      %7496 = vst [vmem:[#allocation11 + $0xc0] sm:$0xff] %v7240
      %7497 = vst [vmem:[#allocation11 + $0xc8] sm:$0xff] %v7241
      %7498 = vst [vmem:[#allocation11 + $0xd0] sm:$0xff] %v7242
      %7499 = vst [vmem:[#allocation11 + $0xd8] sm:$0xff] %v7243
      %7500 = vst [vmem:[#allocation11 + $0xe0] sm:$0xff] %v7244
      %7501 = vst [vmem:[#allocation11 + $0xe8] sm:$0xff] %v7245
      %7502 = vst [vmem:[#allocation11 + $0xf0] sm:$0xff] %v7246
      %7503 = vst [vmem:[#allocation11 + $0xf8] sm:$0xff] %v7247
      %7504 = vst [vmem:[#allocation11 + $0x100] sm:$0xff] %v7248
      %7505 = vst [vmem:[#allocation11 + $0x108] sm:$0xff] %v7249
      %7506 = vst [vmem:[#allocation11 + $0x110] sm:$0xff] %v7250
      %7507 = vst [vmem:[#allocation11 + $0x118] sm:$0xff] %v7251
      %7508 = vst [vmem:[#allocation11 + $0x120] sm:$0xff] %v7252
      %7509 = vst [vmem:[#allocation11 + $0x128] sm:$0xff] %v7253
      %7510 = vst [vmem:[#allocation11 + $0x130] sm:$0xff] %v7254
      %7511 = vst [vmem:[#allocation11 + $0x138] sm:$0xff] %v7255
      %7512 = vst [vmem:[#allocation11 + $0x140] sm:$0xff] %v7256
      %7513 = vst [vmem:[#allocation11 + $0x148] sm:$0xff] %v7257
      %7514 = vst [vmem:[#allocation11 + $0x150] sm:$0xff] %v7258
      %7515 = vst [vmem:[#allocation11 + $0x158] sm:$0xff] %v7259
      %7516 = vst [vmem:[#allocation11 + $0x160] sm:$0xff] %v7260
      %7517 = vst [vmem:[#allocation11 + $0x168] sm:$0xff] %v7261
      %7518 = vst [vmem:[#allocation11 + $0x170] sm:$0xff] %v7262
      %7519 = vst [vmem:[#allocation11 + $0x178] sm:$0xff] %v7263
      %7520 = vst [vmem:[#allocation11 + $0x180] sm:$0xff] %v7264
      %7521 = vst [vmem:[#allocation11 + $0x188] sm:$0xff] %v7265
      %7522 = vst [vmem:[#allocation11 + $0x190] sm:$0xff] %v7266
      %7523 = vst [vmem:[#allocation11 + $0x198] sm:$0xff] %v7267
      %7524 = vst [vmem:[#allocation11 + $0x1a0] sm:$0xff] %v7268
      %7525 = vst [vmem:[#allocation11 + $0x1a8] sm:$0xff] %v7269
      %7526 = vst [vmem:[#allocation11 + $0x1b0] sm:$0xff] %v7270
      %7527 = vst [vmem:[#allocation11 + $0x1b8] sm:$0xff] %v7271
      %7528 = vst [vmem:[#allocation11 + $0x1c0] sm:$0xff] %v7272
      %7529 = vst [vmem:[#allocation11 + $0x1c8] sm:$0xff] %v7273
      %7530 = vst [vmem:[#allocation11 + $0x1d0] sm:$0xff] %v7274
      %7531 = vst [vmem:[#allocation11 + $0x1d8] sm:$0xff] %v7275
      %7532 = vst [vmem:[#allocation11 + $0x1e0] sm:$0xff] %v7276
      %7533 = vst [vmem:[#allocation11 + $0x1e8] sm:$0xff] %v7277
      %7534 = vst [vmem:[#allocation11 + $0x1f0] sm:$0xff] %v7278
      %7535 = vst [vmem:[#allocation11 + $0x1f8] sm:$0xff] %v7279
      %7536 = vst [vmem:[#allocation11 + $0x200] sm:$0xff] %v7280
      %7537 = vst [vmem:[#allocation11 + $0x208] sm:$0xff] %v7281
      %7538 = vst [vmem:[#allocation11 + $0x210] sm:$0xff] %v7282
      %7539 = vst [vmem:[#allocation11 + $0x218] sm:$0xff] %v7283
      %7540 = vst [vmem:[#allocation11 + $0x220] sm:$0xff] %v7284
      %7541 = vst [vmem:[#allocation11 + $0x228] sm:$0xff] %v7285
      %7542 = vst [vmem:[#allocation11 + $0x230] sm:$0xff] %v7286
      %7543 = vst [vmem:[#allocation11 + $0x238] sm:$0xff] %v7287
      %7544 = vst [vmem:[#allocation11 + $0x240] sm:$0xff] %v7288
      %7545 = vst [vmem:[#allocation11 + $0x248] sm:$0xff] %v7289
      %7546 = vst [vmem:[#allocation11 + $0x250] sm:$0xff] %v7290
      %7547 = vst [vmem:[#allocation11 + $0x258] sm:$0xff] %v7291
      %7548 = vst [vmem:[#allocation11 + $0x260] sm:$0xff] %v7292
      %7549 = vst [vmem:[#allocation11 + $0x268] sm:$0xff] %v7293
      %7550 = vst [vmem:[#allocation11 + $0x270] sm:$0xff] %v7294
      %7551 = vst [vmem:[#allocation11 + $0x278] sm:$0xff] %v7295
      %7552 = vst [vmem:[#allocation11 + $0x280] sm:$0xff] %v7296
      %7553 = vst [vmem:[#allocation11 + $0x288] sm:$0xff] %v7297
      %7554 = vst [vmem:[#allocation11 + $0x290] sm:$0xff] %v7298
      %7555 = vst [vmem:[#allocation11 + $0x298] sm:$0xff] %v7299
      %7556 = vst [vmem:[#allocation11 + $0x2a0] sm:$0xff] %v7300
      %7557 = vst [vmem:[#allocation11 + $0x2a8] sm:$0xff] %v7301
      %7558 = vst [vmem:[#allocation11 + $0x2b0] sm:$0xff] %v7302
      %7559 = vst [vmem:[#allocation11 + $0x2b8] sm:$0xff] %v7303
      %7560 = vst [vmem:[#allocation11 + $0x2c0] sm:$0xff] %v7304
      %7561 = vst [vmem:[#allocation11 + $0x2c8] sm:$0xff] %v7305
      %7562 = vst [vmem:[#allocation11 + $0x2d0] sm:$0xff] %v7306
      %7563 = vst [vmem:[#allocation11 + $0x2d8] sm:$0xff] %v7307
      %7564 = vst [vmem:[#allocation11 + $0x2e0] sm:$0xff] %v7308
      %7565 = vst [vmem:[#allocation11 + $0x2e8] sm:$0xff] %v7309
      %7566 = vst [vmem:[#allocation11 + $0x2f0] sm:$0xff] %v7310
      %7567 = vst [vmem:[#allocation11 + $0x2f8] sm:$0xff] %v7311
      %7568 = vst [vmem:[#allocation11 + $0x300] sm:$0xff] %v7312
      %7569 = vst [vmem:[#allocation11 + $0x308] sm:$0xff] %v7313
      %7570 = vst [vmem:[#allocation11 + $0x310] sm:$0xff] %v7314
      %7571 = vst [vmem:[#allocation11 + $0x318] sm:$0xff] %v7315
      %7572 = vst [vmem:[#allocation11 + $0x320] sm:$0xff] %v7316
      %7573 = vst [vmem:[#allocation11 + $0x328] sm:$0xff] %v7317
      %7574 = vst [vmem:[#allocation11 + $0x330] sm:$0xff] %v7318
      %7575 = vst [vmem:[#allocation11 + $0x338] sm:$0xff] %v7319
      %7576 = vst [vmem:[#allocation11 + $0x340] sm:$0xff] %v7320
      %7577 = vst [vmem:[#allocation11 + $0x348] sm:$0xff] %v7321
      %7578 = vst [vmem:[#allocation11 + $0x350] sm:$0xff] %v7322
      %7579 = vst [vmem:[#allocation11 + $0x358] sm:$0xff] %v7323
      %7580 = vst [vmem:[#allocation11 + $0x360] sm:$0xff] %v7324
      %7581 = vst [vmem:[#allocation11 + $0x368] sm:$0xff] %v7325
      %7582 = vst [vmem:[#allocation11 + $0x370] sm:$0xff] %v7326
      %7583 = vst [vmem:[#allocation11 + $0x378] sm:$0xff] %v7327
      %7584 = vst [vmem:[#allocation11 + $0x380] sm:$0xff] %v7328
      %7585 = vst [vmem:[#allocation11 + $0x388] sm:$0xff] %v7329
      %7586 = vst [vmem:[#allocation11 + $0x390] sm:$0xff] %v7330
      %7587 = vst [vmem:[#allocation11 + $0x398] sm:$0xff] %v7331
      %7588 = vst [vmem:[#allocation11 + $0x3a0] sm:$0xff] %v7332
      %7589 = vst [vmem:[#allocation11 + $0x3a8] sm:$0xff] %v7333
      %7590 = vst [vmem:[#allocation11 + $0x3b0] sm:$0xff] %v7334
      %7591 = vst [vmem:[#allocation11 + $0x3b8] sm:$0xff] %v7335
      %7592 = vst [vmem:[#allocation11 + $0x3c0] sm:$0xff] %v7336
      %7593 = vst [vmem:[#allocation11 + $0x3c8] sm:$0xff] %v7337
      %7594 = vst [vmem:[#allocation11 + $0x3d0] sm:$0xff] %v7338
      %7595 = vst [vmem:[#allocation11 + $0x3d8] sm:$0xff] %v7339
      %7596 = vst [vmem:[#allocation11 + $0x3e0] sm:$0xff] %v7340
      %7597 = vst [vmem:[#allocation11 + $0x3e8] sm:$0xff] %v7341
      %7598 = vst [vmem:[#allocation11 + $0x3f0] sm:$0xff] %v7342
      %7599 = vst [vmem:[#allocation11 + $0x3f8] sm:$0xff] %v7343
      %7600 = vst [vmem:[#allocation11 + $0x400] sm:$0xff] %v7344
      %7601 = vst [vmem:[#allocation11 + $0x408] sm:$0xff] %v7345
      %7602 = vst [vmem:[#allocation11 + $0x410] sm:$0xff] %v7346
      %7603 = vst [vmem:[#allocation11 + $0x418] sm:$0xff] %v7347
      %7604 = vst [vmem:[#allocation11 + $0x420] sm:$0xff] %v7348
      %7605 = vst [vmem:[#allocation11 + $0x428] sm:$0xff] %v7349
      %7606 = vst [vmem:[#allocation11 + $0x430] sm:$0xff] %v7350
      %7607 = vst [vmem:[#allocation11 + $0x438] sm:$0xff] %v7351
      %7608 = vst [vmem:[#allocation11 + $0x440] sm:$0xff] %v7352
      %7609 = vst [vmem:[#allocation11 + $0x448] sm:$0xff] %v7353
      %7610 = vst [vmem:[#allocation11 + $0x450] sm:$0xff] %v7354
      %7611 = vst [vmem:[#allocation11 + $0x458] sm:$0xff] %v7355
      %7612 = vst [vmem:[#allocation11 + $0x460] sm:$0xff] %v7356
      %7613 = vst [vmem:[#allocation11 + $0x468] sm:$0xff] %v7357
      %7614 = vst [vmem:[#allocation11 + $0x470] sm:$0xff] %v7358
      %7615 = vst [vmem:[#allocation11 + $0x478] sm:$0xff] %v7359
      %7616 = vst [vmem:[#allocation11 + $0x480] sm:$0xff] %v7360
      %7617 = vst [vmem:[#allocation11 + $0x488] sm:$0xff] %v7361
      %7618 = vst [vmem:[#allocation11 + $0x490] sm:$0xff] %v7362
      %7619 = vst [vmem:[#allocation11 + $0x498] sm:$0xff] %v7363
      %7620 = vst [vmem:[#allocation11 + $0x4a0] sm:$0xff] %v7364
      %7621 = vst [vmem:[#allocation11 + $0x4a8] sm:$0xff] %v7365
      %7622 = vst [vmem:[#allocation11 + $0x4b0] sm:$0xff] %v7366
      %7623 = vst [vmem:[#allocation11 + $0x4b8] sm:$0xff] %v7367
      %7624 = vst [vmem:[#allocation11 + $0x4c0] sm:$0xff] %v7368
      %7625 = vst [vmem:[#allocation11 + $0x4c8] sm:$0xff] %v7369
      %7626 = vst [vmem:[#allocation11 + $0x4d0] sm:$0xff] %v7370
      %7627 = vst [vmem:[#allocation11 + $0x4d8] sm:$0xff] %v7371
      %7628 = vst [vmem:[#allocation11 + $0x4e0] sm:$0xff] %v7372
      %7629 = vst [vmem:[#allocation11 + $0x4e8] sm:$0xff] %v7373
      %7630 = vst [vmem:[#allocation11 + $0x4f0] sm:$0xff] %v7374
      %7631 = vst [vmem:[#allocation11 + $0x4f8] sm:$0xff] %v7375
      %7632 = vst [vmem:[#allocation11 + $0x500] sm:$0xff] %v7376
      %7633 = vst [vmem:[#allocation11 + $0x508] sm:$0xff] %v7377
      %7634 = vst [vmem:[#allocation11 + $0x510] sm:$0xff] %v7378
      %7635 = vst [vmem:[#allocation11 + $0x518] sm:$0xff] %v7379
      %7636 = vst [vmem:[#allocation11 + $0x520] sm:$0xff] %v7380
      %7637 = vst [vmem:[#allocation11 + $0x528] sm:$0xff] %v7381
      %7638 = vst [vmem:[#allocation11 + $0x530] sm:$0xff] %v7382
      %7639 = vst [vmem:[#allocation11 + $0x538] sm:$0xff] %v7383
      %7640 = vst [vmem:[#allocation11 + $0x540] sm:$0xff] %v7384
      %7641 = vst [vmem:[#allocation11 + $0x548] sm:$0xff] %v7385
      %7642 = vst [vmem:[#allocation11 + $0x550] sm:$0xff] %v7386
      %7643 = vst [vmem:[#allocation11 + $0x558] sm:$0xff] %v7387
      %7644 = vst [vmem:[#allocation11 + $0x560] sm:$0xff] %v7388
      %7645 = vst [vmem:[#allocation11 + $0x568] sm:$0xff] %v7389
      %7646 = vst [vmem:[#allocation11 + $0x570] sm:$0xff] %v7390
      %7647 = vst [vmem:[#allocation11 + $0x578] sm:$0xff] %v7391
      %7648 = vst [vmem:[#allocation11 + $0x580] sm:$0xff] %v7392
      %7649 = vst [vmem:[#allocation11 + $0x588] sm:$0xff] %v7393
      %7650 = vst [vmem:[#allocation11 + $0x590] sm:$0xff] %v7394
      %7651 = vst [vmem:[#allocation11 + $0x598] sm:$0xff] %v7395
      %7652 = vst [vmem:[#allocation11 + $0x5a0] sm:$0xff] %v7396
      %7653 = vst [vmem:[#allocation11 + $0x5a8] sm:$0xff] %v7397
      %7654 = vst [vmem:[#allocation11 + $0x5b0] sm:$0xff] %v7398
      %7655 = vst [vmem:[#allocation11 + $0x5b8] sm:$0xff] %v7399
      %7656 = vst [vmem:[#allocation11 + $0x5c0] sm:$0xff] %v7400
      %7657 = vst [vmem:[#allocation11 + $0x5c8] sm:$0xff] %v7401
      %7658 = vst [vmem:[#allocation11 + $0x5d0] sm:$0xff] %v7402
      %7659 = vst [vmem:[#allocation11 + $0x5d8] sm:$0xff] %v7403
      %7660 = vst [vmem:[#allocation11 + $0x5e0] sm:$0xff] %v7404
      %7661 = vst [vmem:[#allocation11 + $0x5e8] sm:$0xff] %v7405
      %7662 = vst [vmem:[#allocation11 + $0x5f0] sm:$0xff] %v7406
      %7663 = vst [vmem:[#allocation11 + $0x5f8] sm:$0xff] %v7407
      %7664 = vst [vmem:[#allocation11 + $0x600] sm:$0xff] %v7408
      %7665 = vst [vmem:[#allocation11 + $0x608] sm:$0xff] %v7409
      %7666 = vst [vmem:[#allocation11 + $0x610] sm:$0xff] %v7410
      %7667 = vst [vmem:[#allocation11 + $0x618] sm:$0xff] %v7411
      %7668 = vst [vmem:[#allocation11 + $0x620] sm:$0xff] %v7412
      %7669 = vst [vmem:[#allocation11 + $0x628] sm:$0xff] %v7413
      %7670 = vst [vmem:[#allocation11 + $0x630] sm:$0xff] %v7414
      %7671 = vst [vmem:[#allocation11 + $0x638] sm:$0xff] %v7415
      %7672 = vst [vmem:[#allocation11 + $0x640] sm:$0xff] %v7416
      %7673 = vst [vmem:[#allocation11 + $0x648] sm:$0xff] %v7417
      %7674 = vst [vmem:[#allocation11 + $0x650] sm:$0xff] %v7418
      %7675 = vst [vmem:[#allocation11 + $0x658] sm:$0xff] %v7419
      %7676 = vst [vmem:[#allocation11 + $0x660] sm:$0xff] %v7420
      %7677 = vst [vmem:[#allocation11 + $0x668] sm:$0xff] %v7421
      %7678 = vst [vmem:[#allocation11 + $0x670] sm:$0xff] %v7422
      %7679 = vst [vmem:[#allocation11 + $0x678] sm:$0xff] %v7423
      %7680 = vst [vmem:[#allocation11 + $0x680] sm:$0xff] %v7424
      %7681 = vst [vmem:[#allocation11 + $0x688] sm:$0xff] %v7425
      %7682 = vst [vmem:[#allocation11 + $0x690] sm:$0xff] %v7426
      %7683 = vst [vmem:[#allocation11 + $0x698] sm:$0xff] %v7427
      %7684 = vst [vmem:[#allocation11 + $0x6a0] sm:$0xff] %v7428
      %7685 = vst [vmem:[#allocation11 + $0x6a8] sm:$0xff] %v7429
      %7686 = vst [vmem:[#allocation11 + $0x6b0] sm:$0xff] %v7430
      %7687 = vst [vmem:[#allocation11 + $0x6b8] sm:$0xff] %v7431
      %7688 = vst [vmem:[#allocation11 + $0x6c0] sm:$0xff] %v7432
      %7689 = vst [vmem:[#allocation11 + $0x6c8] sm:$0xff] %v7433
      %7690 = vst [vmem:[#allocation11 + $0x6d0] sm:$0xff] %v7434
      %7691 = vst [vmem:[#allocation11 + $0x6d8] sm:$0xff] %v7435
      %7692 = vst [vmem:[#allocation11 + $0x6e0] sm:$0xff] %v7436
      %7693 = vst [vmem:[#allocation11 + $0x6e8] sm:$0xff] %v7437
      %7694 = vst [vmem:[#allocation11 + $0x6f0] sm:$0xff] %v7438
      %7695 = vst [vmem:[#allocation11 + $0x6f8] sm:$0xff] %v7439
      %7696 = vst [vmem:[#allocation11 + $0x700] sm:$0xff] %v7440
      %7697 = vst [vmem:[#allocation11 + $0x708] sm:$0xff] %v7441
      %7698 = vst [vmem:[#allocation11 + $0x710] sm:$0xff] %v7442
      %7699 = vst [vmem:[#allocation11 + $0x718] sm:$0xff] %v7443
      %7700 = vst [vmem:[#allocation11 + $0x720] sm:$0xff] %v7444
      %7701 = vst [vmem:[#allocation11 + $0x728] sm:$0xff] %v7445
      %7702 = vst [vmem:[#allocation11 + $0x730] sm:$0xff] %v7446
      %7703 = vst [vmem:[#allocation11 + $0x738] sm:$0xff] %v7447
      %7704 = vst [vmem:[#allocation11 + $0x740] sm:$0xff] %v7448
      %7705 = vst [vmem:[#allocation11 + $0x748] sm:$0xff] %v7449
      %7706 = vst [vmem:[#allocation11 + $0x750] sm:$0xff] %v7450
      %7707 = vst [vmem:[#allocation11 + $0x758] sm:$0xff] %v7451
      %7708 = vst [vmem:[#allocation11 + $0x760] sm:$0xff] %v7452
      %7709 = vst [vmem:[#allocation11 + $0x768] sm:$0xff] %v7453
      %7710 = vst [vmem:[#allocation11 + $0x770] sm:$0xff] %v7454
      %7711 = vst [vmem:[#allocation11 + $0x778] sm:$0xff] %v7455
      %7712 = vst [vmem:[#allocation11 + $0x780] sm:$0xff] %v7456
      %7713 = vst [vmem:[#allocation11 + $0x788] sm:$0xff] %v7457
      %7714 = vst [vmem:[#allocation11 + $0x790] sm:$0xff] %v7458
      %7715 = vst [vmem:[#allocation11 + $0x798] sm:$0xff] %v7459
      %7716 = vst [vmem:[#allocation11 + $0x7a0] sm:$0xff] %v7460
      %7717 = vst [vmem:[#allocation11 + $0x7a8] sm:$0xff] %v7461
      %7718 = vst [vmem:[#allocation11 + $0x7b0] sm:$0xff] %v7462
      %7719 = vst [vmem:[#allocation11 + $0x7b8] sm:$0xff] %v7463
      %7720 = vst [vmem:[#allocation11 + $0x7c0] sm:$0xff] %v7464
      %7721 = vst [vmem:[#allocation11 + $0x7c8] sm:$0xff] %v7465
      %7722 = vst [vmem:[#allocation11 + $0x7d0] sm:$0xff] %v7466
      %7723 = vst [vmem:[#allocation11 + $0x7d8] sm:$0xff] %v7467
      %7724 = vst [vmem:[#allocation11 + $0x7e0] sm:$0xff] %v7468
      %7725 = vst [vmem:[#allocation11 + $0x7e8] sm:$0xff] %v7469
      %7726 = vst [vmem:[#allocation11 + $0x7f0] sm:$0xff] %v7470
      %7727 = vst [vmem:[#allocation11 + $0x7f8] sm:$0xff] %v7471
    $region37: #{attention.1} parent=1 // pred_fallthru
      _
    // Predicated region
    $region38: #{attention.1} parent=1 // pred_check
      %p7728 = pneg %p2198
    $region39: #{attention.1} parent=1 // pred_check_branch
      %7730 = sbr.rel (%p7728) target = $region41
    $region40: #{attention.1} parent=1 // pred_region
      %v7731 = vld [vmem:[#allocation3] sm:$0xff]
      %v7732 = vld [vmem:[#allocation3 + $0x8] sm:$0xff]
      %v7733 = vld [vmem:[#allocation3 + $0x10] sm:$0xff]
      %v7734 = vld [vmem:[#allocation3 + $0x18] sm:$0xff]
      %v7735 = vld [vmem:[#allocation3 + $0x20] sm:$0xff]
      %v7736 = vld [vmem:[#allocation3 + $0x28] sm:$0xff]
      %v7737 = vld [vmem:[#allocation3 + $0x30] sm:$0xff]
      %v7738 = vld [vmem:[#allocation3 + $0x38] sm:$0xff]
      %v7739 = vld [vmem:[#allocation3 + $0x40] sm:$0xff]
      %v7740 = vld [vmem:[#allocation3 + $0x48] sm:$0xff]
      %v7741 = vld [vmem:[#allocation3 + $0x50] sm:$0xff]
      %v7742 = vld [vmem:[#allocation3 + $0x58] sm:$0xff]
      %v7743 = vld [vmem:[#allocation3 + $0x60] sm:$0xff]
      %v7744 = vld [vmem:[#allocation3 + $0x68] sm:$0xff]
      %v7745 = vld [vmem:[#allocation3 + $0x70] sm:$0xff]
      %v7746 = vld [vmem:[#allocation3 + $0x78] sm:$0xff]
      %v7747 = vrcp.pop %v7731
      %v7748 = vrcp.pop %v7732
      %v7749 = vrcp.pop %v7733
      %v7750 = vrcp.pop %v7734
      %v7751 = vrcp.pop %v7735
      %v7752 = vrcp.pop %v7736
      %v7753 = vrcp.pop %v7737
      %v7754 = vrcp.pop %v7738
      %v7755 = vrcp.pop %v7739
      %v7756 = vrcp.pop %v7740
      %v7757 = vrcp.pop %v7741
      %v7758 = vrcp.pop %v7742
      %v7759 = vrcp.pop %v7743
      %v7760 = vrcp.pop %v7744
      %v7761 = vrcp.pop %v7745
      %v7762 = vrcp.pop %v7746
      %v7763 = vld [vmem:[#allocation11] sm:$0xff]
      %v7764 = vld [vmem:[#allocation11 + $0x8] sm:$0xff]
      %v7765 = vld [vmem:[#allocation11 + $0x10] sm:$0xff]
      %v7766 = vld [vmem:[#allocation11 + $0x18] sm:$0xff]
      %v7767 = vld [vmem:[#allocation11 + $0x20] sm:$0xff]
      %v7768 = vld [vmem:[#allocation11 + $0x28] sm:$0xff]
      %v7769 = vld [vmem:[#allocation11 + $0x30] sm:$0xff]
      %v7770 = vld [vmem:[#allocation11 + $0x38] sm:$0xff]
      %v7771 = vld [vmem:[#allocation11 + $0x40] sm:$0xff]
      %v7772 = vld [vmem:[#allocation11 + $0x48] sm:$0xff]
      %v7773 = vld [vmem:[#allocation11 + $0x50] sm:$0xff]
      %v7774 = vld [vmem:[#allocation11 + $0x58] sm:$0xff]
      %v7775 = vld [vmem:[#allocation11 + $0x60] sm:$0xff]
      %v7776 = vld [vmem:[#allocation11 + $0x68] sm:$0xff]
      %v7777 = vld [vmem:[#allocation11 + $0x70] sm:$0xff]
      %v7778 = vld [vmem:[#allocation11 + $0x78] sm:$0xff]
      %v7779 = vld [vmem:[#allocation11 + $0x80] sm:$0xff]
      %v7780 = vld [vmem:[#allocation11 + $0x88] sm:$0xff]
      %v7781 = vld [vmem:[#allocation11 + $0x90] sm:$0xff]
      %v7782 = vld [vmem:[#allocation11 + $0x98] sm:$0xff]
      %v7783 = vld [vmem:[#allocation11 + $0xa0] sm:$0xff]
      %v7784 = vld [vmem:[#allocation11 + $0xa8] sm:$0xff]
      %v7785 = vld [vmem:[#allocation11 + $0xb0] sm:$0xff]
      %v7786 = vld [vmem:[#allocation11 + $0xb8] sm:$0xff]
      %v7787 = vld [vmem:[#allocation11 + $0xc0] sm:$0xff]
      %v7788 = vld [vmem:[#allocation11 + $0xc8] sm:$0xff]
      %v7789 = vld [vmem:[#allocation11 + $0xd0] sm:$0xff]
      %v7790 = vld [vmem:[#allocation11 + $0xd8] sm:$0xff]
      %v7791 = vld [vmem:[#allocation11 + $0xe0] sm:$0xff]
      %v7792 = vld [vmem:[#allocation11 + $0xe8] sm:$0xff]
      %v7793 = vld [vmem:[#allocation11 + $0xf0] sm:$0xff]
      %v7794 = vld [vmem:[#allocation11 + $0xf8] sm:$0xff]
      %v7795 = vld [vmem:[#allocation11 + $0x100] sm:$0xff]
      %v7796 = vld [vmem:[#allocation11 + $0x108] sm:$0xff]
      %v7797 = vld [vmem:[#allocation11 + $0x110] sm:$0xff]
      %v7798 = vld [vmem:[#allocation11 + $0x118] sm:$0xff]
      %v7799 = vld [vmem:[#allocation11 + $0x120] sm:$0xff]
      %v7800 = vld [vmem:[#allocation11 + $0x128] sm:$0xff]
      %v7801 = vld [vmem:[#allocation11 + $0x130] sm:$0xff]
      %v7802 = vld [vmem:[#allocation11 + $0x138] sm:$0xff]
      %v7803 = vld [vmem:[#allocation11 + $0x140] sm:$0xff]
      %v7804 = vld [vmem:[#allocation11 + $0x148] sm:$0xff]
      %v7805 = vld [vmem:[#allocation11 + $0x150] sm:$0xff]
      %v7806 = vld [vmem:[#allocation11 + $0x158] sm:$0xff]
      %v7807 = vld [vmem:[#allocation11 + $0x160] sm:$0xff]
      %v7808 = vld [vmem:[#allocation11 + $0x168] sm:$0xff]
      %v7809 = vld [vmem:[#allocation11 + $0x170] sm:$0xff]
      %v7810 = vld [vmem:[#allocation11 + $0x178] sm:$0xff]
      %v7811 = vld [vmem:[#allocation11 + $0x180] sm:$0xff]
      %v7812 = vld [vmem:[#allocation11 + $0x188] sm:$0xff]
      %v7813 = vld [vmem:[#allocation11 + $0x190] sm:$0xff]
      %v7814 = vld [vmem:[#allocation11 + $0x198] sm:$0xff]
      %v7815 = vld [vmem:[#allocation11 + $0x1a0] sm:$0xff]
      %v7816 = vld [vmem:[#allocation11 + $0x1a8] sm:$0xff]
      %v7817 = vld [vmem:[#allocation11 + $0x1b0] sm:$0xff]
      %v7818 = vld [vmem:[#allocation11 + $0x1b8] sm:$0xff]
      %v7819 = vld [vmem:[#allocation11 + $0x1c0] sm:$0xff]
      %v7820 = vld [vmem:[#allocation11 + $0x1c8] sm:$0xff]
      %v7821 = vld [vmem:[#allocation11 + $0x1d0] sm:$0xff]
      %v7822 = vld [vmem:[#allocation11 + $0x1d8] sm:$0xff]
      %v7823 = vld [vmem:[#allocation11 + $0x1e0] sm:$0xff]
      %v7824 = vld [vmem:[#allocation11 + $0x1e8] sm:$0xff]
      %v7825 = vld [vmem:[#allocation11 + $0x1f0] sm:$0xff]
      %v7826 = vld [vmem:[#allocation11 + $0x1f8] sm:$0xff]
      %v7827 = vld [vmem:[#allocation11 + $0x200] sm:$0xff]
      %v7828 = vld [vmem:[#allocation11 + $0x208] sm:$0xff]
      %v7829 = vld [vmem:[#allocation11 + $0x210] sm:$0xff]
      %v7830 = vld [vmem:[#allocation11 + $0x218] sm:$0xff]
      %v7831 = vld [vmem:[#allocation11 + $0x220] sm:$0xff]
      %v7832 = vld [vmem:[#allocation11 + $0x228] sm:$0xff]
      %v7833 = vld [vmem:[#allocation11 + $0x230] sm:$0xff]
      %v7834 = vld [vmem:[#allocation11 + $0x238] sm:$0xff]
      %v7835 = vld [vmem:[#allocation11 + $0x240] sm:$0xff]
      %v7836 = vld [vmem:[#allocation11 + $0x248] sm:$0xff]
      %v7837 = vld [vmem:[#allocation11 + $0x250] sm:$0xff]
      %v7838 = vld [vmem:[#allocation11 + $0x258] sm:$0xff]
      %v7839 = vld [vmem:[#allocation11 + $0x260] sm:$0xff]
      %v7840 = vld [vmem:[#allocation11 + $0x268] sm:$0xff]
      %v7841 = vld [vmem:[#allocation11 + $0x270] sm:$0xff]
      %v7842 = vld [vmem:[#allocation11 + $0x278] sm:$0xff]
      %v7843 = vld [vmem:[#allocation11 + $0x280] sm:$0xff]
      %v7844 = vld [vmem:[#allocation11 + $0x288] sm:$0xff]
      %v7845 = vld [vmem:[#allocation11 + $0x290] sm:$0xff]
      %v7846 = vld [vmem:[#allocation11 + $0x298] sm:$0xff]
      %v7847 = vld [vmem:[#allocation11 + $0x2a0] sm:$0xff]
      %v7848 = vld [vmem:[#allocation11 + $0x2a8] sm:$0xff]
      %v7849 = vld [vmem:[#allocation11 + $0x2b0] sm:$0xff]
      %v7850 = vld [vmem:[#allocation11 + $0x2b8] sm:$0xff]
      %v7851 = vld [vmem:[#allocation11 + $0x2c0] sm:$0xff]
      %v7852 = vld [vmem:[#allocation11 + $0x2c8] sm:$0xff]
      %v7853 = vld [vmem:[#allocation11 + $0x2d0] sm:$0xff]
      %v7854 = vld [vmem:[#allocation11 + $0x2d8] sm:$0xff]
      %v7855 = vld [vmem:[#allocation11 + $0x2e0] sm:$0xff]
      %v7856 = vld [vmem:[#allocation11 + $0x2e8] sm:$0xff]
      %v7857 = vld [vmem:[#allocation11 + $0x2f0] sm:$0xff]
      %v7858 = vld [vmem:[#allocation11 + $0x2f8] sm:$0xff]
      %v7859 = vld [vmem:[#allocation11 + $0x300] sm:$0xff]
      %v7860 = vld [vmem:[#allocation11 + $0x308] sm:$0xff]
      %v7861 = vld [vmem:[#allocation11 + $0x310] sm:$0xff]
      %v7862 = vld [vmem:[#allocation11 + $0x318] sm:$0xff]
      %v7863 = vld [vmem:[#allocation11 + $0x320] sm:$0xff]
      %v7864 = vld [vmem:[#allocation11 + $0x328] sm:$0xff]
      %v7865 = vld [vmem:[#allocation11 + $0x330] sm:$0xff]
      %v7866 = vld [vmem:[#allocation11 + $0x338] sm:$0xff]
      %v7867 = vld [vmem:[#allocation11 + $0x340] sm:$0xff]
      %v7868 = vld [vmem:[#allocation11 + $0x348] sm:$0xff]
      %v7869 = vld [vmem:[#allocation11 + $0x350] sm:$0xff]
      %v7870 = vld [vmem:[#allocation11 + $0x358] sm:$0xff]
      %v7871 = vld [vmem:[#allocation11 + $0x360] sm:$0xff]
      %v7872 = vld [vmem:[#allocation11 + $0x368] sm:$0xff]
      %v7873 = vld [vmem:[#allocation11 + $0x370] sm:$0xff]
      %v7874 = vld [vmem:[#allocation11 + $0x378] sm:$0xff]
      %v7875 = vld [vmem:[#allocation11 + $0x380] sm:$0xff]
      %v7876 = vld [vmem:[#allocation11 + $0x388] sm:$0xff]
      %v7877 = vld [vmem:[#allocation11 + $0x390] sm:$0xff]
      %v7878 = vld [vmem:[#allocation11 + $0x398] sm:$0xff]
      %v7879 = vld [vmem:[#allocation11 + $0x3a0] sm:$0xff]
      %v7880 = vld [vmem:[#allocation11 + $0x3a8] sm:$0xff]
      %v7881 = vld [vmem:[#allocation11 + $0x3b0] sm:$0xff]
      %v7882 = vld [vmem:[#allocation11 + $0x3b8] sm:$0xff]
      %v7883 = vld [vmem:[#allocation11 + $0x3c0] sm:$0xff]
      %v7884 = vld [vmem:[#allocation11 + $0x3c8] sm:$0xff]
      %v7885 = vld [vmem:[#allocation11 + $0x3d0] sm:$0xff]
      %v7886 = vld [vmem:[#allocation11 + $0x3d8] sm:$0xff]
      %v7887 = vld [vmem:[#allocation11 + $0x3e0] sm:$0xff]
      %v7888 = vld [vmem:[#allocation11 + $0x3e8] sm:$0xff]
      %v7889 = vld [vmem:[#allocation11 + $0x3f0] sm:$0xff]
      %v7890 = vld [vmem:[#allocation11 + $0x3f8] sm:$0xff]
      %v7891 = vld [vmem:[#allocation11 + $0x400] sm:$0xff]
      %v7892 = vld [vmem:[#allocation11 + $0x408] sm:$0xff]
      %v7893 = vld [vmem:[#allocation11 + $0x410] sm:$0xff]
      %v7894 = vld [vmem:[#allocation11 + $0x418] sm:$0xff]
      %v7895 = vld [vmem:[#allocation11 + $0x420] sm:$0xff]
      %v7896 = vld [vmem:[#allocation11 + $0x428] sm:$0xff]
      %v7897 = vld [vmem:[#allocation11 + $0x430] sm:$0xff]
      %v7898 = vld [vmem:[#allocation11 + $0x438] sm:$0xff]
      %v7899 = vld [vmem:[#allocation11 + $0x440] sm:$0xff]
      %v7900 = vld [vmem:[#allocation11 + $0x448] sm:$0xff]
      %v7901 = vld [vmem:[#allocation11 + $0x450] sm:$0xff]
      %v7902 = vld [vmem:[#allocation11 + $0x458] sm:$0xff]
      %v7903 = vld [vmem:[#allocation11 + $0x460] sm:$0xff]
      %v7904 = vld [vmem:[#allocation11 + $0x468] sm:$0xff]
      %v7905 = vld [vmem:[#allocation11 + $0x470] sm:$0xff]
      %v7906 = vld [vmem:[#allocation11 + $0x478] sm:$0xff]
      %v7907 = vld [vmem:[#allocation11 + $0x480] sm:$0xff]
      %v7908 = vld [vmem:[#allocation11 + $0x488] sm:$0xff]
      %v7909 = vld [vmem:[#allocation11 + $0x490] sm:$0xff]
      %v7910 = vld [vmem:[#allocation11 + $0x498] sm:$0xff]
      %v7911 = vld [vmem:[#allocation11 + $0x4a0] sm:$0xff]
      %v7912 = vld [vmem:[#allocation11 + $0x4a8] sm:$0xff]
      %v7913 = vld [vmem:[#allocation11 + $0x4b0] sm:$0xff]
      %v7914 = vld [vmem:[#allocation11 + $0x4b8] sm:$0xff]
      %v7915 = vld [vmem:[#allocation11 + $0x4c0] sm:$0xff]
      %v7916 = vld [vmem:[#allocation11 + $0x4c8] sm:$0xff]
      %v7917 = vld [vmem:[#allocation11 + $0x4d0] sm:$0xff]
      %v7918 = vld [vmem:[#allocation11 + $0x4d8] sm:$0xff]
      %v7919 = vld [vmem:[#allocation11 + $0x4e0] sm:$0xff]
      %v7920 = vld [vmem:[#allocation11 + $0x4e8] sm:$0xff]
      %v7921 = vld [vmem:[#allocation11 + $0x4f0] sm:$0xff]
      %v7922 = vld [vmem:[#allocation11 + $0x4f8] sm:$0xff]
      %v7923 = vld [vmem:[#allocation11 + $0x500] sm:$0xff]
      %v7924 = vld [vmem:[#allocation11 + $0x508] sm:$0xff]
      %v7925 = vld [vmem:[#allocation11 + $0x510] sm:$0xff]
      %v7926 = vld [vmem:[#allocation11 + $0x518] sm:$0xff]
      %v7927 = vld [vmem:[#allocation11 + $0x520] sm:$0xff]
      %v7928 = vld [vmem:[#allocation11 + $0x528] sm:$0xff]
      %v7929 = vld [vmem:[#allocation11 + $0x530] sm:$0xff]
      %v7930 = vld [vmem:[#allocation11 + $0x538] sm:$0xff]
      %v7931 = vld [vmem:[#allocation11 + $0x540] sm:$0xff]
      %v7932 = vld [vmem:[#allocation11 + $0x548] sm:$0xff]
      %v7933 = vld [vmem:[#allocation11 + $0x550] sm:$0xff]
      %v7934 = vld [vmem:[#allocation11 + $0x558] sm:$0xff]
      %v7935 = vld [vmem:[#allocation11 + $0x560] sm:$0xff]
      %v7936 = vld [vmem:[#allocation11 + $0x568] sm:$0xff]
      %v7937 = vld [vmem:[#allocation11 + $0x570] sm:$0xff]
      %v7938 = vld [vmem:[#allocation11 + $0x578] sm:$0xff]
      %v7939 = vld [vmem:[#allocation11 + $0x580] sm:$0xff]
      %v7940 = vld [vmem:[#allocation11 + $0x588] sm:$0xff]
      %v7941 = vld [vmem:[#allocation11 + $0x590] sm:$0xff]
      %v7942 = vld [vmem:[#allocation11 + $0x598] sm:$0xff]
      %v7943 = vld [vmem:[#allocation11 + $0x5a0] sm:$0xff]
      %v7944 = vld [vmem:[#allocation11 + $0x5a8] sm:$0xff]
      %v7945 = vld [vmem:[#allocation11 + $0x5b0] sm:$0xff]
      %v7946 = vld [vmem:[#allocation11 + $0x5b8] sm:$0xff]
      %v7947 = vld [vmem:[#allocation11 + $0x5c0] sm:$0xff]
      %v7948 = vld [vmem:[#allocation11 + $0x5c8] sm:$0xff]
      %v7949 = vld [vmem:[#allocation11 + $0x5d0] sm:$0xff]
      %v7950 = vld [vmem:[#allocation11 + $0x5d8] sm:$0xff]
      %v7951 = vld [vmem:[#allocation11 + $0x5e0] sm:$0xff]
      %v7952 = vld [vmem:[#allocation11 + $0x5e8] sm:$0xff]
      %v7953 = vld [vmem:[#allocation11 + $0x5f0] sm:$0xff]
      %v7954 = vld [vmem:[#allocation11 + $0x5f8] sm:$0xff]
      %v7955 = vld [vmem:[#allocation11 + $0x600] sm:$0xff]
      %v7956 = vld [vmem:[#allocation11 + $0x608] sm:$0xff]
      %v7957 = vld [vmem:[#allocation11 + $0x610] sm:$0xff]
      %v7958 = vld [vmem:[#allocation11 + $0x618] sm:$0xff]
      %v7959 = vld [vmem:[#allocation11 + $0x620] sm:$0xff]
      %v7960 = vld [vmem:[#allocation11 + $0x628] sm:$0xff]
      %v7961 = vld [vmem:[#allocation11 + $0x630] sm:$0xff]
      %v7962 = vld [vmem:[#allocation11 + $0x638] sm:$0xff]
      %v7963 = vld [vmem:[#allocation11 + $0x640] sm:$0xff]
      %v7964 = vld [vmem:[#allocation11 + $0x648] sm:$0xff]
      %v7965 = vld [vmem:[#allocation11 + $0x650] sm:$0xff]
      %v7966 = vld [vmem:[#allocation11 + $0x658] sm:$0xff]
      %v7967 = vld [vmem:[#allocation11 + $0x660] sm:$0xff]
      %v7968 = vld [vmem:[#allocation11 + $0x668] sm:$0xff]
      %v7969 = vld [vmem:[#allocation11 + $0x670] sm:$0xff]
      %v7970 = vld [vmem:[#allocation11 + $0x678] sm:$0xff]
      %v7971 = vld [vmem:[#allocation11 + $0x680] sm:$0xff]
      %v7972 = vld [vmem:[#allocation11 + $0x688] sm:$0xff]
      %v7973 = vld [vmem:[#allocation11 + $0x690] sm:$0xff]
      %v7974 = vld [vmem:[#allocation11 + $0x698] sm:$0xff]
      %v7975 = vld [vmem:[#allocation11 + $0x6a0] sm:$0xff]
      %v7976 = vld [vmem:[#allocation11 + $0x6a8] sm:$0xff]
      %v7977 = vld [vmem:[#allocation11 + $0x6b0] sm:$0xff]
      %v7978 = vld [vmem:[#allocation11 + $0x6b8] sm:$0xff]
      %v7979 = vld [vmem:[#allocation11 + $0x6c0] sm:$0xff]
      %v7980 = vld [vmem:[#allocation11 + $0x6c8] sm:$0xff]
      %v7981 = vld [vmem:[#allocation11 + $0x6d0] sm:$0xff]
      %v7982 = vld [vmem:[#allocation11 + $0x6d8] sm:$0xff]
      %v7983 = vld [vmem:[#allocation11 + $0x6e0] sm:$0xff]
      %v7984 = vld [vmem:[#allocation11 + $0x6e8] sm:$0xff]
      %v7985 = vld [vmem:[#allocation11 + $0x6f0] sm:$0xff]
      %v7986 = vld [vmem:[#allocation11 + $0x6f8] sm:$0xff]
      %v7987 = vld [vmem:[#allocation11 + $0x700] sm:$0xff]
      %v7988 = vld [vmem:[#allocation11 + $0x708] sm:$0xff]
      %v7989 = vld [vmem:[#allocation11 + $0x710] sm:$0xff]
      %v7990 = vld [vmem:[#allocation11 + $0x718] sm:$0xff]
      %v7991 = vld [vmem:[#allocation11 + $0x720] sm:$0xff]
      %v7992 = vld [vmem:[#allocation11 + $0x728] sm:$0xff]
      %v7993 = vld [vmem:[#allocation11 + $0x730] sm:$0xff]
      %v7994 = vld [vmem:[#allocation11 + $0x738] sm:$0xff]
      %v7995 = vld [vmem:[#allocation11 + $0x740] sm:$0xff]
      %v7996 = vld [vmem:[#allocation11 + $0x748] sm:$0xff]
      %v7997 = vld [vmem:[#allocation11 + $0x750] sm:$0xff]
      %v7998 = vld [vmem:[#allocation11 + $0x758] sm:$0xff]
      %v7999 = vld [vmem:[#allocation11 + $0x760] sm:$0xff]
      %v8000 = vld [vmem:[#allocation11 + $0x768] sm:$0xff]
      %v8001 = vld [vmem:[#allocation11 + $0x770] sm:$0xff]
      %v8002 = vld [vmem:[#allocation11 + $0x778] sm:$0xff]
      %v8003 = vld [vmem:[#allocation11 + $0x780] sm:$0xff]
      %v8004 = vld [vmem:[#allocation11 + $0x788] sm:$0xff]
      %v8005 = vld [vmem:[#allocation11 + $0x790] sm:$0xff]
      %v8006 = vld [vmem:[#allocation11 + $0x798] sm:$0xff]
      %v8007 = vld [vmem:[#allocation11 + $0x7a0] sm:$0xff]
      %v8008 = vld [vmem:[#allocation11 + $0x7a8] sm:$0xff]
      %v8009 = vld [vmem:[#allocation11 + $0x7b0] sm:$0xff]
      %v8010 = vld [vmem:[#allocation11 + $0x7b8] sm:$0xff]
      %v8011 = vld [vmem:[#allocation11 + $0x7c0] sm:$0xff]
      %v8012 = vld [vmem:[#allocation11 + $0x7c8] sm:$0xff]
      %v8013 = vld [vmem:[#allocation11 + $0x7d0] sm:$0xff]
      %v8014 = vld [vmem:[#allocation11 + $0x7d8] sm:$0xff]
      %v8015 = vld [vmem:[#allocation11 + $0x7e0] sm:$0xff]
      %v8016 = vld [vmem:[#allocation11 + $0x7e8] sm:$0xff]
      %v8017 = vld [vmem:[#allocation11 + $0x7f0] sm:$0xff]
      %v8018 = vld [vmem:[#allocation11 + $0x7f8] sm:$0xff]
      %8020 = vset.pattern.permute.xlu0 0
      %8021 = vperm.xlu0 %8020, %v7747
      %v8022 = vpop.permute.xlu0 %8021
      %8025 = vset.pattern.permute.xlu0 0
      %8026 = vperm.xlu0 %8025, %v7748
      %v8027 = vpop.permute.xlu0 %8026
      %8030 = vset.pattern.permute.xlu0 0
      %8031 = vperm.xlu0 %8030, %v7749
      %v8032 = vpop.permute.xlu0 %8031
      %8035 = vset.pattern.permute.xlu0 0
      %8036 = vperm.xlu0 %8035, %v7750
      %v8037 = vpop.permute.xlu0 %8036
      %8040 = vset.pattern.permute.xlu0 0
      %8041 = vperm.xlu0 %8040, %v7751
      %v8042 = vpop.permute.xlu0 %8041
      %8045 = vset.pattern.permute.xlu0 0
      %8046 = vperm.xlu0 %8045, %v7752
      %v8047 = vpop.permute.xlu0 %8046
      %8050 = vset.pattern.permute.xlu0 0
      %8051 = vperm.xlu0 %8050, %v7753
      %v8052 = vpop.permute.xlu0 %8051
      %8055 = vset.pattern.permute.xlu0 0
      %8056 = vperm.xlu0 %8055, %v7754
      %v8057 = vpop.permute.xlu0 %8056
      %8060 = vset.pattern.permute.xlu0 0
      %8061 = vperm.xlu0 %8060, %v7755
      %v8062 = vpop.permute.xlu0 %8061
      %8065 = vset.pattern.permute.xlu0 0
      %8066 = vperm.xlu0 %8065, %v7756
      %v8067 = vpop.permute.xlu0 %8066
      %8070 = vset.pattern.permute.xlu0 0
      %8071 = vperm.xlu0 %8070, %v7757
      %v8072 = vpop.permute.xlu0 %8071
      %8075 = vset.pattern.permute.xlu0 0
      %8076 = vperm.xlu0 %8075, %v7758
      %v8077 = vpop.permute.xlu0 %8076
      %8080 = vset.pattern.permute.xlu0 0
      %8081 = vperm.xlu0 %8080, %v7759
      %v8082 = vpop.permute.xlu0 %8081
      %8085 = vset.pattern.permute.xlu0 0
      %8086 = vperm.xlu0 %8085, %v7760
      %v8087 = vpop.permute.xlu0 %8086
      %8090 = vset.pattern.permute.xlu0 0
      %8091 = vperm.xlu0 %8090, %v7761
      %v8092 = vpop.permute.xlu0 %8091
      %8095 = vset.pattern.permute.xlu0 0
      %8096 = vperm.xlu0 %8095, %v7762
      %v8097 = vpop.permute.xlu0 %8096
      %v8099 = vmul.f32 %v7763, %v8022
      %v8100 = vmul.f32 %v7764, %v8022
      %v8101 = vmul.f32 %v7765, %v8022
      %v8102 = vmul.f32 %v7766, %v8022
      %v8103 = vmul.f32 %v7767, %v8022
      %v8104 = vmul.f32 %v7768, %v8022
      %v8105 = vmul.f32 %v7769, %v8022
      %v8106 = vmul.f32 %v7770, %v8022
      %v8107 = vmul.f32 %v7771, %v8022
      %v8108 = vmul.f32 %v7772, %v8022
      %v8109 = vmul.f32 %v7773, %v8022
      %v8110 = vmul.f32 %v7774, %v8022
      %v8111 = vmul.f32 %v7775, %v8022
      %v8112 = vmul.f32 %v7776, %v8022
      %v8113 = vmul.f32 %v7777, %v8022
      %v8114 = vmul.f32 %v7778, %v8022
      %v8115 = vmul.f32 %v7779, %v8027
      %v8116 = vmul.f32 %v7780, %v8027
      %v8117 = vmul.f32 %v7781, %v8027
      %v8118 = vmul.f32 %v7782, %v8027
      %v8119 = vmul.f32 %v7783, %v8027
      %v8120 = vmul.f32 %v7784, %v8027
      %v8121 = vmul.f32 %v7785, %v8027
      %v8122 = vmul.f32 %v7786, %v8027
      %v8123 = vmul.f32 %v7787, %v8027
      %v8124 = vmul.f32 %v7788, %v8027
      %v8125 = vmul.f32 %v7789, %v8027
      %v8126 = vmul.f32 %v7790, %v8027
      %v8127 = vmul.f32 %v7791, %v8027
      %v8128 = vmul.f32 %v7792, %v8027
      %v8129 = vmul.f32 %v7793, %v8027
      %v8130 = vmul.f32 %v7794, %v8027
      %v8131 = vmul.f32 %v7795, %v8032
      %v8132 = vmul.f32 %v7796, %v8032
      %v8133 = vmul.f32 %v7797, %v8032
      %v8134 = vmul.f32 %v7798, %v8032
      %v8135 = vmul.f32 %v7799, %v8032
      %v8136 = vmul.f32 %v7800, %v8032
      %v8137 = vmul.f32 %v7801, %v8032
      %v8138 = vmul.f32 %v7802, %v8032
      %v8139 = vmul.f32 %v7803, %v8032
      %v8140 = vmul.f32 %v7804, %v8032
      %v8141 = vmul.f32 %v7805, %v8032
      %v8142 = vmul.f32 %v7806, %v8032
      %v8143 = vmul.f32 %v7807, %v8032
      %v8144 = vmul.f32 %v7808, %v8032
      %v8145 = vmul.f32 %v7809, %v8032
      %v8146 = vmul.f32 %v7810, %v8032
      %v8147 = vmul.f32 %v7811, %v8037
      %v8148 = vmul.f32 %v7812, %v8037
      %v8149 = vmul.f32 %v7813, %v8037
      %v8150 = vmul.f32 %v7814, %v8037
      %v8151 = vmul.f32 %v7815, %v8037
      %v8152 = vmul.f32 %v7816, %v8037
      %v8153 = vmul.f32 %v7817, %v8037
      %v8154 = vmul.f32 %v7818, %v8037
      %v8155 = vmul.f32 %v7819, %v8037
      %v8156 = vmul.f32 %v7820, %v8037
      %v8157 = vmul.f32 %v7821, %v8037
      %v8158 = vmul.f32 %v7822, %v8037
      %v8159 = vmul.f32 %v7823, %v8037
      %v8160 = vmul.f32 %v7824, %v8037
      %v8161 = vmul.f32 %v7825, %v8037
      %v8162 = vmul.f32 %v7826, %v8037
      %v8163 = vmul.f32 %v7827, %v8042
      %v8164 = vmul.f32 %v7828, %v8042
      %v8165 = vmul.f32 %v7829, %v8042
      %v8166 = vmul.f32 %v7830, %v8042
      %v8167 = vmul.f32 %v7831, %v8042
      %v8168 = vmul.f32 %v7832, %v8042
      %v8169 = vmul.f32 %v7833, %v8042
      %v8170 = vmul.f32 %v7834, %v8042
      %v8171 = vmul.f32 %v7835, %v8042
      %v8172 = vmul.f32 %v7836, %v8042
      %v8173 = vmul.f32 %v7837, %v8042
      %v8174 = vmul.f32 %v7838, %v8042
      %v8175 = vmul.f32 %v7839, %v8042
      %v8176 = vmul.f32 %v7840, %v8042
      %v8177 = vmul.f32 %v7841, %v8042
      %v8178 = vmul.f32 %v7842, %v8042
      %v8179 = vmul.f32 %v7843, %v8047
      %v8180 = vmul.f32 %v7844, %v8047
      %v8181 = vmul.f32 %v7845, %v8047
      %v8182 = vmul.f32 %v7846, %v8047
      %v8183 = vmul.f32 %v7847, %v8047
      %v8184 = vmul.f32 %v7848, %v8047
      %v8185 = vmul.f32 %v7849, %v8047
      %v8186 = vmul.f32 %v7850, %v8047
      %v8187 = vmul.f32 %v7851, %v8047
      %v8188 = vmul.f32 %v7852, %v8047
      %v8189 = vmul.f32 %v7853, %v8047
      %v8190 = vmul.f32 %v7854, %v8047
      %v8191 = vmul.f32 %v7855, %v8047
      %v8192 = vmul.f32 %v7856, %v8047
      %v8193 = vmul.f32 %v7857, %v8047
      %v8194 = vmul.f32 %v7858, %v8047
      %v8195 = vmul.f32 %v7859, %v8052
      %v8196 = vmul.f32 %v7860, %v8052
      %v8197 = vmul.f32 %v7861, %v8052
      %v8198 = vmul.f32 %v7862, %v8052
      %v8199 = vmul.f32 %v7863, %v8052
      %v8200 = vmul.f32 %v7864, %v8052
      %v8201 = vmul.f32 %v7865, %v8052
      %v8202 = vmul.f32 %v7866, %v8052
      %v8203 = vmul.f32 %v7867, %v8052
      %v8204 = vmul.f32 %v7868, %v8052
      %v8205 = vmul.f32 %v7869, %v8052
      %v8206 = vmul.f32 %v7870, %v8052
      %v8207 = vmul.f32 %v7871, %v8052
      %v8208 = vmul.f32 %v7872, %v8052
      %v8209 = vmul.f32 %v7873, %v8052
      %v8210 = vmul.f32 %v7874, %v8052
      %v8211 = vmul.f32 %v7875, %v8057
      %v8212 = vmul.f32 %v7876, %v8057
      %v8213 = vmul.f32 %v7877, %v8057
      %v8214 = vmul.f32 %v7878, %v8057
      %v8215 = vmul.f32 %v7879, %v8057
      %v8216 = vmul.f32 %v7880, %v8057
      %v8217 = vmul.f32 %v7881, %v8057
      %v8218 = vmul.f32 %v7882, %v8057
      %v8219 = vmul.f32 %v7883, %v8057
      %v8220 = vmul.f32 %v7884, %v8057
      %v8221 = vmul.f32 %v7885, %v8057
      %v8222 = vmul.f32 %v7886, %v8057
      %v8223 = vmul.f32 %v7887, %v8057
      %v8224 = vmul.f32 %v7888, %v8057
      %v8225 = vmul.f32 %v7889, %v8057
      %v8226 = vmul.f32 %v7890, %v8057
      %v8227 = vmul.f32 %v7891, %v8062
      %v8228 = vmul.f32 %v7892, %v8062
      %v8229 = vmul.f32 %v7893, %v8062
      %v8230 = vmul.f32 %v7894, %v8062
      %v8231 = vmul.f32 %v7895, %v8062
      %v8232 = vmul.f32 %v7896, %v8062
      %v8233 = vmul.f32 %v7897, %v8062
      %v8234 = vmul.f32 %v7898, %v8062
      %v8235 = vmul.f32 %v7899, %v8062
      %v8236 = vmul.f32 %v7900, %v8062
      %v8237 = vmul.f32 %v7901, %v8062
      %v8238 = vmul.f32 %v7902, %v8062
      %v8239 = vmul.f32 %v7903, %v8062
      %v8240 = vmul.f32 %v7904, %v8062
      %v8241 = vmul.f32 %v7905, %v8062
      %v8242 = vmul.f32 %v7906, %v8062
      %v8243 = vmul.f32 %v7907, %v8067
      %v8244 = vmul.f32 %v7908, %v8067
      %v8245 = vmul.f32 %v7909, %v8067
      %v8246 = vmul.f32 %v7910, %v8067
      %v8247 = vmul.f32 %v7911, %v8067
      %v8248 = vmul.f32 %v7912, %v8067
      %v8249 = vmul.f32 %v7913, %v8067
      %v8250 = vmul.f32 %v7914, %v8067
      %v8251 = vmul.f32 %v7915, %v8067
      %v8252 = vmul.f32 %v7916, %v8067
      %v8253 = vmul.f32 %v7917, %v8067
      %v8254 = vmul.f32 %v7918, %v8067
      %v8255 = vmul.f32 %v7919, %v8067
      %v8256 = vmul.f32 %v7920, %v8067
      %v8257 = vmul.f32 %v7921, %v8067
      %v8258 = vmul.f32 %v7922, %v8067
      %v8259 = vmul.f32 %v7923, %v8072
      %v8260 = vmul.f32 %v7924, %v8072
      %v8261 = vmul.f32 %v7925, %v8072
      %v8262 = vmul.f32 %v7926, %v8072
      %v8263 = vmul.f32 %v7927, %v8072
      %v8264 = vmul.f32 %v7928, %v8072
      %v8265 = vmul.f32 %v7929, %v8072
      %v8266 = vmul.f32 %v7930, %v8072
      %v8267 = vmul.f32 %v7931, %v8072
      %v8268 = vmul.f32 %v7932, %v8072
      %v8269 = vmul.f32 %v7933, %v8072
      %v8270 = vmul.f32 %v7934, %v8072
      %v8271 = vmul.f32 %v7935, %v8072
      %v8272 = vmul.f32 %v7936, %v8072
      %v8273 = vmul.f32 %v7937, %v8072
      %v8274 = vmul.f32 %v7938, %v8072
      %v8275 = vmul.f32 %v7939, %v8077
      %v8276 = vmul.f32 %v7940, %v8077
      %v8277 = vmul.f32 %v7941, %v8077
      %v8278 = vmul.f32 %v7942, %v8077
      %v8279 = vmul.f32 %v7943, %v8077
      %v8280 = vmul.f32 %v7944, %v8077
      %v8281 = vmul.f32 %v7945, %v8077
      %v8282 = vmul.f32 %v7946, %v8077
      %v8283 = vmul.f32 %v7947, %v8077
      %v8284 = vmul.f32 %v7948, %v8077
      %v8285 = vmul.f32 %v7949, %v8077
      %v8286 = vmul.f32 %v7950, %v8077
      %v8287 = vmul.f32 %v7951, %v8077
      %v8288 = vmul.f32 %v7952, %v8077
      %v8289 = vmul.f32 %v7953, %v8077
      %v8290 = vmul.f32 %v7954, %v8077
      %v8291 = vmul.f32 %v7955, %v8082
      %v8292 = vmul.f32 %v7956, %v8082
      %v8293 = vmul.f32 %v7957, %v8082
      %v8294 = vmul.f32 %v7958, %v8082
      %v8295 = vmul.f32 %v7959, %v8082
      %v8296 = vmul.f32 %v7960, %v8082
      %v8297 = vmul.f32 %v7961, %v8082
      %v8298 = vmul.f32 %v7962, %v8082
      %v8299 = vmul.f32 %v7963, %v8082
      %v8300 = vmul.f32 %v7964, %v8082
      %v8301 = vmul.f32 %v7965, %v8082
      %v8302 = vmul.f32 %v7966, %v8082
      %v8303 = vmul.f32 %v7967, %v8082
      %v8304 = vmul.f32 %v7968, %v8082
      %v8305 = vmul.f32 %v7969, %v8082
      %v8306 = vmul.f32 %v7970, %v8082
      %v8307 = vmul.f32 %v7971, %v8087
      %v8308 = vmul.f32 %v7972, %v8087
      %v8309 = vmul.f32 %v7973, %v8087
      %v8310 = vmul.f32 %v7974, %v8087
      %v8311 = vmul.f32 %v7975, %v8087
      %v8312 = vmul.f32 %v7976, %v8087
      %v8313 = vmul.f32 %v7977, %v8087
      %v8314 = vmul.f32 %v7978, %v8087
      %v8315 = vmul.f32 %v7979, %v8087
      %v8316 = vmul.f32 %v7980, %v8087
      %v8317 = vmul.f32 %v7981, %v8087
      %v8318 = vmul.f32 %v7982, %v8087
      %v8319 = vmul.f32 %v7983, %v8087
      %v8320 = vmul.f32 %v7984, %v8087
      %v8321 = vmul.f32 %v7985, %v8087
      %v8322 = vmul.f32 %v7986, %v8087
      %v8323 = vmul.f32 %v7987, %v8092
      %v8324 = vmul.f32 %v7988, %v8092
      %v8325 = vmul.f32 %v7989, %v8092
      %v8326 = vmul.f32 %v7990, %v8092
      %v8327 = vmul.f32 %v7991, %v8092
      %v8328 = vmul.f32 %v7992, %v8092
      %v8329 = vmul.f32 %v7993, %v8092
      %v8330 = vmul.f32 %v7994, %v8092
      %v8331 = vmul.f32 %v7995, %v8092
      %v8332 = vmul.f32 %v7996, %v8092
      %v8333 = vmul.f32 %v7997, %v8092
      %v8334 = vmul.f32 %v7998, %v8092
      %v8335 = vmul.f32 %v7999, %v8092
      %v8336 = vmul.f32 %v8000, %v8092
      %v8337 = vmul.f32 %v8001, %v8092
      %v8338 = vmul.f32 %v8002, %v8092
      %v8339 = vmul.f32 %v8003, %v8097
      %v8340 = vmul.f32 %v8004, %v8097
      %v8341 = vmul.f32 %v8005, %v8097
      %v8342 = vmul.f32 %v8006, %v8097
      %v8343 = vmul.f32 %v8007, %v8097
      %v8344 = vmul.f32 %v8008, %v8097
      %v8345 = vmul.f32 %v8009, %v8097
      %v8346 = vmul.f32 %v8010, %v8097
      %v8347 = vmul.f32 %v8011, %v8097
      %v8348 = vmul.f32 %v8012, %v8097
      %v8349 = vmul.f32 %v8013, %v8097
      %v8350 = vmul.f32 %v8014, %v8097
      %v8351 = vmul.f32 %v8015, %v8097
      %v8352 = vmul.f32 %v8016, %v8097
      %v8353 = vmul.f32 %v8017, %v8097
      %v8354 = vmul.f32 %v8018, %v8097
      %8355 = vst [vmem:[#allocation11] sm:$0xff] %v8099
      %8356 = vst [vmem:[#allocation11 + $0x8] sm:$0xff] %v8100
      %8357 = vst [vmem:[#allocation11 + $0x10] sm:$0xff] %v8101
      %8358 = vst [vmem:[#allocation11 + $0x18] sm:$0xff] %v8102
      %8359 = vst [vmem:[#allocation11 + $0x20] sm:$0xff] %v8103
      %8360 = vst [vmem:[#allocation11 + $0x28] sm:$0xff] %v8104
      %8361 = vst [vmem:[#allocation11 + $0x30] sm:$0xff] %v8105
      %8362 = vst [vmem:[#allocation11 + $0x38] sm:$0xff] %v8106
      %8363 = vst [vmem:[#allocation11 + $0x40] sm:$0xff] %v8107
      %8364 = vst [vmem:[#allocation11 + $0x48] sm:$0xff] %v8108
      %8365 = vst [vmem:[#allocation11 + $0x50] sm:$0xff] %v8109
      %8366 = vst [vmem:[#allocation11 + $0x58] sm:$0xff] %v8110
      %8367 = vst [vmem:[#allocation11 + $0x60] sm:$0xff] %v8111
      %8368 = vst [vmem:[#allocation11 + $0x68] sm:$0xff] %v8112
      %8369 = vst [vmem:[#allocation11 + $0x70] sm:$0xff] %v8113
      %8370 = vst [vmem:[#allocation11 + $0x78] sm:$0xff] %v8114
      %8371 = vst [vmem:[#allocation11 + $0x80] sm:$0xff] %v8115
      %8372 = vst [vmem:[#allocation11 + $0x88] sm:$0xff] %v8116
      %8373 = vst [vmem:[#allocation11 + $0x90] sm:$0xff] %v8117
      %8374 = vst [vmem:[#allocation11 + $0x98] sm:$0xff] %v8118
      %8375 = vst [vmem:[#allocation11 + $0xa0] sm:$0xff] %v8119
      %8376 = vst [vmem:[#allocation11 + $0xa8] sm:$0xff] %v8120
      %8377 = vst [vmem:[#allocation11 + $0xb0] sm:$0xff] %v8121
      %8378 = vst [vmem:[#allocation11 + $0xb8] sm:$0xff] %v8122
      %8379 = vst [vmem:[#allocation11 + $0xc0] sm:$0xff] %v8123
      %8380 = vst [vmem:[#allocation11 + $0xc8] sm:$0xff] %v8124
      %8381 = vst [vmem:[#allocation11 + $0xd0] sm:$0xff] %v8125
      %8382 = vst [vmem:[#allocation11 + $0xd8] sm:$0xff] %v8126
      %8383 = vst [vmem:[#allocation11 + $0xe0] sm:$0xff] %v8127
      %8384 = vst [vmem:[#allocation11 + $0xe8] sm:$0xff] %v8128
      %8385 = vst [vmem:[#allocation11 + $0xf0] sm:$0xff] %v8129
      %8386 = vst [vmem:[#allocation11 + $0xf8] sm:$0xff] %v8130
      %8387 = vst [vmem:[#allocation11 + $0x100] sm:$0xff] %v8131
      %8388 = vst [vmem:[#allocation11 + $0x108] sm:$0xff] %v8132
      %8389 = vst [vmem:[#allocation11 + $0x110] sm:$0xff] %v8133
      %8390 = vst [vmem:[#allocation11 + $0x118] sm:$0xff] %v8134
      %8391 = vst [vmem:[#allocation11 + $0x120] sm:$0xff] %v8135
      %8392 = vst [vmem:[#allocation11 + $0x128] sm:$0xff] %v8136
      %8393 = vst [vmem:[#allocation11 + $0x130] sm:$0xff] %v8137
      %8394 = vst [vmem:[#allocation11 + $0x138] sm:$0xff] %v8138
      %8395 = vst [vmem:[#allocation11 + $0x140] sm:$0xff] %v8139
      %8396 = vst [vmem:[#allocation11 + $0x148] sm:$0xff] %v8140
      %8397 = vst [vmem:[#allocation11 + $0x150] sm:$0xff] %v8141
      %8398 = vst [vmem:[#allocation11 + $0x158] sm:$0xff] %v8142
      %8399 = vst [vmem:[#allocation11 + $0x160] sm:$0xff] %v8143
      %8400 = vst [vmem:[#allocation11 + $0x168] sm:$0xff] %v8144
      %8401 = vst [vmem:[#allocation11 + $0x170] sm:$0xff] %v8145
      %8402 = vst [vmem:[#allocation11 + $0x178] sm:$0xff] %v8146
      %8403 = vst [vmem:[#allocation11 + $0x180] sm:$0xff] %v8147
      %8404 = vst [vmem:[#allocation11 + $0x188] sm:$0xff] %v8148
      %8405 = vst [vmem:[#allocation11 + $0x190] sm:$0xff] %v8149
      %8406 = vst [vmem:[#allocation11 + $0x198] sm:$0xff] %v8150
      %8407 = vst [vmem:[#allocation11 + $0x1a0] sm:$0xff] %v8151
      %8408 = vst [vmem:[#allocation11 + $0x1a8] sm:$0xff] %v8152
      %8409 = vst [vmem:[#allocation11 + $0x1b0] sm:$0xff] %v8153
      %8410 = vst [vmem:[#allocation11 + $0x1b8] sm:$0xff] %v8154
      %8411 = vst [vmem:[#allocation11 + $0x1c0] sm:$0xff] %v8155
      %8412 = vst [vmem:[#allocation11 + $0x1c8] sm:$0xff] %v8156
      %8413 = vst [vmem:[#allocation11 + $0x1d0] sm:$0xff] %v8157
      %8414 = vst [vmem:[#allocation11 + $0x1d8] sm:$0xff] %v8158
      %8415 = vst [vmem:[#allocation11 + $0x1e0] sm:$0xff] %v8159
      %8416 = vst [vmem:[#allocation11 + $0x1e8] sm:$0xff] %v8160
      %8417 = vst [vmem:[#allocation11 + $0x1f0] sm:$0xff] %v8161
      %8418 = vst [vmem:[#allocation11 + $0x1f8] sm:$0xff] %v8162
      %8419 = vst [vmem:[#allocation11 + $0x200] sm:$0xff] %v8163
      %8420 = vst [vmem:[#allocation11 + $0x208] sm:$0xff] %v8164
      %8421 = vst [vmem:[#allocation11 + $0x210] sm:$0xff] %v8165
      %8422 = vst [vmem:[#allocation11 + $0x218] sm:$0xff] %v8166
      %8423 = vst [vmem:[#allocation11 + $0x220] sm:$0xff] %v8167
      %8424 = vst [vmem:[#allocation11 + $0x228] sm:$0xff] %v8168
      %8425 = vst [vmem:[#allocation11 + $0x230] sm:$0xff] %v8169
      %8426 = vst [vmem:[#allocation11 + $0x238] sm:$0xff] %v8170
      %8427 = vst [vmem:[#allocation11 + $0x240] sm:$0xff] %v8171
      %8428 = vst [vmem:[#allocation11 + $0x248] sm:$0xff] %v8172
      %8429 = vst [vmem:[#allocation11 + $0x250] sm:$0xff] %v8173
      %8430 = vst [vmem:[#allocation11 + $0x258] sm:$0xff] %v8174
      %8431 = vst [vmem:[#allocation11 + $0x260] sm:$0xff] %v8175
      %8432 = vst [vmem:[#allocation11 + $0x268] sm:$0xff] %v8176
      %8433 = vst [vmem:[#allocation11 + $0x270] sm:$0xff] %v8177
      %8434 = vst [vmem:[#allocation11 + $0x278] sm:$0xff] %v8178
      %8435 = vst [vmem:[#allocation11 + $0x280] sm:$0xff] %v8179
      %8436 = vst [vmem:[#allocation11 + $0x288] sm:$0xff] %v8180
      %8437 = vst [vmem:[#allocation11 + $0x290] sm:$0xff] %v8181
      %8438 = vst [vmem:[#allocation11 + $0x298] sm:$0xff] %v8182
      %8439 = vst [vmem:[#allocation11 + $0x2a0] sm:$0xff] %v8183
      %8440 = vst [vmem:[#allocation11 + $0x2a8] sm:$0xff] %v8184
      %8441 = vst [vmem:[#allocation11 + $0x2b0] sm:$0xff] %v8185
      %8442 = vst [vmem:[#allocation11 + $0x2b8] sm:$0xff] %v8186
      %8443 = vst [vmem:[#allocation11 + $0x2c0] sm:$0xff] %v8187
      %8444 = vst [vmem:[#allocation11 + $0x2c8] sm:$0xff] %v8188
      %8445 = vst [vmem:[#allocation11 + $0x2d0] sm:$0xff] %v8189
      %8446 = vst [vmem:[#allocation11 + $0x2d8] sm:$0xff] %v8190
      %8447 = vst [vmem:[#allocation11 + $0x2e0] sm:$0xff] %v8191
      %8448 = vst [vmem:[#allocation11 + $0x2e8] sm:$0xff] %v8192
      %8449 = vst [vmem:[#allocation11 + $0x2f0] sm:$0xff] %v8193
      %8450 = vst [vmem:[#allocation11 + $0x2f8] sm:$0xff] %v8194
      %8451 = vst [vmem:[#allocation11 + $0x300] sm:$0xff] %v8195
      %8452 = vst [vmem:[#allocation11 + $0x308] sm:$0xff] %v8196
      %8453 = vst [vmem:[#allocation11 + $0x310] sm:$0xff] %v8197
      %8454 = vst [vmem:[#allocation11 + $0x318] sm:$0xff] %v8198
      %8455 = vst [vmem:[#allocation11 + $0x320] sm:$0xff] %v8199
      %8456 = vst [vmem:[#allocation11 + $0x328] sm:$0xff] %v8200
      %8457 = vst [vmem:[#allocation11 + $0x330] sm:$0xff] %v8201
      %8458 = vst [vmem:[#allocation11 + $0x338] sm:$0xff] %v8202
      %8459 = vst [vmem:[#allocation11 + $0x340] sm:$0xff] %v8203
      %8460 = vst [vmem:[#allocation11 + $0x348] sm:$0xff] %v8204
      %8461 = vst [vmem:[#allocation11 + $0x350] sm:$0xff] %v8205
      %8462 = vst [vmem:[#allocation11 + $0x358] sm:$0xff] %v8206
      %8463 = vst [vmem:[#allocation11 + $0x360] sm:$0xff] %v8207
      %8464 = vst [vmem:[#allocation11 + $0x368] sm:$0xff] %v8208
      %8465 = vst [vmem:[#allocation11 + $0x370] sm:$0xff] %v8209
      %8466 = vst [vmem:[#allocation11 + $0x378] sm:$0xff] %v8210
      %8467 = vst [vmem:[#allocation11 + $0x380] sm:$0xff] %v8211
      %8468 = vst [vmem:[#allocation11 + $0x388] sm:$0xff] %v8212
      %8469 = vst [vmem:[#allocation11 + $0x390] sm:$0xff] %v8213
      %8470 = vst [vmem:[#allocation11 + $0x398] sm:$0xff] %v8214
      %8471 = vst [vmem:[#allocation11 + $0x3a0] sm:$0xff] %v8215
      %8472 = vst [vmem:[#allocation11 + $0x3a8] sm:$0xff] %v8216
      %8473 = vst [vmem:[#allocation11 + $0x3b0] sm:$0xff] %v8217
      %8474 = vst [vmem:[#allocation11 + $0x3b8] sm:$0xff] %v8218
      %8475 = vst [vmem:[#allocation11 + $0x3c0] sm:$0xff] %v8219
      %8476 = vst [vmem:[#allocation11 + $0x3c8] sm:$0xff] %v8220
      %8477 = vst [vmem:[#allocation11 + $0x3d0] sm:$0xff] %v8221
      %8478 = vst [vmem:[#allocation11 + $0x3d8] sm:$0xff] %v8222
      %8479 = vst [vmem:[#allocation11 + $0x3e0] sm:$0xff] %v8223
      %8480 = vst [vmem:[#allocation11 + $0x3e8] sm:$0xff] %v8224
      %8481 = vst [vmem:[#allocation11 + $0x3f0] sm:$0xff] %v8225
      %8482 = vst [vmem:[#allocation11 + $0x3f8] sm:$0xff] %v8226
      %8483 = vst [vmem:[#allocation11 + $0x400] sm:$0xff] %v8227
      %8484 = vst [vmem:[#allocation11 + $0x408] sm:$0xff] %v8228
      %8485 = vst [vmem:[#allocation11 + $0x410] sm:$0xff] %v8229
      %8486 = vst [vmem:[#allocation11 + $0x418] sm:$0xff] %v8230
      %8487 = vst [vmem:[#allocation11 + $0x420] sm:$0xff] %v8231
      %8488 = vst [vmem:[#allocation11 + $0x428] sm:$0xff] %v8232
      %8489 = vst [vmem:[#allocation11 + $0x430] sm:$0xff] %v8233
      %8490 = vst [vmem:[#allocation11 + $0x438] sm:$0xff] %v8234
      %8491 = vst [vmem:[#allocation11 + $0x440] sm:$0xff] %v8235
      %8492 = vst [vmem:[#allocation11 + $0x448] sm:$0xff] %v8236
      %8493 = vst [vmem:[#allocation11 + $0x450] sm:$0xff] %v8237
      %8494 = vst [vmem:[#allocation11 + $0x458] sm:$0xff] %v8238
      %8495 = vst [vmem:[#allocation11 + $0x460] sm:$0xff] %v8239
      %8496 = vst [vmem:[#allocation11 + $0x468] sm:$0xff] %v8240
      %8497 = vst [vmem:[#allocation11 + $0x470] sm:$0xff] %v8241
      %8498 = vst [vmem:[#allocation11 + $0x478] sm:$0xff] %v8242
      %8499 = vst [vmem:[#allocation11 + $0x480] sm:$0xff] %v8243
      %8500 = vst [vmem:[#allocation11 + $0x488] sm:$0xff] %v8244
      %8501 = vst [vmem:[#allocation11 + $0x490] sm:$0xff] %v8245
      %8502 = vst [vmem:[#allocation11 + $0x498] sm:$0xff] %v8246
      %8503 = vst [vmem:[#allocation11 + $0x4a0] sm:$0xff] %v8247
      %8504 = vst [vmem:[#allocation11 + $0x4a8] sm:$0xff] %v8248
      %8505 = vst [vmem:[#allocation11 + $0x4b0] sm:$0xff] %v8249
      %8506 = vst [vmem:[#allocation11 + $0x4b8] sm:$0xff] %v8250
      %8507 = vst [vmem:[#allocation11 + $0x4c0] sm:$0xff] %v8251
      %8508 = vst [vmem:[#allocation11 + $0x4c8] sm:$0xff] %v8252
      %8509 = vst [vmem:[#allocation11 + $0x4d0] sm:$0xff] %v8253
      %8510 = vst [vmem:[#allocation11 + $0x4d8] sm:$0xff] %v8254
      %8511 = vst [vmem:[#allocation11 + $0x4e0] sm:$0xff] %v8255
      %8512 = vst [vmem:[#allocation11 + $0x4e8] sm:$0xff] %v8256
      %8513 = vst [vmem:[#allocation11 + $0x4f0] sm:$0xff] %v8257
      %8514 = vst [vmem:[#allocation11 + $0x4f8] sm:$0xff] %v8258
      %8515 = vst [vmem:[#allocation11 + $0x500] sm:$0xff] %v8259
      %8516 = vst [vmem:[#allocation11 + $0x508] sm:$0xff] %v8260
      %8517 = vst [vmem:[#allocation11 + $0x510] sm:$0xff] %v8261
      %8518 = vst [vmem:[#allocation11 + $0x518] sm:$0xff] %v8262
      %8519 = vst [vmem:[#allocation11 + $0x520] sm:$0xff] %v8263
      %8520 = vst [vmem:[#allocation11 + $0x528] sm:$0xff] %v8264
      %8521 = vst [vmem:[#allocation11 + $0x530] sm:$0xff] %v8265
      %8522 = vst [vmem:[#allocation11 + $0x538] sm:$0xff] %v8266
      %8523 = vst [vmem:[#allocation11 + $0x540] sm:$0xff] %v8267
      %8524 = vst [vmem:[#allocation11 + $0x548] sm:$0xff] %v8268
      %8525 = vst [vmem:[#allocation11 + $0x550] sm:$0xff] %v8269
      %8526 = vst [vmem:[#allocation11 + $0x558] sm:$0xff] %v8270
      %8527 = vst [vmem:[#allocation11 + $0x560] sm:$0xff] %v8271
      %8528 = vst [vmem:[#allocation11 + $0x568] sm:$0xff] %v8272
      %8529 = vst [vmem:[#allocation11 + $0x570] sm:$0xff] %v8273
      %8530 = vst [vmem:[#allocation11 + $0x578] sm:$0xff] %v8274
      %8531 = vst [vmem:[#allocation11 + $0x580] sm:$0xff] %v8275
      %8532 = vst [vmem:[#allocation11 + $0x588] sm:$0xff] %v8276
      %8533 = vst [vmem:[#allocation11 + $0x590] sm:$0xff] %v8277
      %8534 = vst [vmem:[#allocation11 + $0x598] sm:$0xff] %v8278
      %8535 = vst [vmem:[#allocation11 + $0x5a0] sm:$0xff] %v8279
      %8536 = vst [vmem:[#allocation11 + $0x5a8] sm:$0xff] %v8280
      %8537 = vst [vmem:[#allocation11 + $0x5b0] sm:$0xff] %v8281
      %8538 = vst [vmem:[#allocation11 + $0x5b8] sm:$0xff] %v8282
      %8539 = vst [vmem:[#allocation11 + $0x5c0] sm:$0xff] %v8283
      %8540 = vst [vmem:[#allocation11 + $0x5c8] sm:$0xff] %v8284
      %8541 = vst [vmem:[#allocation11 + $0x5d0] sm:$0xff] %v8285
      %8542 = vst [vmem:[#allocation11 + $0x5d8] sm:$0xff] %v8286
      %8543 = vst [vmem:[#allocation11 + $0x5e0] sm:$0xff] %v8287
      %8544 = vst [vmem:[#allocation11 + $0x5e8] sm:$0xff] %v8288
      %8545 = vst [vmem:[#allocation11 + $0x5f0] sm:$0xff] %v8289
      %8546 = vst [vmem:[#allocation11 + $0x5f8] sm:$0xff] %v8290
      %8547 = vst [vmem:[#allocation11 + $0x600] sm:$0xff] %v8291
      %8548 = vst [vmem:[#allocation11 + $0x608] sm:$0xff] %v8292
      %8549 = vst [vmem:[#allocation11 + $0x610] sm:$0xff] %v8293
      %8550 = vst [vmem:[#allocation11 + $0x618] sm:$0xff] %v8294
      %8551 = vst [vmem:[#allocation11 + $0x620] sm:$0xff] %v8295
      %8552 = vst [vmem:[#allocation11 + $0x628] sm:$0xff] %v8296
      %8553 = vst [vmem:[#allocation11 + $0x630] sm:$0xff] %v8297
      %8554 = vst [vmem:[#allocation11 + $0x638] sm:$0xff] %v8298
      %8555 = vst [vmem:[#allocation11 + $0x640] sm:$0xff] %v8299
      %8556 = vst [vmem:[#allocation11 + $0x648] sm:$0xff] %v8300
      %8557 = vst [vmem:[#allocation11 + $0x650] sm:$0xff] %v8301
      %8558 = vst [vmem:[#allocation11 + $0x658] sm:$0xff] %v8302
      %8559 = vst [vmem:[#allocation11 + $0x660] sm:$0xff] %v8303
      %8560 = vst [vmem:[#allocation11 + $0x668] sm:$0xff] %v8304
      %8561 = vst [vmem:[#allocation11 + $0x670] sm:$0xff] %v8305
      %8562 = vst [vmem:[#allocation11 + $0x678] sm:$0xff] %v8306
      %8563 = vst [vmem:[#allocation11 + $0x680] sm:$0xff] %v8307
      %8564 = vst [vmem:[#allocation11 + $0x688] sm:$0xff] %v8308
      %8565 = vst [vmem:[#allocation11 + $0x690] sm:$0xff] %v8309
      %8566 = vst [vmem:[#allocation11 + $0x698] sm:$0xff] %v8310
      %8567 = vst [vmem:[#allocation11 + $0x6a0] sm:$0xff] %v8311
      %8568 = vst [vmem:[#allocation11 + $0x6a8] sm:$0xff] %v8312
      %8569 = vst [vmem:[#allocation11 + $0x6b0] sm:$0xff] %v8313
      %8570 = vst [vmem:[#allocation11 + $0x6b8] sm:$0xff] %v8314
      %8571 = vst [vmem:[#allocation11 + $0x6c0] sm:$0xff] %v8315
      %8572 = vst [vmem:[#allocation11 + $0x6c8] sm:$0xff] %v8316
      %8573 = vst [vmem:[#allocation11 + $0x6d0] sm:$0xff] %v8317
      %8574 = vst [vmem:[#allocation11 + $0x6d8] sm:$0xff] %v8318
      %8575 = vst [vmem:[#allocation11 + $0x6e0] sm:$0xff] %v8319
      %8576 = vst [vmem:[#allocation11 + $0x6e8] sm:$0xff] %v8320
      %8577 = vst [vmem:[#allocation11 + $0x6f0] sm:$0xff] %v8321
      %8578 = vst [vmem:[#allocation11 + $0x6f8] sm:$0xff] %v8322
      %8579 = vst [vmem:[#allocation11 + $0x700] sm:$0xff] %v8323
      %8580 = vst [vmem:[#allocation11 + $0x708] sm:$0xff] %v8324
      %8581 = vst [vmem:[#allocation11 + $0x710] sm:$0xff] %v8325
      %8582 = vst [vmem:[#allocation11 + $0x718] sm:$0xff] %v8326
      %8583 = vst [vmem:[#allocation11 + $0x720] sm:$0xff] %v8327
      %8584 = vst [vmem:[#allocation11 + $0x728] sm:$0xff] %v8328
      %8585 = vst [vmem:[#allocation11 + $0x730] sm:$0xff] %v8329
      %8586 = vst [vmem:[#allocation11 + $0x738] sm:$0xff] %v8330
      %8587 = vst [vmem:[#allocation11 + $0x740] sm:$0xff] %v8331
      %8588 = vst [vmem:[#allocation11 + $0x748] sm:$0xff] %v8332
      %8589 = vst [vmem:[#allocation11 + $0x750] sm:$0xff] %v8333
      %8590 = vst [vmem:[#allocation11 + $0x758] sm:$0xff] %v8334
      %8591 = vst [vmem:[#allocation11 + $0x760] sm:$0xff] %v8335
      %8592 = vst [vmem:[#allocation11 + $0x768] sm:$0xff] %v8336
      %8593 = vst [vmem:[#allocation11 + $0x770] sm:$0xff] %v8337
      %8594 = vst [vmem:[#allocation11 + $0x778] sm:$0xff] %v8338
      %8595 = vst [vmem:[#allocation11 + $0x780] sm:$0xff] %v8339
      %8596 = vst [vmem:[#allocation11 + $0x788] sm:$0xff] %v8340
      %8597 = vst [vmem:[#allocation11 + $0x790] sm:$0xff] %v8341
      %8598 = vst [vmem:[#allocation11 + $0x798] sm:$0xff] %v8342
      %8599 = vst [vmem:[#allocation11 + $0x7a0] sm:$0xff] %v8343
      %8600 = vst [vmem:[#allocation11 + $0x7a8] sm:$0xff] %v8344
      %8601 = vst [vmem:[#allocation11 + $0x7b0] sm:$0xff] %v8345
      %8602 = vst [vmem:[#allocation11 + $0x7b8] sm:$0xff] %v8346
      %8603 = vst [vmem:[#allocation11 + $0x7c0] sm:$0xff] %v8347
      %8604 = vst [vmem:[#allocation11 + $0x7c8] sm:$0xff] %v8348
      %8605 = vst [vmem:[#allocation11 + $0x7d0] sm:$0xff] %v8349
      %8606 = vst [vmem:[#allocation11 + $0x7d8] sm:$0xff] %v8350
      %8607 = vst [vmem:[#allocation11 + $0x7e0] sm:$0xff] %v8351
      %8608 = vst [vmem:[#allocation11 + $0x7e8] sm:$0xff] %v8352
      %8609 = vst [vmem:[#allocation11 + $0x7f0] sm:$0xff] %v8353
      %8610 = vst [vmem:[#allocation11 + $0x7f8] sm:$0xff] %v8354
    $region41: #{attention.1} parent=1 // pred_fallthru
      _
    // Predicated region
    $region42: #{attention.1} parent=1 // pred_check
      _
    $region43: #{attention.1} parent=1 // pred_check_branch
      %8612 = sbr.rel (0) target = $region45
    $region44: #{attention.1} parent=1 // pred_region
      %s8614 = ssub.s32 32768, 32768
      %8615 = vsyncadd [#allocation7], %s8614
      %s8616 = sshll.u32 [#allocation11], 4
      %s8617 = int_to_ptr.vmem [resolvable:$true] %s8616
      %8622 = dma.vmem_to_hbm [thread:$0]  %s8617, 32768, %s4, [#allocation7], 2048, 2048, 128
    $region45: #{attention.1} parent=1 // pred_fallthru
      _
    // Predicated region
    $region46: #{attention.1} parent=1 // pred_check
      _
    $region47: #{attention.1} parent=1 // pred_check_branch
      %8624 = sbr.rel (0) target = $region49
    $region48: #{attention.1} parent=1 // pred_region
      %8625 = dma.done [#allocation7], 32768
    $region49: #{attention.1} parent=1 // pred_fallthru
      _
    %8626 = vsyncpa [#allocation6], 1
    %8627 = vsyncpa [#allocation9], 1
    %8628 = vsyncpa [#allocation7], 1

</llo_original>
